<compile_context>
chip_gen: v7x
topology: tpu7x:2x2x1
jax: 0.10.0
libtpu: 0.0.40
codegen_flags: <defaults>
</compile_context>

<pallas_src>
import functools
import math

import jax
import jax.numpy as jnp
from jax.experimental import pallas as pl
from jax.experimental.pallas import tpu as pltpu

EPS = 1e-6  # annotated-transformer LayerNorm eps (added to the unbiased std)

_WEIGHT_KEYS = (
    "wqkv_s", "bqkv_s", "wo_s", "bo_s",              # self-attn (fused QKV)
    "wq_a", "bq_a", "wkv_a", "bkv_a", "wo_a", "bo_a",  # src-attn audio (fused KV)
    "wq_t", "bq_t", "wkv_t", "bkv_t", "wo_t", "bo_t",  # src-attn text (fused KV)
    "w1", "b1", "w2", "b2",                          # FFN
    "ln_g", "ln_b",                                  # per-layer LN params [N,4,D]
    "fin_g", "fin_b",                                # final LayerNorm [1,D]
)


# ----------------------------- in-kernel helpers -----------------------------

def _layer_norm(x, g, b):
    """Annotated-transformer LayerNorm over last dim: unbiased std, eps added to std, exact divide."""
    d = x.shape[-1]
    mean = jnp.mean(x, axis=-1, keepdims=True)
    var = jnp.sum((x - mean) ** 2, axis=-1, keepdims=True) * (1.0 / (d - 1))
    return g * (x - mean) / (jnp.sqrt(var) + EPS) + b


# ----------------------------- fused whole-decoder kernel -----------------------------

def _decoder_kernel(x_ref, ma_ref, mt_ref, tgtm_ref, am_ref, txm_ref,
                    wqkv_s, bqkv_s, wo_s, bo_s,
                    wq_a, bq_a, wkv_a, bkv_a, wo_a, bo_a,
                    wq_t, bq_t, wkv_t, bkv_t, wo_t, bo_t,
                    w1, b1, w2, b2, ln_g, ln_b, fin_g, fin_b,
                    o_ref, ic_ref, ctx_ref,
                    *, n_head, n_layers, capture_idx):
    x = x_ref[0]                                     # (T, D) f32, stays in VMEM all layers
    T, D = x.shape
    dk = D // n_head

    mem_a = ma_ref[0].astype(jnp.bfloat16)           # (Sa, D)
    mem_t = mt_ref[0].astype(jnp.bfloat16)           # (St, D)
    Sa = mem_a.shape[0]
    St = mem_t.shape[0]

    # Additive attention biases (0 where mask==1, -1e9 where mask==0), computed once per batch
    # element and reused by every layer and every head (hoisted broadcast).
    bias_tgt = jnp.broadcast_to((tgtm_ref[0].astype(jnp.float32) - 1.0) * 1e9, (T, T))
    bias_aud = jnp.broadcast_to((am_ref[0].astype(jnp.float32) - 1.0) * 1e9, (T, Sa))
    bias_txt = jnp.broadcast_to((txm_ref[0].astype(jnp.float32) - 1.0) * 1e9, (T, St))

    def attention(q, k, v, bias):
        """q:(T,D) (already scaled), k,v:(Tk,D). Per-head ctx written into ctx_ref lane slices."""
        qb = q.astype(jnp.bfloat16)
        kb = k.astype(jnp.bfloat16)
        vb = v.astype(jnp.bfloat16)
        for h in range(n_head):                      # static unroll over heads
            sl = slice(h * dk, (h + 1) * dk)
            s = jax.lax.dot_general(qb[:, sl], kb[:, sl],
                                    (((1,), (1,)), ((), ())),
                                    preferred_element_type=jnp.float32)
            s = s + bias                             # masked_fill(mask==0, -1e9) equivalent
            s = s - jnp.max(s, axis=-1, keepdims=True)
            p = jnp.exp(s)
            p = p * pl.reciprocal(jnp.sum(p, axis=-1, keepdims=True), approx=True)
            ctx_ref[:, sl] = jnp.dot(p.astype(jnp.bfloat16), vb[:, sl],
                                     preferred_element_type=jnp.float32)
        return ctx_ref[...].astype(jnp.bfloat16)

    for n in range(n_layers):                        # static unroll over decoder layers
        lg = ln_g[n]                                 # (4, D)
        lb = ln_b[n]

        # --- self attention: x + Wo(MHA(LN(x), LN(x), LN(x), tgt_mask)), fused QKV projection.
        y = _layer_norm(x, lg[0:1], lb[0:1]).astype(jnp.bfloat16)
        qkv = jnp.dot(y, wqkv_s[n], preferred_element_type=jnp.float32) + bqkv_s[n]   # (T, 3D)
        ctx = attention(qkv[:, :D], qkv[:, D:2 * D], qkv[:, 2 * D:], bias_tgt)
        x = x + jnp.dot(ctx, wo_s[n], preferred_element_type=jnp.float32) + bo_s[n]

        # --- src attention (audio memory), fused KV projection.
        y = _layer_norm(x, lg[1:2], lb[1:2]).astype(jnp.bfloat16)
        q = jnp.dot(y, wq_a[n], preferred_element_type=jnp.float32) + bq_a[n]
        kv = jnp.dot(mem_a, wkv_a[n], preferred_element_type=jnp.float32) + bkv_a[n]  # (Sa, 2D)
        ctx = attention(q, kv[:, :D], kv[:, D:], bias_aud)
        x = x + jnp.dot(ctx, wo_a[n], preferred_element_type=jnp.float32) + bo_a[n]

        # --- src attention (text memory), fused KV projection.
        y = _layer_norm(x, lg[2:3], lb[2:3]).astype(jnp.bfloat16)
        q = jnp.dot(y, wq_t[n], preferred_element_type=jnp.float32) + bq_t[n]
        kv = jnp.dot(mem_t, wkv_t[n], preferred_element_type=jnp.float32) + bkv_t[n]  # (St, 2D)
        ctx = attention(q, kv[:, :D], kv[:, D:], bias_txt)
        x = x + jnp.dot(ctx, wo_t[n], preferred_element_type=jnp.float32) + bo_t[n]

        # --- position-wise FFN: x + W2(ReLU(W1(LN(x)))).
        y = _layer_norm(x, lg[3:4], lb[3:4]).astype(jnp.bfloat16)
        h1 = jnp.maximum(jnp.dot(y, w1[n], preferred_element_type=jnp.float32) + b1[n], 0.0)
        x = x + jnp.dot(h1.astype(jnp.bfloat16), w2[n],
                        preferred_element_type=jnp.float32) + b2[n]

        if n == capture_idx:                         # intermediate CE output (interce_*)
            ic_ref[0] = x

    o_ref[0] = _layer_norm(x, fin_g[...], fin_b[...])


# ----------------------------- wrapper -----------------------------

def _const_spec(arr):
    """Whole-array block, constant index map (loaded once, reused across grid steps)."""
    zeros = (0,) * arr.ndim
    return pl.BlockSpec(arr.shape, lambda b, z=zeros: z)


def _mask_spec(mask):
    """Mask at natural shape [Bm, Mq, Tk]; Bm may be 1 (shared) or B (per-batch)."""
    blk = (1,) + mask.shape[1:]
    if mask.shape[0] == 1:
        return pl.BlockSpec(blk, lambda b: (0, 0, 0))
    return pl.BlockSpec(blk, lambda b: (b, 0, 0))


def mix3_att_decoder(params, x, memory_audio, memory_text,
                     src_mask_audio, src_mask_text, tgt_mask, n_head,
                     interce_alpha=0, interce_layer=4):
    B, T, D = x.shape
    Sa = memory_audio.shape[1]
    St = memory_text.shape[1]
    n_layers = params["ln_g"].shape[0]

    if interce_alpha > 0:
        assert 1 <= interce_layer <= n_layers, "interce_layer out of range"
        capture_idx = interce_layer - 1
    else:
        capture_idx = n_layers - 1                  # still written (cheap), never returned

    kernel = functools.partial(_decoder_kernel, n_head=n_head,
                               n_layers=n_layers, capture_idx=capture_idx)

    in_specs = (
        pl.BlockSpec((1, T, D), lambda b: (b, 0, 0)),   # x
        pl.BlockSpec((1, Sa, D), lambda b: (b, 0, 0)),  # memory_audio
        pl.BlockSpec((1, St, D), lambda b: (b, 0, 0)),  # memory_text
        _mask_spec(tgt_mask),
        _mask_spec(src_mask_audio),
        _mask_spec(src_mask_text),
    ) + tuple(_const_spec(params[k]) for k in _WEIGHT_KEYS)

    out, interce = pl.pallas_call(
        kernel,
        grid=(B,),
        in_specs=list(in_specs),
        out_specs=(pl.BlockSpec((1, T, D), lambda b: (b, 0, 0)),
                   pl.BlockSpec((1, T, D), lambda b: (b, 0, 0))),
        out_shape=(jax.ShapeDtypeStruct((B, T, D), jnp.float32),
                   jax.ShapeDtypeStruct((B, T, D), jnp.float32)),
        scratch_shapes=[pltpu.VMEM((T, D), jnp.float32)],   # per-head ctx assembly buffer
        # At these sizes all weights (~70 KB bf16) + activations fit the default scoped VMEM on
        # v5e/v6e/v7x; raise vmem_limit_bytes here if scaled to realistic D / Dff / seq lengths.
        compiler_params=pltpu.CompilerParams(dimension_semantics=("parallel",)),
    )(x, memory_audio, memory_text, tgt_mask, src_mask_audio, src_mask_text,
      *(params[k] for k in _WEIGHT_KEYS))

    if interce_alpha > 0:
        return out, interce
    return out


# ----------------------------- deterministic parameter init -----------------------------

def init_params(key, d, d_ff, n_layers, n_head):
    """Stacked-per-layer params. 1/sqrt(dk) is pre-baked into every Q projection (weight+bias),
    matching (x Wq + bq) / sqrt(dk) in the reference attention. Weights bf16, biases/LN f32."""
    dk = d // n_head
    scale = 1.0 / math.sqrt(dk)

    def lin(k, din, dout, s=0.05):
        kw, kb = jax.random.split(k)
        return (jax.random.normal(kw, (din, dout), jnp.float32) * s,
                jax.random.normal(kb, (dout,), jnp.float32) * s)

    acc = {k: [] for k in _WEIGHT_KEYS if not k.startswith("fin_")}
    for lk in jax.random.split(key, n_layers):
        ks = jax.random.split(lk, 14)
        # self-attn q,k,v,o -> fused QKV
        wq, bq = lin(ks[0], d, d); wk, bk = lin(ks[1], d, d)
        wv, bv = lin(ks[2], d, d); wo, bo = lin(ks[3], d, d)
        acc["wqkv_s"].append(jnp.concatenate([wq * scale, wk, wv], axis=1))
        acc["bqkv_s"].append(jnp.concatenate([bq * scale, bk, bv])[None, :])
        acc["wo_s"].append(wo); acc["bo_s"].append(bo[None, :])
        # src-attn audio
        wq, bq = lin(ks[4], d, d); wk, bk = lin(ks[5], d, d)
        wv, bv = lin(ks[6], d, d); wo, bo = lin(ks[7], d, d)
        acc["wq_a"].append(wq * scale); acc["bq_a"].append((bq * scale)[None, :])
        acc["wkv_a"].append(jnp.concatenate([wk, wv], axis=1))
        acc["bkv_a"].append(jnp.concatenate([bk, bv])[None, :])
        acc["wo_a"].append(wo); acc["bo_a"].append(bo[None, :])
        # src-attn text
        wq, bq = lin(ks[8], d, d); wk, bk = lin(ks[9], d, d)
        wv, bv = lin(ks[10], d, d); wo, bo = lin(ks[11], d, d)
        acc["wq_t"].append(wq * scale); acc["bq_t"].append((bq * scale)[None, :])
        acc["wkv_t"].append(jnp.concatenate([wk, wv], axis=1))
        acc["bkv_t"].append(jnp.concatenate([bk, bv])[None, :])
        acc["wo_t"].append(wo); acc["bo_t"].append(bo[None, :])
        # FFN
        w1, b1 = lin(ks[12], d, d_ff); w2, b2 = lin(ks[13], d_ff, d)
        acc["w1"].append(w1); acc["b1"].append(b1[None, :])
        acc["w2"].append(w2); acc["b2"].append(b2[None, :])
        # the 4 SublayerConnection LayerNorms (gamma=1, beta=0, PyTorch default init)
        acc["ln_g"].append(jnp.ones((4, d), jnp.float32))
        acc["ln_b"].append(jnp.zeros((4, d), jnp.float32))

    params = {}
    for name, lst in acc.items():
        arr = jnp.stack(lst, axis=0)
        if name.startswith("w"):
            arr = arr.astype(jnp.bfloat16)           # MXU operands stored bf16
        params[name] = arr
    params["fin_g"] = jnp.ones((1, d), jnp.float32)
    params["fin_b"] = jnp.zeros((1, d), jnp.float32)
    return params


# ----------------------------- main -----------------------------

if __name__ == "__main__":
    B, T, Sa, St = 2, 8, 16, 12
    D, H, Dff, N = 32, 4, 64, 2

    key = jax.random.PRNGKey(0)
    kx, ka, kt, kp = jax.random.split(key, 4)
    x = jax.random.normal(kx, (B, T, D), jnp.float32)
    memory_audio = jax.random.normal(ka, (B, Sa, D), jnp.float32)
    memory_text = jax.random.normal(kt, (B, St, D), jnp.float32)

    # src padding masks [B,1,S]; causal tgt mask shared by all batches -> [1,T,T]; 0/1 floats.
    src_mask_audio = jnp.ones((B, 1, Sa), jnp.float32).at[1, 0, Sa - 3:].set(0.0)
    src_mask_text = jnp.ones((B, 1, St), jnp.float32).at[1, 0, St - 2:].set(0.0)
    tgt_mask = jnp.tril(jnp.ones((T, T), jnp.float32))[None]

    params = init_params(kp, D, Dff, N, H)

    decoder = jax.jit(functools.partial(mix3_att_decoder, n_head=H))
    out = decoder(params, x, memory_audio, memory_text,
                  src_mask_audio, src_mask_text, tgt_mask)
    out = jax.block_until_ready(out)
    assert out.shape == (B, T, D) and out.dtype == jnp.float32
    assert bool(jnp.all(jnp.isfinite(out)))
    print("KERNEL_OK")
</pallas_src>

<mosaic_0001>
module attributes {stable_mosaic.version = 11 : i64} {
  func.func @_decoder_kernel(%arg0: i32, %arg1: memref<1x8x32xf32, #tpu.memory_space<vmem>>, %arg2: memref<1x16x32xf32, #tpu.memory_space<vmem>>, %arg3: memref<1x12x32xf32, #tpu.memory_space<vmem>>, %arg4: memref<1x8x8xf32, #tpu.memory_space<vmem>>, %arg5: memref<1x1x16xf32, #tpu.memory_space<vmem>>, %arg6: memref<1x1x12xf32, #tpu.memory_space<vmem>>, %arg7: memref<2x32x96xbf16, #tpu.memory_space<vmem>>, %arg8: memref<2x1x96xf32, #tpu.memory_space<vmem>>, %arg9: memref<2x32x32xbf16, #tpu.memory_space<vmem>>, %arg10: memref<2x1x32xf32, #tpu.memory_space<vmem>>, %arg11: memref<2x32x32xbf16, #tpu.memory_space<vmem>>, %arg12: memref<2x1x32xf32, #tpu.memory_space<vmem>>, %arg13: memref<2x32x64xbf16, #tpu.memory_space<vmem>>, %arg14: memref<2x1x64xf32, #tpu.memory_space<vmem>>, %arg15: memref<2x32x32xbf16, #tpu.memory_space<vmem>>, %arg16: memref<2x1x32xf32, #tpu.memory_space<vmem>>, %arg17: memref<2x32x32xbf16, #tpu.memory_space<vmem>>, %arg18: memref<2x1x32xf32, #tpu.memory_space<vmem>>, %arg19: memref<2x32x64xbf16, #tpu.memory_space<vmem>>, %arg20: memref<2x1x64xf32, #tpu.memory_space<vmem>>, %arg21: memref<2x32x32xbf16, #tpu.memory_space<vmem>>, %arg22: memref<2x1x32xf32, #tpu.memory_space<vmem>>, %arg23: memref<2x32x64xbf16, #tpu.memory_space<vmem>>, %arg24: memref<2x1x64xf32, #tpu.memory_space<vmem>>, %arg25: memref<2x64x32xbf16, #tpu.memory_space<vmem>>, %arg26: memref<2x1x32xf32, #tpu.memory_space<vmem>>, %arg27: memref<2x4x32xf32, #tpu.memory_space<vmem>>, %arg28: memref<2x4x32xf32, #tpu.memory_space<vmem>>, %arg29: memref<1x32xf32, #tpu.memory_space<vmem>>, %arg30: memref<1x32xf32, #tpu.memory_space<vmem>>, %arg31: memref<1x8x32xf32, #tpu.memory_space<vmem>>, %arg32: memref<1x8x32xf32, #tpu.memory_space<vmem>>, %arg33: memref<8x32xf32, #tpu.memory_space<vmem>>) attributes {dimension_semantics = [#tpu.dimension_semantics<parallel>], iteration_bounds = array<i64: 2>, scalar_prefetch = 0 : i64, scratch_operands = 1 : i64, tpu.core_type = #tpu.core_type<tc>, window_params = [{transform_indices = @transform_0, window_bounds = array<i64: 1, 8, 32>}, {transform_indices = @transform_1, window_bounds = array<i64: 1, 16, 32>}, {transform_indices = @transform_2, window_bounds = array<i64: 1, 12, 32>}, {pipeline_mode = #tpu.pipeline_mode<synchronous>, transform_indices = @transform_3, window_bounds = array<i64: 1, 8, 8>}, {transform_indices = @transform_4, window_bounds = array<i64: 1, 1, 16>}, {transform_indices = @transform_5, window_bounds = array<i64: 1, 1, 12>}, {pipeline_mode = #tpu.pipeline_mode<synchronous>, transform_indices = @transform_6, window_bounds = array<i64: 2, 32, 96>}, {pipeline_mode = #tpu.pipeline_mode<synchronous>, transform_indices = @transform_7, window_bounds = array<i64: 2, 1, 96>}, {pipeline_mode = #tpu.pipeline_mode<synchronous>, transform_indices = @transform_8, window_bounds = array<i64: 2, 32, 32>}, {pipeline_mode = #tpu.pipeline_mode<synchronous>, transform_indices = @transform_9, window_bounds = array<i64: 2, 1, 32>}, {pipeline_mode = #tpu.pipeline_mode<synchronous>, transform_indices = @transform_10, window_bounds = array<i64: 2, 32, 32>}, {pipeline_mode = #tpu.pipeline_mode<synchronous>, transform_indices = @transform_11, window_bounds = array<i64: 2, 1, 32>}, {pipeline_mode = #tpu.pipeline_mode<synchronous>, transform_indices = @transform_12, window_bounds = array<i64: 2, 32, 64>}, {pipeline_mode = #tpu.pipeline_mode<synchronous>, transform_indices = @transform_13, window_bounds = array<i64: 2, 1, 64>}, {pipeline_mode = #tpu.pipeline_mode<synchronous>, transform_indices = @transform_14, window_bounds = array<i64: 2, 32, 32>}, {pipeline_mode = #tpu.pipeline_mode<synchronous>, transform_indices = @transform_15, window_bounds = array<i64: 2, 1, 32>}, {pipeline_mode = #tpu.pipeline_mode<synchronous>, transform_indices = @transform_16, window_bounds = array<i64: 2, 32, 32>}, {pipeline_mode = #tpu.pipeline_mode<synchronous>, transform_indices = @transform_17, window_bounds = array<i64: 2, 1, 32>}, {pipeline_mode = #tpu.pipeline_mode<synchronous>, transform_indices = @transform_18, window_bounds = array<i64: 2, 32, 64>}, {pipeline_mode = #tpu.pipeline_mode<synchronous>, transform_indices = @transform_19, window_bounds = array<i64: 2, 1, 64>}, {pipeline_mode = #tpu.pipeline_mode<synchronous>, transform_indices = @transform_20, window_bounds = array<i64: 2, 32, 32>}, {pipeline_mode = #tpu.pipeline_mode<synchronous>, transform_indices = @transform_21, window_bounds = array<i64: 2, 1, 32>}, {pipeline_mode = #tpu.pipeline_mode<synchronous>, transform_indices = @transform_22, window_bounds = array<i64: 2, 32, 64>}, {pipeline_mode = #tpu.pipeline_mode<synchronous>, transform_indices = @transform_23, window_bounds = array<i64: 2, 1, 64>}, {pipeline_mode = #tpu.pipeline_mode<synchronous>, transform_indices = @transform_24, window_bounds = array<i64: 2, 64, 32>}, {pipeline_mode = #tpu.pipeline_mode<synchronous>, transform_indices = @transform_25, window_bounds = array<i64: 2, 1, 32>}, {pipeline_mode = #tpu.pipeline_mode<synchronous>, transform_indices = @transform_26, window_bounds = array<i64: 2, 4, 32>}, {pipeline_mode = #tpu.pipeline_mode<synchronous>, transform_indices = @transform_27, window_bounds = array<i64: 2, 4, 32>}, {pipeline_mode = #tpu.pipeline_mode<synchronous>, transform_indices = @transform_28, window_bounds = array<i64: 1, 32>}, {pipeline_mode = #tpu.pipeline_mode<synchronous>, transform_indices = @transform_29, window_bounds = array<i64: 1, 32>}, {transform_indices = @transform_30, window_bounds = array<i64: 1, 8, 32>}, {transform_indices = @transform_31, window_bounds = array<i64: 1, 8, 32>}]} {
    %c0 = arith.constant 0 : index
    %c0_0 = arith.constant 0 : index
    %c0_1 = arith.constant 0 : index
    %0 = vector.load %arg1[%c0, %c0_0, %c0_1] : memref<1x8x32xf32, #tpu.memory_space<vmem>>, vector<1x8x32xf32>
    %1 = vector.shape_cast %0 : vector<1x8x32xf32> to vector<8x32xf32>
    %c0_2 = arith.constant 0 : index
    %c0_3 = arith.constant 0 : index
    %c0_4 = arith.constant 0 : index
    %2 = vector.load %arg2[%c0_2, %c0_3, %c0_4] : memref<1x16x32xf32, #tpu.memory_space<vmem>>, vector<1x16x32xf32>
    %3 = vector.shape_cast %2 : vector<1x16x32xf32> to vector<16x32xf32>
    %4 = arith.truncf %3 : vector<16x32xf32> to vector<16x32xbf16>
    %c0_5 = arith.constant 0 : index
    %c0_6 = arith.constant 0 : index
    %c0_7 = arith.constant 0 : index
    %5 = vector.load %arg3[%c0_5, %c0_6, %c0_7] : memref<1x12x32xf32, #tpu.memory_space<vmem>>, vector<1x12x32xf32>
    %6 = vector.shape_cast %5 : vector<1x12x32xf32> to vector<12x32xf32>
    %7 = arith.truncf %6 : vector<12x32xf32> to vector<12x32xbf16>
    %c0_8 = arith.constant 0 : index
    %c0_9 = arith.constant 0 : index
    %c0_10 = arith.constant 0 : index
    %8 = vector.load %arg4[%c0_8, %c0_9, %c0_10] : memref<1x8x8xf32, #tpu.memory_space<vmem>>, vector<1x8x8xf32>
    %9 = vector.shape_cast %8 : vector<1x8x8xf32> to vector<8x8xf32>
    %cst = arith.constant 1.000000e+00 : f32
    %10 = vector.broadcast %cst : f32 to vector<8x8xf32>
    %11 = arith.subf %9, %10 : vector<8x8xf32>
    %cst_11 = arith.constant 1.000000e+09 : f32
    %12 = vector.broadcast %cst_11 : f32 to vector<8x8xf32>
    %13 = arith.mulf %11, %12 : vector<8x8xf32>
    %c0_12 = arith.constant 0 : index
    %c0_13 = arith.constant 0 : index
    %c0_14 = arith.constant 0 : index
    %14 = vector.load %arg5[%c0_12, %c0_13, %c0_14] : memref<1x1x16xf32, #tpu.memory_space<vmem>>, vector<1x1x16xf32>
    %15 = vector.shape_cast %14 : vector<1x1x16xf32> to vector<1x16xf32>
    %cst_15 = arith.constant 1.000000e+00 : f32
    %16 = vector.broadcast %cst_15 : f32 to vector<1x16xf32>
    %17 = arith.subf %15, %16 : vector<1x16xf32>
    %cst_16 = arith.constant 1.000000e+09 : f32
    %18 = vector.broadcast %cst_16 : f32 to vector<1x16xf32>
    %19 = arith.mulf %17, %18 : vector<1x16xf32>
    %20 = vector.shape_cast %19 : vector<1x16xf32> to vector<1x16xf32>
    %21 = vector.broadcast %20 : vector<1x16xf32> to vector<8x16xf32>
    %c0_17 = arith.constant 0 : index
    %c0_18 = arith.constant 0 : index
    %c0_19 = arith.constant 0 : index
    %22 = vector.load %arg6[%c0_17, %c0_18, %c0_19] : memref<1x1x12xf32, #tpu.memory_space<vmem>>, vector<1x1x12xf32>
    %23 = vector.shape_cast %22 : vector<1x1x12xf32> to vector<1x12xf32>
    %cst_20 = arith.constant 1.000000e+00 : f32
    %24 = vector.broadcast %cst_20 : f32 to vector<1x12xf32>
    %25 = arith.subf %23, %24 : vector<1x12xf32>
    %cst_21 = arith.constant 1.000000e+09 : f32
    %26 = vector.broadcast %cst_21 : f32 to vector<1x12xf32>
    %27 = arith.mulf %25, %26 : vector<1x12xf32>
    %28 = vector.shape_cast %27 : vector<1x12xf32> to vector<1x12xf32>
    %29 = vector.broadcast %28 : vector<1x12xf32> to vector<8x12xf32>
    %c0_22 = arith.constant 0 : index
    %c0_23 = arith.constant 0 : index
    %c0_24 = arith.constant 0 : index
    %30 = vector.load %arg27[%c0_22, %c0_23, %c0_24] : memref<2x4x32xf32, #tpu.memory_space<vmem>>, vector<1x4x32xf32>
    %31 = vector.shape_cast %30 : vector<1x4x32xf32> to vector<4x32xf32>
    %c0_25 = arith.constant 0 : index
    %c0_26 = arith.constant 0 : index
    %c0_27 = arith.constant 0 : index
    %32 = vector.load %arg28[%c0_25, %c0_26, %c0_27] : memref<2x4x32xf32, #tpu.memory_space<vmem>>, vector<1x4x32xf32>
    %33 = vector.shape_cast %32 : vector<1x4x32xf32> to vector<4x32xf32>
    %34 = vector.extract_strided_slice %31 {offsets = [0, 0], sizes = [1, 32], strides = [1, 1]} : vector<4x32xf32> to vector<1x32xf32>
    %35 = vector.extract_strided_slice %33 {offsets = [0, 0], sizes = [1, 32], strides = [1, 1]} : vector<4x32xf32> to vector<1x32xf32>
    %cst_28 = arith.constant dense<0.000000e+00> : vector<8xf32>
    %36 = vector.multi_reduction <add>, %1, %cst_28 [1] : vector<8x32xf32> to vector<8xf32>
    %37 = vector.shape_cast %36 : vector<8xf32> to vector<8x1xf32>
    %cst_29 = arith.constant 3.200000e+01 : f32
    %38 = vector.broadcast %cst_29 : f32 to vector<8x1xf32>
    %39 = arith.divf %37, %38 : vector<8x1xf32>
    %40 = vector.broadcast %39 : vector<8x1xf32> to vector<8x32xf32>
    %41 = arith.subf %1, %40 : vector<8x32xf32>
    %42 = arith.mulf %41, %41 : vector<8x32xf32>
    %cst_30 = arith.constant dense<0.000000e+00> : vector<8xf32>
    %43 = vector.multi_reduction <add>, %42, %cst_30 [1] : vector<8x32xf32> to vector<8xf32>
    %44 = vector.shape_cast %43 : vector<8xf32> to vector<8x1xf32>
    %cst_31 = arith.constant 0.0322580636 : f32
    %45 = vector.broadcast %cst_31 : f32 to vector<8x1xf32>
    %46 = arith.mulf %44, %45 : vector<8x1xf32>
    %47 = vector.broadcast %39 : vector<8x1xf32> to vector<8x32xf32>
    %48 = arith.subf %1, %47 : vector<8x32xf32>
    %49 = vector.broadcast %34 : vector<1x32xf32> to vector<8x32xf32>
    %50 = arith.mulf %49, %48 : vector<8x32xf32>
    %51 = math.sqrt %46 : vector<8x1xf32>
    %cst_32 = arith.constant 9.99999997E-7 : f32
    %52 = vector.broadcast %cst_32 : f32 to vector<8x1xf32>
    %53 = arith.addf %51, %52 : vector<8x1xf32>
    %54 = vector.broadcast %53 : vector<8x1xf32> to vector<8x32xf32>
    %55 = arith.divf %50, %54 : vector<8x32xf32>
    %56 = vector.broadcast %35 : vector<1x32xf32> to vector<8x32xf32>
    %57 = arith.addf %55, %56 : vector<8x32xf32>
    %58 = arith.truncf %57 : vector<8x32xf32> to vector<8x32xbf16>
    %c0_33 = arith.constant 0 : index
    %c0_34 = arith.constant 0 : index
    %c0_35 = arith.constant 0 : index
    %59 = vector.load %arg7[%c0_33, %c0_34, %c0_35] : memref<2x32x96xbf16, #tpu.memory_space<vmem>>, vector<1x32x96xbf16>
    %60 = vector.shape_cast %59 : vector<1x32x96xbf16> to vector<32x96xbf16>
    %cst_36 = arith.constant dense<0.000000e+00> : vector<8x96xf32>
    %61 = tpu.matmul %58, %60, %cst_36 {dimension_numbers = #tpu.dot_dimension_numbers<[1], [0], [0], [1], [0, 0, 1, 1], [], []>} : vector<8x32xbf16>, vector<32x96xbf16>, vector<8x96xf32> -> vector<8x96xf32>
    %c0_37 = arith.constant 0 : index
    %c0_38 = arith.constant 0 : index
    %c0_39 = arith.constant 0 : index
    %62 = vector.load %arg8[%c0_37, %c0_38, %c0_39] : memref<2x1x96xf32, #tpu.memory_space<vmem>>, vector<1x1x96xf32>
    %63 = vector.shape_cast %62 : vector<1x1x96xf32> to vector<1x96xf32>
    %64 = vector.broadcast %63 : vector<1x96xf32> to vector<8x96xf32>
    %65 = arith.addf %61, %64 : vector<8x96xf32>
    %66 = vector.extract_strided_slice %65 {offsets = [0, 0], sizes = [8, 32], strides = [1, 1]} : vector<8x96xf32> to vector<8x32xf32>
    %67 = vector.extract_strided_slice %65 {offsets = [0, 32], sizes = [8, 32], strides = [1, 1]} : vector<8x96xf32> to vector<8x32xf32>
    %68 = vector.extract_strided_slice %65 {offsets = [0, 64], sizes = [8, 32], strides = [1, 1]} : vector<8x96xf32> to vector<8x32xf32>
    %69 = arith.truncf %66 : vector<8x32xf32> to vector<8x32xbf16>
    %70 = arith.truncf %67 : vector<8x32xf32> to vector<8x32xbf16>
    %71 = arith.truncf %68 : vector<8x32xf32> to vector<8x32xbf16>
    %72 = vector.extract_strided_slice %69 {offsets = [0, 0], sizes = [8, 8], strides = [1, 1]} : vector<8x32xbf16> to vector<8x8xbf16>
    %73 = vector.extract_strided_slice %70 {offsets = [0, 0], sizes = [8, 8], strides = [1, 1]} : vector<8x32xbf16> to vector<8x8xbf16>
    %cst_40 = arith.constant dense<0.000000e+00> : vector<8x8xf32>
    %74 = tpu.matmul %72, %73, %cst_40 {dimension_numbers = #tpu.dot_dimension_numbers<[1], [1], [0], [0], [0, 0, 1, 0], [], []>} : vector<8x8xbf16>, vector<8x8xbf16>, vector<8x8xf32> -> vector<8x8xf32>
    %75 = arith.addf %74, %13 : vector<8x8xf32>
    %cst_41 = arith.constant dense<0xFF800000> : vector<8xf32>
    %76 = vector.multi_reduction <maximumf>, %75, %cst_41 [1] : vector<8x8xf32> to vector<8xf32>
    %77 = vector.shape_cast %76 : vector<8xf32> to vector<8x1xf32>
    %78 = vector.broadcast %77 : vector<8x1xf32> to vector<8x8xf32>
    %79 = arith.subf %75, %78 : vector<8x8xf32>
    %80 = math.exp %79 : vector<8x8xf32>
    %cst_42 = arith.constant dense<0.000000e+00> : vector<8xf32>
    %81 = vector.multi_reduction <add>, %80, %cst_42 [1] : vector<8x8xf32> to vector<8xf32>
    %82 = vector.shape_cast %81 : vector<8xf32> to vector<8x1xf32>
    %83 = tpu.reciprocal %82 {approx = true} : vector<8x1xf32> -> vector<8x1xf32>
    %84 = vector.broadcast %83 : vector<8x1xf32> to vector<8x8xf32>
    %85 = arith.mulf %80, %84 : vector<8x8xf32>
    %86 = arith.truncf %85 : vector<8x8xf32> to vector<8x8xbf16>
    %87 = vector.extract_strided_slice %71 {offsets = [0, 0], sizes = [8, 8], strides = [1, 1]} : vector<8x32xbf16> to vector<8x8xbf16>
    %cst_43 = arith.constant dense<0.000000e+00> : vector<8x8xf32>
    %88 = tpu.matmul %86, %87, %cst_43 {dimension_numbers = #tpu.dot_dimension_numbers<[1], [0], [0], [1], [0, 0, 1, 1], [], []>} : vector<8x8xbf16>, vector<8x8xbf16>, vector<8x8xf32> -> vector<8x8xf32>
    %c0_44 = arith.constant 0 : index
    %c0_45 = arith.constant 0 : index
    %89 = vector.load %arg33[%c0_44, %c0_45] : memref<8x32xf32, #tpu.memory_space<vmem>>, vector<8x8xf32>
    tpu.vector_store %arg33[%c0_44, %c0_45], %88 {strides = array<i32>} : memref<8x32xf32, #tpu.memory_space<vmem>>, vector<8x8xf32>,
    %90 = vector.extract_strided_slice %69 {offsets = [0, 8], sizes = [8, 8], strides = [1, 1]} : vector<8x32xbf16> to vector<8x8xbf16>
    %91 = vector.extract_strided_slice %70 {offsets = [0, 8], sizes = [8, 8], strides = [1, 1]} : vector<8x32xbf16> to vector<8x8xbf16>
    %cst_46 = arith.constant dense<0.000000e+00> : vector<8x8xf32>
    %92 = tpu.matmul %90, %91, %cst_46 {dimension_numbers = #tpu.dot_dimension_numbers<[1], [1], [0], [0], [0, 0, 1, 0], [], []>} : vector<8x8xbf16>, vector<8x8xbf16>, vector<8x8xf32> -> vector<8x8xf32>
    %93 = arith.addf %92, %13 : vector<8x8xf32>
    %cst_47 = arith.constant dense<0xFF800000> : vector<8xf32>
    %94 = vector.multi_reduction <maximumf>, %93, %cst_47 [1] : vector<8x8xf32> to vector<8xf32>
    %95 = vector.shape_cast %94 : vector<8xf32> to vector<8x1xf32>
    %96 = vector.broadcast %95 : vector<8x1xf32> to vector<8x8xf32>
    %97 = arith.subf %93, %96 : vector<8x8xf32>
    %98 = math.exp %97 : vector<8x8xf32>
    %cst_48 = arith.constant dense<0.000000e+00> : vector<8xf32>
    %99 = vector.multi_reduction <add>, %98, %cst_48 [1] : vector<8x8xf32> to vector<8xf32>
    %100 = vector.shape_cast %99 : vector<8xf32> to vector<8x1xf32>
    %101 = tpu.reciprocal %100 {approx = true} : vector<8x1xf32> -> vector<8x1xf32>
    %102 = vector.broadcast %101 : vector<8x1xf32> to vector<8x8xf32>
    %103 = arith.mulf %98, %102 : vector<8x8xf32>
    %104 = arith.truncf %103 : vector<8x8xf32> to vector<8x8xbf16>
    %105 = vector.extract_strided_slice %71 {offsets = [0, 8], sizes = [8, 8], strides = [1, 1]} : vector<8x32xbf16> to vector<8x8xbf16>
    %cst_49 = arith.constant dense<0.000000e+00> : vector<8x8xf32>
    %106 = tpu.matmul %104, %105, %cst_49 {dimension_numbers = #tpu.dot_dimension_numbers<[1], [0], [0], [1], [0, 0, 1, 1], [], []>} : vector<8x8xbf16>, vector<8x8xbf16>, vector<8x8xf32> -> vector<8x8xf32>
    %c0_50 = arith.constant 0 : index
    %c8 = arith.constant 8 : index
    %107 = vector.load %arg33[%c0_50, %c8] : memref<8x32xf32, #tpu.memory_space<vmem>>, vector<8x8xf32>
    tpu.vector_store %arg33[%c0_50, %c8], %106 {strides = array<i32>} : memref<8x32xf32, #tpu.memory_space<vmem>>, vector<8x8xf32>,
    %108 = vector.extract_strided_slice %69 {offsets = [0, 16], sizes = [8, 8], strides = [1, 1]} : vector<8x32xbf16> to vector<8x8xbf16>
    %109 = vector.extract_strided_slice %70 {offsets = [0, 16], sizes = [8, 8], strides = [1, 1]} : vector<8x32xbf16> to vector<8x8xbf16>
    %cst_51 = arith.constant dense<0.000000e+00> : vector<8x8xf32>
    %110 = tpu.matmul %108, %109, %cst_51 {dimension_numbers = #tpu.dot_dimension_numbers<[1], [1], [0], [0], [0, 0, 1, 0], [], []>} : vector<8x8xbf16>, vector<8x8xbf16>, vector<8x8xf32> -> vector<8x8xf32>
    %111 = arith.addf %110, %13 : vector<8x8xf32>
    %cst_52 = arith.constant dense<0xFF800000> : vector<8xf32>
    %112 = vector.multi_reduction <maximumf>, %111, %cst_52 [1] : vector<8x8xf32> to vector<8xf32>
    %113 = vector.shape_cast %112 : vector<8xf32> to vector<8x1xf32>
    %114 = vector.broadcast %113 : vector<8x1xf32> to vector<8x8xf32>
    %115 = arith.subf %111, %114 : vector<8x8xf32>
    %116 = math.exp %115 : vector<8x8xf32>
    %cst_53 = arith.constant dense<0.000000e+00> : vector<8xf32>
    %117 = vector.multi_reduction <add>, %116, %cst_53 [1] : vector<8x8xf32> to vector<8xf32>
    %118 = vector.shape_cast %117 : vector<8xf32> to vector<8x1xf32>
    %119 = tpu.reciprocal %118 {approx = true} : vector<8x1xf32> -> vector<8x1xf32>
    %120 = vector.broadcast %119 : vector<8x1xf32> to vector<8x8xf32>
    %121 = arith.mulf %116, %120 : vector<8x8xf32>
    %122 = arith.truncf %121 : vector<8x8xf32> to vector<8x8xbf16>
    %123 = vector.extract_strided_slice %71 {offsets = [0, 16], sizes = [8, 8], strides = [1, 1]} : vector<8x32xbf16> to vector<8x8xbf16>
    %cst_54 = arith.constant dense<0.000000e+00> : vector<8x8xf32>
    %124 = tpu.matmul %122, %123, %cst_54 {dimension_numbers = #tpu.dot_dimension_numbers<[1], [0], [0], [1], [0, 0, 1, 1], [], []>} : vector<8x8xbf16>, vector<8x8xbf16>, vector<8x8xf32> -> vector<8x8xf32>
    %c0_55 = arith.constant 0 : index
    %c16 = arith.constant 16 : index
    %125 = vector.load %arg33[%c0_55, %c16] : memref<8x32xf32, #tpu.memory_space<vmem>>, vector<8x8xf32>
    tpu.vector_store %arg33[%c0_55, %c16], %124 {strides = array<i32>} : memref<8x32xf32, #tpu.memory_space<vmem>>, vector<8x8xf32>,
    %126 = vector.extract_strided_slice %69 {offsets = [0, 24], sizes = [8, 8], strides = [1, 1]} : vector<8x32xbf16> to vector<8x8xbf16>
    %127 = vector.extract_strided_slice %70 {offsets = [0, 24], sizes = [8, 8], strides = [1, 1]} : vector<8x32xbf16> to vector<8x8xbf16>
    %cst_56 = arith.constant dense<0.000000e+00> : vector<8x8xf32>
    %128 = tpu.matmul %126, %127, %cst_56 {dimension_numbers = #tpu.dot_dimension_numbers<[1], [1], [0], [0], [0, 0, 1, 0], [], []>} : vector<8x8xbf16>, vector<8x8xbf16>, vector<8x8xf32> -> vector<8x8xf32>
    %129 = arith.addf %128, %13 : vector<8x8xf32>
    %cst_57 = arith.constant dense<0xFF800000> : vector<8xf32>
    %130 = vector.multi_reduction <maximumf>, %129, %cst_57 [1] : vector<8x8xf32> to vector<8xf32>
    %131 = vector.shape_cast %130 : vector<8xf32> to vector<8x1xf32>
    %132 = vector.broadcast %131 : vector<8x1xf32> to vector<8x8xf32>
    %133 = arith.subf %129, %132 : vector<8x8xf32>
    %134 = math.exp %133 : vector<8x8xf32>
    %cst_58 = arith.constant dense<0.000000e+00> : vector<8xf32>
    %135 = vector.multi_reduction <add>, %134, %cst_58 [1] : vector<8x8xf32> to vector<8xf32>
    %136 = vector.shape_cast %135 : vector<8xf32> to vector<8x1xf32>
    %137 = tpu.reciprocal %136 {approx = true} : vector<8x1xf32> -> vector<8x1xf32>
    %138 = vector.broadcast %137 : vector<8x1xf32> to vector<8x8xf32>
    %139 = arith.mulf %134, %138 : vector<8x8xf32>
    %140 = arith.truncf %139 : vector<8x8xf32> to vector<8x8xbf16>
    %141 = vector.extract_strided_slice %71 {offsets = [0, 24], sizes = [8, 8], strides = [1, 1]} : vector<8x32xbf16> to vector<8x8xbf16>
    %cst_59 = arith.constant dense<0.000000e+00> : vector<8x8xf32>
    %142 = tpu.matmul %140, %141, %cst_59 {dimension_numbers = #tpu.dot_dimension_numbers<[1], [0], [0], [1], [0, 0, 1, 1], [], []>} : vector<8x8xbf16>, vector<8x8xbf16>, vector<8x8xf32> -> vector<8x8xf32>
    %c0_60 = arith.constant 0 : index
    %c24 = arith.constant 24 : index
    %143 = vector.load %arg33[%c0_60, %c24] : memref<8x32xf32, #tpu.memory_space<vmem>>, vector<8x8xf32>
    tpu.vector_store %arg33[%c0_60, %c24], %142 {strides = array<i32>} : memref<8x32xf32, #tpu.memory_space<vmem>>, vector<8x8xf32>,
    %c0_61 = arith.constant 0 : index
    %c0_62 = arith.constant 0 : index
    %144 = vector.load %arg33[%c0_61, %c0_62] : memref<8x32xf32, #tpu.memory_space<vmem>>, vector<8x32xf32>
    %145 = arith.truncf %144 : vector<8x32xf32> to vector<8x32xbf16>
    %c0_63 = arith.constant 0 : index
    %c0_64 = arith.constant 0 : index
    %c0_65 = arith.constant 0 : index
    %146 = vector.load %arg9[%c0_63, %c0_64, %c0_65] : memref<2x32x32xbf16, #tpu.memory_space<vmem>>, vector<1x32x32xbf16>
    %147 = vector.shape_cast %146 : vector<1x32x32xbf16> to vector<32x32xbf16>
    %cst_66 = arith.constant dense<0.000000e+00> : vector<8x32xf32>
    %148 = tpu.matmul %145, %147, %cst_66 {dimension_numbers = #tpu.dot_dimension_numbers<[1], [0], [0], [1], [0, 0, 1, 1], [], []>} : vector<8x32xbf16>, vector<32x32xbf16>, vector<8x32xf32> -> vector<8x32xf32>
    %149 = arith.addf %1, %148 : vector<8x32xf32>
    %c0_67 = arith.constant 0 : index
    %c0_68 = arith.constant 0 : index
    %c0_69 = arith.constant 0 : index
    %150 = vector.load %arg10[%c0_67, %c0_68, %c0_69] : memref<2x1x32xf32, #tpu.memory_space<vmem>>, vector<1x1x32xf32>
    %151 = vector.shape_cast %150 : vector<1x1x32xf32> to vector<1x32xf32>
    %152 = vector.broadcast %151 : vector<1x32xf32> to vector<8x32xf32>
    %153 = arith.addf %149, %152 : vector<8x32xf32>
    %154 = vector.extract_strided_slice %31 {offsets = [1, 0], sizes = [1, 32], strides = [1, 1]} : vector<4x32xf32> to vector<1x32xf32>
    %155 = vector.extract_strided_slice %33 {offsets = [1, 0], sizes = [1, 32], strides = [1, 1]} : vector<4x32xf32> to vector<1x32xf32>
    %cst_70 = arith.constant dense<0.000000e+00> : vector<8xf32>
    %156 = vector.multi_reduction <add>, %153, %cst_70 [1] : vector<8x32xf32> to vector<8xf32>
    %157 = vector.shape_cast %156 : vector<8xf32> to vector<8x1xf32>
    %cst_71 = arith.constant 3.200000e+01 : f32
    %158 = vector.broadcast %cst_71 : f32 to vector<8x1xf32>
    %159 = arith.divf %157, %158 : vector<8x1xf32>
    %160 = vector.broadcast %159 : vector<8x1xf32> to vector<8x32xf32>
    %161 = arith.subf %153, %160 : vector<8x32xf32>
    %162 = arith.mulf %161, %161 : vector<8x32xf32>
    %cst_72 = arith.constant dense<0.000000e+00> : vector<8xf32>
    %163 = vector.multi_reduction <add>, %162, %cst_72 [1] : vector<8x32xf32> to vector<8xf32>
    %164 = vector.shape_cast %163 : vector<8xf32> to vector<8x1xf32>
    %cst_73 = arith.constant 0.0322580636 : f32
    %165 = vector.broadcast %cst_73 : f32 to vector<8x1xf32>
    %166 = arith.mulf %164, %165 : vector<8x1xf32>
    %167 = vector.broadcast %159 : vector<8x1xf32> to vector<8x32xf32>
    %168 = arith.subf %153, %167 : vector<8x32xf32>
    %169 = vector.broadcast %154 : vector<1x32xf32> to vector<8x32xf32>
    %170 = arith.mulf %169, %168 : vector<8x32xf32>
    %171 = math.sqrt %166 : vector<8x1xf32>
    %cst_74 = arith.constant 9.99999997E-7 : f32
    %172 = vector.broadcast %cst_74 : f32 to vector<8x1xf32>
    %173 = arith.addf %171, %172 : vector<8x1xf32>
    %174 = vector.broadcast %173 : vector<8x1xf32> to vector<8x32xf32>
    %175 = arith.divf %170, %174 : vector<8x32xf32>
    %176 = vector.broadcast %155 : vector<1x32xf32> to vector<8x32xf32>
    %177 = arith.addf %175, %176 : vector<8x32xf32>
    %178 = arith.truncf %177 : vector<8x32xf32> to vector<8x32xbf16>
    %c0_75 = arith.constant 0 : index
    %c0_76 = arith.constant 0 : index
    %c0_77 = arith.constant 0 : index
    %179 = vector.load %arg11[%c0_75, %c0_76, %c0_77] : memref<2x32x32xbf16, #tpu.memory_space<vmem>>, vector<1x32x32xbf16>
    %180 = vector.shape_cast %179 : vector<1x32x32xbf16> to vector<32x32xbf16>
    %cst_78 = arith.constant dense<0.000000e+00> : vector<8x32xf32>
    %181 = tpu.matmul %178, %180, %cst_78 {dimension_numbers = #tpu.dot_dimension_numbers<[1], [0], [0], [1], [0, 0, 1, 1], [], []>} : vector<8x32xbf16>, vector<32x32xbf16>, vector<8x32xf32> -> vector<8x32xf32>
    %c0_79 = arith.constant 0 : index
    %c0_80 = arith.constant 0 : index
    %c0_81 = arith.constant 0 : index
    %182 = vector.load %arg12[%c0_79, %c0_80, %c0_81] : memref<2x1x32xf32, #tpu.memory_space<vmem>>, vector<1x1x32xf32>
    %183 = vector.shape_cast %182 : vector<1x1x32xf32> to vector<1x32xf32>
    %184 = vector.broadcast %183 : vector<1x32xf32> to vector<8x32xf32>
    %185 = arith.addf %181, %184 : vector<8x32xf32>
    %c0_82 = arith.constant 0 : index
    %c0_83 = arith.constant 0 : index
    %c0_84 = arith.constant 0 : index
    %186 = vector.load %arg13[%c0_82, %c0_83, %c0_84] : memref<2x32x64xbf16, #tpu.memory_space<vmem>>, vector<1x32x64xbf16>
    %187 = vector.shape_cast %186 : vector<1x32x64xbf16> to vector<32x64xbf16>
    %cst_85 = arith.constant dense<0.000000e+00> : vector<16x64xf32>
    %188 = tpu.matmul %4, %187, %cst_85 {dimension_numbers = #tpu.dot_dimension_numbers<[1], [0], [0], [1], [0, 0, 1, 1], [], []>} : vector<16x32xbf16>, vector<32x64xbf16>, vector<16x64xf32> -> vector<16x64xf32>
    %c0_86 = arith.constant 0 : index
    %c0_87 = arith.constant 0 : index
    %c0_88 = arith.constant 0 : index
    %189 = vector.load %arg14[%c0_86, %c0_87, %c0_88] : memref<2x1x64xf32, #tpu.memory_space<vmem>>, vector<1x1x64xf32>
    %190 = vector.shape_cast %189 : vector<1x1x64xf32> to vector<1x64xf32>
    %191 = vector.broadcast %190 : vector<1x64xf32> to vector<16x64xf32>
    %192 = arith.addf %188, %191 : vector<16x64xf32>
    %193 = vector.extract_strided_slice %192 {offsets = [0, 0], sizes = [16, 32], strides = [1, 1]} : vector<16x64xf32> to vector<16x32xf32>
    %194 = vector.extract_strided_slice %192 {offsets = [0, 32], sizes = [16, 32], strides = [1, 1]} : vector<16x64xf32> to vector<16x32xf32>
    %195 = arith.truncf %185 : vector<8x32xf32> to vector<8x32xbf16>
    %196 = arith.truncf %193 : vector<16x32xf32> to vector<16x32xbf16>
    %197 = arith.truncf %194 : vector<16x32xf32> to vector<16x32xbf16>
    %198 = vector.extract_strided_slice %195 {offsets = [0, 0], sizes = [8, 8], strides = [1, 1]} : vector<8x32xbf16> to vector<8x8xbf16>
    %199 = vector.extract_strided_slice %196 {offsets = [0, 0], sizes = [16, 8], strides = [1, 1]} : vector<16x32xbf16> to vector<16x8xbf16>
    %cst_89 = arith.constant dense<0.000000e+00> : vector<8x16xf32>
    %200 = tpu.matmul %198, %199, %cst_89 {dimension_numbers = #tpu.dot_dimension_numbers<[1], [1], [0], [0], [0, 0, 1, 0], [], []>} : vector<8x8xbf16>, vector<16x8xbf16>, vector<8x16xf32> -> vector<8x16xf32>
    %201 = arith.addf %200, %21 : vector<8x16xf32>
    %cst_90 = arith.constant dense<0xFF800000> : vector<8xf32>
    %202 = vector.multi_reduction <maximumf>, %201, %cst_90 [1] : vector<8x16xf32> to vector<8xf32>
    %203 = vector.shape_cast %202 : vector<8xf32> to vector<8x1xf32>
    %204 = vector.broadcast %203 : vector<8x1xf32> to vector<8x16xf32>
    %205 = arith.subf %201, %204 : vector<8x16xf32>
    %206 = math.exp %205 : vector<8x16xf32>
    %cst_91 = arith.constant dense<0.000000e+00> : vector<8xf32>
    %207 = vector.multi_reduction <add>, %206, %cst_91 [1] : vector<8x16xf32> to vector<8xf32>
    %208 = vector.shape_cast %207 : vector<8xf32> to vector<8x1xf32>
    %209 = tpu.reciprocal %208 {approx = true} : vector<8x1xf32> -> vector<8x1xf32>
    %210 = vector.broadcast %209 : vector<8x1xf32> to vector<8x16xf32>
    %211 = arith.mulf %206, %210 : vector<8x16xf32>
    %212 = arith.truncf %211 : vector<8x16xf32> to vector<8x16xbf16>
    %213 = vector.extract_strided_slice %197 {offsets = [0, 0], sizes = [16, 8], strides = [1, 1]} : vector<16x32xbf16> to vector<16x8xbf16>
    %cst_92 = arith.constant dense<0.000000e+00> : vector<8x8xf32>
    %214 = tpu.matmul %212, %213, %cst_92 {dimension_numbers = #tpu.dot_dimension_numbers<[1], [0], [0], [1], [0, 0, 1, 1], [], []>} : vector<8x16xbf16>, vector<16x8xbf16>, vector<8x8xf32> -> vector<8x8xf32>
    %c0_93 = arith.constant 0 : index
    %c0_94 = arith.constant 0 : index
    %215 = vector.load %arg33[%c0_93, %c0_94] : memref<8x32xf32, #tpu.memory_space<vmem>>, vector<8x8xf32>
    tpu.vector_store %arg33[%c0_93, %c0_94], %214 {strides = array<i32>} : memref<8x32xf32, #tpu.memory_space<vmem>>, vector<8x8xf32>,
    %216 = vector.extract_strided_slice %195 {offsets = [0, 8], sizes = [8, 8], strides = [1, 1]} : vector<8x32xbf16> to vector<8x8xbf16>
    %217 = vector.extract_strided_slice %196 {offsets = [0, 8], sizes = [16, 8], strides = [1, 1]} : vector<16x32xbf16> to vector<16x8xbf16>
    %cst_95 = arith.constant dense<0.000000e+00> : vector<8x16xf32>
    %218 = tpu.matmul %216, %217, %cst_95 {dimension_numbers = #tpu.dot_dimension_numbers<[1], [1], [0], [0], [0, 0, 1, 0], [], []>} : vector<8x8xbf16>, vector<16x8xbf16>, vector<8x16xf32> -> vector<8x16xf32>
    %219 = arith.addf %218, %21 : vector<8x16xf32>
    %cst_96 = arith.constant dense<0xFF800000> : vector<8xf32>
    %220 = vector.multi_reduction <maximumf>, %219, %cst_96 [1] : vector<8x16xf32> to vector<8xf32>
    %221 = vector.shape_cast %220 : vector<8xf32> to vector<8x1xf32>
    %222 = vector.broadcast %221 : vector<8x1xf32> to vector<8x16xf32>
    %223 = arith.subf %219, %222 : vector<8x16xf32>
    %224 = math.exp %223 : vector<8x16xf32>
    %cst_97 = arith.constant dense<0.000000e+00> : vector<8xf32>
    %225 = vector.multi_reduction <add>, %224, %cst_97 [1] : vector<8x16xf32> to vector<8xf32>
    %226 = vector.shape_cast %225 : vector<8xf32> to vector<8x1xf32>
    %227 = tpu.reciprocal %226 {approx = true} : vector<8x1xf32> -> vector<8x1xf32>
    %228 = vector.broadcast %227 : vector<8x1xf32> to vector<8x16xf32>
    %229 = arith.mulf %224, %228 : vector<8x16xf32>
    %230 = arith.truncf %229 : vector<8x16xf32> to vector<8x16xbf16>
    %231 = vector.extract_strided_slice %197 {offsets = [0, 8], sizes = [16, 8], strides = [1, 1]} : vector<16x32xbf16> to vector<16x8xbf16>
    %cst_98 = arith.constant dense<0.000000e+00> : vector<8x8xf32>
    %232 = tpu.matmul %230, %231, %cst_98 {dimension_numbers = #tpu.dot_dimension_numbers<[1], [0], [0], [1], [0, 0, 1, 1], [], []>} : vector<8x16xbf16>, vector<16x8xbf16>, vector<8x8xf32> -> vector<8x8xf32>
    %c0_99 = arith.constant 0 : index
    %c8_100 = arith.constant 8 : index
    %233 = vector.load %arg33[%c0_99, %c8_100] : memref<8x32xf32, #tpu.memory_space<vmem>>, vector<8x8xf32>
    tpu.vector_store %arg33[%c0_99, %c8_100], %232 {strides = array<i32>} : memref<8x32xf32, #tpu.memory_space<vmem>>, vector<8x8xf32>,
    %234 = vector.extract_strided_slice %195 {offsets = [0, 16], sizes = [8, 8], strides = [1, 1]} : vector<8x32xbf16> to vector<8x8xbf16>
    %235 = vector.extract_strided_slice %196 {offsets = [0, 16], sizes = [16, 8], strides = [1, 1]} : vector<16x32xbf16> to vector<16x8xbf16>
    %cst_101 = arith.constant dense<0.000000e+00> : vector<8x16xf32>
    %236 = tpu.matmul %234, %235, %cst_101 {dimension_numbers = #tpu.dot_dimension_numbers<[1], [1], [0], [0], [0, 0, 1, 0], [], []>} : vector<8x8xbf16>, vector<16x8xbf16>, vector<8x16xf32> -> vector<8x16xf32>
    %237 = arith.addf %236, %21 : vector<8x16xf32>
    %cst_102 = arith.constant dense<0xFF800000> : vector<8xf32>
    %238 = vector.multi_reduction <maximumf>, %237, %cst_102 [1] : vector<8x16xf32> to vector<8xf32>
    %239 = vector.shape_cast %238 : vector<8xf32> to vector<8x1xf32>
    %240 = vector.broadcast %239 : vector<8x1xf32> to vector<8x16xf32>
    %241 = arith.subf %237, %240 : vector<8x16xf32>
    %242 = math.exp %241 : vector<8x16xf32>
    %cst_103 = arith.constant dense<0.000000e+00> : vector<8xf32>
    %243 = vector.multi_reduction <add>, %242, %cst_103 [1] : vector<8x16xf32> to vector<8xf32>
    %244 = vector.shape_cast %243 : vector<8xf32> to vector<8x1xf32>
    %245 = tpu.reciprocal %244 {approx = true} : vector<8x1xf32> -> vector<8x1xf32>
    %246 = vector.broadcast %245 : vector<8x1xf32> to vector<8x16xf32>
    %247 = arith.mulf %242, %246 : vector<8x16xf32>
    %248 = arith.truncf %247 : vector<8x16xf32> to vector<8x16xbf16>
    %249 = vector.extract_strided_slice %197 {offsets = [0, 16], sizes = [16, 8], strides = [1, 1]} : vector<16x32xbf16> to vector<16x8xbf16>
    %cst_104 = arith.constant dense<0.000000e+00> : vector<8x8xf32>
    %250 = tpu.matmul %248, %249, %cst_104 {dimension_numbers = #tpu.dot_dimension_numbers<[1], [0], [0], [1], [0, 0, 1, 1], [], []>} : vector<8x16xbf16>, vector<16x8xbf16>, vector<8x8xf32> -> vector<8x8xf32>
    %c0_105 = arith.constant 0 : index
    %c16_106 = arith.constant 16 : index
    %251 = vector.load %arg33[%c0_105, %c16_106] : memref<8x32xf32, #tpu.memory_space<vmem>>, vector<8x8xf32>
    tpu.vector_store %arg33[%c0_105, %c16_106], %250 {strides = array<i32>} : memref<8x32xf32, #tpu.memory_space<vmem>>, vector<8x8xf32>,
    %252 = vector.extract_strided_slice %195 {offsets = [0, 24], sizes = [8, 8], strides = [1, 1]} : vector<8x32xbf16> to vector<8x8xbf16>
    %253 = vector.extract_strided_slice %196 {offsets = [0, 24], sizes = [16, 8], strides = [1, 1]} : vector<16x32xbf16> to vector<16x8xbf16>
    %cst_107 = arith.constant dense<0.000000e+00> : vector<8x16xf32>
    %254 = tpu.matmul %252, %253, %cst_107 {dimension_numbers = #tpu.dot_dimension_numbers<[1], [1], [0], [0], [0, 0, 1, 0], [], []>} : vector<8x8xbf16>, vector<16x8xbf16>, vector<8x16xf32> -> vector<8x16xf32>
    %255 = arith.addf %254, %21 : vector<8x16xf32>
    %cst_108 = arith.constant dense<0xFF800000> : vector<8xf32>
    %256 = vector.multi_reduction <maximumf>, %255, %cst_108 [1] : vector<8x16xf32> to vector<8xf32>
    %257 = vector.shape_cast %256 : vector<8xf32> to vector<8x1xf32>
    %258 = vector.broadcast %257 : vector<8x1xf32> to vector<8x16xf32>
    %259 = arith.subf %255, %258 : vector<8x16xf32>
    %260 = math.exp %259 : vector<8x16xf32>
    %cst_109 = arith.constant dense<0.000000e+00> : vector<8xf32>
    %261 = vector.multi_reduction <add>, %260, %cst_109 [1] : vector<8x16xf32> to vector<8xf32>
    %262 = vector.shape_cast %261 : vector<8xf32> to vector<8x1xf32>
    %263 = tpu.reciprocal %262 {approx = true} : vector<8x1xf32> -> vector<8x1xf32>
    %264 = vector.broadcast %263 : vector<8x1xf32> to vector<8x16xf32>
    %265 = arith.mulf %260, %264 : vector<8x16xf32>
    %266 = arith.truncf %265 : vector<8x16xf32> to vector<8x16xbf16>
    %267 = vector.extract_strided_slice %197 {offsets = [0, 24], sizes = [16, 8], strides = [1, 1]} : vector<16x32xbf16> to vector<16x8xbf16>
    %cst_110 = arith.constant dense<0.000000e+00> : vector<8x8xf32>
    %268 = tpu.matmul %266, %267, %cst_110 {dimension_numbers = #tpu.dot_dimension_numbers<[1], [0], [0], [1], [0, 0, 1, 1], [], []>} : vector<8x16xbf16>, vector<16x8xbf16>, vector<8x8xf32> -> vector<8x8xf32>
    %c0_111 = arith.constant 0 : index
    %c24_112 = arith.constant 24 : index
    %269 = vector.load %arg33[%c0_111, %c24_112] : memref<8x32xf32, #tpu.memory_space<vmem>>, vector<8x8xf32>
    tpu.vector_store %arg33[%c0_111, %c24_112], %268 {strides = array<i32>} : memref<8x32xf32, #tpu.memory_space<vmem>>, vector<8x8xf32>,
    %c0_113 = arith.constant 0 : index
    %c0_114 = arith.constant 0 : index
    %270 = vector.load %arg33[%c0_113, %c0_114] : memref<8x32xf32, #tpu.memory_space<vmem>>, vector<8x32xf32>
    %271 = arith.truncf %270 : vector<8x32xf32> to vector<8x32xbf16>
    %c0_115 = arith.constant 0 : index
    %c0_116 = arith.constant 0 : index
    %c0_117 = arith.constant 0 : index
    %272 = vector.load %arg15[%c0_115, %c0_116, %c0_117] : memref<2x32x32xbf16, #tpu.memory_space<vmem>>, vector<1x32x32xbf16>
    %273 = vector.shape_cast %272 : vector<1x32x32xbf16> to vector<32x32xbf16>
    %cst_118 = arith.constant dense<0.000000e+00> : vector<8x32xf32>
    %274 = tpu.matmul %271, %273, %cst_118 {dimension_numbers = #tpu.dot_dimension_numbers<[1], [0], [0], [1], [0, 0, 1, 1], [], []>} : vector<8x32xbf16>, vector<32x32xbf16>, vector<8x32xf32> -> vector<8x32xf32>
    %275 = arith.addf %153, %274 : vector<8x32xf32>
    %c0_119 = arith.constant 0 : index
    %c0_120 = arith.constant 0 : index
    %c0_121 = arith.constant 0 : index
    %276 = vector.load %arg16[%c0_119, %c0_120, %c0_121] : memref<2x1x32xf32, #tpu.memory_space<vmem>>, vector<1x1x32xf32>
    %277 = vector.shape_cast %276 : vector<1x1x32xf32> to vector<1x32xf32>
    %278 = vector.broadcast %277 : vector<1x32xf32> to vector<8x32xf32>
    %279 = arith.addf %275, %278 : vector<8x32xf32>
    %280 = vector.extract_strided_slice %31 {offsets = [2, 0], sizes = [1, 32], strides = [1, 1]} : vector<4x32xf32> to vector<1x32xf32>
    %281 = vector.extract_strided_slice %33 {offsets = [2, 0], sizes = [1, 32], strides = [1, 1]} : vector<4x32xf32> to vector<1x32xf32>
    %cst_122 = arith.constant dense<0.000000e+00> : vector<8xf32>
    %282 = vector.multi_reduction <add>, %279, %cst_122 [1] : vector<8x32xf32> to vector<8xf32>
    %283 = vector.shape_cast %282 : vector<8xf32> to vector<8x1xf32>
    %cst_123 = arith.constant 3.200000e+01 : f32
    %284 = vector.broadcast %cst_123 : f32 to vector<8x1xf32>
    %285 = arith.divf %283, %284 : vector<8x1xf32>
    %286 = vector.broadcast %285 : vector<8x1xf32> to vector<8x32xf32>
    %287 = arith.subf %279, %286 : vector<8x32xf32>
    %288 = arith.mulf %287, %287 : vector<8x32xf32>
    %cst_124 = arith.constant dense<0.000000e+00> : vector<8xf32>
    %289 = vector.multi_reduction <add>, %288, %cst_124 [1] : vector<8x32xf32> to vector<8xf32>
    %290 = vector.shape_cast %289 : vector<8xf32> to vector<8x1xf32>
    %cst_125 = arith.constant 0.0322580636 : f32
    %291 = vector.broadcast %cst_125 : f32 to vector<8x1xf32>
    %292 = arith.mulf %290, %291 : vector<8x1xf32>
    %293 = vector.broadcast %285 : vector<8x1xf32> to vector<8x32xf32>
    %294 = arith.subf %279, %293 : vector<8x32xf32>
    %295 = vector.broadcast %280 : vector<1x32xf32> to vector<8x32xf32>
    %296 = arith.mulf %295, %294 : vector<8x32xf32>
    %297 = math.sqrt %292 : vector<8x1xf32>
    %cst_126 = arith.constant 9.99999997E-7 : f32
    %298 = vector.broadcast %cst_126 : f32 to vector<8x1xf32>
    %299 = arith.addf %297, %298 : vector<8x1xf32>
    %300 = vector.broadcast %299 : vector<8x1xf32> to vector<8x32xf32>
    %301 = arith.divf %296, %300 : vector<8x32xf32>
    %302 = vector.broadcast %281 : vector<1x32xf32> to vector<8x32xf32>
    %303 = arith.addf %301, %302 : vector<8x32xf32>
    %304 = arith.truncf %303 : vector<8x32xf32> to vector<8x32xbf16>
    %c0_127 = arith.constant 0 : index
    %c0_128 = arith.constant 0 : index
    %c0_129 = arith.constant 0 : index
    %305 = vector.load %arg17[%c0_127, %c0_128, %c0_129] : memref<2x32x32xbf16, #tpu.memory_space<vmem>>, vector<1x32x32xbf16>
    %306 = vector.shape_cast %305 : vector<1x32x32xbf16> to vector<32x32xbf16>
    %cst_130 = arith.constant dense<0.000000e+00> : vector<8x32xf32>
    %307 = tpu.matmul %304, %306, %cst_130 {dimension_numbers = #tpu.dot_dimension_numbers<[1], [0], [0], [1], [0, 0, 1, 1], [], []>} : vector<8x32xbf16>, vector<32x32xbf16>, vector<8x32xf32> -> vector<8x32xf32>
    %c0_131 = arith.constant 0 : index
    %c0_132 = arith.constant 0 : index
    %c0_133 = arith.constant 0 : index
    %308 = vector.load %arg18[%c0_131, %c0_132, %c0_133] : memref<2x1x32xf32, #tpu.memory_space<vmem>>, vector<1x1x32xf32>
    %309 = vector.shape_cast %308 : vector<1x1x32xf32> to vector<1x32xf32>
    %310 = vector.broadcast %309 : vector<1x32xf32> to vector<8x32xf32>
    %311 = arith.addf %307, %310 : vector<8x32xf32>
    %c0_134 = arith.constant 0 : index
    %c0_135 = arith.constant 0 : index
    %c0_136 = arith.constant 0 : index
    %312 = vector.load %arg19[%c0_134, %c0_135, %c0_136] : memref<2x32x64xbf16, #tpu.memory_space<vmem>>, vector<1x32x64xbf16>
    %313 = vector.shape_cast %312 : vector<1x32x64xbf16> to vector<32x64xbf16>
    %cst_137 = arith.constant dense<0.000000e+00> : vector<12x64xf32>
    %314 = tpu.matmul %7, %313, %cst_137 {dimension_numbers = #tpu.dot_dimension_numbers<[1], [0], [0], [1], [0, 0, 1, 1], [], []>} : vector<12x32xbf16>, vector<32x64xbf16>, vector<12x64xf32> -> vector<12x64xf32>
    %c0_138 = arith.constant 0 : index
    %c0_139 = arith.constant 0 : index
    %c0_140 = arith.constant 0 : index
    %315 = vector.load %arg20[%c0_138, %c0_139, %c0_140] : memref<2x1x64xf32, #tpu.memory_space<vmem>>, vector<1x1x64xf32>
    %316 = vector.shape_cast %315 : vector<1x1x64xf32> to vector<1x64xf32>
    %317 = vector.broadcast %316 : vector<1x64xf32> to vector<12x64xf32>
    %318 = arith.addf %314, %317 : vector<12x64xf32>
    %319 = vector.extract_strided_slice %318 {offsets = [0, 0], sizes = [12, 32], strides = [1, 1]} : vector<12x64xf32> to vector<12x32xf32>
    %320 = vector.extract_strided_slice %318 {offsets = [0, 32], sizes = [12, 32], strides = [1, 1]} : vector<12x64xf32> to vector<12x32xf32>
    %321 = arith.truncf %311 : vector<8x32xf32> to vector<8x32xbf16>
    %322 = arith.truncf %319 : vector<12x32xf32> to vector<12x32xbf16>
    %323 = arith.truncf %320 : vector<12x32xf32> to vector<12x32xbf16>
    %324 = vector.extract_strided_slice %321 {offsets = [0, 0], sizes = [8, 8], strides = [1, 1]} : vector<8x32xbf16> to vector<8x8xbf16>
    %325 = vector.extract_strided_slice %322 {offsets = [0, 0], sizes = [12, 8], strides = [1, 1]} : vector<12x32xbf16> to vector<12x8xbf16>
    %cst_141 = arith.constant dense<0.000000e+00> : vector<8x12xf32>
    %326 = tpu.matmul %324, %325, %cst_141 {dimension_numbers = #tpu.dot_dimension_numbers<[1], [1], [0], [0], [0, 0, 1, 0], [], []>} : vector<8x8xbf16>, vector<12x8xbf16>, vector<8x12xf32> -> vector<8x12xf32>
    %327 = arith.addf %326, %29 : vector<8x12xf32>
    %cst_142 = arith.constant dense<0xFF800000> : vector<8xf32>
    %328 = vector.multi_reduction <maximumf>, %327, %cst_142 [1] : vector<8x12xf32> to vector<8xf32>
    %329 = vector.shape_cast %328 : vector<8xf32> to vector<8x1xf32>
    %330 = vector.broadcast %329 : vector<8x1xf32> to vector<8x12xf32>
    %331 = arith.subf %327, %330 : vector<8x12xf32>
    %332 = math.exp %331 : vector<8x12xf32>
    %cst_143 = arith.constant dense<0.000000e+00> : vector<8xf32>
    %333 = vector.multi_reduction <add>, %332, %cst_143 [1] : vector<8x12xf32> to vector<8xf32>
    %334 = vector.shape_cast %333 : vector<8xf32> to vector<8x1xf32>
    %335 = tpu.reciprocal %334 {approx = true} : vector<8x1xf32> -> vector<8x1xf32>
    %336 = vector.broadcast %335 : vector<8x1xf32> to vector<8x12xf32>
    %337 = arith.mulf %332, %336 : vector<8x12xf32>
    %338 = arith.truncf %337 : vector<8x12xf32> to vector<8x12xbf16>
    %339 = vector.extract_strided_slice %323 {offsets = [0, 0], sizes = [12, 8], strides = [1, 1]} : vector<12x32xbf16> to vector<12x8xbf16>
    %cst_144 = arith.constant dense<0.000000e+00> : vector<8x8xf32>
    %340 = tpu.matmul %338, %339, %cst_144 {dimension_numbers = #tpu.dot_dimension_numbers<[1], [0], [0], [1], [0, 0, 1, 1], [], []>} : vector<8x12xbf16>, vector<12x8xbf16>, vector<8x8xf32> -> vector<8x8xf32>
    %c0_145 = arith.constant 0 : index
    %c0_146 = arith.constant 0 : index
    %341 = vector.load %arg33[%c0_145, %c0_146] : memref<8x32xf32, #tpu.memory_space<vmem>>, vector<8x8xf32>
    tpu.vector_store %arg33[%c0_145, %c0_146], %340 {strides = array<i32>} : memref<8x32xf32, #tpu.memory_space<vmem>>, vector<8x8xf32>,
    %342 = vector.extract_strided_slice %321 {offsets = [0, 8], sizes = [8, 8], strides = [1, 1]} : vector<8x32xbf16> to vector<8x8xbf16>
    %343 = vector.extract_strided_slice %322 {offsets = [0, 8], sizes = [12, 8], strides = [1, 1]} : vector<12x32xbf16> to vector<12x8xbf16>
    %cst_147 = arith.constant dense<0.000000e+00> : vector<8x12xf32>
    %344 = tpu.matmul %342, %343, %cst_147 {dimension_numbers = #tpu.dot_dimension_numbers<[1], [1], [0], [0], [0, 0, 1, 0], [], []>} : vector<8x8xbf16>, vector<12x8xbf16>, vector<8x12xf32> -> vector<8x12xf32>
    %345 = arith.addf %344, %29 : vector<8x12xf32>
    %cst_148 = arith.constant dense<0xFF800000> : vector<8xf32>
    %346 = vector.multi_reduction <maximumf>, %345, %cst_148 [1] : vector<8x12xf32> to vector<8xf32>
    %347 = vector.shape_cast %346 : vector<8xf32> to vector<8x1xf32>
    %348 = vector.broadcast %347 : vector<8x1xf32> to vector<8x12xf32>
    %349 = arith.subf %345, %348 : vector<8x12xf32>
    %350 = math.exp %349 : vector<8x12xf32>
    %cst_149 = arith.constant dense<0.000000e+00> : vector<8xf32>
    %351 = vector.multi_reduction <add>, %350, %cst_149 [1] : vector<8x12xf32> to vector<8xf32>
    %352 = vector.shape_cast %351 : vector<8xf32> to vector<8x1xf32>
    %353 = tpu.reciprocal %352 {approx = true} : vector<8x1xf32> -> vector<8x1xf32>
    %354 = vector.broadcast %353 : vector<8x1xf32> to vector<8x12xf32>
    %355 = arith.mulf %350, %354 : vector<8x12xf32>
    %356 = arith.truncf %355 : vector<8x12xf32> to vector<8x12xbf16>
    %357 = vector.extract_strided_slice %323 {offsets = [0, 8], sizes = [12, 8], strides = [1, 1]} : vector<12x32xbf16> to vector<12x8xbf16>
    %cst_150 = arith.constant dense<0.000000e+00> : vector<8x8xf32>
    %358 = tpu.matmul %356, %357, %cst_150 {dimension_numbers = #tpu.dot_dimension_numbers<[1], [0], [0], [1], [0, 0, 1, 1], [], []>} : vector<8x12xbf16>, vector<12x8xbf16>, vector<8x8xf32> -> vector<8x8xf32>
    %c0_151 = arith.constant 0 : index
    %c8_152 = arith.constant 8 : index
    %359 = vector.load %arg33[%c0_151, %c8_152] : memref<8x32xf32, #tpu.memory_space<vmem>>, vector<8x8xf32>
    tpu.vector_store %arg33[%c0_151, %c8_152], %358 {strides = array<i32>} : memref<8x32xf32, #tpu.memory_space<vmem>>, vector<8x8xf32>,
    %360 = vector.extract_strided_slice %321 {offsets = [0, 16], sizes = [8, 8], strides = [1, 1]} : vector<8x32xbf16> to vector<8x8xbf16>
    %361 = vector.extract_strided_slice %322 {offsets = [0, 16], sizes = [12, 8], strides = [1, 1]} : vector<12x32xbf16> to vector<12x8xbf16>
    %cst_153 = arith.constant dense<0.000000e+00> : vector<8x12xf32>
    %362 = tpu.matmul %360, %361, %cst_153 {dimension_numbers = #tpu.dot_dimension_numbers<[1], [1], [0], [0], [0, 0, 1, 0], [], []>} : vector<8x8xbf16>, vector<12x8xbf16>, vector<8x12xf32> -> vector<8x12xf32>
    %363 = arith.addf %362, %29 : vector<8x12xf32>
    %cst_154 = arith.constant dense<0xFF800000> : vector<8xf32>
    %364 = vector.multi_reduction <maximumf>, %363, %cst_154 [1] : vector<8x12xf32> to vector<8xf32>
    %365 = vector.shape_cast %364 : vector<8xf32> to vector<8x1xf32>
    %366 = vector.broadcast %365 : vector<8x1xf32> to vector<8x12xf32>
    %367 = arith.subf %363, %366 : vector<8x12xf32>
    %368 = math.exp %367 : vector<8x12xf32>
    %cst_155 = arith.constant dense<0.000000e+00> : vector<8xf32>
    %369 = vector.multi_reduction <add>, %368, %cst_155 [1] : vector<8x12xf32> to vector<8xf32>
    %370 = vector.shape_cast %369 : vector<8xf32> to vector<8x1xf32>
    %371 = tpu.reciprocal %370 {approx = true} : vector<8x1xf32> -> vector<8x1xf32>
    %372 = vector.broadcast %371 : vector<8x1xf32> to vector<8x12xf32>
    %373 = arith.mulf %368, %372 : vector<8x12xf32>
    %374 = arith.truncf %373 : vector<8x12xf32> to vector<8x12xbf16>
    %375 = vector.extract_strided_slice %323 {offsets = [0, 16], sizes = [12, 8], strides = [1, 1]} : vector<12x32xbf16> to vector<12x8xbf16>
    %cst_156 = arith.constant dense<0.000000e+00> : vector<8x8xf32>
    %376 = tpu.matmul %374, %375, %cst_156 {dimension_numbers = #tpu.dot_dimension_numbers<[1], [0], [0], [1], [0, 0, 1, 1], [], []>} : vector<8x12xbf16>, vector<12x8xbf16>, vector<8x8xf32> -> vector<8x8xf32>
    %c0_157 = arith.constant 0 : index
    %c16_158 = arith.constant 16 : index
    %377 = vector.load %arg33[%c0_157, %c16_158] : memref<8x32xf32, #tpu.memory_space<vmem>>, vector<8x8xf32>
    tpu.vector_store %arg33[%c0_157, %c16_158], %376 {strides = array<i32>} : memref<8x32xf32, #tpu.memory_space<vmem>>, vector<8x8xf32>,
    %378 = vector.extract_strided_slice %321 {offsets = [0, 24], sizes = [8, 8], strides = [1, 1]} : vector<8x32xbf16> to vector<8x8xbf16>
    %379 = vector.extract_strided_slice %322 {offsets = [0, 24], sizes = [12, 8], strides = [1, 1]} : vector<12x32xbf16> to vector<12x8xbf16>
    %cst_159 = arith.constant dense<0.000000e+00> : vector<8x12xf32>
    %380 = tpu.matmul %378, %379, %cst_159 {dimension_numbers = #tpu.dot_dimension_numbers<[1], [1], [0], [0], [0, 0, 1, 0], [], []>} : vector<8x8xbf16>, vector<12x8xbf16>, vector<8x12xf32> -> vector<8x12xf32>
    %381 = arith.addf %380, %29 : vector<8x12xf32>
    %cst_160 = arith.constant dense<0xFF800000> : vector<8xf32>
    %382 = vector.multi_reduction <maximumf>, %381, %cst_160 [1] : vector<8x12xf32> to vector<8xf32>
    %383 = vector.shape_cast %382 : vector<8xf32> to vector<8x1xf32>
    %384 = vector.broadcast %383 : vector<8x1xf32> to vector<8x12xf32>
    %385 = arith.subf %381, %384 : vector<8x12xf32>
    %386 = math.exp %385 : vector<8x12xf32>
    %cst_161 = arith.constant dense<0.000000e+00> : vector<8xf32>
    %387 = vector.multi_reduction <add>, %386, %cst_161 [1] : vector<8x12xf32> to vector<8xf32>
    %388 = vector.shape_cast %387 : vector<8xf32> to vector<8x1xf32>
    %389 = tpu.reciprocal %388 {approx = true} : vector<8x1xf32> -> vector<8x1xf32>
    %390 = vector.broadcast %389 : vector<8x1xf32> to vector<8x12xf32>
    %391 = arith.mulf %386, %390 : vector<8x12xf32>
    %392 = arith.truncf %391 : vector<8x12xf32> to vector<8x12xbf16>
    %393 = vector.extract_strided_slice %323 {offsets = [0, 24], sizes = [12, 8], strides = [1, 1]} : vector<12x32xbf16> to vector<12x8xbf16>
    %cst_162 = arith.constant dense<0.000000e+00> : vector<8x8xf32>
    %394 = tpu.matmul %392, %393, %cst_162 {dimension_numbers = #tpu.dot_dimension_numbers<[1], [0], [0], [1], [0, 0, 1, 1], [], []>} : vector<8x12xbf16>, vector<12x8xbf16>, vector<8x8xf32> -> vector<8x8xf32>
    %c0_163 = arith.constant 0 : index
    %c24_164 = arith.constant 24 : index
    %395 = vector.load %arg33[%c0_163, %c24_164] : memref<8x32xf32, #tpu.memory_space<vmem>>, vector<8x8xf32>
    tpu.vector_store %arg33[%c0_163, %c24_164], %394 {strides = array<i32>} : memref<8x32xf32, #tpu.memory_space<vmem>>, vector<8x8xf32>,
    %c0_165 = arith.constant 0 : index
    %c0_166 = arith.constant 0 : index
    %396 = vector.load %arg33[%c0_165, %c0_166] : memref<8x32xf32, #tpu.memory_space<vmem>>, vector<8x32xf32>
    %397 = arith.truncf %396 : vector<8x32xf32> to vector<8x32xbf16>
    %c0_167 = arith.constant 0 : index
    %c0_168 = arith.constant 0 : index
    %c0_169 = arith.constant 0 : index
    %398 = vector.load %arg21[%c0_167, %c0_168, %c0_169] : memref<2x32x32xbf16, #tpu.memory_space<vmem>>, vector<1x32x32xbf16>
    %399 = vector.shape_cast %398 : vector<1x32x32xbf16> to vector<32x32xbf16>
    %cst_170 = arith.constant dense<0.000000e+00> : vector<8x32xf32>
    %400 = tpu.matmul %397, %399, %cst_170 {dimension_numbers = #tpu.dot_dimension_numbers<[1], [0], [0], [1], [0, 0, 1, 1], [], []>} : vector<8x32xbf16>, vector<32x32xbf16>, vector<8x32xf32> -> vector<8x32xf32>
    %401 = arith.addf %279, %400 : vector<8x32xf32>
    %c0_171 = arith.constant 0 : index
    %c0_172 = arith.constant 0 : index
    %c0_173 = arith.constant 0 : index
    %402 = vector.load %arg22[%c0_171, %c0_172, %c0_173] : memref<2x1x32xf32, #tpu.memory_space<vmem>>, vector<1x1x32xf32>
    %403 = vector.shape_cast %402 : vector<1x1x32xf32> to vector<1x32xf32>
    %404 = vector.broadcast %403 : vector<1x32xf32> to vector<8x32xf32>
    %405 = arith.addf %401, %404 : vector<8x32xf32>
    %406 = vector.extract_strided_slice %31 {offsets = [3, 0], sizes = [1, 32], strides = [1, 1]} : vector<4x32xf32> to vector<1x32xf32>
    %407 = vector.extract_strided_slice %33 {offsets = [3, 0], sizes = [1, 32], strides = [1, 1]} : vector<4x32xf32> to vector<1x32xf32>
    %cst_174 = arith.constant dense<0.000000e+00> : vector<8xf32>
    %408 = vector.multi_reduction <add>, %405, %cst_174 [1] : vector<8x32xf32> to vector<8xf32>
    %409 = vector.shape_cast %408 : vector<8xf32> to vector<8x1xf32>
    %cst_175 = arith.constant 3.200000e+01 : f32
    %410 = vector.broadcast %cst_175 : f32 to vector<8x1xf32>
    %411 = arith.divf %409, %410 : vector<8x1xf32>
    %412 = vector.broadcast %411 : vector<8x1xf32> to vector<8x32xf32>
    %413 = arith.subf %405, %412 : vector<8x32xf32>
    %414 = arith.mulf %413, %413 : vector<8x32xf32>
    %cst_176 = arith.constant dense<0.000000e+00> : vector<8xf32>
    %415 = vector.multi_reduction <add>, %414, %cst_176 [1] : vector<8x32xf32> to vector<8xf32>
    %416 = vector.shape_cast %415 : vector<8xf32> to vector<8x1xf32>
    %cst_177 = arith.constant 0.0322580636 : f32
    %417 = vector.broadcast %cst_177 : f32 to vector<8x1xf32>
    %418 = arith.mulf %416, %417 : vector<8x1xf32>
    %419 = vector.broadcast %411 : vector<8x1xf32> to vector<8x32xf32>
    %420 = arith.subf %405, %419 : vector<8x32xf32>
    %421 = vector.broadcast %406 : vector<1x32xf32> to vector<8x32xf32>
    %422 = arith.mulf %421, %420 : vector<8x32xf32>
    %423 = math.sqrt %418 : vector<8x1xf32>
    %cst_178 = arith.constant 9.99999997E-7 : f32
    %424 = vector.broadcast %cst_178 : f32 to vector<8x1xf32>
    %425 = arith.addf %423, %424 : vector<8x1xf32>
    %426 = vector.broadcast %425 : vector<8x1xf32> to vector<8x32xf32>
    %427 = arith.divf %422, %426 : vector<8x32xf32>
    %428 = vector.broadcast %407 : vector<1x32xf32> to vector<8x32xf32>
    %429 = arith.addf %427, %428 : vector<8x32xf32>
    %430 = arith.truncf %429 : vector<8x32xf32> to vector<8x32xbf16>
    %c0_179 = arith.constant 0 : index
    %c0_180 = arith.constant 0 : index
    %c0_181 = arith.constant 0 : index
    %431 = vector.load %arg23[%c0_179, %c0_180, %c0_181] : memref<2x32x64xbf16, #tpu.memory_space<vmem>>, vector<1x32x64xbf16>
    %432 = vector.shape_cast %431 : vector<1x32x64xbf16> to vector<32x64xbf16>
    %cst_182 = arith.constant dense<0.000000e+00> : vector<8x64xf32>
    %433 = tpu.matmul %430, %432, %cst_182 {dimension_numbers = #tpu.dot_dimension_numbers<[1], [0], [0], [1], [0, 0, 1, 1], [], []>} : vector<8x32xbf16>, vector<32x64xbf16>, vector<8x64xf32> -> vector<8x64xf32>
    %c0_183 = arith.constant 0 : index
    %c0_184 = arith.constant 0 : index
    %c0_185 = arith.constant 0 : index
    %434 = vector.load %arg24[%c0_183, %c0_184, %c0_185] : memref<2x1x64xf32, #tpu.memory_space<vmem>>, vector<1x1x64xf32>
    %435 = vector.shape_cast %434 : vector<1x1x64xf32> to vector<1x64xf32>
    %436 = vector.broadcast %435 : vector<1x64xf32> to vector<8x64xf32>
    %437 = arith.addf %433, %436 : vector<8x64xf32>
    %cst_186 = arith.constant 0.000000e+00 : f32
    %438 = vector.broadcast %cst_186 : f32 to vector<8x64xf32>
    %439 = arith.maximumf %437, %438 : vector<8x64xf32>
    %440 = arith.truncf %439 : vector<8x64xf32> to vector<8x64xbf16>
    %c0_187 = arith.constant 0 : index
    %c0_188 = arith.constant 0 : index
    %c0_189 = arith.constant 0 : index
    %441 = vector.load %arg25[%c0_187, %c0_188, %c0_189] : memref<2x64x32xbf16, #tpu.memory_space<vmem>>, vector<1x64x32xbf16>
    %442 = vector.shape_cast %441 : vector<1x64x32xbf16> to vector<64x32xbf16>
    %cst_190 = arith.constant dense<0.000000e+00> : vector<8x32xf32>
    %443 = tpu.matmul %440, %442, %cst_190 {dimension_numbers = #tpu.dot_dimension_numbers<[1], [0], [0], [1], [0, 0, 1, 1], [], []>} : vector<8x64xbf16>, vector<64x32xbf16>, vector<8x32xf32> -> vector<8x32xf32>
    %444 = arith.addf %405, %443 : vector<8x32xf32>
    %c0_191 = arith.constant 0 : index
    %c0_192 = arith.constant 0 : index
    %c0_193 = arith.constant 0 : index
    %445 = vector.load %arg26[%c0_191, %c0_192, %c0_193] : memref<2x1x32xf32, #tpu.memory_space<vmem>>, vector<1x1x32xf32>
    %446 = vector.shape_cast %445 : vector<1x1x32xf32> to vector<1x32xf32>
    %447 = vector.broadcast %446 : vector<1x32xf32> to vector<8x32xf32>
    %448 = arith.addf %444, %447 : vector<8x32xf32>
    %c1 = arith.constant 1 : index
    %c0_194 = arith.constant 0 : index
    %c0_195 = arith.constant 0 : index
    %449 = vector.load %arg27[%c1, %c0_194, %c0_195] : memref<2x4x32xf32, #tpu.memory_space<vmem>>, vector<1x4x32xf32>
    %450 = vector.shape_cast %449 : vector<1x4x32xf32> to vector<4x32xf32>
    %c1_196 = arith.constant 1 : index
    %c0_197 = arith.constant 0 : index
    %c0_198 = arith.constant 0 : index
    %451 = vector.load %arg28[%c1_196, %c0_197, %c0_198] : memref<2x4x32xf32, #tpu.memory_space<vmem>>, vector<1x4x32xf32>
    %452 = vector.shape_cast %451 : vector<1x4x32xf32> to vector<4x32xf32>
    %453 = vector.extract_strided_slice %450 {offsets = [0, 0], sizes = [1, 32], strides = [1, 1]} : vector<4x32xf32> to vector<1x32xf32>
    %454 = vector.extract_strided_slice %452 {offsets = [0, 0], sizes = [1, 32], strides = [1, 1]} : vector<4x32xf32> to vector<1x32xf32>
    %cst_199 = arith.constant dense<0.000000e+00> : vector<8xf32>
    %455 = vector.multi_reduction <add>, %448, %cst_199 [1] : vector<8x32xf32> to vector<8xf32>
    %456 = vector.shape_cast %455 : vector<8xf32> to vector<8x1xf32>
    %cst_200 = arith.constant 3.200000e+01 : f32
    %457 = vector.broadcast %cst_200 : f32 to vector<8x1xf32>
    %458 = arith.divf %456, %457 : vector<8x1xf32>
    %459 = vector.broadcast %458 : vector<8x1xf32> to vector<8x32xf32>
    %460 = arith.subf %448, %459 : vector<8x32xf32>
    %461 = arith.mulf %460, %460 : vector<8x32xf32>
    %cst_201 = arith.constant dense<0.000000e+00> : vector<8xf32>
    %462 = vector.multi_reduction <add>, %461, %cst_201 [1] : vector<8x32xf32> to vector<8xf32>
    %463 = vector.shape_cast %462 : vector<8xf32> to vector<8x1xf32>
    %cst_202 = arith.constant 0.0322580636 : f32
    %464 = vector.broadcast %cst_202 : f32 to vector<8x1xf32>
    %465 = arith.mulf %463, %464 : vector<8x1xf32>
    %466 = vector.broadcast %458 : vector<8x1xf32> to vector<8x32xf32>
    %467 = arith.subf %448, %466 : vector<8x32xf32>
    %468 = vector.broadcast %453 : vector<1x32xf32> to vector<8x32xf32>
    %469 = arith.mulf %468, %467 : vector<8x32xf32>
    %470 = math.sqrt %465 : vector<8x1xf32>
    %cst_203 = arith.constant 9.99999997E-7 : f32
    %471 = vector.broadcast %cst_203 : f32 to vector<8x1xf32>
    %472 = arith.addf %470, %471 : vector<8x1xf32>
    %473 = vector.broadcast %472 : vector<8x1xf32> to vector<8x32xf32>
    %474 = arith.divf %469, %473 : vector<8x32xf32>
    %475 = vector.broadcast %454 : vector<1x32xf32> to vector<8x32xf32>
    %476 = arith.addf %474, %475 : vector<8x32xf32>
    %477 = arith.truncf %476 : vector<8x32xf32> to vector<8x32xbf16>
    %c1_204 = arith.constant 1 : index
    %c0_205 = arith.constant 0 : index
    %c0_206 = arith.constant 0 : index
    %478 = vector.load %arg7[%c1_204, %c0_205, %c0_206] : memref<2x32x96xbf16, #tpu.memory_space<vmem>>, vector<1x32x96xbf16>
    %479 = vector.shape_cast %478 : vector<1x32x96xbf16> to vector<32x96xbf16>
    %cst_207 = arith.constant dense<0.000000e+00> : vector<8x96xf32>
    %480 = tpu.matmul %477, %479, %cst_207 {dimension_numbers = #tpu.dot_dimension_numbers<[1], [0], [0], [1], [0, 0, 1, 1], [], []>} : vector<8x32xbf16>, vector<32x96xbf16>, vector<8x96xf32> -> vector<8x96xf32>
    %c1_208 = arith.constant 1 : index
    %c0_209 = arith.constant 0 : index
    %c0_210 = arith.constant 0 : index
    %481 = vector.load %arg8[%c1_208, %c0_209, %c0_210] : memref<2x1x96xf32, #tpu.memory_space<vmem>>, vector<1x1x96xf32>
    %482 = vector.shape_cast %481 : vector<1x1x96xf32> to vector<1x96xf32>
    %483 = vector.broadcast %482 : vector<1x96xf32> to vector<8x96xf32>
    %484 = arith.addf %480, %483 : vector<8x96xf32>
    %485 = vector.extract_strided_slice %484 {offsets = [0, 0], sizes = [8, 32], strides = [1, 1]} : vector<8x96xf32> to vector<8x32xf32>
    %486 = vector.extract_strided_slice %484 {offsets = [0, 32], sizes = [8, 32], strides = [1, 1]} : vector<8x96xf32> to vector<8x32xf32>
    %487 = vector.extract_strided_slice %484 {offsets = [0, 64], sizes = [8, 32], strides = [1, 1]} : vector<8x96xf32> to vector<8x32xf32>
    %488 = arith.truncf %485 : vector<8x32xf32> to vector<8x32xbf16>
    %489 = arith.truncf %486 : vector<8x32xf32> to vector<8x32xbf16>
    %490 = arith.truncf %487 : vector<8x32xf32> to vector<8x32xbf16>
    %491 = vector.extract_strided_slice %488 {offsets = [0, 0], sizes = [8, 8], strides = [1, 1]} : vector<8x32xbf16> to vector<8x8xbf16>
    %492 = vector.extract_strided_slice %489 {offsets = [0, 0], sizes = [8, 8], strides = [1, 1]} : vector<8x32xbf16> to vector<8x8xbf16>
    %cst_211 = arith.constant dense<0.000000e+00> : vector<8x8xf32>
    %493 = tpu.matmul %491, %492, %cst_211 {dimension_numbers = #tpu.dot_dimension_numbers<[1], [1], [0], [0], [0, 0, 1, 0], [], []>} : vector<8x8xbf16>, vector<8x8xbf16>, vector<8x8xf32> -> vector<8x8xf32>
    %494 = arith.addf %493, %13 : vector<8x8xf32>
    %cst_212 = arith.constant dense<0xFF800000> : vector<8xf32>
    %495 = vector.multi_reduction <maximumf>, %494, %cst_212 [1] : vector<8x8xf32> to vector<8xf32>
    %496 = vector.shape_cast %495 : vector<8xf32> to vector<8x1xf32>
    %497 = vector.broadcast %496 : vector<8x1xf32> to vector<8x8xf32>
    %498 = arith.subf %494, %497 : vector<8x8xf32>
    %499 = math.exp %498 : vector<8x8xf32>
    %cst_213 = arith.constant dense<0.000000e+00> : vector<8xf32>
    %500 = vector.multi_reduction <add>, %499, %cst_213 [1] : vector<8x8xf32> to vector<8xf32>
    %501 = vector.shape_cast %500 : vector<8xf32> to vector<8x1xf32>
    %502 = tpu.reciprocal %501 {approx = true} : vector<8x1xf32> -> vector<8x1xf32>
    %503 = vector.broadcast %502 : vector<8x1xf32> to vector<8x8xf32>
    %504 = arith.mulf %499, %503 : vector<8x8xf32>
    %505 = arith.truncf %504 : vector<8x8xf32> to vector<8x8xbf16>
    %506 = vector.extract_strided_slice %490 {offsets = [0, 0], sizes = [8, 8], strides = [1, 1]} : vector<8x32xbf16> to vector<8x8xbf16>
    %cst_214 = arith.constant dense<0.000000e+00> : vector<8x8xf32>
    %507 = tpu.matmul %505, %506, %cst_214 {dimension_numbers = #tpu.dot_dimension_numbers<[1], [0], [0], [1], [0, 0, 1, 1], [], []>} : vector<8x8xbf16>, vector<8x8xbf16>, vector<8x8xf32> -> vector<8x8xf32>
    %c0_215 = arith.constant 0 : index
    %c0_216 = arith.constant 0 : index
    %508 = vector.load %arg33[%c0_215, %c0_216] : memref<8x32xf32, #tpu.memory_space<vmem>>, vector<8x8xf32>
    tpu.vector_store %arg33[%c0_215, %c0_216], %507 {strides = array<i32>} : memref<8x32xf32, #tpu.memory_space<vmem>>, vector<8x8xf32>,
    %509 = vector.extract_strided_slice %488 {offsets = [0, 8], sizes = [8, 8], strides = [1, 1]} : vector<8x32xbf16> to vector<8x8xbf16>
    %510 = vector.extract_strided_slice %489 {offsets = [0, 8], sizes = [8, 8], strides = [1, 1]} : vector<8x32xbf16> to vector<8x8xbf16>
    %cst_217 = arith.constant dense<0.000000e+00> : vector<8x8xf32>
    %511 = tpu.matmul %509, %510, %cst_217 {dimension_numbers = #tpu.dot_dimension_numbers<[1], [1], [0], [0], [0, 0, 1, 0], [], []>} : vector<8x8xbf16>, vector<8x8xbf16>, vector<8x8xf32> -> vector<8x8xf32>
    %512 = arith.addf %511, %13 : vector<8x8xf32>
    %cst_218 = arith.constant dense<0xFF800000> : vector<8xf32>
    %513 = vector.multi_reduction <maximumf>, %512, %cst_218 [1] : vector<8x8xf32> to vector<8xf32>
    %514 = vector.shape_cast %513 : vector<8xf32> to vector<8x1xf32>
    %515 = vector.broadcast %514 : vector<8x1xf32> to vector<8x8xf32>
    %516 = arith.subf %512, %515 : vector<8x8xf32>
    %517 = math.exp %516 : vector<8x8xf32>
    %cst_219 = arith.constant dense<0.000000e+00> : vector<8xf32>
    %518 = vector.multi_reduction <add>, %517, %cst_219 [1] : vector<8x8xf32> to vector<8xf32>
    %519 = vector.shape_cast %518 : vector<8xf32> to vector<8x1xf32>
    %520 = tpu.reciprocal %519 {approx = true} : vector<8x1xf32> -> vector<8x1xf32>
    %521 = vector.broadcast %520 : vector<8x1xf32> to vector<8x8xf32>
    %522 = arith.mulf %517, %521 : vector<8x8xf32>
    %523 = arith.truncf %522 : vector<8x8xf32> to vector<8x8xbf16>
    %524 = vector.extract_strided_slice %490 {offsets = [0, 8], sizes = [8, 8], strides = [1, 1]} : vector<8x32xbf16> to vector<8x8xbf16>
    %cst_220 = arith.constant dense<0.000000e+00> : vector<8x8xf32>
    %525 = tpu.matmul %523, %524, %cst_220 {dimension_numbers = #tpu.dot_dimension_numbers<[1], [0], [0], [1], [0, 0, 1, 1], [], []>} : vector<8x8xbf16>, vector<8x8xbf16>, vector<8x8xf32> -> vector<8x8xf32>
    %c0_221 = arith.constant 0 : index
    %c8_222 = arith.constant 8 : index
    %526 = vector.load %arg33[%c0_221, %c8_222] : memref<8x32xf32, #tpu.memory_space<vmem>>, vector<8x8xf32>
    tpu.vector_store %arg33[%c0_221, %c8_222], %525 {strides = array<i32>} : memref<8x32xf32, #tpu.memory_space<vmem>>, vector<8x8xf32>,
    %527 = vector.extract_strided_slice %488 {offsets = [0, 16], sizes = [8, 8], strides = [1, 1]} : vector<8x32xbf16> to vector<8x8xbf16>
    %528 = vector.extract_strided_slice %489 {offsets = [0, 16], sizes = [8, 8], strides = [1, 1]} : vector<8x32xbf16> to vector<8x8xbf16>
    %cst_223 = arith.constant dense<0.000000e+00> : vector<8x8xf32>
    %529 = tpu.matmul %527, %528, %cst_223 {dimension_numbers = #tpu.dot_dimension_numbers<[1], [1], [0], [0], [0, 0, 1, 0], [], []>} : vector<8x8xbf16>, vector<8x8xbf16>, vector<8x8xf32> -> vector<8x8xf32>
    %530 = arith.addf %529, %13 : vector<8x8xf32>
    %cst_224 = arith.constant dense<0xFF800000> : vector<8xf32>
    %531 = vector.multi_reduction <maximumf>, %530, %cst_224 [1] : vector<8x8xf32> to vector<8xf32>
    %532 = vector.shape_cast %531 : vector<8xf32> to vector<8x1xf32>
    %533 = vector.broadcast %532 : vector<8x1xf32> to vector<8x8xf32>
    %534 = arith.subf %530, %533 : vector<8x8xf32>
    %535 = math.exp %534 : vector<8x8xf32>
    %cst_225 = arith.constant dense<0.000000e+00> : vector<8xf32>
    %536 = vector.multi_reduction <add>, %535, %cst_225 [1] : vector<8x8xf32> to vector<8xf32>
    %537 = vector.shape_cast %536 : vector<8xf32> to vector<8x1xf32>
    %538 = tpu.reciprocal %537 {approx = true} : vector<8x1xf32> -> vector<8x1xf32>
    %539 = vector.broadcast %538 : vector<8x1xf32> to vector<8x8xf32>
    %540 = arith.mulf %535, %539 : vector<8x8xf32>
    %541 = arith.truncf %540 : vector<8x8xf32> to vector<8x8xbf16>
    %542 = vector.extract_strided_slice %490 {offsets = [0, 16], sizes = [8, 8], strides = [1, 1]} : vector<8x32xbf16> to vector<8x8xbf16>
    %cst_226 = arith.constant dense<0.000000e+00> : vector<8x8xf32>
    %543 = tpu.matmul %541, %542, %cst_226 {dimension_numbers = #tpu.dot_dimension_numbers<[1], [0], [0], [1], [0, 0, 1, 1], [], []>} : vector<8x8xbf16>, vector<8x8xbf16>, vector<8x8xf32> -> vector<8x8xf32>
    %c0_227 = arith.constant 0 : index
    %c16_228 = arith.constant 16 : index
    %544 = vector.load %arg33[%c0_227, %c16_228] : memref<8x32xf32, #tpu.memory_space<vmem>>, vector<8x8xf32>
    tpu.vector_store %arg33[%c0_227, %c16_228], %543 {strides = array<i32>} : memref<8x32xf32, #tpu.memory_space<vmem>>, vector<8x8xf32>,
    %545 = vector.extract_strided_slice %488 {offsets = [0, 24], sizes = [8, 8], strides = [1, 1]} : vector<8x32xbf16> to vector<8x8xbf16>
    %546 = vector.extract_strided_slice %489 {offsets = [0, 24], sizes = [8, 8], strides = [1, 1]} : vector<8x32xbf16> to vector<8x8xbf16>
    %cst_229 = arith.constant dense<0.000000e+00> : vector<8x8xf32>
    %547 = tpu.matmul %545, %546, %cst_229 {dimension_numbers = #tpu.dot_dimension_numbers<[1], [1], [0], [0], [0, 0, 1, 0], [], []>} : vector<8x8xbf16>, vector<8x8xbf16>, vector<8x8xf32> -> vector<8x8xf32>
    %548 = arith.addf %547, %13 : vector<8x8xf32>
    %cst_230 = arith.constant dense<0xFF800000> : vector<8xf32>
    %549 = vector.multi_reduction <maximumf>, %548, %cst_230 [1] : vector<8x8xf32> to vector<8xf32>
    %550 = vector.shape_cast %549 : vector<8xf32> to vector<8x1xf32>
    %551 = vector.broadcast %550 : vector<8x1xf32> to vector<8x8xf32>
    %552 = arith.subf %548, %551 : vector<8x8xf32>
    %553 = math.exp %552 : vector<8x8xf32>
    %cst_231 = arith.constant dense<0.000000e+00> : vector<8xf32>
    %554 = vector.multi_reduction <add>, %553, %cst_231 [1] : vector<8x8xf32> to vector<8xf32>
    %555 = vector.shape_cast %554 : vector<8xf32> to vector<8x1xf32>
    %556 = tpu.reciprocal %555 {approx = true} : vector<8x1xf32> -> vector<8x1xf32>
    %557 = vector.broadcast %556 : vector<8x1xf32> to vector<8x8xf32>
    %558 = arith.mulf %553, %557 : vector<8x8xf32>
    %559 = arith.truncf %558 : vector<8x8xf32> to vector<8x8xbf16>
    %560 = vector.extract_strided_slice %490 {offsets = [0, 24], sizes = [8, 8], strides = [1, 1]} : vector<8x32xbf16> to vector<8x8xbf16>
    %cst_232 = arith.constant dense<0.000000e+00> : vector<8x8xf32>
    %561 = tpu.matmul %559, %560, %cst_232 {dimension_numbers = #tpu.dot_dimension_numbers<[1], [0], [0], [1], [0, 0, 1, 1], [], []>} : vector<8x8xbf16>, vector<8x8xbf16>, vector<8x8xf32> -> vector<8x8xf32>
    %c0_233 = arith.constant 0 : index
    %c24_234 = arith.constant 24 : index
    %562 = vector.load %arg33[%c0_233, %c24_234] : memref<8x32xf32, #tpu.memory_space<vmem>>, vector<8x8xf32>
    tpu.vector_store %arg33[%c0_233, %c24_234], %561 {strides = array<i32>} : memref<8x32xf32, #tpu.memory_space<vmem>>, vector<8x8xf32>,
    %c0_235 = arith.constant 0 : index
    %c0_236 = arith.constant 0 : index
    %563 = vector.load %arg33[%c0_235, %c0_236] : memref<8x32xf32, #tpu.memory_space<vmem>>, vector<8x32xf32>
    %564 = arith.truncf %563 : vector<8x32xf32> to vector<8x32xbf16>
    %c1_237 = arith.constant 1 : index
    %c0_238 = arith.constant 0 : index
    %c0_239 = arith.constant 0 : index
    %565 = vector.load %arg9[%c1_237, %c0_238, %c0_239] : memref<2x32x32xbf16, #tpu.memory_space<vmem>>, vector<1x32x32xbf16>
    %566 = vector.shape_cast %565 : vector<1x32x32xbf16> to vector<32x32xbf16>
    %cst_240 = arith.constant dense<0.000000e+00> : vector<8x32xf32>
    %567 = tpu.matmul %564, %566, %cst_240 {dimension_numbers = #tpu.dot_dimension_numbers<[1], [0], [0], [1], [0, 0, 1, 1], [], []>} : vector<8x32xbf16>, vector<32x32xbf16>, vector<8x32xf32> -> vector<8x32xf32>
    %568 = arith.addf %448, %567 : vector<8x32xf32>
    %c1_241 = arith.constant 1 : index
    %c0_242 = arith.constant 0 : index
    %c0_243 = arith.constant 0 : index
    %569 = vector.load %arg10[%c1_241, %c0_242, %c0_243] : memref<2x1x32xf32, #tpu.memory_space<vmem>>, vector<1x1x32xf32>
    %570 = vector.shape_cast %569 : vector<1x1x32xf32> to vector<1x32xf32>
    %571 = vector.broadcast %570 : vector<1x32xf32> to vector<8x32xf32>
    %572 = arith.addf %568, %571 : vector<8x32xf32>
    %573 = vector.extract_strided_slice %450 {offsets = [1, 0], sizes = [1, 32], strides = [1, 1]} : vector<4x32xf32> to vector<1x32xf32>
    %574 = vector.extract_strided_slice %452 {offsets = [1, 0], sizes = [1, 32], strides = [1, 1]} : vector<4x32xf32> to vector<1x32xf32>
    %cst_244 = arith.constant dense<0.000000e+00> : vector<8xf32>
    %575 = vector.multi_reduction <add>, %572, %cst_244 [1] : vector<8x32xf32> to vector<8xf32>
    %576 = vector.shape_cast %575 : vector<8xf32> to vector<8x1xf32>
    %cst_245 = arith.constant 3.200000e+01 : f32
    %577 = vector.broadcast %cst_245 : f32 to vector<8x1xf32>
    %578 = arith.divf %576, %577 : vector<8x1xf32>
    %579 = vector.broadcast %578 : vector<8x1xf32> to vector<8x32xf32>
    %580 = arith.subf %572, %579 : vector<8x32xf32>
    %581 = arith.mulf %580, %580 : vector<8x32xf32>
    %cst_246 = arith.constant dense<0.000000e+00> : vector<8xf32>
    %582 = vector.multi_reduction <add>, %581, %cst_246 [1] : vector<8x32xf32> to vector<8xf32>
    %583 = vector.shape_cast %582 : vector<8xf32> to vector<8x1xf32>
    %cst_247 = arith.constant 0.0322580636 : f32
    %584 = vector.broadcast %cst_247 : f32 to vector<8x1xf32>
    %585 = arith.mulf %583, %584 : vector<8x1xf32>
    %586 = vector.broadcast %578 : vector<8x1xf32> to vector<8x32xf32>
    %587 = arith.subf %572, %586 : vector<8x32xf32>
    %588 = vector.broadcast %573 : vector<1x32xf32> to vector<8x32xf32>
    %589 = arith.mulf %588, %587 : vector<8x32xf32>
    %590 = math.sqrt %585 : vector<8x1xf32>
    %cst_248 = arith.constant 9.99999997E-7 : f32
    %591 = vector.broadcast %cst_248 : f32 to vector<8x1xf32>
    %592 = arith.addf %590, %591 : vector<8x1xf32>
    %593 = vector.broadcast %592 : vector<8x1xf32> to vector<8x32xf32>
    %594 = arith.divf %589, %593 : vector<8x32xf32>
    %595 = vector.broadcast %574 : vector<1x32xf32> to vector<8x32xf32>
    %596 = arith.addf %594, %595 : vector<8x32xf32>
    %597 = arith.truncf %596 : vector<8x32xf32> to vector<8x32xbf16>
    %c1_249 = arith.constant 1 : index
    %c0_250 = arith.constant 0 : index
    %c0_251 = arith.constant 0 : index
    %598 = vector.load %arg11[%c1_249, %c0_250, %c0_251] : memref<2x32x32xbf16, #tpu.memory_space<vmem>>, vector<1x32x32xbf16>
    %599 = vector.shape_cast %598 : vector<1x32x32xbf16> to vector<32x32xbf16>
    %cst_252 = arith.constant dense<0.000000e+00> : vector<8x32xf32>
    %600 = tpu.matmul %597, %599, %cst_252 {dimension_numbers = #tpu.dot_dimension_numbers<[1], [0], [0], [1], [0, 0, 1, 1], [], []>} : vector<8x32xbf16>, vector<32x32xbf16>, vector<8x32xf32> -> vector<8x32xf32>
    %c1_253 = arith.constant 1 : index
    %c0_254 = arith.constant 0 : index
    %c0_255 = arith.constant 0 : index
    %601 = vector.load %arg12[%c1_253, %c0_254, %c0_255] : memref<2x1x32xf32, #tpu.memory_space<vmem>>, vector<1x1x32xf32>
    %602 = vector.shape_cast %601 : vector<1x1x32xf32> to vector<1x32xf32>
    %603 = vector.broadcast %602 : vector<1x32xf32> to vector<8x32xf32>
    %604 = arith.addf %600, %603 : vector<8x32xf32>
    %c1_256 = arith.constant 1 : index
    %c0_257 = arith.constant 0 : index
    %c0_258 = arith.constant 0 : index
    %605 = vector.load %arg13[%c1_256, %c0_257, %c0_258] : memref<2x32x64xbf16, #tpu.memory_space<vmem>>, vector<1x32x64xbf16>
    %606 = vector.shape_cast %605 : vector<1x32x64xbf16> to vector<32x64xbf16>
    %cst_259 = arith.constant dense<0.000000e+00> : vector<16x64xf32>
    %607 = tpu.matmul %4, %606, %cst_259 {dimension_numbers = #tpu.dot_dimension_numbers<[1], [0], [0], [1], [0, 0, 1, 1], [], []>} : vector<16x32xbf16>, vector<32x64xbf16>, vector<16x64xf32> -> vector<16x64xf32>
    %c1_260 = arith.constant 1 : index
    %c0_261 = arith.constant 0 : index
    %c0_262 = arith.constant 0 : index
    %608 = vector.load %arg14[%c1_260, %c0_261, %c0_262] : memref<2x1x64xf32, #tpu.memory_space<vmem>>, vector<1x1x64xf32>
    %609 = vector.shape_cast %608 : vector<1x1x64xf32> to vector<1x64xf32>
    %610 = vector.broadcast %609 : vector<1x64xf32> to vector<16x64xf32>
    %611 = arith.addf %607, %610 : vector<16x64xf32>
    %612 = vector.extract_strided_slice %611 {offsets = [0, 0], sizes = [16, 32], strides = [1, 1]} : vector<16x64xf32> to vector<16x32xf32>
    %613 = vector.extract_strided_slice %611 {offsets = [0, 32], sizes = [16, 32], strides = [1, 1]} : vector<16x64xf32> to vector<16x32xf32>
    %614 = arith.truncf %604 : vector<8x32xf32> to vector<8x32xbf16>
    %615 = arith.truncf %612 : vector<16x32xf32> to vector<16x32xbf16>
    %616 = arith.truncf %613 : vector<16x32xf32> to vector<16x32xbf16>
    %617 = vector.extract_strided_slice %614 {offsets = [0, 0], sizes = [8, 8], strides = [1, 1]} : vector<8x32xbf16> to vector<8x8xbf16>
    %618 = vector.extract_strided_slice %615 {offsets = [0, 0], sizes = [16, 8], strides = [1, 1]} : vector<16x32xbf16> to vector<16x8xbf16>
    %cst_263 = arith.constant dense<0.000000e+00> : vector<8x16xf32>
    %619 = tpu.matmul %617, %618, %cst_263 {dimension_numbers = #tpu.dot_dimension_numbers<[1], [1], [0], [0], [0, 0, 1, 0], [], []>} : vector<8x8xbf16>, vector<16x8xbf16>, vector<8x16xf32> -> vector<8x16xf32>
    %620 = arith.addf %619, %21 : vector<8x16xf32>
    %cst_264 = arith.constant dense<0xFF800000> : vector<8xf32>
    %621 = vector.multi_reduction <maximumf>, %620, %cst_264 [1] : vector<8x16xf32> to vector<8xf32>
    %622 = vector.shape_cast %621 : vector<8xf32> to vector<8x1xf32>
    %623 = vector.broadcast %622 : vector<8x1xf32> to vector<8x16xf32>
    %624 = arith.subf %620, %623 : vector<8x16xf32>
    %625 = math.exp %624 : vector<8x16xf32>
    %cst_265 = arith.constant dense<0.000000e+00> : vector<8xf32>
    %626 = vector.multi_reduction <add>, %625, %cst_265 [1] : vector<8x16xf32> to vector<8xf32>
    %627 = vector.shape_cast %626 : vector<8xf32> to vector<8x1xf32>
    %628 = tpu.reciprocal %627 {approx = true} : vector<8x1xf32> -> vector<8x1xf32>
    %629 = vector.broadcast %628 : vector<8x1xf32> to vector<8x16xf32>
    %630 = arith.mulf %625, %629 : vector<8x16xf32>
    %631 = arith.truncf %630 : vector<8x16xf32> to vector<8x16xbf16>
    %632 = vector.extract_strided_slice %616 {offsets = [0, 0], sizes = [16, 8], strides = [1, 1]} : vector<16x32xbf16> to vector<16x8xbf16>
    %cst_266 = arith.constant dense<0.000000e+00> : vector<8x8xf32>
    %633 = tpu.matmul %631, %632, %cst_266 {dimension_numbers = #tpu.dot_dimension_numbers<[1], [0], [0], [1], [0, 0, 1, 1], [], []>} : vector<8x16xbf16>, vector<16x8xbf16>, vector<8x8xf32> -> vector<8x8xf32>
    %c0_267 = arith.constant 0 : index
    %c0_268 = arith.constant 0 : index
    %634 = vector.load %arg33[%c0_267, %c0_268] : memref<8x32xf32, #tpu.memory_space<vmem>>, vector<8x8xf32>
    tpu.vector_store %arg33[%c0_267, %c0_268], %633 {strides = array<i32>} : memref<8x32xf32, #tpu.memory_space<vmem>>, vector<8x8xf32>,
    %635 = vector.extract_strided_slice %614 {offsets = [0, 8], sizes = [8, 8], strides = [1, 1]} : vector<8x32xbf16> to vector<8x8xbf16>
    %636 = vector.extract_strided_slice %615 {offsets = [0, 8], sizes = [16, 8], strides = [1, 1]} : vector<16x32xbf16> to vector<16x8xbf16>
    %cst_269 = arith.constant dense<0.000000e+00> : vector<8x16xf32>
    %637 = tpu.matmul %635, %636, %cst_269 {dimension_numbers = #tpu.dot_dimension_numbers<[1], [1], [0], [0], [0, 0, 1, 0], [], []>} : vector<8x8xbf16>, vector<16x8xbf16>, vector<8x16xf32> -> vector<8x16xf32>
    %638 = arith.addf %637, %21 : vector<8x16xf32>
    %cst_270 = arith.constant dense<0xFF800000> : vector<8xf32>
    %639 = vector.multi_reduction <maximumf>, %638, %cst_270 [1] : vector<8x16xf32> to vector<8xf32>
    %640 = vector.shape_cast %639 : vector<8xf32> to vector<8x1xf32>
    %641 = vector.broadcast %640 : vector<8x1xf32> to vector<8x16xf32>
    %642 = arith.subf %638, %641 : vector<8x16xf32>
    %643 = math.exp %642 : vector<8x16xf32>
    %cst_271 = arith.constant dense<0.000000e+00> : vector<8xf32>
    %644 = vector.multi_reduction <add>, %643, %cst_271 [1] : vector<8x16xf32> to vector<8xf32>
    %645 = vector.shape_cast %644 : vector<8xf32> to vector<8x1xf32>
    %646 = tpu.reciprocal %645 {approx = true} : vector<8x1xf32> -> vector<8x1xf32>
    %647 = vector.broadcast %646 : vector<8x1xf32> to vector<8x16xf32>
    %648 = arith.mulf %643, %647 : vector<8x16xf32>
    %649 = arith.truncf %648 : vector<8x16xf32> to vector<8x16xbf16>
    %650 = vector.extract_strided_slice %616 {offsets = [0, 8], sizes = [16, 8], strides = [1, 1]} : vector<16x32xbf16> to vector<16x8xbf16>
    %cst_272 = arith.constant dense<0.000000e+00> : vector<8x8xf32>
    %651 = tpu.matmul %649, %650, %cst_272 {dimension_numbers = #tpu.dot_dimension_numbers<[1], [0], [0], [1], [0, 0, 1, 1], [], []>} : vector<8x16xbf16>, vector<16x8xbf16>, vector<8x8xf32> -> vector<8x8xf32>
    %c0_273 = arith.constant 0 : index
    %c8_274 = arith.constant 8 : index
    %652 = vector.load %arg33[%c0_273, %c8_274] : memref<8x32xf32, #tpu.memory_space<vmem>>, vector<8x8xf32>
    tpu.vector_store %arg33[%c0_273, %c8_274], %651 {strides = array<i32>} : memref<8x32xf32, #tpu.memory_space<vmem>>, vector<8x8xf32>,
    %653 = vector.extract_strided_slice %614 {offsets = [0, 16], sizes = [8, 8], strides = [1, 1]} : vector<8x32xbf16> to vector<8x8xbf16>
    %654 = vector.extract_strided_slice %615 {offsets = [0, 16], sizes = [16, 8], strides = [1, 1]} : vector<16x32xbf16> to vector<16x8xbf16>
    %cst_275 = arith.constant dense<0.000000e+00> : vector<8x16xf32>
    %655 = tpu.matmul %653, %654, %cst_275 {dimension_numbers = #tpu.dot_dimension_numbers<[1], [1], [0], [0], [0, 0, 1, 0], [], []>} : vector<8x8xbf16>, vector<16x8xbf16>, vector<8x16xf32> -> vector<8x16xf32>
    %656 = arith.addf %655, %21 : vector<8x16xf32>
    %cst_276 = arith.constant dense<0xFF800000> : vector<8xf32>
    %657 = vector.multi_reduction <maximumf>, %656, %cst_276 [1] : vector<8x16xf32> to vector<8xf32>
    %658 = vector.shape_cast %657 : vector<8xf32> to vector<8x1xf32>
    %659 = vector.broadcast %658 : vector<8x1xf32> to vector<8x16xf32>
    %660 = arith.subf %656, %659 : vector<8x16xf32>
    %661 = math.exp %660 : vector<8x16xf32>
    %cst_277 = arith.constant dense<0.000000e+00> : vector<8xf32>
    %662 = vector.multi_reduction <add>, %661, %cst_277 [1] : vector<8x16xf32> to vector<8xf32>
    %663 = vector.shape_cast %662 : vector<8xf32> to vector<8x1xf32>
    %664 = tpu.reciprocal %663 {approx = true} : vector<8x1xf32> -> vector<8x1xf32>
    %665 = vector.broadcast %664 : vector<8x1xf32> to vector<8x16xf32>
    %666 = arith.mulf %661, %665 : vector<8x16xf32>
    %667 = arith.truncf %666 : vector<8x16xf32> to vector<8x16xbf16>
    %668 = vector.extract_strided_slice %616 {offsets = [0, 16], sizes = [16, 8], strides = [1, 1]} : vector<16x32xbf16> to vector<16x8xbf16>
    %cst_278 = arith.constant dense<0.000000e+00> : vector<8x8xf32>
    %669 = tpu.matmul %667, %668, %cst_278 {dimension_numbers = #tpu.dot_dimension_numbers<[1], [0], [0], [1], [0, 0, 1, 1], [], []>} : vector<8x16xbf16>, vector<16x8xbf16>, vector<8x8xf32> -> vector<8x8xf32>
    %c0_279 = arith.constant 0 : index
    %c16_280 = arith.constant 16 : index
    %670 = vector.load %arg33[%c0_279, %c16_280] : memref<8x32xf32, #tpu.memory_space<vmem>>, vector<8x8xf32>
    tpu.vector_store %arg33[%c0_279, %c16_280], %669 {strides = array<i32>} : memref<8x32xf32, #tpu.memory_space<vmem>>, vector<8x8xf32>,
    %671 = vector.extract_strided_slice %614 {offsets = [0, 24], sizes = [8, 8], strides = [1, 1]} : vector<8x32xbf16> to vector<8x8xbf16>
    %672 = vector.extract_strided_slice %615 {offsets = [0, 24], sizes = [16, 8], strides = [1, 1]} : vector<16x32xbf16> to vector<16x8xbf16>
    %cst_281 = arith.constant dense<0.000000e+00> : vector<8x16xf32>
    %673 = tpu.matmul %671, %672, %cst_281 {dimension_numbers = #tpu.dot_dimension_numbers<[1], [1], [0], [0], [0, 0, 1, 0], [], []>} : vector<8x8xbf16>, vector<16x8xbf16>, vector<8x16xf32> -> vector<8x16xf32>
    %674 = arith.addf %673, %21 : vector<8x16xf32>
    %cst_282 = arith.constant dense<0xFF800000> : vector<8xf32>
    %675 = vector.multi_reduction <maximumf>, %674, %cst_282 [1] : vector<8x16xf32> to vector<8xf32>
    %676 = vector.shape_cast %675 : vector<8xf32> to vector<8x1xf32>
    %677 = vector.broadcast %676 : vector<8x1xf32> to vector<8x16xf32>
    %678 = arith.subf %674, %677 : vector<8x16xf32>
    %679 = math.exp %678 : vector<8x16xf32>
    %cst_283 = arith.constant dense<0.000000e+00> : vector<8xf32>
    %680 = vector.multi_reduction <add>, %679, %cst_283 [1] : vector<8x16xf32> to vector<8xf32>
    %681 = vector.shape_cast %680 : vector<8xf32> to vector<8x1xf32>
    %682 = tpu.reciprocal %681 {approx = true} : vector<8x1xf32> -> vector<8x1xf32>
    %683 = vector.broadcast %682 : vector<8x1xf32> to vector<8x16xf32>
    %684 = arith.mulf %679, %683 : vector<8x16xf32>
    %685 = arith.truncf %684 : vector<8x16xf32> to vector<8x16xbf16>
    %686 = vector.extract_strided_slice %616 {offsets = [0, 24], sizes = [16, 8], strides = [1, 1]} : vector<16x32xbf16> to vector<16x8xbf16>
    %cst_284 = arith.constant dense<0.000000e+00> : vector<8x8xf32>
    %687 = tpu.matmul %685, %686, %cst_284 {dimension_numbers = #tpu.dot_dimension_numbers<[1], [0], [0], [1], [0, 0, 1, 1], [], []>} : vector<8x16xbf16>, vector<16x8xbf16>, vector<8x8xf32> -> vector<8x8xf32>
    %c0_285 = arith.constant 0 : index
    %c24_286 = arith.constant 24 : index
    %688 = vector.load %arg33[%c0_285, %c24_286] : memref<8x32xf32, #tpu.memory_space<vmem>>, vector<8x8xf32>
    tpu.vector_store %arg33[%c0_285, %c24_286], %687 {strides = array<i32>} : memref<8x32xf32, #tpu.memory_space<vmem>>, vector<8x8xf32>,
    %c0_287 = arith.constant 0 : index
    %c0_288 = arith.constant 0 : index
    %689 = vector.load %arg33[%c0_287, %c0_288] : memref<8x32xf32, #tpu.memory_space<vmem>>, vector<8x32xf32>
    %690 = arith.truncf %689 : vector<8x32xf32> to vector<8x32xbf16>
    %c1_289 = arith.constant 1 : index
    %c0_290 = arith.constant 0 : index
    %c0_291 = arith.constant 0 : index
    %691 = vector.load %arg15[%c1_289, %c0_290, %c0_291] : memref<2x32x32xbf16, #tpu.memory_space<vmem>>, vector<1x32x32xbf16>
    %692 = vector.shape_cast %691 : vector<1x32x32xbf16> to vector<32x32xbf16>
    %cst_292 = arith.constant dense<0.000000e+00> : vector<8x32xf32>
    %693 = tpu.matmul %690, %692, %cst_292 {dimension_numbers = #tpu.dot_dimension_numbers<[1], [0], [0], [1], [0, 0, 1, 1], [], []>} : vector<8x32xbf16>, vector<32x32xbf16>, vector<8x32xf32> -> vector<8x32xf32>
    %694 = arith.addf %572, %693 : vector<8x32xf32>
    %c1_293 = arith.constant 1 : index
    %c0_294 = arith.constant 0 : index
    %c0_295 = arith.constant 0 : index
    %695 = vector.load %arg16[%c1_293, %c0_294, %c0_295] : memref<2x1x32xf32, #tpu.memory_space<vmem>>, vector<1x1x32xf32>
    %696 = vector.shape_cast %695 : vector<1x1x32xf32> to vector<1x32xf32>
    %697 = vector.broadcast %696 : vector<1x32xf32> to vector<8x32xf32>
    %698 = arith.addf %694, %697 : vector<8x32xf32>
    %699 = vector.extract_strided_slice %450 {offsets = [2, 0], sizes = [1, 32], strides = [1, 1]} : vector<4x32xf32> to vector<1x32xf32>
    %700 = vector.extract_strided_slice %452 {offsets = [2, 0], sizes = [1, 32], strides = [1, 1]} : vector<4x32xf32> to vector<1x32xf32>
    %cst_296 = arith.constant dense<0.000000e+00> : vector<8xf32>
    %701 = vector.multi_reduction <add>, %698, %cst_296 [1] : vector<8x32xf32> to vector<8xf32>
    %702 = vector.shape_cast %701 : vector<8xf32> to vector<8x1xf32>
    %cst_297 = arith.constant 3.200000e+01 : f32
    %703 = vector.broadcast %cst_297 : f32 to vector<8x1xf32>
    %704 = arith.divf %702, %703 : vector<8x1xf32>
    %705 = vector.broadcast %704 : vector<8x1xf32> to vector<8x32xf32>
    %706 = arith.subf %698, %705 : vector<8x32xf32>
    %707 = arith.mulf %706, %706 : vector<8x32xf32>
    %cst_298 = arith.constant dense<0.000000e+00> : vector<8xf32>
    %708 = vector.multi_reduction <add>, %707, %cst_298 [1] : vector<8x32xf32> to vector<8xf32>
    %709 = vector.shape_cast %708 : vector<8xf32> to vector<8x1xf32>
    %cst_299 = arith.constant 0.0322580636 : f32
    %710 = vector.broadcast %cst_299 : f32 to vector<8x1xf32>
    %711 = arith.mulf %709, %710 : vector<8x1xf32>
    %712 = vector.broadcast %704 : vector<8x1xf32> to vector<8x32xf32>
    %713 = arith.subf %698, %712 : vector<8x32xf32>
    %714 = vector.broadcast %699 : vector<1x32xf32> to vector<8x32xf32>
    %715 = arith.mulf %714, %713 : vector<8x32xf32>
    %716 = math.sqrt %711 : vector<8x1xf32>
    %cst_300 = arith.constant 9.99999997E-7 : f32
    %717 = vector.broadcast %cst_300 : f32 to vector<8x1xf32>
    %718 = arith.addf %716, %717 : vector<8x1xf32>
    %719 = vector.broadcast %718 : vector<8x1xf32> to vector<8x32xf32>
    %720 = arith.divf %715, %719 : vector<8x32xf32>
    %721 = vector.broadcast %700 : vector<1x32xf32> to vector<8x32xf32>
    %722 = arith.addf %720, %721 : vector<8x32xf32>
    %723 = arith.truncf %722 : vector<8x32xf32> to vector<8x32xbf16>
    %c1_301 = arith.constant 1 : index
    %c0_302 = arith.constant 0 : index
    %c0_303 = arith.constant 0 : index
    %724 = vector.load %arg17[%c1_301, %c0_302, %c0_303] : memref<2x32x32xbf16, #tpu.memory_space<vmem>>, vector<1x32x32xbf16>
    %725 = vector.shape_cast %724 : vector<1x32x32xbf16> to vector<32x32xbf16>
    %cst_304 = arith.constant dense<0.000000e+00> : vector<8x32xf32>
    %726 = tpu.matmul %723, %725, %cst_304 {dimension_numbers = #tpu.dot_dimension_numbers<[1], [0], [0], [1], [0, 0, 1, 1], [], []>} : vector<8x32xbf16>, vector<32x32xbf16>, vector<8x32xf32> -> vector<8x32xf32>
    %c1_305 = arith.constant 1 : index
    %c0_306 = arith.constant 0 : index
    %c0_307 = arith.constant 0 : index
    %727 = vector.load %arg18[%c1_305, %c0_306, %c0_307] : memref<2x1x32xf32, #tpu.memory_space<vmem>>, vector<1x1x32xf32>
    %728 = vector.shape_cast %727 : vector<1x1x32xf32> to vector<1x32xf32>
    %729 = vector.broadcast %728 : vector<1x32xf32> to vector<8x32xf32>
    %730 = arith.addf %726, %729 : vector<8x32xf32>
    %c1_308 = arith.constant 1 : index
    %c0_309 = arith.constant 0 : index
    %c0_310 = arith.constant 0 : index
    %731 = vector.load %arg19[%c1_308, %c0_309, %c0_310] : memref<2x32x64xbf16, #tpu.memory_space<vmem>>, vector<1x32x64xbf16>
    %732 = vector.shape_cast %731 : vector<1x32x64xbf16> to vector<32x64xbf16>
    %cst_311 = arith.constant dense<0.000000e+00> : vector<12x64xf32>
    %733 = tpu.matmul %7, %732, %cst_311 {dimension_numbers = #tpu.dot_dimension_numbers<[1], [0], [0], [1], [0, 0, 1, 1], [], []>} : vector<12x32xbf16>, vector<32x64xbf16>, vector<12x64xf32> -> vector<12x64xf32>
    %c1_312 = arith.constant 1 : index
    %c0_313 = arith.constant 0 : index
    %c0_314 = arith.constant 0 : index
    %734 = vector.load %arg20[%c1_312, %c0_313, %c0_314] : memref<2x1x64xf32, #tpu.memory_space<vmem>>, vector<1x1x64xf32>
    %735 = vector.shape_cast %734 : vector<1x1x64xf32> to vector<1x64xf32>
    %736 = vector.broadcast %735 : vector<1x64xf32> to vector<12x64xf32>
    %737 = arith.addf %733, %736 : vector<12x64xf32>
    %738 = vector.extract_strided_slice %737 {offsets = [0, 0], sizes = [12, 32], strides = [1, 1]} : vector<12x64xf32> to vector<12x32xf32>
    %739 = vector.extract_strided_slice %737 {offsets = [0, 32], sizes = [12, 32], strides = [1, 1]} : vector<12x64xf32> to vector<12x32xf32>
    %740 = arith.truncf %730 : vector<8x32xf32> to vector<8x32xbf16>
    %741 = arith.truncf %738 : vector<12x32xf32> to vector<12x32xbf16>
    %742 = arith.truncf %739 : vector<12x32xf32> to vector<12x32xbf16>
    %743 = vector.extract_strided_slice %740 {offsets = [0, 0], sizes = [8, 8], strides = [1, 1]} : vector<8x32xbf16> to vector<8x8xbf16>
    %744 = vector.extract_strided_slice %741 {offsets = [0, 0], sizes = [12, 8], strides = [1, 1]} : vector<12x32xbf16> to vector<12x8xbf16>
    %cst_315 = arith.constant dense<0.000000e+00> : vector<8x12xf32>
    %745 = tpu.matmul %743, %744, %cst_315 {dimension_numbers = #tpu.dot_dimension_numbers<[1], [1], [0], [0], [0, 0, 1, 0], [], []>} : vector<8x8xbf16>, vector<12x8xbf16>, vector<8x12xf32> -> vector<8x12xf32>
    %746 = arith.addf %745, %29 : vector<8x12xf32>
    %cst_316 = arith.constant dense<0xFF800000> : vector<8xf32>
    %747 = vector.multi_reduction <maximumf>, %746, %cst_316 [1] : vector<8x12xf32> to vector<8xf32>
    %748 = vector.shape_cast %747 : vector<8xf32> to vector<8x1xf32>
    %749 = vector.broadcast %748 : vector<8x1xf32> to vector<8x12xf32>
    %750 = arith.subf %746, %749 : vector<8x12xf32>
    %751 = math.exp %750 : vector<8x12xf32>
    %cst_317 = arith.constant dense<0.000000e+00> : vector<8xf32>
    %752 = vector.multi_reduction <add>, %751, %cst_317 [1] : vector<8x12xf32> to vector<8xf32>
    %753 = vector.shape_cast %752 : vector<8xf32> to vector<8x1xf32>
    %754 = tpu.reciprocal %753 {approx = true} : vector<8x1xf32> -> vector<8x1xf32>
    %755 = vector.broadcast %754 : vector<8x1xf32> to vector<8x12xf32>
    %756 = arith.mulf %751, %755 : vector<8x12xf32>
    %757 = arith.truncf %756 : vector<8x12xf32> to vector<8x12xbf16>
    %758 = vector.extract_strided_slice %742 {offsets = [0, 0], sizes = [12, 8], strides = [1, 1]} : vector<12x32xbf16> to vector<12x8xbf16>
    %cst_318 = arith.constant dense<0.000000e+00> : vector<8x8xf32>
    %759 = tpu.matmul %757, %758, %cst_318 {dimension_numbers = #tpu.dot_dimension_numbers<[1], [0], [0], [1], [0, 0, 1, 1], [], []>} : vector<8x12xbf16>, vector<12x8xbf16>, vector<8x8xf32> -> vector<8x8xf32>
    %c0_319 = arith.constant 0 : index
    %c0_320 = arith.constant 0 : index
    %760 = vector.load %arg33[%c0_319, %c0_320] : memref<8x32xf32, #tpu.memory_space<vmem>>, vector<8x8xf32>
    tpu.vector_store %arg33[%c0_319, %c0_320], %759 {strides = array<i32>} : memref<8x32xf32, #tpu.memory_space<vmem>>, vector<8x8xf32>,
    %761 = vector.extract_strided_slice %740 {offsets = [0, 8], sizes = [8, 8], strides = [1, 1]} : vector<8x32xbf16> to vector<8x8xbf16>
    %762 = vector.extract_strided_slice %741 {offsets = [0, 8], sizes = [12, 8], strides = [1, 1]} : vector<12x32xbf16> to vector<12x8xbf16>
    %cst_321 = arith.constant dense<0.000000e+00> : vector<8x12xf32>
    %763 = tpu.matmul %761, %762, %cst_321 {dimension_numbers = #tpu.dot_dimension_numbers<[1], [1], [0], [0], [0, 0, 1, 0], [], []>} : vector<8x8xbf16>, vector<12x8xbf16>, vector<8x12xf32> -> vector<8x12xf32>
    %764 = arith.addf %763, %29 : vector<8x12xf32>
    %cst_322 = arith.constant dense<0xFF800000> : vector<8xf32>
    %765 = vector.multi_reduction <maximumf>, %764, %cst_322 [1] : vector<8x12xf32> to vector<8xf32>
    %766 = vector.shape_cast %765 : vector<8xf32> to vector<8x1xf32>
    %767 = vector.broadcast %766 : vector<8x1xf32> to vector<8x12xf32>
    %768 = arith.subf %764, %767 : vector<8x12xf32>
    %769 = math.exp %768 : vector<8x12xf32>
    %cst_323 = arith.constant dense<0.000000e+00> : vector<8xf32>
    %770 = vector.multi_reduction <add>, %769, %cst_323 [1] : vector<8x12xf32> to vector<8xf32>
    %771 = vector.shape_cast %770 : vector<8xf32> to vector<8x1xf32>
    %772 = tpu.reciprocal %771 {approx = true} : vector<8x1xf32> -> vector<8x1xf32>
    %773 = vector.broadcast %772 : vector<8x1xf32> to vector<8x12xf32>
    %774 = arith.mulf %769, %773 : vector<8x12xf32>
    %775 = arith.truncf %774 : vector<8x12xf32> to vector<8x12xbf16>
    %776 = vector.extract_strided_slice %742 {offsets = [0, 8], sizes = [12, 8], strides = [1, 1]} : vector<12x32xbf16> to vector<12x8xbf16>
    %cst_324 = arith.constant dense<0.000000e+00> : vector<8x8xf32>
    %777 = tpu.matmul %775, %776, %cst_324 {dimension_numbers = #tpu.dot_dimension_numbers<[1], [0], [0], [1], [0, 0, 1, 1], [], []>} : vector<8x12xbf16>, vector<12x8xbf16>, vector<8x8xf32> -> vector<8x8xf32>
    %c0_325 = arith.constant 0 : index
    %c8_326 = arith.constant 8 : index
    %778 = vector.load %arg33[%c0_325, %c8_326] : memref<8x32xf32, #tpu.memory_space<vmem>>, vector<8x8xf32>
    tpu.vector_store %arg33[%c0_325, %c8_326], %777 {strides = array<i32>} : memref<8x32xf32, #tpu.memory_space<vmem>>, vector<8x8xf32>,
    %779 = vector.extract_strided_slice %740 {offsets = [0, 16], sizes = [8, 8], strides = [1, 1]} : vector<8x32xbf16> to vector<8x8xbf16>
    %780 = vector.extract_strided_slice %741 {offsets = [0, 16], sizes = [12, 8], strides = [1, 1]} : vector<12x32xbf16> to vector<12x8xbf16>
    %cst_327 = arith.constant dense<0.000000e+00> : vector<8x12xf32>
    %781 = tpu.matmul %779, %780, %cst_327 {dimension_numbers = #tpu.dot_dimension_numbers<[1], [1], [0], [0], [0, 0, 1, 0], [], []>} : vector<8x8xbf16>, vector<12x8xbf16>, vector<8x12xf32> -> vector<8x12xf32>
    %782 = arith.addf %781, %29 : vector<8x12xf32>
    %cst_328 = arith.constant dense<0xFF800000> : vector<8xf32>
    %783 = vector.multi_reduction <maximumf>, %782, %cst_328 [1] : vector<8x12xf32> to vector<8xf32>
    %784 = vector.shape_cast %783 : vector<8xf32> to vector<8x1xf32>
    %785 = vector.broadcast %784 : vector<8x1xf32> to vector<8x12xf32>
    %786 = arith.subf %782, %785 : vector<8x12xf32>
    %787 = math.exp %786 : vector<8x12xf32>
    %cst_329 = arith.constant dense<0.000000e+00> : vector<8xf32>
    %788 = vector.multi_reduction <add>, %787, %cst_329 [1] : vector<8x12xf32> to vector<8xf32>
    %789 = vector.shape_cast %788 : vector<8xf32> to vector<8x1xf32>
    %790 = tpu.reciprocal %789 {approx = true} : vector<8x1xf32> -> vector<8x1xf32>
    %791 = vector.broadcast %790 : vector<8x1xf32> to vector<8x12xf32>
    %792 = arith.mulf %787, %791 : vector<8x12xf32>
    %793 = arith.truncf %792 : vector<8x12xf32> to vector<8x12xbf16>
    %794 = vector.extract_strided_slice %742 {offsets = [0, 16], sizes = [12, 8], strides = [1, 1]} : vector<12x32xbf16> to vector<12x8xbf16>
    %cst_330 = arith.constant dense<0.000000e+00> : vector<8x8xf32>
    %795 = tpu.matmul %793, %794, %cst_330 {dimension_numbers = #tpu.dot_dimension_numbers<[1], [0], [0], [1], [0, 0, 1, 1], [], []>} : vector<8x12xbf16>, vector<12x8xbf16>, vector<8x8xf32> -> vector<8x8xf32>
    %c0_331 = arith.constant 0 : index
    %c16_332 = arith.constant 16 : index
    %796 = vector.load %arg33[%c0_331, %c16_332] : memref<8x32xf32, #tpu.memory_space<vmem>>, vector<8x8xf32>
    tpu.vector_store %arg33[%c0_331, %c16_332], %795 {strides = array<i32>} : memref<8x32xf32, #tpu.memory_space<vmem>>, vector<8x8xf32>,
    %797 = vector.extract_strided_slice %740 {offsets = [0, 24], sizes = [8, 8], strides = [1, 1]} : vector<8x32xbf16> to vector<8x8xbf16>
    %798 = vector.extract_strided_slice %741 {offsets = [0, 24], sizes = [12, 8], strides = [1, 1]} : vector<12x32xbf16> to vector<12x8xbf16>
    %cst_333 = arith.constant dense<0.000000e+00> : vector<8x12xf32>
    %799 = tpu.matmul %797, %798, %cst_333 {dimension_numbers = #tpu.dot_dimension_numbers<[1], [1], [0], [0], [0, 0, 1, 0], [], []>} : vector<8x8xbf16>, vector<12x8xbf16>, vector<8x12xf32> -> vector<8x12xf32>
    %800 = arith.addf %799, %29 : vector<8x12xf32>
    %cst_334 = arith.constant dense<0xFF800000> : vector<8xf32>
    %801 = vector.multi_reduction <maximumf>, %800, %cst_334 [1] : vector<8x12xf32> to vector<8xf32>
    %802 = vector.shape_cast %801 : vector<8xf32> to vector<8x1xf32>
    %803 = vector.broadcast %802 : vector<8x1xf32> to vector<8x12xf32>
    %804 = arith.subf %800, %803 : vector<8x12xf32>
    %805 = math.exp %804 : vector<8x12xf32>
    %cst_335 = arith.constant dense<0.000000e+00> : vector<8xf32>
    %806 = vector.multi_reduction <add>, %805, %cst_335 [1] : vector<8x12xf32> to vector<8xf32>
    %807 = vector.shape_cast %806 : vector<8xf32> to vector<8x1xf32>
    %808 = tpu.reciprocal %807 {approx = true} : vector<8x1xf32> -> vector<8x1xf32>
    %809 = vector.broadcast %808 : vector<8x1xf32> to vector<8x12xf32>
    %810 = arith.mulf %805, %809 : vector<8x12xf32>
    %811 = arith.truncf %810 : vector<8x12xf32> to vector<8x12xbf16>
    %812 = vector.extract_strided_slice %742 {offsets = [0, 24], sizes = [12, 8], strides = [1, 1]} : vector<12x32xbf16> to vector<12x8xbf16>
    %cst_336 = arith.constant dense<0.000000e+00> : vector<8x8xf32>
    %813 = tpu.matmul %811, %812, %cst_336 {dimension_numbers = #tpu.dot_dimension_numbers<[1], [0], [0], [1], [0, 0, 1, 1], [], []>} : vector<8x12xbf16>, vector<12x8xbf16>, vector<8x8xf32> -> vector<8x8xf32>
    %c0_337 = arith.constant 0 : index
    %c24_338 = arith.constant 24 : index
    %814 = vector.load %arg33[%c0_337, %c24_338] : memref<8x32xf32, #tpu.memory_space<vmem>>, vector<8x8xf32>
    tpu.vector_store %arg33[%c0_337, %c24_338], %813 {strides = array<i32>} : memref<8x32xf32, #tpu.memory_space<vmem>>, vector<8x8xf32>,
    %c0_339 = arith.constant 0 : index
    %c0_340 = arith.constant 0 : index
    %815 = vector.load %arg33[%c0_339, %c0_340] : memref<8x32xf32, #tpu.memory_space<vmem>>, vector<8x32xf32>
    %816 = arith.truncf %815 : vector<8x32xf32> to vector<8x32xbf16>
    %c1_341 = arith.constant 1 : index
    %c0_342 = arith.constant 0 : index
    %c0_343 = arith.constant 0 : index
    %817 = vector.load %arg21[%c1_341, %c0_342, %c0_343] : memref<2x32x32xbf16, #tpu.memory_space<vmem>>, vector<1x32x32xbf16>
    %818 = vector.shape_cast %817 : vector<1x32x32xbf16> to vector<32x32xbf16>
    %cst_344 = arith.constant dense<0.000000e+00> : vector<8x32xf32>
    %819 = tpu.matmul %816, %818, %cst_344 {dimension_numbers = #tpu.dot_dimension_numbers<[1], [0], [0], [1], [0, 0, 1, 1], [], []>} : vector<8x32xbf16>, vector<32x32xbf16>, vector<8x32xf32> -> vector<8x32xf32>
    %820 = arith.addf %698, %819 : vector<8x32xf32>
    %c1_345 = arith.constant 1 : index
    %c0_346 = arith.constant 0 : index
    %c0_347 = arith.constant 0 : index
    %821 = vector.load %arg22[%c1_345, %c0_346, %c0_347] : memref<2x1x32xf32, #tpu.memory_space<vmem>>, vector<1x1x32xf32>
    %822 = vector.shape_cast %821 : vector<1x1x32xf32> to vector<1x32xf32>
    %823 = vector.broadcast %822 : vector<1x32xf32> to vector<8x32xf32>
    %824 = arith.addf %820, %823 : vector<8x32xf32>
    %825 = vector.extract_strided_slice %450 {offsets = [3, 0], sizes = [1, 32], strides = [1, 1]} : vector<4x32xf32> to vector<1x32xf32>
    %826 = vector.extract_strided_slice %452 {offsets = [3, 0], sizes = [1, 32], strides = [1, 1]} : vector<4x32xf32> to vector<1x32xf32>
    %cst_348 = arith.constant dense<0.000000e+00> : vector<8xf32>
    %827 = vector.multi_reduction <add>, %824, %cst_348 [1] : vector<8x32xf32> to vector<8xf32>
    %828 = vector.shape_cast %827 : vector<8xf32> to vector<8x1xf32>
    %cst_349 = arith.constant 3.200000e+01 : f32
    %829 = vector.broadcast %cst_349 : f32 to vector<8x1xf32>
    %830 = arith.divf %828, %829 : vector<8x1xf32>
    %831 = vector.broadcast %830 : vector<8x1xf32> to vector<8x32xf32>
    %832 = arith.subf %824, %831 : vector<8x32xf32>
    %833 = arith.mulf %832, %832 : vector<8x32xf32>
    %cst_350 = arith.constant dense<0.000000e+00> : vector<8xf32>
    %834 = vector.multi_reduction <add>, %833, %cst_350 [1] : vector<8x32xf32> to vector<8xf32>
    %835 = vector.shape_cast %834 : vector<8xf32> to vector<8x1xf32>
    %cst_351 = arith.constant 0.0322580636 : f32
    %836 = vector.broadcast %cst_351 : f32 to vector<8x1xf32>
    %837 = arith.mulf %835, %836 : vector<8x1xf32>
    %838 = vector.broadcast %830 : vector<8x1xf32> to vector<8x32xf32>
    %839 = arith.subf %824, %838 : vector<8x32xf32>
    %840 = vector.broadcast %825 : vector<1x32xf32> to vector<8x32xf32>
    %841 = arith.mulf %840, %839 : vector<8x32xf32>
    %842 = math.sqrt %837 : vector<8x1xf32>
    %cst_352 = arith.constant 9.99999997E-7 : f32
    %843 = vector.broadcast %cst_352 : f32 to vector<8x1xf32>
    %844 = arith.addf %842, %843 : vector<8x1xf32>
    %845 = vector.broadcast %844 : vector<8x1xf32> to vector<8x32xf32>
    %846 = arith.divf %841, %845 : vector<8x32xf32>
    %847 = vector.broadcast %826 : vector<1x32xf32> to vector<8x32xf32>
    %848 = arith.addf %846, %847 : vector<8x32xf32>
    %849 = arith.truncf %848 : vector<8x32xf32> to vector<8x32xbf16>
    %c1_353 = arith.constant 1 : index
    %c0_354 = arith.constant 0 : index
    %c0_355 = arith.constant 0 : index
    %850 = vector.load %arg23[%c1_353, %c0_354, %c0_355] : memref<2x32x64xbf16, #tpu.memory_space<vmem>>, vector<1x32x64xbf16>
    %851 = vector.shape_cast %850 : vector<1x32x64xbf16> to vector<32x64xbf16>
    %cst_356 = arith.constant dense<0.000000e+00> : vector<8x64xf32>
    %852 = tpu.matmul %849, %851, %cst_356 {dimension_numbers = #tpu.dot_dimension_numbers<[1], [0], [0], [1], [0, 0, 1, 1], [], []>} : vector<8x32xbf16>, vector<32x64xbf16>, vector<8x64xf32> -> vector<8x64xf32>
    %c1_357 = arith.constant 1 : index
    %c0_358 = arith.constant 0 : index
    %c0_359 = arith.constant 0 : index
    %853 = vector.load %arg24[%c1_357, %c0_358, %c0_359] : memref<2x1x64xf32, #tpu.memory_space<vmem>>, vector<1x1x64xf32>
    %854 = vector.shape_cast %853 : vector<1x1x64xf32> to vector<1x64xf32>
    %855 = vector.broadcast %854 : vector<1x64xf32> to vector<8x64xf32>
    %856 = arith.addf %852, %855 : vector<8x64xf32>
    %cst_360 = arith.constant 0.000000e+00 : f32
    %857 = vector.broadcast %cst_360 : f32 to vector<8x64xf32>
    %858 = arith.maximumf %856, %857 : vector<8x64xf32>
    %859 = arith.truncf %858 : vector<8x64xf32> to vector<8x64xbf16>
    %c1_361 = arith.constant 1 : index
    %c0_362 = arith.constant 0 : index
    %c0_363 = arith.constant 0 : index
    %860 = vector.load %arg25[%c1_361, %c0_362, %c0_363] : memref<2x64x32xbf16, #tpu.memory_space<vmem>>, vector<1x64x32xbf16>
    %861 = vector.shape_cast %860 : vector<1x64x32xbf16> to vector<64x32xbf16>
    %cst_364 = arith.constant dense<0.000000e+00> : vector<8x32xf32>
    %862 = tpu.matmul %859, %861, %cst_364 {dimension_numbers = #tpu.dot_dimension_numbers<[1], [0], [0], [1], [0, 0, 1, 1], [], []>} : vector<8x64xbf16>, vector<64x32xbf16>, vector<8x32xf32> -> vector<8x32xf32>
    %863 = arith.addf %824, %862 : vector<8x32xf32>
    %c1_365 = arith.constant 1 : index
    %c0_366 = arith.constant 0 : index
    %c0_367 = arith.constant 0 : index
    %864 = vector.load %arg26[%c1_365, %c0_366, %c0_367] : memref<2x1x32xf32, #tpu.memory_space<vmem>>, vector<1x1x32xf32>
    %865 = vector.shape_cast %864 : vector<1x1x32xf32> to vector<1x32xf32>
    %866 = vector.broadcast %865 : vector<1x32xf32> to vector<8x32xf32>
    %867 = arith.addf %863, %866 : vector<8x32xf32>
    %c0_368 = arith.constant 0 : index
    %c0_369 = arith.constant 0 : index
    %c0_370 = arith.constant 0 : index
    %868 = vector.load %arg32[%c0_368, %c0_369, %c0_370] : memref<1x8x32xf32, #tpu.memory_space<vmem>>, vector<1x8x32xf32>
    %869 = vector.shape_cast %868 : vector<1x8x32xf32> to vector<8x32xf32>
    %870 = vector.shape_cast %867 : vector<8x32xf32> to vector<1x8x32xf32>
    tpu.vector_store %arg32[%c0_368, %c0_369, %c0_370], %870 {strides = array<i32>} : memref<1x8x32xf32, #tpu.memory_space<vmem>>, vector<1x8x32xf32>,
    %c0_371 = arith.constant 0 : index
    %c0_372 = arith.constant 0 : index
    %871 = vector.load %arg29[%c0_371, %c0_372] : memref<1x32xf32, #tpu.memory_space<vmem>>, vector<1x32xf32>
    %c0_373 = arith.constant 0 : index
    %c0_374 = arith.constant 0 : index
    %872 = vector.load %arg30[%c0_373, %c0_374] : memref<1x32xf32, #tpu.memory_space<vmem>>, vector<1x32xf32>
    %cst_375 = arith.constant dense<0.000000e+00> : vector<8xf32>
    %873 = vector.multi_reduction <add>, %867, %cst_375 [1] : vector<8x32xf32> to vector<8xf32>
    %874 = vector.shape_cast %873 : vector<8xf32> to vector<8x1xf32>
    %cst_376 = arith.constant 3.200000e+01 : f32
    %875 = vector.broadcast %cst_376 : f32 to vector<8x1xf32>
    %876 = arith.divf %874, %875 : vector<8x1xf32>
    %877 = vector.broadcast %876 : vector<8x1xf32> to vector<8x32xf32>
    %878 = arith.subf %867, %877 : vector<8x32xf32>
    %879 = arith.mulf %878, %878 : vector<8x32xf32>
    %cst_377 = arith.constant dense<0.000000e+00> : vector<8xf32>
    %880 = vector.multi_reduction <add>, %879, %cst_377 [1] : vector<8x32xf32> to vector<8xf32>
    %881 = vector.shape_cast %880 : vector<8xf32> to vector<8x1xf32>
    %cst_378 = arith.constant 0.0322580636 : f32
    %882 = vector.broadcast %cst_378 : f32 to vector<8x1xf32>
    %883 = arith.mulf %881, %882 : vector<8x1xf32>
    %884 = vector.broadcast %876 : vector<8x1xf32> to vector<8x32xf32>
    %885 = arith.subf %867, %884 : vector<8x32xf32>
    %886 = vector.broadcast %871 : vector<1x32xf32> to vector<8x32xf32>
    %887 = arith.mulf %886, %885 : vector<8x32xf32>
    %888 = math.sqrt %883 : vector<8x1xf32>
    %cst_379 = arith.constant 9.99999997E-7 : f32
    %889 = vector.broadcast %cst_379 : f32 to vector<8x1xf32>
    %890 = arith.addf %888, %889 : vector<8x1xf32>
    %891 = vector.broadcast %890 : vector<8x1xf32> to vector<8x32xf32>
    %892 = arith.divf %887, %891 : vector<8x32xf32>
    %893 = vector.broadcast %872 : vector<1x32xf32> to vector<8x32xf32>
    %894 = arith.addf %892, %893 : vector<8x32xf32>
    %c0_380 = arith.constant 0 : index
    %c0_381 = arith.constant 0 : index
    %c0_382 = arith.constant 0 : index
    %895 = vector.load %arg31[%c0_380, %c0_381, %c0_382] : memref<1x8x32xf32, #tpu.memory_space<vmem>>, vector<1x8x32xf32>
    %896 = vector.shape_cast %895 : vector<1x8x32xf32> to vector<8x32xf32>
    %897 = vector.shape_cast %894 : vector<8x32xf32> to vector<1x8x32xf32>
    tpu.vector_store %arg31[%c0_380, %c0_381, %c0_382], %897 {strides = array<i32>} : memref<1x8x32xf32, #tpu.memory_space<vmem>>, vector<1x8x32xf32>,
    return
  }
  func.func @transform_0(%arg0: i32) -> (i32, i32, i32) {
    %c0_i32 = arith.constant 0 : i32
    %c0_i32_0 = arith.constant 0 : i32
    %c0_i32_1 = arith.constant 0 : i32
    return %arg0, %c0_i32, %c0_i32_0 : i32, i32, i32
  }
  func.func @transform_1(%arg0: i32) -> (i32, i32, i32) {
    %c0_i32 = arith.constant 0 : i32
    %c0_i32_0 = arith.constant 0 : i32
    %c0_i32_1 = arith.constant 0 : i32
    return %arg0, %c0_i32, %c0_i32_0 : i32, i32, i32
  }
  func.func @transform_2(%arg0: i32) -> (i32, i32, i32) {
    %c0_i32 = arith.constant 0 : i32
    %c0_i32_0 = arith.constant 0 : i32
    %c0_i32_1 = arith.constant 0 : i32
    return %arg0, %c0_i32, %c0_i32_0 : i32, i32, i32
  }
  func.func @transform_3(%arg0: i32) -> (i32, i32, i32) {
    %c0_i32 = arith.constant 0 : i32
    %c0_i32_0 = arith.constant 0 : i32
    %c0_i32_1 = arith.constant 0 : i32
    %c0_i32_2 = arith.constant 0 : i32
    return %c0_i32, %c0_i32_0, %c0_i32_1 : i32, i32, i32
  }
  func.func @transform_4(%arg0: i32) -> (i32, i32, i32) {
    %c0_i32 = arith.constant 0 : i32
    %c0_i32_0 = arith.constant 0 : i32
    %c0_i32_1 = arith.constant 0 : i32
    return %arg0, %c0_i32, %c0_i32_0 : i32, i32, i32
  }
  func.func @transform_5(%arg0: i32) -> (i32, i32, i32) {
    %c0_i32 = arith.constant 0 : i32
    %c0_i32_0 = arith.constant 0 : i32
    %c0_i32_1 = arith.constant 0 : i32
    return %arg0, %c0_i32, %c0_i32_0 : i32, i32, i32
  }
  func.func @transform_6(%arg0: i32) -> (i32, i32, i32) {
    %c0_i32 = arith.constant 0 : i32
    %c0_i32_0 = arith.constant 0 : i32
    %c0_i32_1 = arith.constant 0 : i32
    %c0_i32_2 = arith.constant 0 : i32
    return %c0_i32, %c0_i32_0, %c0_i32_1 : i32, i32, i32
  }
  func.func @transform_7(%arg0: i32) -> (i32, i32, i32) {
    %c0_i32 = arith.constant 0 : i32
    %c0_i32_0 = arith.constant 0 : i32
    %c0_i32_1 = arith.constant 0 : i32
    %c0_i32_2 = arith.constant 0 : i32
    return %c0_i32, %c0_i32_0, %c0_i32_1 : i32, i32, i32
  }
  func.func @transform_8(%arg0: i32) -> (i32, i32, i32) {
    %c0_i32 = arith.constant 0 : i32
    %c0_i32_0 = arith.constant 0 : i32
    %c0_i32_1 = arith.constant 0 : i32
    %c0_i32_2 = arith.constant 0 : i32
    return %c0_i32, %c0_i32_0, %c0_i32_1 : i32, i32, i32
  }
  func.func @transform_9(%arg0: i32) -> (i32, i32, i32) {
    %c0_i32 = arith.constant 0 : i32
    %c0_i32_0 = arith.constant 0 : i32
    %c0_i32_1 = arith.constant 0 : i32
    %c0_i32_2 = arith.constant 0 : i32
    return %c0_i32, %c0_i32_0, %c0_i32_1 : i32, i32, i32
  }
  func.func @transform_10(%arg0: i32) -> (i32, i32, i32) {
    %c0_i32 = arith.constant 0 : i32
    %c0_i32_0 = arith.constant 0 : i32
    %c0_i32_1 = arith.constant 0 : i32
    %c0_i32_2 = arith.constant 0 : i32
    return %c0_i32, %c0_i32_0, %c0_i32_1 : i32, i32, i32
  }
  func.func @transform_11(%arg0: i32) -> (i32, i32, i32) {
    %c0_i32 = arith.constant 0 : i32
    %c0_i32_0 = arith.constant 0 : i32
    %c0_i32_1 = arith.constant 0 : i32
    %c0_i32_2 = arith.constant 0 : i32
    return %c0_i32, %c0_i32_0, %c0_i32_1 : i32, i32, i32
  }
  func.func @transform_12(%arg0: i32) -> (i32, i32, i32) {
    %c0_i32 = arith.constant 0 : i32
    %c0_i32_0 = arith.constant 0 : i32
    %c0_i32_1 = arith.constant 0 : i32
    %c0_i32_2 = arith.constant 0 : i32
    return %c0_i32, %c0_i32_0, %c0_i32_1 : i32, i32, i32
  }
  func.func @transform_13(%arg0: i32) -> (i32, i32, i32) {
    %c0_i32 = arith.constant 0 : i32
    %c0_i32_0 = arith.constant 0 : i32
    %c0_i32_1 = arith.constant 0 : i32
    %c0_i32_2 = arith.constant 0 : i32
    return %c0_i32, %c0_i32_0, %c0_i32_1 : i32, i32, i32
  }
  func.func @transform_14(%arg0: i32) -> (i32, i32, i32) {
    %c0_i32 = arith.constant 0 : i32
    %c0_i32_0 = arith.constant 0 : i32
    %c0_i32_1 = arith.constant 0 : i32
    %c0_i32_2 = arith.constant 0 : i32
    return %c0_i32, %c0_i32_0, %c0_i32_1 : i32, i32, i32
  }
  func.func @transform_15(%arg0: i32) -> (i32, i32, i32) {
    %c0_i32 = arith.constant 0 : i32
    %c0_i32_0 = arith.constant 0 : i32
    %c0_i32_1 = arith.constant 0 : i32
    %c0_i32_2 = arith.constant 0 : i32
    return %c0_i32, %c0_i32_0, %c0_i32_1 : i32, i32, i32
  }
  func.func @transform_16(%arg0: i32) -> (i32, i32, i32) {
    %c0_i32 = arith.constant 0 : i32
    %c0_i32_0 = arith.constant 0 : i32
    %c0_i32_1 = arith.constant 0 : i32
    %c0_i32_2 = arith.constant 0 : i32
    return %c0_i32, %c0_i32_0, %c0_i32_1 : i32, i32, i32
  }
  func.func @transform_17(%arg0: i32) -> (i32, i32, i32) {
    %c0_i32 = arith.constant 0 : i32
    %c0_i32_0 = arith.constant 0 : i32
    %c0_i32_1 = arith.constant 0 : i32
    %c0_i32_2 = arith.constant 0 : i32
    return %c0_i32, %c0_i32_0, %c0_i32_1 : i32, i32, i32
  }
  func.func @transform_18(%arg0: i32) -> (i32, i32, i32) {
    %c0_i32 = arith.constant 0 : i32
    %c0_i32_0 = arith.constant 0 : i32
    %c0_i32_1 = arith.constant 0 : i32
    %c0_i32_2 = arith.constant 0 : i32
    return %c0_i32, %c0_i32_0, %c0_i32_1 : i32, i32, i32
  }
  func.func @transform_19(%arg0: i32) -> (i32, i32, i32) {
    %c0_i32 = arith.constant 0 : i32
    %c0_i32_0 = arith.constant 0 : i32
    %c0_i32_1 = arith.constant 0 : i32
    %c0_i32_2 = arith.constant 0 : i32
    return %c0_i32, %c0_i32_0, %c0_i32_1 : i32, i32, i32
  }
  func.func @transform_20(%arg0: i32) -> (i32, i32, i32) {
    %c0_i32 = arith.constant 0 : i32
    %c0_i32_0 = arith.constant 0 : i32
    %c0_i32_1 = arith.constant 0 : i32
    %c0_i32_2 = arith.constant 0 : i32
    return %c0_i32, %c0_i32_0, %c0_i32_1 : i32, i32, i32
  }
  func.func @transform_21(%arg0: i32) -> (i32, i32, i32) {
    %c0_i32 = arith.constant 0 : i32
    %c0_i32_0 = arith.constant 0 : i32
    %c0_i32_1 = arith.constant 0 : i32
    %c0_i32_2 = arith.constant 0 : i32
    return %c0_i32, %c0_i32_0, %c0_i32_1 : i32, i32, i32
  }
  func.func @transform_22(%arg0: i32) -> (i32, i32, i32) {
    %c0_i32 = arith.constant 0 : i32
    %c0_i32_0 = arith.constant 0 : i32
    %c0_i32_1 = arith.constant 0 : i32
    %c0_i32_2 = arith.constant 0 : i32
    return %c0_i32, %c0_i32_0, %c0_i32_1 : i32, i32, i32
  }
  func.func @transform_23(%arg0: i32) -> (i32, i32, i32) {
    %c0_i32 = arith.constant 0 : i32
    %c0_i32_0 = arith.constant 0 : i32
    %c0_i32_1 = arith.constant 0 : i32
    %c0_i32_2 = arith.constant 0 : i32
    return %c0_i32, %c0_i32_0, %c0_i32_1 : i32, i32, i32
  }
  func.func @transform_24(%arg0: i32) -> (i32, i32, i32) {
    %c0_i32 = arith.constant 0 : i32
    %c0_i32_0 = arith.constant 0 : i32
    %c0_i32_1 = arith.constant 0 : i32
    %c0_i32_2 = arith.constant 0 : i32
    return %c0_i32, %c0_i32_0, %c0_i32_1 : i32, i32, i32
  }
  func.func @transform_25(%arg0: i32) -> (i32, i32, i32) {
    %c0_i32 = arith.constant 0 : i32
    %c0_i32_0 = arith.constant 0 : i32
    %c0_i32_1 = arith.constant 0 : i32
    %c0_i32_2 = arith.constant 0 : i32
    return %c0_i32, %c0_i32_0, %c0_i32_1 : i32, i32, i32
  }
  func.func @transform_26(%arg0: i32) -> (i32, i32, i32) {
    %c0_i32 = arith.constant 0 : i32
    %c0_i32_0 = arith.constant 0 : i32
    %c0_i32_1 = arith.constant 0 : i32
    %c0_i32_2 = arith.constant 0 : i32
    return %c0_i32, %c0_i32_0, %c0_i32_1 : i32, i32, i32
  }
  func.func @transform_27(%arg0: i32) -> (i32, i32, i32) {
    %c0_i32 = arith.constant 0 : i32
    %c0_i32_0 = arith.constant 0 : i32
    %c0_i32_1 = arith.constant 0 : i32
    %c0_i32_2 = arith.constant 0 : i32
    return %c0_i32, %c0_i32_0, %c0_i32_1 : i32, i32, i32
  }
  func.func @transform_28(%arg0: i32) -> (i32, i32) {
    %c0_i32 = arith.constant 0 : i32
    %c0_i32_0 = arith.constant 0 : i32
    %c0_i32_1 = arith.constant 0 : i32
    return %c0_i32, %c0_i32_0 : i32, i32
  }
  func.func @transform_29(%arg0: i32) -> (i32, i32) {
    %c0_i32 = arith.constant 0 : i32
    %c0_i32_0 = arith.constant 0 : i32
    %c0_i32_1 = arith.constant 0 : i32
    return %c0_i32, %c0_i32_0 : i32, i32
  }
  func.func @transform_30(%arg0: i32) -> (i32, i32, i32) {
    %c0_i32 = arith.constant 0 : i32
    %c0_i32_0 = arith.constant 0 : i32
    %c0_i32_1 = arith.constant 0 : i32
    return %arg0, %c0_i32, %c0_i32_0 : i32, i32, i32
  }
  func.func @transform_31(%arg0: i32) -> (i32, i32, i32) {
    %c0_i32 = arith.constant 0 : i32
    %c0_i32_0 = arith.constant 0 : i32
    %c0_i32_1 = arith.constant 0 : i32
    return %arg0, %c0_i32, %c0_i32_0 : i32, i32, i32
  }
}

</mosaic_0001>

<llo_original>
// kernel: mix3_att_decoder.1
$region0: #{mix3_att_decoder.1}
  #allocation0 [shape = 'u32[]', space=smem, size = 0x4, offset = 0x4, fixed_abs, tag = 'smem constant byte address 0x4 - core index']
  #allocation1 [shape = 'u32[144,128]{1,0:T(1,128)}', space=vmem, size = 0x12000, scoped, tag = 'internal scratch']
  #allocation2 [shape = 'f32[8,32]{1,0:T(8,128)}', space=vmem, size = 0x1000, scoped, tag = 'scratch operand']
  %s0 = inlined_call_operand.smem [shape: u32[32], index: -1, kind: input, shape index: {}]
  %s1 = sld [smem:[%s0]]
  %s2 = scalar_lea.smem %s0, 1
  %s3 = sld [smem:[%s2]]
  %s4 = scalar_lea.smem %s0, 2
  %s5 = sld [smem:[%s4]]
  %s6 = scalar_lea.smem %s0, 3
  %s7 = sld [smem:[%s6]]
  %s8 = scalar_lea.smem %s0, 4
  %s9 = sld [smem:[%s8]]
  %s10 = scalar_lea.smem %s0, 5
  %s11 = sld [smem:[%s10]]
  %s12 = scalar_lea.smem %s0, 6
  %s13 = sld [smem:[%s12]]
  %s14 = scalar_lea.smem %s0, 7
  %s15 = sld [smem:[%s14]]
  %s16 = scalar_lea.smem %s0, 8
  %s17 = sld [smem:[%s16]]
  %s18 = scalar_lea.smem %s0, 9
  %s19 = sld [smem:[%s18]]
  %s20 = scalar_lea.smem %s0, 10
  %s21 = sld [smem:[%s20]]
  %s22 = scalar_lea.smem %s0, 11
  %s23 = sld [smem:[%s22]]
  %s24 = scalar_lea.smem %s0, 12
  %s25 = sld [smem:[%s24]]
  %s26 = scalar_lea.smem %s0, 13
  %s27 = sld [smem:[%s26]]
  %s28 = scalar_lea.smem %s0, 14
  %s29 = sld [smem:[%s28]]
  %s30 = scalar_lea.smem %s0, 15
  %s31 = sld [smem:[%s30]]
  %s32 = scalar_lea.smem %s0, 16
  %s33 = sld [smem:[%s32]]
  %s34 = scalar_lea.smem %s0, 17
  %s35 = sld [smem:[%s34]]
  %s36 = scalar_lea.smem %s0, 18
  %s37 = sld [smem:[%s36]]
  %s38 = scalar_lea.smem %s0, 19
  %s39 = sld [smem:[%s38]]
  %s40 = scalar_lea.smem %s0, 20
  %s41 = sld [smem:[%s40]]
  %s42 = scalar_lea.smem %s0, 21
  %s43 = sld [smem:[%s42]]
  %s44 = scalar_lea.smem %s0, 22
  %s45 = sld [smem:[%s44]]
  %s46 = scalar_lea.smem %s0, 23
  %s47 = sld [smem:[%s46]]
  %s48 = scalar_lea.smem %s0, 24
  %s49 = sld [smem:[%s48]]
  %s50 = scalar_lea.smem %s0, 25
  %s51 = sld [smem:[%s50]]
  %s52 = scalar_lea.smem %s0, 26
  %s53 = sld [smem:[%s52]]
  %s54 = scalar_lea.smem %s0, 27
  %s55 = sld [smem:[%s54]]
  %s56 = scalar_lea.smem %s0, 28
  %s57 = sld [smem:[%s56]]
  %s58 = scalar_lea.smem %s0, 29
  %s59 = sld [smem:[%s58]]
  %s60 = scalar_lea.smem %s0, 30
  %s61 = sld [smem:[%s60]]
  %s62 = scalar_lea.smem %s0, 31
  %s63 = sld [smem:[%s62]]
  %64 = xla_tuple %s61, %s63
  %s65 = sld [smem:[#allocation0]]
  $region241: #{mix3_att_decoder.1} parent=0
    _
  %s67 = ssub.s32 1, %s65
  %s68 = scalar_select 0, %s67, %s65
  $region1: #{mix3_att_decoder.1} parent=0
    #allocation3 [shape = 'u8[8192]{0}', space=vmem, size = 0x2000, scoped, tag = 'input window, operand 0']
    #allocation4 [shape = 's32[2]{0}', space=sflag, size = 0x8, scoped, tag = 'scoped memory for mix3_att_decoder.1']
    #allocation5 [shape = 's32[2]{0}', space=sflag, size = 0x8, scoped, tag = 'scoped memory for mix3_att_decoder.1']
    #allocation6 [shape = 'u8[1024]{0}', space=vmem, size = 0x400, scoped, tag = 'input window, operand 4']
    #allocation7 [shape = 's32[2]{0}', space=sflag, size = 0x8, scoped, tag = 'scoped memory for mix3_att_decoder.1']
    #allocation8 [shape = 'u8[1024]{0}', space=vmem, size = 0x400, scoped, tag = 'input window, operand 5']
    #allocation9 [shape = 'u8[1024]{0}', space=vmem, size = 0x400, scoped, tag = 'input window, operand 7, single buffered']
    #allocation10 [shape = 's32[1]{0}', space=sflag, size = 0x4, scoped, tag = 'scoped memory for mix3_att_decoder.1']
    #allocation11 [shape = 'u8[1024]{0}', space=vmem, size = 0x400, scoped, tag = 'input window, operand 9, single buffered']
    #allocation12 [shape = 'u8[1024]{0}', space=vmem, size = 0x400, scoped, tag = 'input window, operand 11, single buffered']
    #allocation13 [shape = 's32[1]{0}', space=sflag, size = 0x4, scoped, tag = 'scoped memory for mix3_att_decoder.1']
    #allocation14 [shape = 'u8[1024]{0}', space=vmem, size = 0x400, scoped, tag = 'input window, operand 13, single buffered']
    #allocation15 [shape = 'u8[16384]{0}', space=vmem, size = 0x4000, scoped, tag = 'input window, operand 14, single buffered']
    #allocation16 [shape = 's32[1]{0}', space=sflag, size = 0x4, scoped, tag = 'scoped memory for mix3_att_decoder.1']
    #allocation17 [shape = 'u8[1024]{0}', space=vmem, size = 0x400, scoped, tag = 'input window, operand 15, single buffered']
    #allocation18 [shape = 'u8[1024]{0}', space=vmem, size = 0x400, scoped, tag = 'input window, operand 17, single buffered']
    #allocation19 [shape = 's32[1]{0}', space=sflag, size = 0x4, scoped, tag = 'scoped memory for mix3_att_decoder.1']
    #allocation20 [shape = 'u8[16384]{0}', space=vmem, size = 0x4000, scoped, tag = 'input window, operand 18, single buffered']
    #allocation21 [shape = 'u8[1024]{0}', space=vmem, size = 0x400, scoped, tag = 'input window, operand 19, single buffered']
    #allocation22 [shape = 's32[1]{0}', space=sflag, size = 0x4, scoped, tag = 'scoped memory for mix3_att_decoder.1']
    #allocation23 [shape = 'u8[16384]{0}', space=vmem, size = 0x4000, scoped, tag = 'input window, operand 20, single buffered']
    #allocation24 [shape = 'u8[1024]{0}', space=vmem, size = 0x400, scoped, tag = 'input window, operand 21, single buffered']
    #allocation25 [shape = 's32[1]{0}', space=sflag, size = 0x4, scoped, tag = 'scoped memory for mix3_att_decoder.1']
    #allocation26 [shape = 'u8[16384]{0}', space=vmem, size = 0x4000, scoped, tag = 'input window, operand 22, single buffered']
    #allocation27 [shape = 'u8[1024]{0}', space=vmem, size = 0x400, scoped, tag = 'input window, operand 23, single buffered']
    #allocation28 [shape = 's32[1]{0}', space=sflag, size = 0x4, scoped, tag = 'scoped memory for mix3_att_decoder.1']
    #allocation29 [shape = 'u8[1024]{0}', space=vmem, size = 0x400, scoped, tag = 'input window, operand 25, single buffered']
    #allocation30 [shape = 'u8[4096]{0}', space=vmem, size = 0x1000, scoped, tag = 'input window, operand 26, single buffered']
    #allocation31 [shape = 's32[1]{0}', space=sflag, size = 0x4, scoped, tag = 'scoped memory for mix3_att_decoder.1']
    #allocation32 [shape = 'u8[4096]{0}', space=vmem, size = 0x1000, scoped, tag = 'input window, operand 27, single buffered']
    #allocation33 [shape = 'u8[512]{0}', space=vmem, size = 0x400, scoped, tag = 'input window, operand 29, single buffered']
    #allocation34 [shape = 's32[1]{0}', space=sflag, size = 0x4, scoped, tag = 'scoped memory for mix3_att_decoder.1']
    #allocation35 [shape = 'u8[8192]{0}', space=vmem, size = 0x2000, scoped, tag = 'output window, operand 0']
    #allocation36 [shape = 'u8[8192]{0}', space=vmem, size = 0x2000, scoped, tag = 'output window, operand 1']
    #allocation37 [shape = 's32[2]{0}', space=sflag, size = 0x8, scoped, tag = 'scoped memory for mix3_att_decoder.1']
    %69 = vsyncpa [#allocation4], 0
    %s70 = scalar_lea.sflag [#allocation4], 1
    %71 = vsyncpa %s70, 0
    %72 = vsyncpa [#allocation7], 0
    %s73 = scalar_lea.sflag [#allocation7], 1
    %74 = vsyncpa %s73, 0
    %75 = vsyncpa [#allocation10], 0
    %76 = vsyncpa [#allocation13], 0
    %77 = vsyncpa [#allocation16], 0
    %78 = vsyncpa [#allocation19], 0
    %79 = vsyncpa [#allocation22], 0
    %80 = vsyncpa [#allocation25], 0
    %81 = vsyncpa [#allocation28], 0
    %82 = vsyncpa [#allocation31], 0
    %83 = vsyncpa [#allocation34], 0
    %84 = vsyncpa [#allocation5], 0
    %s85 = scalar_lea.sflag [#allocation5], 1
    %86 = vsyncpa %s85, 0
    %87 = vsyncpa [#allocation37], 0
    %s88 = scalar_lea.sflag [#allocation37], 1
    %89 = vsyncpa %s88, 0
    loop: start=0, step=1, limit=4
    $region2: #{mix3_att_decoder.1} parent=1 // loop_pre_header
      _
    $region3: #{mix3_att_decoder.1} parent=1 // loop_header
      %s91 = sphi 0, %s95
      %p92 = scmp.ge.s32.totalorder %s91, 4
      %s101 = sphi 0, %s103
      %s104 = sphi 0, %s101
      %s105 = sphi 0, %s104
      %s121 = sphi 0, %s105
      %s127 = sphi 0, %s129
      %s130 = sphi 0, %s127
      %s131 = sphi 0, %s130
      %s147 = sphi 0, %s131
      %s153 = sphi 0, %s155
      %s156 = sphi 0, %s153
      %s157 = sphi 0, %s156
      %s173 = sphi 0, %s157
      %s177 = sphi 0, %s177
      %s179 = sphi 0, %s177
      %s180 = sphi 0, %s179
      %s194 = sphi 0, %s180
      %s200 = sphi 0, %s202
      %s203 = sphi 0, %s200
      %s204 = sphi 0, %s203
      %s220 = sphi 0, %s204
      %s226 = sphi 0, %s228
      %s229 = sphi 0, %s226
      %s230 = sphi 0, %s229
      %s246 = sphi 0, %s230
      %s250 = sphi 0, %s250
      %s252 = sphi 0, %s250
      %s253 = sphi 0, %s252
      %s267 = sphi 0, %s253
      %s271 = sphi 0, %s271
      %s273 = sphi 0, %s271
      %s274 = sphi 0, %s273
      %s288 = sphi 0, %s274
      %s292 = sphi 0, %s292
      %s294 = sphi 0, %s292
      %s295 = sphi 0, %s294
      %s309 = sphi 0, %s295
      %s313 = sphi 0, %s313
      %s315 = sphi 0, %s313
      %s316 = sphi 0, %s315
      %s330 = sphi 0, %s316
      %s334 = sphi 0, %s334
      %s336 = sphi 0, %s334
      %s337 = sphi 0, %s336
      %s351 = sphi 0, %s337
      %s355 = sphi 0, %s355
      %s357 = sphi 0, %s355
      %s358 = sphi 0, %s357
      %s372 = sphi 0, %s358
      %s376 = sphi 0, %s376
      %s378 = sphi 0, %s376
      %s379 = sphi 0, %s378
      %s393 = sphi 0, %s379
      %s397 = sphi 0, %s397
      %s399 = sphi 0, %s397
      %s400 = sphi 0, %s399
      %s414 = sphi 0, %s400
      %s418 = sphi 0, %s418
      %s420 = sphi 0, %s418
      %s421 = sphi 0, %s420
      %s435 = sphi 0, %s421
      %s439 = sphi 0, %s439
      %s441 = sphi 0, %s439
      %s442 = sphi 0, %s441
      %s456 = sphi 0, %s442
      %s460 = sphi 0, %s460
      %s462 = sphi 0, %s460
      %s463 = sphi 0, %s462
      %s477 = sphi 0, %s463
      %s481 = sphi 0, %s481
      %s483 = sphi 0, %s481
      %s484 = sphi 0, %s483
      %s498 = sphi 0, %s484
      %s502 = sphi 0, %s502
      %s504 = sphi 0, %s502
      %s505 = sphi 0, %s504
      %s519 = sphi 0, %s505
      %s523 = sphi 0, %s523
      %s525 = sphi 0, %s523
      %s526 = sphi 0, %s525
      %s540 = sphi 0, %s526
      %s544 = sphi 0, %s544
      %s546 = sphi 0, %s544
      %s547 = sphi 0, %s546
      %s561 = sphi 0, %s547
      %s565 = sphi 0, %s565
      %s567 = sphi 0, %s565
      %s568 = sphi 0, %s567
      %s582 = sphi 0, %s568
      %s586 = sphi 0, %s586
      %s588 = sphi 0, %s586
      %s589 = sphi 0, %s588
      %s603 = sphi 0, %s589
      %s607 = sphi 0, %s607
      %s609 = sphi 0, %s607
      %s610 = sphi 0, %s609
      %s624 = sphi 0, %s610
      %s628 = sphi 0, %s628
      %s630 = sphi 0, %s628
      %s631 = sphi 0, %s630
      %s645 = sphi 0, %s631
      %s649 = sphi 0, %s649
      %s651 = sphi 0, %s649
      %s652 = sphi 0, %s651
      %s666 = sphi 0, %s652
      %s670 = sphi 0, %s670
      %s672 = sphi 0, %s670
      %s673 = sphi 0, %s672
      %s687 = sphi 0, %s673
      %s691 = sphi 0, %s691
      %s693 = sphi 0, %s691
      %s694 = sphi 0, %s693
      %s708 = sphi 0, %s694
      %s712 = sphi 0, %s712
      %s714 = sphi 0, %s712
      %s715 = sphi 0, %s714
      %s729 = sphi 0, %s715
      %s733 = sphi 0, %s733
      %s735 = sphi 0, %s733
      %s736 = sphi 0, %s735
      %s750 = sphi 0, %s736
      %s756 = sphi 0, %s758
      %s759 = sphi 0, %s756
      %s760 = sphi 0, %s759
      %s776 = sphi 0, %s760
      %s782 = sphi 0, %s784
      %s785 = sphi 0, %s782
      %s786 = sphi 0, %s785
      %s802 = sphi 0, %s786
    $region4: #{mix3_att_decoder.1} parent=1 // loop_header_branch
      %94 = sbr.rel (%p92) target = $region8
    $region5: #{mix3_att_decoder.1} parent=1 // loop_body
      %s96 = ssub.s32 %s91, 1
      %s97 = ssub.s32 %s91, 2
      %s98 = sadd.s32 %s91, 1
      %s99 = ssub.s32 %s91, %s98
      %p100 = scmp.eq.s32.totalorder %s99, 0
      %s102 = sadd.s32 %s101, 1
      %s103 = scalar_select %p100, %s101, %s102
      %p106 = pneg %p100
      %p107 = scmp.eq.s32.totalorder %s91, 1
      %p108 = por %p106, %p107
      %p109 = scmp.ne.s32.totalorder %s101, %s104
      %p110 = scmp.eq.s32.totalorder %s91, 0
      %p111 = por %p109, %p110
      %p112 = scmp.ne.s32.totalorder %s101, %s104
      %p113 = scmp.eq.s32.totalorder %s96, 1
      %p114 = por %p112, %p113
      %p115 = scmp.ne.s32.totalorder %s104, %s105
      %p116 = scmp.eq.s32.totalorder %s96, 0
      %p117 = por %p115, %p116
      %p118 = scmp.ne.s32.totalorder %s104, %s105
      %p119 = scmp.eq.s32.totalorder %s97, 1
      %p120 = por %p118, %p119
      %p122 = scmp.ne.s32.totalorder %s105, %s121
      %p123 = scmp.eq.s32.totalorder %s97, 0
      %p124 = por %p122, %p123
      %s125 = ssub.s32 %s91, %s98
      %p126 = scmp.eq.s32.totalorder %s125, 0
      %s128 = sadd.s32 %s127, 1
      %s129 = scalar_select %p126, %s127, %s128
      %p132 = pneg %p126
      %p133 = scmp.eq.s32.totalorder %s91, 1
      %p134 = por %p132, %p133
      %p135 = scmp.ne.s32.totalorder %s127, %s130
      %p136 = scmp.eq.s32.totalorder %s91, 0
      %p137 = por %p135, %p136
      %p138 = scmp.ne.s32.totalorder %s127, %s130
      %p139 = scmp.eq.s32.totalorder %s96, 1
      %p140 = por %p138, %p139
      %p141 = scmp.ne.s32.totalorder %s130, %s131
      %p142 = scmp.eq.s32.totalorder %s96, 0
      %p143 = por %p141, %p142
      %p144 = scmp.ne.s32.totalorder %s130, %s131
      %p145 = scmp.eq.s32.totalorder %s97, 1
      %p146 = por %p144, %p145
      %p148 = scmp.ne.s32.totalorder %s131, %s147
      %p149 = scmp.eq.s32.totalorder %s97, 0
      %p150 = por %p148, %p149
      %s151 = ssub.s32 %s91, %s98
      %p152 = scmp.eq.s32.totalorder %s151, 0
      %s154 = sadd.s32 %s153, 1
      %s155 = scalar_select %p152, %s153, %s154
      %p158 = pneg %p152
      %p159 = scmp.eq.s32.totalorder %s91, 1
      %p160 = por %p158, %p159
      %p161 = scmp.ne.s32.totalorder %s153, %s156
      %p162 = scmp.eq.s32.totalorder %s91, 0
      %p163 = por %p161, %p162
      %p164 = scmp.ne.s32.totalorder %s153, %s156
      %p165 = scmp.eq.s32.totalorder %s96, 1
      %p166 = por %p164, %p165
      %p167 = scmp.ne.s32.totalorder %s156, %s157
      %p168 = scmp.eq.s32.totalorder %s96, 0
      %p169 = por %p167, %p168
      %p170 = scmp.ne.s32.totalorder %s156, %s157
      %p171 = scmp.eq.s32.totalorder %s97, 1
      %p172 = por %p170, %p171
      %p174 = scmp.ne.s32.totalorder %s157, %s173
      %p175 = scmp.eq.s32.totalorder %s97, 0
      %p176 = por %p174, %p175
      %s178 = sadd.s32 %s177, 1
      %p181 = scmp.eq.s32.totalorder %s91, 1
      %p182 = scmp.ne.s32.totalorder %s177, %s179
      %p183 = scmp.eq.s32.totalorder %s91, 0
      %p184 = por %p182, %p183
      %p185 = scmp.ne.s32.totalorder %s177, %s179
      %p186 = scmp.eq.s32.totalorder %s96, 1
      %p187 = por %p185, %p186
      %p188 = scmp.ne.s32.totalorder %s179, %s180
      %p189 = scmp.eq.s32.totalorder %s96, 0
      %p190 = por %p188, %p189
      %p191 = scmp.ne.s32.totalorder %s179, %s180
      %p192 = scmp.eq.s32.totalorder %s97, 1
      %p193 = por %p191, %p192
      %p195 = scmp.ne.s32.totalorder %s180, %s194
      %p196 = scmp.eq.s32.totalorder %s97, 0
      %p197 = por %p195, %p196
      %s198 = ssub.s32 %s91, %s98
      %p199 = scmp.eq.s32.totalorder %s198, 0
      %s201 = sadd.s32 %s200, 1
      %s202 = scalar_select %p199, %s200, %s201
      %p205 = pneg %p199
      %p206 = scmp.eq.s32.totalorder %s91, 1
      %p207 = por %p205, %p206
      %p208 = scmp.ne.s32.totalorder %s200, %s203
      %p209 = scmp.eq.s32.totalorder %s91, 0
      %p210 = por %p208, %p209
      %p211 = scmp.ne.s32.totalorder %s200, %s203
      %p212 = scmp.eq.s32.totalorder %s96, 1
      %p213 = por %p211, %p212
      %p214 = scmp.ne.s32.totalorder %s203, %s204
      %p215 = scmp.eq.s32.totalorder %s96, 0
      %p216 = por %p214, %p215
      %p217 = scmp.ne.s32.totalorder %s203, %s204
      %p218 = scmp.eq.s32.totalorder %s97, 1
      %p219 = por %p217, %p218
      %p221 = scmp.ne.s32.totalorder %s204, %s220
      %p222 = scmp.eq.s32.totalorder %s97, 0
      %p223 = por %p221, %p222
      %s224 = ssub.s32 %s91, %s98
      %p225 = scmp.eq.s32.totalorder %s224, 0
      %s227 = sadd.s32 %s226, 1
      %s228 = scalar_select %p225, %s226, %s227
      %p231 = pneg %p225
      %p232 = scmp.eq.s32.totalorder %s91, 1
      %p233 = por %p231, %p232
      %p234 = scmp.ne.s32.totalorder %s226, %s229
      %p235 = scmp.eq.s32.totalorder %s91, 0
      %p236 = por %p234, %p235
      %p237 = scmp.ne.s32.totalorder %s226, %s229
      %p238 = scmp.eq.s32.totalorder %s96, 1
      %p239 = por %p237, %p238
      %p240 = scmp.ne.s32.totalorder %s229, %s230
      %p241 = scmp.eq.s32.totalorder %s96, 0
      %p242 = por %p240, %p241
      %p243 = scmp.ne.s32.totalorder %s229, %s230
      %p244 = scmp.eq.s32.totalorder %s97, 1
      %p245 = por %p243, %p244
      %p247 = scmp.ne.s32.totalorder %s230, %s246
      %p248 = scmp.eq.s32.totalorder %s97, 0
      %p249 = por %p247, %p248
      %s251 = sadd.s32 %s250, 1
      %p254 = scmp.eq.s32.totalorder %s91, 1
      %p255 = scmp.ne.s32.totalorder %s250, %s252
      %p256 = scmp.eq.s32.totalorder %s91, 0
      %p257 = por %p255, %p256
      %p258 = scmp.ne.s32.totalorder %s250, %s252
      %p259 = scmp.eq.s32.totalorder %s96, 1
      %p260 = por %p258, %p259
      %p261 = scmp.ne.s32.totalorder %s252, %s253
      %p262 = scmp.eq.s32.totalorder %s96, 0
      %p263 = por %p261, %p262
      %p264 = scmp.ne.s32.totalorder %s252, %s253
      %p265 = scmp.eq.s32.totalorder %s97, 1
      %p266 = por %p264, %p265
      %p268 = scmp.ne.s32.totalorder %s253, %s267
      %p269 = scmp.eq.s32.totalorder %s97, 0
      %p270 = por %p268, %p269
      %s272 = sadd.s32 %s271, 1
      %p275 = scmp.eq.s32.totalorder %s91, 1
      %p276 = scmp.ne.s32.totalorder %s271, %s273
      %p277 = scmp.eq.s32.totalorder %s91, 0
      %p278 = por %p276, %p277
      %p279 = scmp.ne.s32.totalorder %s271, %s273
      %p280 = scmp.eq.s32.totalorder %s96, 1
      %p281 = por %p279, %p280
      %p282 = scmp.ne.s32.totalorder %s273, %s274
      %p283 = scmp.eq.s32.totalorder %s96, 0
      %p284 = por %p282, %p283
      %p285 = scmp.ne.s32.totalorder %s273, %s274
      %p286 = scmp.eq.s32.totalorder %s97, 1
      %p287 = por %p285, %p286
      %p289 = scmp.ne.s32.totalorder %s274, %s288
      %p290 = scmp.eq.s32.totalorder %s97, 0
      %p291 = por %p289, %p290
      %s293 = sadd.s32 %s292, 1
      %p296 = scmp.eq.s32.totalorder %s91, 1
      %p297 = scmp.ne.s32.totalorder %s292, %s294
      %p298 = scmp.eq.s32.totalorder %s91, 0
      %p299 = por %p297, %p298
      %p300 = scmp.ne.s32.totalorder %s292, %s294
      %p301 = scmp.eq.s32.totalorder %s96, 1
      %p302 = por %p300, %p301
      %p303 = scmp.ne.s32.totalorder %s294, %s295
      %p304 = scmp.eq.s32.totalorder %s96, 0
      %p305 = por %p303, %p304
      %p306 = scmp.ne.s32.totalorder %s294, %s295
      %p307 = scmp.eq.s32.totalorder %s97, 1
      %p308 = por %p306, %p307
      %p310 = scmp.ne.s32.totalorder %s295, %s309
      %p311 = scmp.eq.s32.totalorder %s97, 0
      %p312 = por %p310, %p311
      %s314 = sadd.s32 %s313, 1
      %p317 = scmp.eq.s32.totalorder %s91, 1
      %p318 = scmp.ne.s32.totalorder %s313, %s315
      %p319 = scmp.eq.s32.totalorder %s91, 0
      %p320 = por %p318, %p319
      %p321 = scmp.ne.s32.totalorder %s313, %s315
      %p322 = scmp.eq.s32.totalorder %s96, 1
      %p323 = por %p321, %p322
      %p324 = scmp.ne.s32.totalorder %s315, %s316
      %p325 = scmp.eq.s32.totalorder %s96, 0
      %p326 = por %p324, %p325
      %p327 = scmp.ne.s32.totalorder %s315, %s316
      %p328 = scmp.eq.s32.totalorder %s97, 1
      %p329 = por %p327, %p328
      %p331 = scmp.ne.s32.totalorder %s316, %s330
      %p332 = scmp.eq.s32.totalorder %s97, 0
      %p333 = por %p331, %p332
      %s335 = sadd.s32 %s334, 1
      %p338 = scmp.eq.s32.totalorder %s91, 1
      %p339 = scmp.ne.s32.totalorder %s334, %s336
      %p340 = scmp.eq.s32.totalorder %s91, 0
      %p341 = por %p339, %p340
      %p342 = scmp.ne.s32.totalorder %s334, %s336
      %p343 = scmp.eq.s32.totalorder %s96, 1
      %p344 = por %p342, %p343
      %p345 = scmp.ne.s32.totalorder %s336, %s337
      %p346 = scmp.eq.s32.totalorder %s96, 0
      %p347 = por %p345, %p346
      %p348 = scmp.ne.s32.totalorder %s336, %s337
      %p349 = scmp.eq.s32.totalorder %s97, 1
      %p350 = por %p348, %p349
      %p352 = scmp.ne.s32.totalorder %s337, %s351
      %p353 = scmp.eq.s32.totalorder %s97, 0
      %p354 = por %p352, %p353
      %s356 = sadd.s32 %s355, 1
      %p359 = scmp.eq.s32.totalorder %s91, 1
      %p360 = scmp.ne.s32.totalorder %s355, %s357
      %p361 = scmp.eq.s32.totalorder %s91, 0
      %p362 = por %p360, %p361
      %p363 = scmp.ne.s32.totalorder %s355, %s357
      %p364 = scmp.eq.s32.totalorder %s96, 1
      %p365 = por %p363, %p364
      %p366 = scmp.ne.s32.totalorder %s357, %s358
      %p367 = scmp.eq.s32.totalorder %s96, 0
      %p368 = por %p366, %p367
      %p369 = scmp.ne.s32.totalorder %s357, %s358
      %p370 = scmp.eq.s32.totalorder %s97, 1
      %p371 = por %p369, %p370
      %p373 = scmp.ne.s32.totalorder %s358, %s372
      %p374 = scmp.eq.s32.totalorder %s97, 0
      %p375 = por %p373, %p374
      %s377 = sadd.s32 %s376, 1
      %p380 = scmp.eq.s32.totalorder %s91, 1
      %p381 = scmp.ne.s32.totalorder %s376, %s378
      %p382 = scmp.eq.s32.totalorder %s91, 0
      %p383 = por %p381, %p382
      %p384 = scmp.ne.s32.totalorder %s376, %s378
      %p385 = scmp.eq.s32.totalorder %s96, 1
      %p386 = por %p384, %p385
      %p387 = scmp.ne.s32.totalorder %s378, %s379
      %p388 = scmp.eq.s32.totalorder %s96, 0
      %p389 = por %p387, %p388
      %p390 = scmp.ne.s32.totalorder %s378, %s379
      %p391 = scmp.eq.s32.totalorder %s97, 1
      %p392 = por %p390, %p391
      %p394 = scmp.ne.s32.totalorder %s379, %s393
      %p395 = scmp.eq.s32.totalorder %s97, 0
      %p396 = por %p394, %p395
      %s398 = sadd.s32 %s397, 1
      %p401 = scmp.eq.s32.totalorder %s91, 1
      %p402 = scmp.ne.s32.totalorder %s397, %s399
      %p403 = scmp.eq.s32.totalorder %s91, 0
      %p404 = por %p402, %p403
      %p405 = scmp.ne.s32.totalorder %s397, %s399
      %p406 = scmp.eq.s32.totalorder %s96, 1
      %p407 = por %p405, %p406
      %p408 = scmp.ne.s32.totalorder %s399, %s400
      %p409 = scmp.eq.s32.totalorder %s96, 0
      %p410 = por %p408, %p409
      %p411 = scmp.ne.s32.totalorder %s399, %s400
      %p412 = scmp.eq.s32.totalorder %s97, 1
      %p413 = por %p411, %p412
      %p415 = scmp.ne.s32.totalorder %s400, %s414
      %p416 = scmp.eq.s32.totalorder %s97, 0
      %p417 = por %p415, %p416
      %s419 = sadd.s32 %s418, 1
      %p422 = scmp.eq.s32.totalorder %s91, 1
      %p423 = scmp.ne.s32.totalorder %s418, %s420
      %p424 = scmp.eq.s32.totalorder %s91, 0
      %p425 = por %p423, %p424
      %p426 = scmp.ne.s32.totalorder %s418, %s420
      %p427 = scmp.eq.s32.totalorder %s96, 1
      %p428 = por %p426, %p427
      %p429 = scmp.ne.s32.totalorder %s420, %s421
      %p430 = scmp.eq.s32.totalorder %s96, 0
      %p431 = por %p429, %p430
      %p432 = scmp.ne.s32.totalorder %s420, %s421
      %p433 = scmp.eq.s32.totalorder %s97, 1
      %p434 = por %p432, %p433
      %p436 = scmp.ne.s32.totalorder %s421, %s435
      %p437 = scmp.eq.s32.totalorder %s97, 0
      %p438 = por %p436, %p437
      %s440 = sadd.s32 %s439, 1
      %p443 = scmp.eq.s32.totalorder %s91, 1
      %p444 = scmp.ne.s32.totalorder %s439, %s441
      %p445 = scmp.eq.s32.totalorder %s91, 0
      %p446 = por %p444, %p445
      %p447 = scmp.ne.s32.totalorder %s439, %s441
      %p448 = scmp.eq.s32.totalorder %s96, 1
      %p449 = por %p447, %p448
      %p450 = scmp.ne.s32.totalorder %s441, %s442
      %p451 = scmp.eq.s32.totalorder %s96, 0
      %p452 = por %p450, %p451
      %p453 = scmp.ne.s32.totalorder %s441, %s442
      %p454 = scmp.eq.s32.totalorder %s97, 1
      %p455 = por %p453, %p454
      %p457 = scmp.ne.s32.totalorder %s442, %s456
      %p458 = scmp.eq.s32.totalorder %s97, 0
      %p459 = por %p457, %p458
      %s461 = sadd.s32 %s460, 1
      %p464 = scmp.eq.s32.totalorder %s91, 1
      %p465 = scmp.ne.s32.totalorder %s460, %s462
      %p466 = scmp.eq.s32.totalorder %s91, 0
      %p467 = por %p465, %p466
      %p468 = scmp.ne.s32.totalorder %s460, %s462
      %p469 = scmp.eq.s32.totalorder %s96, 1
      %p470 = por %p468, %p469
      %p471 = scmp.ne.s32.totalorder %s462, %s463
      %p472 = scmp.eq.s32.totalorder %s96, 0
      %p473 = por %p471, %p472
      %p474 = scmp.ne.s32.totalorder %s462, %s463
      %p475 = scmp.eq.s32.totalorder %s97, 1
      %p476 = por %p474, %p475
      %p478 = scmp.ne.s32.totalorder %s463, %s477
      %p479 = scmp.eq.s32.totalorder %s97, 0
      %p480 = por %p478, %p479
      %s482 = sadd.s32 %s481, 1
      %p485 = scmp.eq.s32.totalorder %s91, 1
      %p486 = scmp.ne.s32.totalorder %s481, %s483
      %p487 = scmp.eq.s32.totalorder %s91, 0
      %p488 = por %p486, %p487
      %p489 = scmp.ne.s32.totalorder %s481, %s483
      %p490 = scmp.eq.s32.totalorder %s96, 1
      %p491 = por %p489, %p490
      %p492 = scmp.ne.s32.totalorder %s483, %s484
      %p493 = scmp.eq.s32.totalorder %s96, 0
      %p494 = por %p492, %p493
      %p495 = scmp.ne.s32.totalorder %s483, %s484
      %p496 = scmp.eq.s32.totalorder %s97, 1
      %p497 = por %p495, %p496
      %p499 = scmp.ne.s32.totalorder %s484, %s498
      %p500 = scmp.eq.s32.totalorder %s97, 0
      %p501 = por %p499, %p500
      %s503 = sadd.s32 %s502, 1
      %p506 = scmp.eq.s32.totalorder %s91, 1
      %p507 = scmp.ne.s32.totalorder %s502, %s504
      %p508 = scmp.eq.s32.totalorder %s91, 0
      %p509 = por %p507, %p508
      %p510 = scmp.ne.s32.totalorder %s502, %s504
      %p511 = scmp.eq.s32.totalorder %s96, 1
      %p512 = por %p510, %p511
      %p513 = scmp.ne.s32.totalorder %s504, %s505
      %p514 = scmp.eq.s32.totalorder %s96, 0
      %p515 = por %p513, %p514
      %p516 = scmp.ne.s32.totalorder %s504, %s505
      %p517 = scmp.eq.s32.totalorder %s97, 1
      %p518 = por %p516, %p517
      %p520 = scmp.ne.s32.totalorder %s505, %s519
      %p521 = scmp.eq.s32.totalorder %s97, 0
      %p522 = por %p520, %p521
      %s524 = sadd.s32 %s523, 1
      %p527 = scmp.eq.s32.totalorder %s91, 1
      %p528 = scmp.ne.s32.totalorder %s523, %s525
      %p529 = scmp.eq.s32.totalorder %s91, 0
      %p530 = por %p528, %p529
      %p531 = scmp.ne.s32.totalorder %s523, %s525
      %p532 = scmp.eq.s32.totalorder %s96, 1
      %p533 = por %p531, %p532
      %p534 = scmp.ne.s32.totalorder %s525, %s526
      %p535 = scmp.eq.s32.totalorder %s96, 0
      %p536 = por %p534, %p535
      %p537 = scmp.ne.s32.totalorder %s525, %s526
      %p538 = scmp.eq.s32.totalorder %s97, 1
      %p539 = por %p537, %p538
      %p541 = scmp.ne.s32.totalorder %s526, %s540
      %p542 = scmp.eq.s32.totalorder %s97, 0
      %p543 = por %p541, %p542
      %s545 = sadd.s32 %s544, 1
      %p548 = scmp.eq.s32.totalorder %s91, 1
      %p549 = scmp.ne.s32.totalorder %s544, %s546
      %p550 = scmp.eq.s32.totalorder %s91, 0
      %p551 = por %p549, %p550
      %p552 = scmp.ne.s32.totalorder %s544, %s546
      %p553 = scmp.eq.s32.totalorder %s96, 1
      %p554 = por %p552, %p553
      %p555 = scmp.ne.s32.totalorder %s546, %s547
      %p556 = scmp.eq.s32.totalorder %s96, 0
      %p557 = por %p555, %p556
      %p558 = scmp.ne.s32.totalorder %s546, %s547
      %p559 = scmp.eq.s32.totalorder %s97, 1
      %p560 = por %p558, %p559
      %p562 = scmp.ne.s32.totalorder %s547, %s561
      %p563 = scmp.eq.s32.totalorder %s97, 0
      %p564 = por %p562, %p563
      %s566 = sadd.s32 %s565, 1
      %p569 = scmp.eq.s32.totalorder %s91, 1
      %p570 = scmp.ne.s32.totalorder %s565, %s567
      %p571 = scmp.eq.s32.totalorder %s91, 0
      %p572 = por %p570, %p571
      %p573 = scmp.ne.s32.totalorder %s565, %s567
      %p574 = scmp.eq.s32.totalorder %s96, 1
      %p575 = por %p573, %p574
      %p576 = scmp.ne.s32.totalorder %s567, %s568
      %p577 = scmp.eq.s32.totalorder %s96, 0
      %p578 = por %p576, %p577
      %p579 = scmp.ne.s32.totalorder %s567, %s568
      %p580 = scmp.eq.s32.totalorder %s97, 1
      %p581 = por %p579, %p580
      %p583 = scmp.ne.s32.totalorder %s568, %s582
      %p584 = scmp.eq.s32.totalorder %s97, 0
      %p585 = por %p583, %p584
      %s587 = sadd.s32 %s586, 1
      %p590 = scmp.eq.s32.totalorder %s91, 1
      %p591 = scmp.ne.s32.totalorder %s586, %s588
      %p592 = scmp.eq.s32.totalorder %s91, 0
      %p593 = por %p591, %p592
      %p594 = scmp.ne.s32.totalorder %s586, %s588
      %p595 = scmp.eq.s32.totalorder %s96, 1
      %p596 = por %p594, %p595
      %p597 = scmp.ne.s32.totalorder %s588, %s589
      %p598 = scmp.eq.s32.totalorder %s96, 0
      %p599 = por %p597, %p598
      %p600 = scmp.ne.s32.totalorder %s588, %s589
      %p601 = scmp.eq.s32.totalorder %s97, 1
      %p602 = por %p600, %p601
      %p604 = scmp.ne.s32.totalorder %s589, %s603
      %p605 = scmp.eq.s32.totalorder %s97, 0
      %p606 = por %p604, %p605
      %s608 = sadd.s32 %s607, 1
      %p611 = scmp.eq.s32.totalorder %s91, 1
      %p612 = scmp.ne.s32.totalorder %s607, %s609
      %p613 = scmp.eq.s32.totalorder %s91, 0
      %p614 = por %p612, %p613
      %p615 = scmp.ne.s32.totalorder %s607, %s609
      %p616 = scmp.eq.s32.totalorder %s96, 1
      %p617 = por %p615, %p616
      %p618 = scmp.ne.s32.totalorder %s609, %s610
      %p619 = scmp.eq.s32.totalorder %s96, 0
      %p620 = por %p618, %p619
      %p621 = scmp.ne.s32.totalorder %s609, %s610
      %p622 = scmp.eq.s32.totalorder %s97, 1
      %p623 = por %p621, %p622
      %p625 = scmp.ne.s32.totalorder %s610, %s624
      %p626 = scmp.eq.s32.totalorder %s97, 0
      %p627 = por %p625, %p626
      %s629 = sadd.s32 %s628, 1
      %p632 = scmp.eq.s32.totalorder %s91, 1
      %p633 = scmp.ne.s32.totalorder %s628, %s630
      %p634 = scmp.eq.s32.totalorder %s91, 0
      %p635 = por %p633, %p634
      %p636 = scmp.ne.s32.totalorder %s628, %s630
      %p637 = scmp.eq.s32.totalorder %s96, 1
      %p638 = por %p636, %p637
      %p639 = scmp.ne.s32.totalorder %s630, %s631
      %p640 = scmp.eq.s32.totalorder %s96, 0
      %p641 = por %p639, %p640
      %p642 = scmp.ne.s32.totalorder %s630, %s631
      %p643 = scmp.eq.s32.totalorder %s97, 1
      %p644 = por %p642, %p643
      %p646 = scmp.ne.s32.totalorder %s631, %s645
      %p647 = scmp.eq.s32.totalorder %s97, 0
      %p648 = por %p646, %p647
      %s650 = sadd.s32 %s649, 1
      %p653 = scmp.eq.s32.totalorder %s91, 1
      %p654 = scmp.ne.s32.totalorder %s649, %s651
      %p655 = scmp.eq.s32.totalorder %s91, 0
      %p656 = por %p654, %p655
      %p657 = scmp.ne.s32.totalorder %s649, %s651
      %p658 = scmp.eq.s32.totalorder %s96, 1
      %p659 = por %p657, %p658
      %p660 = scmp.ne.s32.totalorder %s651, %s652
      %p661 = scmp.eq.s32.totalorder %s96, 0
      %p662 = por %p660, %p661
      %p663 = scmp.ne.s32.totalorder %s651, %s652
      %p664 = scmp.eq.s32.totalorder %s97, 1
      %p665 = por %p663, %p664
      %p667 = scmp.ne.s32.totalorder %s652, %s666
      %p668 = scmp.eq.s32.totalorder %s97, 0
      %p669 = por %p667, %p668
      %s671 = sadd.s32 %s670, 1
      %p674 = scmp.eq.s32.totalorder %s91, 1
      %p675 = scmp.ne.s32.totalorder %s670, %s672
      %p676 = scmp.eq.s32.totalorder %s91, 0
      %p677 = por %p675, %p676
      %p678 = scmp.ne.s32.totalorder %s670, %s672
      %p679 = scmp.eq.s32.totalorder %s96, 1
      %p680 = por %p678, %p679
      %p681 = scmp.ne.s32.totalorder %s672, %s673
      %p682 = scmp.eq.s32.totalorder %s96, 0
      %p683 = por %p681, %p682
      %p684 = scmp.ne.s32.totalorder %s672, %s673
      %p685 = scmp.eq.s32.totalorder %s97, 1
      %p686 = por %p684, %p685
      %p688 = scmp.ne.s32.totalorder %s673, %s687
      %p689 = scmp.eq.s32.totalorder %s97, 0
      %p690 = por %p688, %p689
      %s692 = sadd.s32 %s691, 1
      %p695 = scmp.eq.s32.totalorder %s91, 1
      %p696 = scmp.ne.s32.totalorder %s691, %s693
      %p697 = scmp.eq.s32.totalorder %s91, 0
      %p698 = por %p696, %p697
      %p699 = scmp.ne.s32.totalorder %s691, %s693
      %p700 = scmp.eq.s32.totalorder %s96, 1
      %p701 = por %p699, %p700
      %p702 = scmp.ne.s32.totalorder %s693, %s694
      %p703 = scmp.eq.s32.totalorder %s96, 0
      %p704 = por %p702, %p703
      %p705 = scmp.ne.s32.totalorder %s693, %s694
      %p706 = scmp.eq.s32.totalorder %s97, 1
      %p707 = por %p705, %p706
      %p709 = scmp.ne.s32.totalorder %s694, %s708
      %p710 = scmp.eq.s32.totalorder %s97, 0
      %p711 = por %p709, %p710
      %s713 = sadd.s32 %s712, 1
      %p716 = scmp.eq.s32.totalorder %s91, 1
      %p717 = scmp.ne.s32.totalorder %s712, %s714
      %p718 = scmp.eq.s32.totalorder %s91, 0
      %p719 = por %p717, %p718
      %p720 = scmp.ne.s32.totalorder %s712, %s714
      %p721 = scmp.eq.s32.totalorder %s96, 1
      %p722 = por %p720, %p721
      %p723 = scmp.ne.s32.totalorder %s714, %s715
      %p724 = scmp.eq.s32.totalorder %s96, 0
      %p725 = por %p723, %p724
      %p726 = scmp.ne.s32.totalorder %s714, %s715
      %p727 = scmp.eq.s32.totalorder %s97, 1
      %p728 = por %p726, %p727
      %p730 = scmp.ne.s32.totalorder %s715, %s729
      %p731 = scmp.eq.s32.totalorder %s97, 0
      %p732 = por %p730, %p731
      %s734 = sadd.s32 %s733, 1
      %p737 = scmp.eq.s32.totalorder %s91, 1
      %p738 = scmp.ne.s32.totalorder %s733, %s735
      %p739 = scmp.eq.s32.totalorder %s91, 0
      %p740 = por %p738, %p739
      %p741 = scmp.ne.s32.totalorder %s733, %s735
      %p742 = scmp.eq.s32.totalorder %s96, 1
      %p743 = por %p741, %p742
      %p744 = scmp.ne.s32.totalorder %s735, %s736
      %p745 = scmp.eq.s32.totalorder %s96, 0
      %p746 = por %p744, %p745
      %p747 = scmp.ne.s32.totalorder %s735, %s736
      %p748 = scmp.eq.s32.totalorder %s97, 1
      %p749 = por %p747, %p748
      %p751 = scmp.ne.s32.totalorder %s736, %s750
      %p752 = scmp.eq.s32.totalorder %s97, 0
      %p753 = por %p751, %p752
      %s754 = ssub.s32 %s91, %s98
      %p755 = scmp.eq.s32.totalorder %s754, 0
      %s757 = sadd.s32 %s756, 1
      %s758 = scalar_select %p755, %s756, %s757
      %p761 = pneg %p755
      %p762 = scmp.eq.s32.totalorder %s91, 1
      %p763 = por %p761, %p762
      %p764 = scmp.ne.s32.totalorder %s756, %s759
      %p765 = scmp.eq.s32.totalorder %s91, 0
      %p766 = por %p764, %p765
      %p767 = scmp.ne.s32.totalorder %s756, %s759
      %p768 = scmp.eq.s32.totalorder %s96, 1
      %p769 = por %p767, %p768
      %p770 = scmp.ne.s32.totalorder %s759, %s760
      %p771 = scmp.eq.s32.totalorder %s96, 0
      %p772 = por %p770, %p771
      %p773 = scmp.ne.s32.totalorder %s759, %s760
      %p774 = scmp.eq.s32.totalorder %s97, 1
      %p775 = por %p773, %p774
      %p777 = scmp.ne.s32.totalorder %s760, %s776
      %p778 = scmp.eq.s32.totalorder %s97, 0
      %p779 = por %p777, %p778
      %s780 = ssub.s32 %s91, %s98
      %p781 = scmp.eq.s32.totalorder %s780, 0
      %s783 = sadd.s32 %s782, 1
      %s784 = scalar_select %p781, %s782, %s783
      %p787 = pneg %p781
      %p788 = scmp.eq.s32.totalorder %s91, 1
      %p789 = por %p787, %p788
      %p790 = scmp.ne.s32.totalorder %s782, %s785
      %p791 = scmp.eq.s32.totalorder %s91, 0
      %p792 = por %p790, %p791
      %p793 = scmp.ne.s32.totalorder %s782, %s785
      %p794 = scmp.eq.s32.totalorder %s96, 1
      %p795 = por %p793, %p794
      %p796 = scmp.ne.s32.totalorder %s785, %s786
      %p797 = scmp.eq.s32.totalorder %s96, 0
      %p798 = por %p796, %p797
      %p799 = scmp.ne.s32.totalorder %s785, %s786
      %p800 = scmp.eq.s32.totalorder %s97, 1
      %p801 = por %p799, %p800
      %p803 = scmp.ne.s32.totalorder %s786, %s802
      %p804 = scmp.eq.s32.totalorder %s97, 0
      %p805 = por %p803, %p804
      %p806 = scmp.le.s32.totalorder 1, %s91
      %p807 = scmp.lt.s32.totalorder %s91, 3
      %p808 = pnand %p806, %p807
      %p809 = pneg %p808
      // Predicated region
      $region9: #{mix3_att_decoder.1} parent=5 // pred_check
        _
      $region10: #{mix3_att_decoder.1} parent=5 // pred_check_branch
        %811 = sbr.rel (%p808) target = $region12
      $region11: #{mix3_att_decoder.1} parent=5 // pred_region
        %s812 = ssub.s32 %s91, 1
        // Predicated region
        $region13: #{mix3_att_decoder.1} parent=11 // pred_check
          %p813 = pneg %p190
        $region14: #{mix3_att_decoder.1} parent=11 // pred_check_branch
          %815 = sbr.rel (%p813) target = $region16
        $region15: #{mix3_att_decoder.1} parent=11 // pred_region
          _
        $region16: #{mix3_att_decoder.1} parent=11 // pred_fallthru
          _
        // Predicated region
        $region17: #{mix3_att_decoder.1} parent=11 // pred_check
          %p816 = pneg %p263
        $region18: #{mix3_att_decoder.1} parent=11 // pred_check_branch
          %818 = sbr.rel (%p816) target = $region20
        $region19: #{mix3_att_decoder.1} parent=11 // pred_region
          _
        $region20: #{mix3_att_decoder.1} parent=11 // pred_fallthru
          _
        // Predicated region
        $region21: #{mix3_att_decoder.1} parent=11 // pred_check
          %p819 = pneg %p284
        $region22: #{mix3_att_decoder.1} parent=11 // pred_check_branch
          %821 = sbr.rel (%p819) target = $region24
        $region23: #{mix3_att_decoder.1} parent=11 // pred_region
          %s823 = ssub.s32 32, 32
          %824 = vsyncadd [#allocation10], %s823
          %s825 = sshll.u32 [#allocation9], 4
          %s826 = int_to_ptr.vmem [resolvable:$true] %s825
          %831 = dma.hbm_to_vmem [thread:$0]  %s15, 32, %s826, [#allocation10], 16, 16, 1
        $region24: #{mix3_att_decoder.1} parent=11 // pred_fallthru
          _
        // Predicated region
        $region25: #{mix3_att_decoder.1} parent=11 // pred_check
          %p832 = pneg %p305
        $region26: #{mix3_att_decoder.1} parent=11 // pred_check_branch
          %834 = sbr.rel (%p832) target = $region28
        $region27: #{mix3_att_decoder.1} parent=11 // pred_region
          _
        $region28: #{mix3_att_decoder.1} parent=11 // pred_fallthru
          _
        // Predicated region
        $region29: #{mix3_att_decoder.1} parent=11 // pred_check
          %p835 = pneg %p326
        $region30: #{mix3_att_decoder.1} parent=11 // pred_check_branch
          %837 = sbr.rel (%p835) target = $region32
        $region31: #{mix3_att_decoder.1} parent=11 // pred_region
          %s839 = ssub.s32 32, 32
          %840 = vsyncadd [#allocation10], %s839
          %s841 = sshll.u32 [#allocation11], 4
          %s842 = int_to_ptr.vmem [resolvable:$true] %s841
          %847 = dma.hbm_to_vmem [thread:$0]  %s19, 32, %s842, [#allocation10], 16, 16, 1
        $region32: #{mix3_att_decoder.1} parent=11 // pred_fallthru
          _
        // Predicated region
        $region33: #{mix3_att_decoder.1} parent=11 // pred_check
          %p848 = pneg %p347
        $region34: #{mix3_att_decoder.1} parent=11 // pred_check_branch
          %850 = sbr.rel (%p848) target = $region36
        $region35: #{mix3_att_decoder.1} parent=11 // pred_region
          _
        $region36: #{mix3_att_decoder.1} parent=11 // pred_fallthru
          _
        // Predicated region
        $region37: #{mix3_att_decoder.1} parent=11 // pred_check
          %p851 = pneg %p368
        $region38: #{mix3_att_decoder.1} parent=11 // pred_check_branch
          %853 = sbr.rel (%p851) target = $region40
        $region39: #{mix3_att_decoder.1} parent=11 // pred_region
          %s855 = ssub.s32 32, 32
          %856 = vsyncadd [#allocation13], %s855
          %s857 = sshll.u32 [#allocation12], 4
          %s858 = int_to_ptr.vmem [resolvable:$true] %s857
          %863 = dma.hbm_to_vmem [thread:$0]  %s23, 32, %s858, [#allocation13], 16, 16, 1
        $region40: #{mix3_att_decoder.1} parent=11 // pred_fallthru
          _
        // Predicated region
        $region41: #{mix3_att_decoder.1} parent=11 // pred_check
          %p864 = pneg %p389
        $region42: #{mix3_att_decoder.1} parent=11 // pred_check_branch
          %866 = sbr.rel (%p864) target = $region44
        $region43: #{mix3_att_decoder.1} parent=11 // pred_region
          _
        $region44: #{mix3_att_decoder.1} parent=11 // pred_fallthru
          _
        // Predicated region
        $region45: #{mix3_att_decoder.1} parent=11 // pred_check
          %p867 = pneg %p410
        $region46: #{mix3_att_decoder.1} parent=11 // pred_check_branch
          %869 = sbr.rel (%p867) target = $region48
        $region47: #{mix3_att_decoder.1} parent=11 // pred_region
          %s871 = ssub.s32 32, 32
          %872 = vsyncadd [#allocation13], %s871
          %s873 = sshll.u32 [#allocation14], 4
          %s874 = int_to_ptr.vmem [resolvable:$true] %s873
          %879 = dma.hbm_to_vmem [thread:$0]  %s27, 32, %s874, [#allocation13], 16, 16, 1
        $region48: #{mix3_att_decoder.1} parent=11 // pred_fallthru
          _
        // Predicated region
        $region49: #{mix3_att_decoder.1} parent=11 // pred_check
          %p880 = pneg %p431
        $region50: #{mix3_att_decoder.1} parent=11 // pred_check_branch
          %882 = sbr.rel (%p880) target = $region52
        $region51: #{mix3_att_decoder.1} parent=11 // pred_region
          %s884 = ssub.s32 512, 512
          %885 = vsyncadd [#allocation16], %s884
          %s886 = sshll.u32 [#allocation15], 4
          %s887 = int_to_ptr.vmem [resolvable:$true] %s886
          %892 = dma.hbm_to_vmem [thread:$0]  %s29, 512, %s887, [#allocation16], 64, 64, 4
        $region52: #{mix3_att_decoder.1} parent=11 // pred_fallthru
          _
        // Predicated region
        $region53: #{mix3_att_decoder.1} parent=11 // pred_check
          %p893 = pneg %p452
        $region54: #{mix3_att_decoder.1} parent=11 // pred_check_branch
          %895 = sbr.rel (%p893) target = $region56
        $region55: #{mix3_att_decoder.1} parent=11 // pred_region
          %s897 = ssub.s32 32, 32
          %898 = vsyncadd [#allocation16], %s897
          %s899 = sshll.u32 [#allocation17], 4
          %s900 = int_to_ptr.vmem [resolvable:$true] %s899
          %905 = dma.hbm_to_vmem [thread:$0]  %s31, 32, %s900, [#allocation16], 16, 16, 1
        $region56: #{mix3_att_decoder.1} parent=11 // pred_fallthru
          _
        // Predicated region
        $region57: #{mix3_att_decoder.1} parent=11 // pred_check
          %p906 = pneg %p473
        $region58: #{mix3_att_decoder.1} parent=11 // pred_check_branch
          %908 = sbr.rel (%p906) target = $region60
        $region59: #{mix3_att_decoder.1} parent=11 // pred_region
          _
        $region60: #{mix3_att_decoder.1} parent=11 // pred_fallthru
          _
        // Predicated region
        $region61: #{mix3_att_decoder.1} parent=11 // pred_check
          %p909 = pneg %p494
        $region62: #{mix3_att_decoder.1} parent=11 // pred_check_branch
          %911 = sbr.rel (%p909) target = $region64
        $region63: #{mix3_att_decoder.1} parent=11 // pred_region
          %s913 = ssub.s32 32, 32
          %914 = vsyncadd [#allocation19], %s913
          %s915 = sshll.u32 [#allocation18], 4
          %s916 = int_to_ptr.vmem [resolvable:$true] %s915
          %921 = dma.hbm_to_vmem [thread:$0]  %s35, 32, %s916, [#allocation19], 16, 16, 1
        $region64: #{mix3_att_decoder.1} parent=11 // pred_fallthru
          _
        // Predicated region
        $region65: #{mix3_att_decoder.1} parent=11 // pred_check
          %p922 = pneg %p515
        $region66: #{mix3_att_decoder.1} parent=11 // pred_check_branch
          %924 = sbr.rel (%p922) target = $region68
        $region67: #{mix3_att_decoder.1} parent=11 // pred_region
          %s926 = ssub.s32 512, 512
          %927 = vsyncadd [#allocation19], %s926
          %s928 = sshll.u32 [#allocation20], 4
          %s929 = int_to_ptr.vmem [resolvable:$true] %s928
          %934 = dma.hbm_to_vmem [thread:$0]  %s37, 512, %s929, [#allocation19], 64, 64, 4
        $region68: #{mix3_att_decoder.1} parent=11 // pred_fallthru
          _
        // Predicated region
        $region69: #{mix3_att_decoder.1} parent=11 // pred_check
          %p935 = pneg %p536
        $region70: #{mix3_att_decoder.1} parent=11 // pred_check_branch
          %937 = sbr.rel (%p935) target = $region72
        $region71: #{mix3_att_decoder.1} parent=11 // pred_region
          %s939 = ssub.s32 32, 32
          %940 = vsyncadd [#allocation22], %s939
          %s941 = sshll.u32 [#allocation21], 4
          %s942 = int_to_ptr.vmem [resolvable:$true] %s941
          %947 = dma.hbm_to_vmem [thread:$0]  %s39, 32, %s942, [#allocation22], 16, 16, 1
        $region72: #{mix3_att_decoder.1} parent=11 // pred_fallthru
          _
        // Predicated region
        $region73: #{mix3_att_decoder.1} parent=11 // pred_check
          %p948 = pneg %p557
        $region74: #{mix3_att_decoder.1} parent=11 // pred_check_branch
          %950 = sbr.rel (%p948) target = $region76
        $region75: #{mix3_att_decoder.1} parent=11 // pred_region
          %s952 = ssub.s32 512, 512
          %953 = vsyncadd [#allocation22], %s952
          %s954 = sshll.u32 [#allocation23], 4
          %s955 = int_to_ptr.vmem [resolvable:$true] %s954
          %960 = dma.hbm_to_vmem [thread:$0]  %s41, 512, %s955, [#allocation22], 64, 64, 4
        $region76: #{mix3_att_decoder.1} parent=11 // pred_fallthru
          _
        // Predicated region
        $region77: #{mix3_att_decoder.1} parent=11 // pred_check
          %p961 = pneg %p578
        $region78: #{mix3_att_decoder.1} parent=11 // pred_check_branch
          %963 = sbr.rel (%p961) target = $region80
        $region79: #{mix3_att_decoder.1} parent=11 // pred_region
          %s965 = ssub.s32 32, 32
          %966 = vsyncadd [#allocation25], %s965
          %s967 = sshll.u32 [#allocation24], 4
          %s968 = int_to_ptr.vmem [resolvable:$true] %s967
          %973 = dma.hbm_to_vmem [thread:$0]  %s43, 32, %s968, [#allocation25], 16, 16, 1
        $region80: #{mix3_att_decoder.1} parent=11 // pred_fallthru
          _
        // Predicated region
        $region81: #{mix3_att_decoder.1} parent=11 // pred_check
          %p974 = pneg %p599
        $region82: #{mix3_att_decoder.1} parent=11 // pred_check_branch
          %976 = sbr.rel (%p974) target = $region84
        $region83: #{mix3_att_decoder.1} parent=11 // pred_region
          %s978 = ssub.s32 512, 512
          %979 = vsyncadd [#allocation25], %s978
          %s980 = sshll.u32 [#allocation26], 4
          %s981 = int_to_ptr.vmem [resolvable:$true] %s980
          %986 = dma.hbm_to_vmem [thread:$0]  %s45, 512, %s981, [#allocation25], 64, 64, 4
        $region84: #{mix3_att_decoder.1} parent=11 // pred_fallthru
          _
        // Predicated region
        $region85: #{mix3_att_decoder.1} parent=11 // pred_check
          %p987 = pneg %p620
        $region86: #{mix3_att_decoder.1} parent=11 // pred_check_branch
          %989 = sbr.rel (%p987) target = $region88
        $region87: #{mix3_att_decoder.1} parent=11 // pred_region
          %s991 = ssub.s32 32, 32
          %992 = vsyncadd [#allocation28], %s991
          %s993 = sshll.u32 [#allocation27], 4
          %s994 = int_to_ptr.vmem [resolvable:$true] %s993
          %999 = dma.hbm_to_vmem [thread:$0]  %s47, 32, %s994, [#allocation28], 16, 16, 1
        $region88: #{mix3_att_decoder.1} parent=11 // pred_fallthru
          _
        // Predicated region
        $region89: #{mix3_att_decoder.1} parent=11 // pred_check
          %p1000 = pneg %p641
        $region90: #{mix3_att_decoder.1} parent=11 // pred_check_branch
          %1002 = sbr.rel (%p1000) target = $region92
        $region91: #{mix3_att_decoder.1} parent=11 // pred_region
          _
        $region92: #{mix3_att_decoder.1} parent=11 // pred_fallthru
          _
        // Predicated region
        $region93: #{mix3_att_decoder.1} parent=11 // pred_check
          %p1003 = pneg %p662
        $region94: #{mix3_att_decoder.1} parent=11 // pred_check_branch
          %1005 = sbr.rel (%p1003) target = $region96
        $region95: #{mix3_att_decoder.1} parent=11 // pred_region
          %s1007 = ssub.s32 32, 32
          %1008 = vsyncadd [#allocation28], %s1007
          %s1009 = sshll.u32 [#allocation29], 4
          %s1010 = int_to_ptr.vmem [resolvable:$true] %s1009
          %1015 = dma.hbm_to_vmem [thread:$0]  %s51, 32, %s1010, [#allocation28], 16, 16, 1
        $region96: #{mix3_att_decoder.1} parent=11 // pred_fallthru
          _
        // Predicated region
        $region97: #{mix3_att_decoder.1} parent=11 // pred_check
          %p1016 = pneg %p683
        $region98: #{mix3_att_decoder.1} parent=11 // pred_check_branch
          %1018 = sbr.rel (%p1016) target = $region100
        $region99: #{mix3_att_decoder.1} parent=11 // pred_region
          %s1020 = ssub.s32 128, 128
          %1021 = vsyncadd [#allocation31], %s1020
          %s1022 = sshll.u32 [#allocation30], 4
          %s1023 = int_to_ptr.vmem [resolvable:$true] %s1022
          %1028 = dma.hbm_to_vmem [thread:$0]  %s53, 128, %s1023, [#allocation31], 64, 64, 4
        $region100: #{mix3_att_decoder.1} parent=11 // pred_fallthru
          _
        // Predicated region
        $region101: #{mix3_att_decoder.1} parent=11 // pred_check
          %p1029 = pneg %p704
        $region102: #{mix3_att_decoder.1} parent=11 // pred_check_branch
          %1031 = sbr.rel (%p1029) target = $region104
        $region103: #{mix3_att_decoder.1} parent=11 // pred_region
          %s1033 = ssub.s32 128, 128
          %1034 = vsyncadd [#allocation31], %s1033
          %s1035 = sshll.u32 [#allocation32], 4
          %s1036 = int_to_ptr.vmem [resolvable:$true] %s1035
          %1041 = dma.hbm_to_vmem [thread:$0]  %s55, 128, %s1036, [#allocation31], 64, 64, 4
        $region104: #{mix3_att_decoder.1} parent=11 // pred_fallthru
          _
        // Predicated region
        $region105: #{mix3_att_decoder.1} parent=11 // pred_check
          %p1042 = pneg %p725
        $region106: #{mix3_att_decoder.1} parent=11 // pred_check_branch
          %1044 = sbr.rel (%p1042) target = $region108
        $region107: #{mix3_att_decoder.1} parent=11 // pred_region
          _
        $region108: #{mix3_att_decoder.1} parent=11 // pred_fallthru
          _
        // Predicated region
        $region109: #{mix3_att_decoder.1} parent=11 // pred_check
          %p1045 = pneg %p746
        $region110: #{mix3_att_decoder.1} parent=11 // pred_check_branch
          %1047 = sbr.rel (%p1045) target = $region112
        $region111: #{mix3_att_decoder.1} parent=11 // pred_region
          %s1049 = ssub.s32 16, 16
          %1050 = vsyncadd [#allocation34], %s1049
          %s1052 = sshll.u32 [#allocation33], 4
          %s1053 = int_to_ptr.vmem [resolvable:$true] %s1052
          %1055 = dma.hbm_to_vmem [thread:$0]  %s59, 16, %s1053, [#allocation34]
        $region112: #{mix3_att_decoder.1} parent=11 // pred_fallthru
          _
      $region12: #{mix3_att_decoder.1} parent=5 // pred_fallthru
        _
      %p1056 = scmp.lt.s32.totalorder %s91, 2
      // Predicated region
      $region113: #{mix3_att_decoder.1} parent=5 // pred_check
        %p1057 = pneg %p1056
      $region114: #{mix3_att_decoder.1} parent=5 // pred_check_branch
        %1059 = sbr.rel (%p1057) target = $region116
      $region115: #{mix3_att_decoder.1} parent=5 // pred_region
        // Predicated region
        $region117: #{mix3_att_decoder.1} parent=115 // pred_check
          %p1060 = pneg %p111
        $region118: #{mix3_att_decoder.1} parent=115 // pred_check_branch
          %1062 = sbr.rel (%p1060) target = $region120
        $region119: #{mix3_att_decoder.1} parent=115 // pred_region
          %s1063 = sand.u32 %s101, 1
          %s1064 = scalar_lea.sflag [#allocation4], %s1063
          %s1065 = sand.u32 %s101, 1
          %s1066 = smul.addr %s1065, 8
          %s1067 = scalar_lea.vmem [#allocation3], %s1066
          %s1069 = ssub.s32 128, 128
          %1070 = vsyncadd %s1064, %s1069
          %s1071 = smul.addr %s91, 128
          %s1072 = scalar_lea.hbm %s1, %s1071
          %s1074 = sshll.u32 %s1067, 4
          %s1075 = int_to_ptr.vmem [resolvable:$true] %s1074
          %1077 = dma.hbm_to_vmem [thread:$0]  %s1072, 128, %s1075, %s1064
        $region120: #{mix3_att_decoder.1} parent=115 // pred_fallthru
          _
        // Predicated region
        $region121: #{mix3_att_decoder.1} parent=115 // pred_check
          %p1078 = pneg %p137
        $region122: #{mix3_att_decoder.1} parent=115 // pred_check_branch
          %1080 = sbr.rel (%p1078) target = $region124
        $region123: #{mix3_att_decoder.1} parent=115 // pred_region
          %p1081 = scmp.lt.s32.totalorder %s91, 1
          %s1082 = scalar_select %p1081, %s91, 1
          %s1083 = smul.addr %s1082, 2
          %s1084 = smul.addr %s1083, 8
          %s1085 = scalar_lea.vmem %s3, %s1084
        $region124: #{mix3_att_decoder.1} parent=115 // pred_fallthru
          _
        // Predicated region
        $region125: #{mix3_att_decoder.1} parent=115 // pred_check
          %p1086 = pneg %p163
        $region126: #{mix3_att_decoder.1} parent=115 // pred_check_branch
          %1088 = sbr.rel (%p1086) target = $region128
        $region127: #{mix3_att_decoder.1} parent=115 // pred_region
          %p1089 = scmp.lt.s32.totalorder %s91, 1
          %s1090 = scalar_select %p1089, %s91, 1
          %s1091 = smul.addr %s1090, 2
          %s1092 = smul.addr %s1091, 8
          %s1093 = scalar_lea.vmem %s5, %s1092
        $region128: #{mix3_att_decoder.1} parent=115 // pred_fallthru
          _
        // Predicated region
        $region129: #{mix3_att_decoder.1} parent=115 // pred_check
          %p1094 = pneg %p210
        $region130: #{mix3_att_decoder.1} parent=115 // pred_check_branch
          %1096 = sbr.rel (%p1094) target = $region132
        $region131: #{mix3_att_decoder.1} parent=115 // pred_region
          %s1097 = sand.u32 %s91, 1
          %s1098 = scalar_lea.sflag [#allocation7], %s1097
          %s1099 = sand.u32 %s200, 1
          %s1100 = scalar_lea.vmem [#allocation6], %s1099
          %s1102 = ssub.s32 16, 16
          %1103 = vsyncadd %s1098, %s1102
          %s1104 = smul.addr %s91, 16
          %s1105 = scalar_lea.hbm %s9, %s1104
          %s1107 = sshll.u32 %s1100, 4
          %s1108 = int_to_ptr.vmem [resolvable:$true] %s1107
          %1110 = dma.hbm_to_vmem [thread:$0]  %s1105, 16, %s1108, %s1098
        $region132: #{mix3_att_decoder.1} parent=115 // pred_fallthru
          _
        // Predicated region
        $region133: #{mix3_att_decoder.1} parent=115 // pred_check
          %p1111 = pneg %p236
        $region134: #{mix3_att_decoder.1} parent=115 // pred_check_branch
          %1113 = sbr.rel (%p1111) target = $region136
        $region135: #{mix3_att_decoder.1} parent=115 // pred_region
          %s1114 = sand.u32 %s91, 1
          %s1115 = scalar_lea.sflag [#allocation7], %s1114
          %s1116 = sand.u32 %s226, 1
          %s1117 = scalar_lea.vmem [#allocation8], %s1116
          %s1119 = ssub.s32 16, 16
          %1120 = vsyncadd %s1115, %s1119
          %s1121 = smul.addr %s91, 16
          %s1122 = scalar_lea.hbm %s11, %s1121
          %s1124 = sshll.u32 %s1117, 4
          %s1125 = int_to_ptr.vmem [resolvable:$true] %s1124
          %1127 = dma.hbm_to_vmem [thread:$0]  %s1122, 16, %s1125, %s1115
        $region136: #{mix3_att_decoder.1} parent=115 // pred_fallthru
          _
      $region116: #{mix3_att_decoder.1} parent=5 // pred_fallthru
        _
      %p1128 = scmp.le.s32.totalorder 1, %s91
      %p1129 = scmp.lt.s32.totalorder %s91, 3
      %p1130 = pnand %p1128, %p1129
      %p1131 = pneg %p1130
      // Predicated region
      $region137: #{mix3_att_decoder.1} parent=5 // pred_check
        _
      $region138: #{mix3_att_decoder.1} parent=5 // pred_check_branch
        %1133 = sbr.rel (%p1130) target = $region140
      $region139: #{mix3_att_decoder.1} parent=5 // pred_region
        %s1134 = ssub.s32 %s91, 1
        %s1135 = sand.u32 %s104, 1
        %s1136 = scalar_lea.sflag [#allocation4], %s1135
        %s1137 = sand.u32 %s104, 1
        %s1138 = smul.addr %s1137, 8
        %s1139 = scalar_lea.vmem [#allocation3], %s1138
        // Predicated region
        $region141: #{mix3_att_decoder.1} parent=139 // pred_check
          %p1140 = pneg %p117
        $region142: #{mix3_att_decoder.1} parent=139 // pred_check_branch
          %1142 = sbr.rel (%p1140) target = $region144
        $region143: #{mix3_att_decoder.1} parent=139 // pred_region
          %1143 = dma.done %s1136, 128
        $region144: #{mix3_att_decoder.1} parent=139 // pred_fallthru
          _
        %s1144 = sand.u32 %s96, 1
        %s1145 = scalar_lea.sflag [#allocation7], %s1144
        %s1146 = sand.u32 %s203, 1
        %s1147 = scalar_lea.vmem [#allocation6], %s1146
        // Predicated region
        $region145: #{mix3_att_decoder.1} parent=139 // pred_check
          %p1148 = pneg %p216
        $region146: #{mix3_att_decoder.1} parent=139 // pred_check_branch
          %1150 = sbr.rel (%p1148) target = $region148
        $region147: #{mix3_att_decoder.1} parent=139 // pred_region
          %1151 = dma.done %s1145, 16
        $region148: #{mix3_att_decoder.1} parent=139 // pred_fallthru
          _
        %s1152 = sand.u32 %s96, 1
        %s1153 = scalar_lea.sflag [#allocation7], %s1152
        %s1154 = sand.u32 %s229, 1
        %s1155 = scalar_lea.vmem [#allocation8], %s1154
        // Predicated region
        $region149: #{mix3_att_decoder.1} parent=139 // pred_check
          %p1156 = pneg %p242
        $region150: #{mix3_att_decoder.1} parent=139 // pred_check_branch
          %1158 = sbr.rel (%p1156) target = $region152
        $region151: #{mix3_att_decoder.1} parent=139 // pred_region
          %1159 = dma.done %s1153, 16
        $region152: #{mix3_att_decoder.1} parent=139 // pred_fallthru
          _
        // Predicated region
        $region153: #{mix3_att_decoder.1} parent=139 // pred_check
          %p1160 = pneg %p284
        $region154: #{mix3_att_decoder.1} parent=139 // pred_check_branch
          %1162 = sbr.rel (%p1160) target = $region156
        $region155: #{mix3_att_decoder.1} parent=139 // pred_region
          %1163 = dma.done [#allocation10], 32
        $region156: #{mix3_att_decoder.1} parent=139 // pred_fallthru
          _
        // Predicated region
        $region157: #{mix3_att_decoder.1} parent=139 // pred_check
          %p1164 = pneg %p326
        $region158: #{mix3_att_decoder.1} parent=139 // pred_check_branch
          %1166 = sbr.rel (%p1164) target = $region160
        $region159: #{mix3_att_decoder.1} parent=139 // pred_region
          %1167 = dma.done [#allocation10], 32
        $region160: #{mix3_att_decoder.1} parent=139 // pred_fallthru
          _
        // Predicated region
        $region161: #{mix3_att_decoder.1} parent=139 // pred_check
          %p1168 = pneg %p368
        $region162: #{mix3_att_decoder.1} parent=139 // pred_check_branch
          %1170 = sbr.rel (%p1168) target = $region164
        $region163: #{mix3_att_decoder.1} parent=139 // pred_region
          %1171 = dma.done [#allocation13], 32
        $region164: #{mix3_att_decoder.1} parent=139 // pred_fallthru
          _
        // Predicated region
        $region165: #{mix3_att_decoder.1} parent=139 // pred_check
          %p1172 = pneg %p410
        $region166: #{mix3_att_decoder.1} parent=139 // pred_check_branch
          %1174 = sbr.rel (%p1172) target = $region168
        $region167: #{mix3_att_decoder.1} parent=139 // pred_region
          %1175 = dma.done [#allocation13], 32
        $region168: #{mix3_att_decoder.1} parent=139 // pred_fallthru
          _
        // Predicated region
        $region169: #{mix3_att_decoder.1} parent=139 // pred_check
          %p1176 = pneg %p431
        $region170: #{mix3_att_decoder.1} parent=139 // pred_check_branch
          %1178 = sbr.rel (%p1176) target = $region172
        $region171: #{mix3_att_decoder.1} parent=139 // pred_region
          %1179 = dma.done [#allocation16], 512
        $region172: #{mix3_att_decoder.1} parent=139 // pred_fallthru
          _
        // Predicated region
        $region173: #{mix3_att_decoder.1} parent=139 // pred_check
          %p1180 = pneg %p452
        $region174: #{mix3_att_decoder.1} parent=139 // pred_check_branch
          %1182 = sbr.rel (%p1180) target = $region176
        $region175: #{mix3_att_decoder.1} parent=139 // pred_region
          %1183 = dma.done [#allocation16], 32
        $region176: #{mix3_att_decoder.1} parent=139 // pred_fallthru
          _
        // Predicated region
        $region177: #{mix3_att_decoder.1} parent=139 // pred_check
          %p1184 = pneg %p494
        $region178: #{mix3_att_decoder.1} parent=139 // pred_check_branch
          %1186 = sbr.rel (%p1184) target = $region180
        $region179: #{mix3_att_decoder.1} parent=139 // pred_region
          %1187 = dma.done [#allocation19], 32
        $region180: #{mix3_att_decoder.1} parent=139 // pred_fallthru
          _
        // Predicated region
        $region181: #{mix3_att_decoder.1} parent=139 // pred_check
          %p1188 = pneg %p515
        $region182: #{mix3_att_decoder.1} parent=139 // pred_check_branch
          %1190 = sbr.rel (%p1188) target = $region184
        $region183: #{mix3_att_decoder.1} parent=139 // pred_region
          %1191 = dma.done [#allocation19], 512
        $region184: #{mix3_att_decoder.1} parent=139 // pred_fallthru
          _
        // Predicated region
        $region185: #{mix3_att_decoder.1} parent=139 // pred_check
          %p1192 = pneg %p536
        $region186: #{mix3_att_decoder.1} parent=139 // pred_check_branch
          %1194 = sbr.rel (%p1192) target = $region188
        $region187: #{mix3_att_decoder.1} parent=139 // pred_region
          %1195 = dma.done [#allocation22], 32
        $region188: #{mix3_att_decoder.1} parent=139 // pred_fallthru
          _
        // Predicated region
        $region189: #{mix3_att_decoder.1} parent=139 // pred_check
          %p1196 = pneg %p557
        $region190: #{mix3_att_decoder.1} parent=139 // pred_check_branch
          %1198 = sbr.rel (%p1196) target = $region192
        $region191: #{mix3_att_decoder.1} parent=139 // pred_region
          %1199 = dma.done [#allocation22], 512
        $region192: #{mix3_att_decoder.1} parent=139 // pred_fallthru
          _
        // Predicated region
        $region193: #{mix3_att_decoder.1} parent=139 // pred_check
          %p1200 = pneg %p578
        $region194: #{mix3_att_decoder.1} parent=139 // pred_check_branch
          %1202 = sbr.rel (%p1200) target = $region196
        $region195: #{mix3_att_decoder.1} parent=139 // pred_region
          %1203 = dma.done [#allocation25], 32
        $region196: #{mix3_att_decoder.1} parent=139 // pred_fallthru
          _
        // Predicated region
        $region197: #{mix3_att_decoder.1} parent=139 // pred_check
          %p1204 = pneg %p599
        $region198: #{mix3_att_decoder.1} parent=139 // pred_check_branch
          %1206 = sbr.rel (%p1204) target = $region200
        $region199: #{mix3_att_decoder.1} parent=139 // pred_region
          %1207 = dma.done [#allocation25], 512
        $region200: #{mix3_att_decoder.1} parent=139 // pred_fallthru
          _
        // Predicated region
        $region201: #{mix3_att_decoder.1} parent=139 // pred_check
          %p1208 = pneg %p620
        $region202: #{mix3_att_decoder.1} parent=139 // pred_check_branch
          %1210 = sbr.rel (%p1208) target = $region204
        $region203: #{mix3_att_decoder.1} parent=139 // pred_region
          %1211 = dma.done [#allocation28], 32
        $region204: #{mix3_att_decoder.1} parent=139 // pred_fallthru
          _
        // Predicated region
        $region205: #{mix3_att_decoder.1} parent=139 // pred_check
          %p1212 = pneg %p662
        $region206: #{mix3_att_decoder.1} parent=139 // pred_check_branch
          %1214 = sbr.rel (%p1212) target = $region208
        $region207: #{mix3_att_decoder.1} parent=139 // pred_region
          %1215 = dma.done [#allocation28], 32
        $region208: #{mix3_att_decoder.1} parent=139 // pred_fallthru
          _
        // Predicated region
        $region209: #{mix3_att_decoder.1} parent=139 // pred_check
          %p1216 = pneg %p683
        $region210: #{mix3_att_decoder.1} parent=139 // pred_check_branch
          %1218 = sbr.rel (%p1216) target = $region212
        $region211: #{mix3_att_decoder.1} parent=139 // pred_region
          %1219 = dma.done [#allocation31], 128
        $region212: #{mix3_att_decoder.1} parent=139 // pred_fallthru
          _
        // Predicated region
        $region213: #{mix3_att_decoder.1} parent=139 // pred_check
          %p1220 = pneg %p704
        $region214: #{mix3_att_decoder.1} parent=139 // pred_check_branch
          %1222 = sbr.rel (%p1220) target = $region216
        $region215: #{mix3_att_decoder.1} parent=139 // pred_region
          %1223 = dma.done [#allocation31], 128
        $region216: #{mix3_att_decoder.1} parent=139 // pred_fallthru
          _
        // Predicated region
        $region217: #{mix3_att_decoder.1} parent=139 // pred_check
          %p1224 = pneg %p746
        $region218: #{mix3_att_decoder.1} parent=139 // pred_check_branch
          %1226 = sbr.rel (%p1224) target = $region220
        $region219: #{mix3_att_decoder.1} parent=139 // pred_region
          %1227 = dma.done [#allocation34], 16
        $region220: #{mix3_att_decoder.1} parent=139 // pred_fallthru
          _
        %s1228 = sand.u32 %s104, 1
        %s1229 = scalar_lea.sflag [#allocation4], %s1228
        %s1230 = sand.u32 %s104, 1
        %s1231 = smul.addr %s1230, 8
        %s1232 = scalar_lea.vmem [#allocation3], %s1231
        %p1233 = pneg %p117
        %p1234 = pneg %p114
        %p1235 = scmp.lt.s32.totalorder %s96, 1
        %s1236 = scalar_select %p1235, %s96, 1
        %s1237 = smul.addr %s1236, 2
        %s1238 = smul.addr %s1237, 8
        %s1239 = scalar_lea.vmem %s3, %s1238
        %p1240 = pneg %p143
        %p1241 = pneg %p140
        %p1242 = scmp.lt.s32.totalorder %s96, 1
        %s1243 = scalar_select %p1242, %s96, 1
        %s1244 = smul.addr %s1243, 2
        %s1245 = smul.addr %s1244, 8
        %s1246 = scalar_lea.vmem %s5, %s1245
        %p1247 = pneg %p169
        %p1248 = pneg %p166
        %p1249 = pneg %p190
        %p1250 = pneg %p187
        %s1251 = sand.u32 %s96, 1
        %s1252 = scalar_lea.sflag [#allocation7], %s1251
        %s1253 = sand.u32 %s203, 1
        %s1254 = scalar_lea.vmem [#allocation6], %s1253
        %p1255 = pneg %p216
        %p1256 = pneg %p213
        %s1257 = sand.u32 %s96, 1
        %s1258 = scalar_lea.sflag [#allocation7], %s1257
        %s1259 = sand.u32 %s229, 1
        %s1260 = scalar_lea.vmem [#allocation8], %s1259
        %p1261 = pneg %p242
        %p1262 = pneg %p239
        %p1263 = pneg %p263
        %p1264 = pneg %p260
        %p1265 = pneg %p284
        %p1266 = pneg %p281
        %p1267 = pneg %p305
        %p1268 = pneg %p302
        %p1269 = pneg %p326
        %p1270 = pneg %p323
        %p1271 = pneg %p347
        %p1272 = pneg %p344
        %p1273 = pneg %p368
        %p1274 = pneg %p365
        %p1275 = pneg %p389
        %p1276 = pneg %p386
        %p1277 = pneg %p410
        %p1278 = pneg %p407
        %p1279 = pneg %p431
        %p1280 = pneg %p428
        %p1281 = pneg %p452
        %p1282 = pneg %p449
        %p1283 = pneg %p473
        %p1284 = pneg %p470
        %p1285 = pneg %p494
        %p1286 = pneg %p491
        %p1287 = pneg %p515
        %p1288 = pneg %p512
        %p1289 = pneg %p536
        %p1290 = pneg %p533
        %p1291 = pneg %p557
        %p1292 = pneg %p554
        %p1293 = pneg %p578
        %p1294 = pneg %p575
        %p1295 = pneg %p599
        %p1296 = pneg %p596
        %p1297 = pneg %p620
        %p1298 = pneg %p617
        %p1299 = pneg %p641
        %p1300 = pneg %p638
        %p1301 = pneg %p662
        %p1302 = pneg %p659
        %p1303 = pneg %p683
        %p1304 = pneg %p680
        %p1305 = pneg %p704
        %p1306 = pneg %p701
        %p1307 = pneg %p725
        %p1308 = pneg %p722
        %p1309 = pneg %p746
        %p1310 = pneg %p743
        %p1311 = pneg %p772
        %p1312 = pneg %p769
        %s1313 = sand.u32 %s759, 1
        %s1314 = scalar_lea.sflag [#allocation5], %s1313
        %s1315 = sand.u32 %s759, 1
        %s1316 = smul.addr %s1315, 8
        %s1317 = scalar_lea.vmem [#allocation35], %s1316
        %p1318 = pneg %p798
        %p1319 = pneg %p795
        %s1320 = sand.u32 %s785, 1
        %s1321 = scalar_lea.sflag [#allocation37], %s1320
        %s1322 = sand.u32 %s785, 1
        %s1323 = smul.addr %s1322, 8
        %s1324 = scalar_lea.vmem [#allocation36], %s1323
        %p1325 = scmp.lt.s32.totalorder %s96, 1
        %s1326 = scalar_select %p1325, %s96, 1
        %s1327 = smul.addr %s1326, 2
        %s1328 = smul.addr %s1327, 8
        %s1329 = scalar_lea.vmem %s3, %s1328
        %p1330 = scmp.lt.s32.totalorder %s96, 1
        %s1331 = scalar_select %p1330, %s96, 1
        %s1332 = smul.addr %s1331, 2
        %s1333 = smul.addr %s1332, 8
        %s1334 = scalar_lea.vmem %s5, %s1333
        %v1336 = vld [vmem:[%s1139] sm:$0xff]
        %v1337 = vld [vmem:[%s1329] sm:$0xff]
        %v1338 = vld [vmem:[%s1329 + $0x8] sm:$0xff]
        %v1339 = vpack.c.bf16 %v1338, %v1337
        %v1340 = vld [vmem:[%s1334] sm:$0xff]
        %v1341 = vld [vmem:[%s1334 + $0x8] sm:$0xf]
        %v1342 = vpack.c.bf16 %v1341, %v1340
        %v1343 = vld [vmem:[%s7] sm:$0xff]
        %v1344 = vsub.f32 %v1343, 1.0
        %v1345 = vmul.f32 %v1344, 1e+09
        %v1346 = vld [vmem:[%s1147] sm:$0x1]
        %v1347 = vsub.f32 %v1346, 1.0
        %v1348 = vmul.f32 %v1347, 1e+09
        %v1350 = vlaneseq
        %v1351 = vshrl.u32 %v1350, 7
        %v1352 = vsub.s32 0, %v1351
        %v1353 = vrot.slane %v1348, %v1352
        %v1355 = vld [vmem:[%s1155] sm:$0x1]
        %v1356 = vsub.f32 %v1355, 1.0
        %v1357 = vmul.f32 %v1356, 1e+09
        %v1359 = vlaneseq
        %v1360 = vshrl.u32 %v1359, 7
        %v1361 = vsub.s32 0, %v1360
        %v1362 = vrot.slane %v1357, %v1361
        %v1364 = vld [vmem:[#allocation30] sm:$0xf]
        %v1365 = vld [vmem:[#allocation32] sm:$0xf]
        %vm1366 = vcmask 261120
        %v1367 = vsel %vm1366, %v1336, 0.0
        %1368 = vadd.xlane.f32.xlu0 %v1367
        %v1369 = vpop.xlane.xlu0 %1368
        %v1370 = vrcp.pop 32.0
        %v1371 = vmul.f32 %v1369, %v1370
        %v1372 = vsub.f32 %v1336, %v1371
        %v1373 = vmul.f32 %v1372, %v1372
        %v1374 = vsel %vm1366, %v1373, 0.0
        %1375 = vadd.xlane.f32.xlu0 %v1374
        %v1376 = vpop.xlane.xlu0 %1375
        %v1377 = vmul.f32 %v1376, 0.032258064
        %v1378 = vlaneseq
        %v1379 = vshrl.u32 %v1378, 7
        %v1380 = vsub.s32 0, %v1379
        %v1381 = vrot.slane %v1364, %v1380
        %v1382 = vmul.f32 %v1381, %v1372
        %v1383 = vrsqrt.pop %v1377
        %v1384 = vmul.f32 %v1377, %v1383
        %vm1385 = vcmp.eq.f32.partialorder %v1377, inf
        %v1386 = vsel %vm1385, %v1377, %v1384
        %vm1387 = vcmp.eq.f32.partialorder %v1377, 0.0
        %v1388 = vand.u32 %v1377, 2147483648
        %v1389 = vsel %vm1387, %v1388, %v1386
        %v1390 = vadd.f32 %v1389, 1e-06
        %v1391 = vrcp.pop %v1390
        %v1392 = vmul.f32 %v1382, %v1391
        %v1393 = vlaneseq
        %v1394 = vshrl.u32 %v1393, 7
        %v1395 = vsub.s32 0, %v1394
        %v1396 = vrot.slane %v1365, %v1395
        %v1397 = vadd.f32 %v1392, %v1396
        %v1398 = vpack.c.bf16 %v1397, %v1397
        %v1399 = vld [vmem:[%s13] sm:$0xf]
        %v1400 = vld [vmem:[%s13 + $0x4] sm:$0xf]
        %v1401 = vld [vmem:[%s13 + $0x8] sm:$0xf]
        %v1402 = vld [vmem:[%s13 + $0xc] sm:$0xf]
        %v1403 = vld [vmem:[#allocation9] sm:$0x1]
        %v1405 = vlaneseq
        %v1406 = vshrl.u32 %v1405, 7
        %v1407 = vsub.s32 0, %v1406
        %v1408 = vrot.slane %v1403, %v1407
        %v1414 = vunpack.c.l.b16 %v1399
        %v1415 = vunpack.c.l.b16 %v1400
        %v1416 = vunpack.c.l.b16 %v1401
        %v1417 = vunpack.c.l.b16 %v1402
        %v1418 = vpack.c.b16 %v1415, %v1414
        %v1419 = vpack.c.b16 %v1417, %v1416
        %v1423 = vsel %vm1366, %v1398, 0
        %1425 = vmatprep.subr.bf16.mxu0 0
        %1426 = vmatpush1.bf16.msra.mxu0 %v1418
        %1427 = vmatprep.subr.bf16.mxu0 0
        %1428 = vmatpush1.bf16.msra.mxu0 %v1419
        %1429 = vmatprep.subr.bf16.mxu0 0
        %1430 = vmatpush1.bf16.msra.mxu0 0
        %1431 = vmatprep.subr.bf16.mxu0 0
        %1432 = vmatpush1.bf16.msra.mxu0 0
        %1433 = vmatprep.subr.bf16.mxu0 0
        %1434 = vmatpush1.bf16.msra.mxu0 0
        %1435 = vmatprep.subr.bf16.mxu0 0
        %1436 = vmatpush1.bf16.msra.mxu0 0
        %1437 = vmatprep.subr.bf16.mxu0 0
        %1438 = vmatpush1.bf16.msra.mxu0 0
        %1439 = vmatprep.subr.bf16.mxu0 0
        %1440 = vmatpush1.bf16.msra.mxu0 0
        %1441 = vmatprep.subr.bf16.mxu0 0
        %1442 = vmatpush1.bf16.msra.mxu0 0
        %1443 = vmatprep.subr.bf16.mxu0 0
        %1444 = vmatpush1.bf16.msra.mxu0 0
        %1445 = vmatprep.subr.bf16.mxu0 0
        %1446 = vmatpush1.bf16.msra.mxu0 0
        %1447 = vmatprep.subr.bf16.mxu0 0
        %1448 = vmatpush1.bf16.msra.mxu0 0
        %1449 = vmatprep.subr.bf16.mxu0 0
        %1450 = vmatpush1.bf16.msra.mxu0 0
        %1451 = vmatprep.subr.bf16.mxu0 0
        %1452 = vmatpush1.bf16.msra.mxu0 0
        %1453 = vmatprep.subr.bf16.mxu0 0
        %1454 = vmatpush1.bf16.msra.mxu0 0
        %1455 = vmatprep.subr.bf16.mxu0 0
        %1456 = vmatpush1.bf16.msra.mxu0 0
        %1457 = vmatprep.mubr.bf16.mxu0 0
        %1458 = vmatmul.mubr.bf16.gmra.mrb[0].mxu0 %v1423
        %v1459 = vpop.f32.mrb[0].mxu0
        %v1460 = vadd.f32 %v1408, %v1459
        %v1461 = vpop.f32.mrb[0].mxu0
        %v1462 = vpop.f32.mrb[0].mxu0
        %v1463 = vpop.f32.mrb[0].mxu0
        %1464 = vdwg.mxu0
        %v1465 = vpack.c.bf16 %v1460, %v1460
        %1467 = vrot.lane.b32.xlu0 %v1465, 96
        %v1468 = vpop.permute.xlu0 %1467
        %vm1469 = vcmask 64512
        %v1471 = vsel %vm1469, %v1465, 0
        %v1474 = vsel %vm1469, %v1468, 0
        %1476 = vmatprep.subr.bf16.mxu0 0
        %1477 = vmatpush1.bf16.xpose.msra.mxu0 %v1474
        %1478 = vmatprep.subr.bf16.mxu0 0
        %1479 = vmatpush1.bf16.xpose.msra.mxu0 0
        %1480 = vmatprep.subr.bf16.mxu0 0
        %1481 = vmatpush1.bf16.xpose.msra.mxu0 0
        %1482 = vmatprep.subr.bf16.mxu0 0
        %1483 = vmatpush1.bf16.xpose.msra.mxu0 0
        %1484 = vmatprep.subr.bf16.mxu0 0
        %1485 = vmatpush1.bf16.xpose.msra.mxu0 0
        %1486 = vmatprep.subr.bf16.mxu0 0
        %1487 = vmatpush1.bf16.xpose.msra.mxu0 0
        %1488 = vmatprep.subr.bf16.mxu0 0
        %1489 = vmatpush1.bf16.xpose.msra.mxu0 0
        %1490 = vmatprep.subr.bf16.mxu0 0
        %1491 = vmatpush1.bf16.xpose.msra.mxu0 0
        %1492 = vmatprep.subr.bf16.mxu0 0
        %1493 = vmatpush1.bf16.xpose.msra.mxu0 0
        %1494 = vmatprep.subr.bf16.mxu0 0
        %1495 = vmatpush1.bf16.xpose.msra.mxu0 0
        %1496 = vmatprep.subr.bf16.mxu0 0
        %1497 = vmatpush1.bf16.xpose.msra.mxu0 0
        %1498 = vmatprep.subr.bf16.mxu0 0
        %1499 = vmatpush1.bf16.xpose.msra.mxu0 0
        %1500 = vmatprep.subr.bf16.mxu0 0
        %1501 = vmatpush1.bf16.xpose.msra.mxu0 0
        %1502 = vmatprep.subr.bf16.mxu0 0
        %1503 = vmatpush1.bf16.xpose.msra.mxu0 0
        %1504 = vmatprep.subr.bf16.mxu0 0
        %1505 = vmatpush1.bf16.xpose.msra.mxu0 0
        %1506 = vmatprep.subr.bf16.mxu0 0
        %1507 = vmatpush1.bf16.xpose.msra.mxu0 0
        %1508 = vmatprep.mubr.bf16.mxu0 0
        %1509 = vmatmul.mubr.bf16.gmra.mrb[0].mxu0 %v1471
        %v1510 = vpop.f32.mrb[0].mxu0
        %v1511 = vadd.f32 %v1345, %v1510
        %v1512 = vpop.f32.mrb[0].mxu0
        %v1513 = vpop.f32.mrb[0].mxu0
        %v1514 = vpop.f32.mrb[0].mxu0
        %1515 = vdwg.mxu0
        %v1516 = vsel %vm1469, %v1511, -inf
        %1517 = vmax.xlane.f32.xlu0 %v1516
        %v1518 = vpop.xlane.xlu0 %1517
        %v1519 = vsub.f32 %v1511, %v1518
        %v1520 = vmul.f32 %v1519, 1.442695
        %v1521 = vpow.pop %v1520
        %v1522 = vsel %vm1469, %v1521, 0.0
        %1523 = vadd.xlane.f32.xlu0 %v1522
        %v1524 = vpop.xlane.xlu0 %1523
        %v1525 = vrcp.pop %v1524
        %v1526 = vmul.f32 %v1521, %v1525
        %v1527 = vpack.c.bf16 %v1526, %v1526
        %1528 = vrot.lane.b32.xlu0 %v1465, 64
        %v1529 = vpop.permute.xlu0 %1528
        %v1531 = vsel %vm1469, %v1527, 0
        %vm1533 = vcmask 1043456
        %v1535 = vsel %vm1533, %v1529, 0
        %1537 = vmatprep.subr.bf16.mxu0 0
        %1538 = vmatpush1.bf16.msra.mxu0 %v1535
        %1539 = vmatprep.subr.bf16.mxu0 0
        %1540 = vmatpush1.bf16.msra.mxu0 0
        %1541 = vmatprep.subr.bf16.mxu0 0
        %1542 = vmatpush1.bf16.msra.mxu0 0
        %1543 = vmatprep.subr.bf16.mxu0 0
        %1544 = vmatpush1.bf16.msra.mxu0 0
        %1545 = vmatprep.subr.bf16.mxu0 0
        %1546 = vmatpush1.bf16.msra.mxu0 0
        %1547 = vmatprep.subr.bf16.mxu0 0
        %1548 = vmatpush1.bf16.msra.mxu0 0
        %1549 = vmatprep.subr.bf16.mxu0 0
        %1550 = vmatpush1.bf16.msra.mxu0 0
        %1551 = vmatprep.subr.bf16.mxu0 0
        %1552 = vmatpush1.bf16.msra.mxu0 0
        %1553 = vmatprep.subr.bf16.mxu0 0
        %1554 = vmatpush1.bf16.msra.mxu0 0
        %1555 = vmatprep.subr.bf16.mxu0 0
        %1556 = vmatpush1.bf16.msra.mxu0 0
        %1557 = vmatprep.subr.bf16.mxu0 0
        %1558 = vmatpush1.bf16.msra.mxu0 0
        %1559 = vmatprep.subr.bf16.mxu0 0
        %1560 = vmatpush1.bf16.msra.mxu0 0
        %1561 = vmatprep.subr.bf16.mxu0 0
        %1562 = vmatpush1.bf16.msra.mxu0 0
        %1563 = vmatprep.subr.bf16.mxu0 0
        %1564 = vmatpush1.bf16.msra.mxu0 0
        %1565 = vmatprep.subr.bf16.mxu0 0
        %1566 = vmatpush1.bf16.msra.mxu0 0
        %1567 = vmatprep.subr.bf16.mxu0 0
        %1568 = vmatpush1.bf16.msra.mxu0 0
        %1569 = vmatprep.mubr.bf16.mxu0 0
        %1570 = vmatmul.mubr.bf16.gmra.mrb[0].mxu0 %v1531
        %v1571 = vpop.f32.mrb[0].mxu0
        %v1572 = vadd.f32 0.0, %v1571
        %v1573 = vpop.f32.mrb[0].mxu0
        %v1574 = vpop.f32.mrb[0].mxu0
        %v1575 = vpop.f32.mrb[0].mxu0
        %1576 = vdwg.mxu0
        %1577 = vst.msk [vmem:[#allocation2] sm:$0xff] %vm1469, %v1572
        %1578 = vrot.lane.b32.xlu0 %v1465, 120
        %v1579 = vpop.permute.xlu0 %1578
        %1580 = vrot.lane.b32.xlu0 %v1465, 88
        %v1581 = vpop.permute.xlu0 %1580
        %v1583 = vsel %vm1469, %v1579, 0
        %v1586 = vsel %vm1469, %v1581, 0
        %1588 = vmatprep.subr.bf16.mxu0 0
        %1589 = vmatpush1.bf16.xpose.msra.mxu0 %v1586
        %1590 = vmatprep.subr.bf16.mxu0 0
        %1591 = vmatpush1.bf16.xpose.msra.mxu0 0
        %1592 = vmatprep.subr.bf16.mxu0 0
        %1593 = vmatpush1.bf16.xpose.msra.mxu0 0
        %1594 = vmatprep.subr.bf16.mxu0 0
        %1595 = vmatpush1.bf16.xpose.msra.mxu0 0
        %1596 = vmatprep.subr.bf16.mxu0 0
        %1597 = vmatpush1.bf16.xpose.msra.mxu0 0
        %1598 = vmatprep.subr.bf16.mxu0 0
        %1599 = vmatpush1.bf16.xpose.msra.mxu0 0
        %1600 = vmatprep.subr.bf16.mxu0 0
        %1601 = vmatpush1.bf16.xpose.msra.mxu0 0
        %1602 = vmatprep.subr.bf16.mxu0 0
        %1603 = vmatpush1.bf16.xpose.msra.mxu0 0
        %1604 = vmatprep.subr.bf16.mxu0 0
        %1605 = vmatpush1.bf16.xpose.msra.mxu0 0
        %1606 = vmatprep.subr.bf16.mxu0 0
        %1607 = vmatpush1.bf16.xpose.msra.mxu0 0
        %1608 = vmatprep.subr.bf16.mxu0 0
        %1609 = vmatpush1.bf16.xpose.msra.mxu0 0
        %1610 = vmatprep.subr.bf16.mxu0 0
        %1611 = vmatpush1.bf16.xpose.msra.mxu0 0
        %1612 = vmatprep.subr.bf16.mxu0 0
        %1613 = vmatpush1.bf16.xpose.msra.mxu0 0
        %1614 = vmatprep.subr.bf16.mxu0 0
        %1615 = vmatpush1.bf16.xpose.msra.mxu0 0
        %1616 = vmatprep.subr.bf16.mxu0 0
        %1617 = vmatpush1.bf16.xpose.msra.mxu0 0
        %1618 = vmatprep.subr.bf16.mxu0 0
        %1619 = vmatpush1.bf16.xpose.msra.mxu0 0
        %1620 = vmatprep.mubr.bf16.mxu0 0
        %1621 = vmatmul.mubr.bf16.gmra.mrb[0].mxu0 %v1583
        %v1622 = vpop.f32.mrb[0].mxu0
        %v1623 = vadd.f32 %v1345, %v1622
        %v1624 = vpop.f32.mrb[0].mxu0
        %v1625 = vpop.f32.mrb[0].mxu0
        %v1626 = vpop.f32.mrb[0].mxu0
        %1627 = vdwg.mxu0
        %v1628 = vsel %vm1469, %v1623, -inf
        %1629 = vmax.xlane.f32.xlu0 %v1628
        %v1630 = vpop.xlane.xlu0 %1629
        %v1631 = vsub.f32 %v1623, %v1630
        %v1632 = vmul.f32 %v1631, 1.442695
        %v1633 = vpow.pop %v1632
        %v1634 = vsel %vm1469, %v1633, 0.0
        %1635 = vadd.xlane.f32.xlu0 %v1634
        %v1636 = vpop.xlane.xlu0 %1635
        %v1637 = vrcp.pop %v1636
        %v1638 = vmul.f32 %v1633, %v1637
        %v1639 = vpack.c.bf16 %v1638, %v1638
        %1640 = vrot.lane.b32.xlu0 %v1465, 56
        %v1641 = vpop.permute.xlu0 %1640
        %v1643 = vsel %vm1469, %v1639, 0
        %v1646 = vsel %vm1533, %v1641, 0
        %1648 = vmatprep.subr.bf16.mxu0 0
        %1649 = vmatpush1.bf16.msra.mxu0 %v1646
        %1650 = vmatprep.subr.bf16.mxu0 0
        %1651 = vmatpush1.bf16.msra.mxu0 0
        %1652 = vmatprep.subr.bf16.mxu0 0
        %1653 = vmatpush1.bf16.msra.mxu0 0
        %1654 = vmatprep.subr.bf16.mxu0 0
        %1655 = vmatpush1.bf16.msra.mxu0 0
        %1656 = vmatprep.subr.bf16.mxu0 0
        %1657 = vmatpush1.bf16.msra.mxu0 0
        %1658 = vmatprep.subr.bf16.mxu0 0
        %1659 = vmatpush1.bf16.msra.mxu0 0
        %1660 = vmatprep.subr.bf16.mxu0 0
        %1661 = vmatpush1.bf16.msra.mxu0 0
        %1662 = vmatprep.subr.bf16.mxu0 0
        %1663 = vmatpush1.bf16.msra.mxu0 0
        %1664 = vmatprep.subr.bf16.mxu0 0
        %1665 = vmatpush1.bf16.msra.mxu0 0
        %1666 = vmatprep.subr.bf16.mxu0 0
        %1667 = vmatpush1.bf16.msra.mxu0 0
        %1668 = vmatprep.subr.bf16.mxu0 0
        %1669 = vmatpush1.bf16.msra.mxu0 0
        %1670 = vmatprep.subr.bf16.mxu0 0
        %1671 = vmatpush1.bf16.msra.mxu0 0
        %1672 = vmatprep.subr.bf16.mxu0 0
        %1673 = vmatpush1.bf16.msra.mxu0 0
        %1674 = vmatprep.subr.bf16.mxu0 0
        %1675 = vmatpush1.bf16.msra.mxu0 0
        %1676 = vmatprep.subr.bf16.mxu0 0
        %1677 = vmatpush1.bf16.msra.mxu0 0
        %1678 = vmatprep.subr.bf16.mxu0 0
        %1679 = vmatpush1.bf16.msra.mxu0 0
        %1680 = vmatprep.mubr.bf16.mxu0 0
        %1681 = vmatmul.mubr.bf16.gmra.mrb[0].mxu0 %v1643
        %v1682 = vpop.f32.mrb[0].mxu0
        %v1683 = vadd.f32 0.0, %v1682
        %v1684 = vpop.f32.mrb[0].mxu0
        %v1685 = vpop.f32.mrb[0].mxu0
        %v1686 = vpop.f32.mrb[0].mxu0
        %1687 = vdwg.mxu0
        %1689 = vrot.lane.b32.xlu0 %v1683, 8
        %v1690 = vpop.permute.xlu0 %1689
        %vm1692 = vcmask 130112
        %1693 = vst.msk [vmem:[#allocation2] sm:$0xff] %vm1692, %v1690
        %1694 = vrot.lane.b32.xlu0 %v1465, 112
        %v1695 = vpop.permute.xlu0 %1694
        %1696 = vrot.lane.b32.xlu0 %v1465, 80
        %v1697 = vpop.permute.xlu0 %1696
        %v1699 = vsel %vm1469, %v1695, 0
        %v1702 = vsel %vm1469, %v1697, 0
        %1704 = vmatprep.subr.bf16.mxu0 0
        %1705 = vmatpush1.bf16.xpose.msra.mxu0 %v1702
        %1706 = vmatprep.subr.bf16.mxu0 0
        %1707 = vmatpush1.bf16.xpose.msra.mxu0 0
        %1708 = vmatprep.subr.bf16.mxu0 0
        %1709 = vmatpush1.bf16.xpose.msra.mxu0 0
        %1710 = vmatprep.subr.bf16.mxu0 0
        %1711 = vmatpush1.bf16.xpose.msra.mxu0 0
        %1712 = vmatprep.subr.bf16.mxu0 0
        %1713 = vmatpush1.bf16.xpose.msra.mxu0 0
        %1714 = vmatprep.subr.bf16.mxu0 0
        %1715 = vmatpush1.bf16.xpose.msra.mxu0 0
        %1716 = vmatprep.subr.bf16.mxu0 0
        %1717 = vmatpush1.bf16.xpose.msra.mxu0 0
        %1718 = vmatprep.subr.bf16.mxu0 0
        %1719 = vmatpush1.bf16.xpose.msra.mxu0 0
        %1720 = vmatprep.subr.bf16.mxu0 0
        %1721 = vmatpush1.bf16.xpose.msra.mxu0 0
        %1722 = vmatprep.subr.bf16.mxu0 0
        %1723 = vmatpush1.bf16.xpose.msra.mxu0 0
        %1724 = vmatprep.subr.bf16.mxu0 0
        %1725 = vmatpush1.bf16.xpose.msra.mxu0 0
        %1726 = vmatprep.subr.bf16.mxu0 0
        %1727 = vmatpush1.bf16.xpose.msra.mxu0 0
        %1728 = vmatprep.subr.bf16.mxu0 0
        %1729 = vmatpush1.bf16.xpose.msra.mxu0 0
        %1730 = vmatprep.subr.bf16.mxu0 0
        %1731 = vmatpush1.bf16.xpose.msra.mxu0 0
        %1732 = vmatprep.subr.bf16.mxu0 0
        %1733 = vmatpush1.bf16.xpose.msra.mxu0 0
        %1734 = vmatprep.subr.bf16.mxu0 0
        %1735 = vmatpush1.bf16.xpose.msra.mxu0 0
        %1736 = vmatprep.mubr.bf16.mxu0 0
        %1737 = vmatmul.mubr.bf16.gmra.mrb[0].mxu0 %v1699
        %v1738 = vpop.f32.mrb[0].mxu0
        %v1739 = vadd.f32 %v1345, %v1738
        %v1740 = vpop.f32.mrb[0].mxu0
        %v1741 = vpop.f32.mrb[0].mxu0
        %v1742 = vpop.f32.mrb[0].mxu0
        %1743 = vdwg.mxu0
        %v1744 = vsel %vm1469, %v1739, -inf
        %1745 = vmax.xlane.f32.xlu0 %v1744
        %v1746 = vpop.xlane.xlu0 %1745
        %v1747 = vsub.f32 %v1739, %v1746
        %v1748 = vmul.f32 %v1747, 1.442695
        %v1749 = vpow.pop %v1748
        %v1750 = vsel %vm1469, %v1749, 0.0
        %1751 = vadd.xlane.f32.xlu0 %v1750
        %v1752 = vpop.xlane.xlu0 %1751
        %v1753 = vrcp.pop %v1752
        %v1754 = vmul.f32 %v1749, %v1753
        %v1755 = vpack.c.bf16 %v1754, %v1754
        %1756 = vrot.lane.b32.xlu0 %v1465, 48
        %v1757 = vpop.permute.xlu0 %1756
        %v1759 = vsel %vm1469, %v1755, 0
        %v1762 = vsel %vm1533, %v1757, 0
        %1764 = vmatprep.subr.bf16.mxu0 0
        %1765 = vmatpush1.bf16.msra.mxu0 %v1762
        %1766 = vmatprep.subr.bf16.mxu0 0
        %1767 = vmatpush1.bf16.msra.mxu0 0
        %1768 = vmatprep.subr.bf16.mxu0 0
        %1769 = vmatpush1.bf16.msra.mxu0 0
        %1770 = vmatprep.subr.bf16.mxu0 0
        %1771 = vmatpush1.bf16.msra.mxu0 0
        %1772 = vmatprep.subr.bf16.mxu0 0
        %1773 = vmatpush1.bf16.msra.mxu0 0
        %1774 = vmatprep.subr.bf16.mxu0 0
        %1775 = vmatpush1.bf16.msra.mxu0 0
        %1776 = vmatprep.subr.bf16.mxu0 0
        %1777 = vmatpush1.bf16.msra.mxu0 0
        %1778 = vmatprep.subr.bf16.mxu0 0
        %1779 = vmatpush1.bf16.msra.mxu0 0
        %1780 = vmatprep.subr.bf16.mxu0 0
        %1781 = vmatpush1.bf16.msra.mxu0 0
        %1782 = vmatprep.subr.bf16.mxu0 0
        %1783 = vmatpush1.bf16.msra.mxu0 0
        %1784 = vmatprep.subr.bf16.mxu0 0
        %1785 = vmatpush1.bf16.msra.mxu0 0
        %1786 = vmatprep.subr.bf16.mxu0 0
        %1787 = vmatpush1.bf16.msra.mxu0 0
        %1788 = vmatprep.subr.bf16.mxu0 0
        %1789 = vmatpush1.bf16.msra.mxu0 0
        %1790 = vmatprep.subr.bf16.mxu0 0
        %1791 = vmatpush1.bf16.msra.mxu0 0
        %1792 = vmatprep.subr.bf16.mxu0 0
        %1793 = vmatpush1.bf16.msra.mxu0 0
        %1794 = vmatprep.subr.bf16.mxu0 0
        %1795 = vmatpush1.bf16.msra.mxu0 0
        %1796 = vmatprep.mubr.bf16.mxu0 0
        %1797 = vmatmul.mubr.bf16.gmra.mrb[0].mxu0 %v1759
        %v1798 = vpop.f32.mrb[0].mxu0
        %v1799 = vadd.f32 0.0, %v1798
        %v1800 = vpop.f32.mrb[0].mxu0
        %v1801 = vpop.f32.mrb[0].mxu0
        %v1802 = vpop.f32.mrb[0].mxu0
        %1803 = vdwg.mxu0
        %1805 = vrot.lane.b32.xlu0 %v1799, 16
        %v1806 = vpop.permute.xlu0 %1805
        %vm1808 = vcmask 195712
        %1809 = vst.msk [vmem:[#allocation2] sm:$0xff] %vm1808, %v1806
        %1810 = vrot.lane.b32.xlu0 %v1465, 104
        %v1811 = vpop.permute.xlu0 %1810
        %1812 = vrot.lane.b32.xlu0 %v1465, 72
        %v1813 = vpop.permute.xlu0 %1812
        %v1815 = vsel %vm1469, %v1811, 0
        %v1818 = vsel %vm1469, %v1813, 0
        %1820 = vmatprep.subr.bf16.mxu0 0
        %1821 = vmatpush1.bf16.xpose.msra.mxu0 %v1818
        %1822 = vmatprep.subr.bf16.mxu0 0
        %1823 = vmatpush1.bf16.xpose.msra.mxu0 0
        %1824 = vmatprep.subr.bf16.mxu0 0
        %1825 = vmatpush1.bf16.xpose.msra.mxu0 0
        %1826 = vmatprep.subr.bf16.mxu0 0
        %1827 = vmatpush1.bf16.xpose.msra.mxu0 0
        %1828 = vmatprep.subr.bf16.mxu0 0
        %1829 = vmatpush1.bf16.xpose.msra.mxu0 0
        %1830 = vmatprep.subr.bf16.mxu0 0
        %1831 = vmatpush1.bf16.xpose.msra.mxu0 0
        %1832 = vmatprep.subr.bf16.mxu0 0
        %1833 = vmatpush1.bf16.xpose.msra.mxu0 0
        %1834 = vmatprep.subr.bf16.mxu0 0
        %1835 = vmatpush1.bf16.xpose.msra.mxu0 0
        %1836 = vmatprep.subr.bf16.mxu0 0
        %1837 = vmatpush1.bf16.xpose.msra.mxu0 0
        %1838 = vmatprep.subr.bf16.mxu0 0
        %1839 = vmatpush1.bf16.xpose.msra.mxu0 0
        %1840 = vmatprep.subr.bf16.mxu0 0
        %1841 = vmatpush1.bf16.xpose.msra.mxu0 0
        %1842 = vmatprep.subr.bf16.mxu0 0
        %1843 = vmatpush1.bf16.xpose.msra.mxu0 0
        %1844 = vmatprep.subr.bf16.mxu0 0
        %1845 = vmatpush1.bf16.xpose.msra.mxu0 0
        %1846 = vmatprep.subr.bf16.mxu0 0
        %1847 = vmatpush1.bf16.xpose.msra.mxu0 0
        %1848 = vmatprep.subr.bf16.mxu0 0
        %1849 = vmatpush1.bf16.xpose.msra.mxu0 0
        %1850 = vmatprep.subr.bf16.mxu0 0
        %1851 = vmatpush1.bf16.xpose.msra.mxu0 0
        %1852 = vmatprep.mubr.bf16.mxu0 0
        %1853 = vmatmul.mubr.bf16.gmra.mrb[0].mxu0 %v1815
        %v1854 = vpop.f32.mrb[0].mxu0
        %v1855 = vadd.f32 %v1345, %v1854
        %v1856 = vpop.f32.mrb[0].mxu0
        %v1857 = vpop.f32.mrb[0].mxu0
        %v1858 = vpop.f32.mrb[0].mxu0
        %1859 = vdwg.mxu0
        %v1860 = vsel %vm1469, %v1855, -inf
        %1861 = vmax.xlane.f32.xlu0 %v1860
        %v1862 = vpop.xlane.xlu0 %1861
        %v1863 = vsub.f32 %v1855, %v1862
        %v1864 = vmul.f32 %v1863, 1.442695
        %v1865 = vpow.pop %v1864
        %v1866 = vsel %vm1469, %v1865, 0.0
        %1867 = vadd.xlane.f32.xlu0 %v1866
        %v1868 = vpop.xlane.xlu0 %1867
        %v1869 = vrcp.pop %v1868
        %v1870 = vmul.f32 %v1865, %v1869
        %v1871 = vpack.c.bf16 %v1870, %v1870
        %1872 = vrot.lane.b32.xlu0 %v1465, 40
        %v1873 = vpop.permute.xlu0 %1872
        %v1875 = vsel %vm1469, %v1871, 0
        %v1878 = vsel %vm1533, %v1873, 0
        %1880 = vmatprep.subr.bf16.mxu0 0
        %1881 = vmatpush1.bf16.msra.mxu0 %v1878
        %1882 = vmatprep.subr.bf16.mxu0 0
        %1883 = vmatpush1.bf16.msra.mxu0 0
        %1884 = vmatprep.subr.bf16.mxu0 0
        %1885 = vmatpush1.bf16.msra.mxu0 0
        %1886 = vmatprep.subr.bf16.mxu0 0
        %1887 = vmatpush1.bf16.msra.mxu0 0
        %1888 = vmatprep.subr.bf16.mxu0 0
        %1889 = vmatpush1.bf16.msra.mxu0 0
        %1890 = vmatprep.subr.bf16.mxu0 0
        %1891 = vmatpush1.bf16.msra.mxu0 0
        %1892 = vmatprep.subr.bf16.mxu0 0
        %1893 = vmatpush1.bf16.msra.mxu0 0
        %1894 = vmatprep.subr.bf16.mxu0 0
        %1895 = vmatpush1.bf16.msra.mxu0 0
        %1896 = vmatprep.subr.bf16.mxu0 0
        %1897 = vmatpush1.bf16.msra.mxu0 0
        %1898 = vmatprep.subr.bf16.mxu0 0
        %1899 = vmatpush1.bf16.msra.mxu0 0
        %1900 = vmatprep.subr.bf16.mxu0 0
        %1901 = vmatpush1.bf16.msra.mxu0 0
        %1902 = vmatprep.subr.bf16.mxu0 0
        %1903 = vmatpush1.bf16.msra.mxu0 0
        %1904 = vmatprep.subr.bf16.mxu0 0
        %1905 = vmatpush1.bf16.msra.mxu0 0
        %1906 = vmatprep.subr.bf16.mxu0 0
        %1907 = vmatpush1.bf16.msra.mxu0 0
        %1908 = vmatprep.subr.bf16.mxu0 0
        %1909 = vmatpush1.bf16.msra.mxu0 0
        %1910 = vmatprep.subr.bf16.mxu0 0
        %1911 = vmatpush1.bf16.msra.mxu0 0
        %1912 = vmatprep.mubr.bf16.mxu0 0
        %1913 = vmatmul.mubr.bf16.gmra.mrb[0].mxu0 %v1875
        %v1914 = vpop.f32.mrb[0].mxu0
        %v1915 = vadd.f32 0.0, %v1914
        %v1916 = vpop.f32.mrb[0].mxu0
        %v1917 = vpop.f32.mrb[0].mxu0
        %v1918 = vpop.f32.mrb[0].mxu0
        %1919 = vdwg.mxu0
        %1921 = vrot.lane.b32.xlu0 %v1915, 24
        %v1922 = vpop.permute.xlu0 %1921
        %vm1924 = vcmask 261312
        %1925 = vst.msk [vmem:[#allocation2] sm:$0xff] %vm1924, %v1922
        %v1926 = vld [vmem:[#allocation2] sm:$0xff]
        %v1927 = vpack.c.bf16 %v1926, %v1926
        %v1928 = vld [vmem:[%s17] sm:$0xf]
        %v1929 = vld [vmem:[%s17 + $0x4] sm:$0xf]
        %v1930 = vld [vmem:[%s17 + $0x8] sm:$0xf]
        %v1931 = vld [vmem:[%s17 + $0xc] sm:$0xf]
        %v1936 = vunpack.c.l.b16 %v1928
        %v1937 = vunpack.c.l.b16 %v1929
        %v1938 = vunpack.c.l.b16 %v1930
        %v1939 = vunpack.c.l.b16 %v1931
        %v1940 = vpack.c.b16 %v1937, %v1936
        %v1941 = vpack.c.b16 %v1939, %v1938
        %v1945 = vsel %vm1366, %v1927, 0
        %1947 = vmatprep.subr.bf16.mxu0 0
        %1948 = vmatpush1.bf16.msra.mxu0 %v1940
        %1949 = vmatprep.subr.bf16.mxu0 0
        %1950 = vmatpush1.bf16.msra.mxu0 %v1941
        %1951 = vmatprep.subr.bf16.mxu0 0
        %1952 = vmatpush1.bf16.msra.mxu0 0
        %1953 = vmatprep.subr.bf16.mxu0 0
        %1954 = vmatpush1.bf16.msra.mxu0 0
        %1955 = vmatprep.subr.bf16.mxu0 0
        %1956 = vmatpush1.bf16.msra.mxu0 0
        %1957 = vmatprep.subr.bf16.mxu0 0
        %1958 = vmatpush1.bf16.msra.mxu0 0
        %1959 = vmatprep.subr.bf16.mxu0 0
        %1960 = vmatpush1.bf16.msra.mxu0 0
        %1961 = vmatprep.subr.bf16.mxu0 0
        %1962 = vmatpush1.bf16.msra.mxu0 0
        %1963 = vmatprep.subr.bf16.mxu0 0
        %1964 = vmatpush1.bf16.msra.mxu0 0
        %1965 = vmatprep.subr.bf16.mxu0 0
        %1966 = vmatpush1.bf16.msra.mxu0 0
        %1967 = vmatprep.subr.bf16.mxu0 0
        %1968 = vmatpush1.bf16.msra.mxu0 0
        %1969 = vmatprep.subr.bf16.mxu0 0
        %1970 = vmatpush1.bf16.msra.mxu0 0
        %1971 = vmatprep.subr.bf16.mxu0 0
        %1972 = vmatpush1.bf16.msra.mxu0 0
        %1973 = vmatprep.subr.bf16.mxu0 0
        %1974 = vmatpush1.bf16.msra.mxu0 0
        %1975 = vmatprep.subr.bf16.mxu0 0
        %1976 = vmatpush1.bf16.msra.mxu0 0
        %1977 = vmatprep.subr.bf16.mxu0 0
        %1978 = vmatpush1.bf16.msra.mxu0 0
        %1979 = vmatprep.mubr.bf16.mxu0 0
        %1980 = vmatmul.mubr.bf16.gmra.mrb[0].mxu0 %v1945
        %v1981 = vpop.f32.mrb[0].mxu0
        %v1982 = vadd.f32 0.0, %v1981
        %v1983 = vpop.f32.mrb[0].mxu0
        %v1984 = vpop.f32.mrb[0].mxu0
        %v1985 = vpop.f32.mrb[0].mxu0
        %1986 = vdwg.mxu0
        %v1987 = vadd.f32 %v1336, %v1982
        %v1988 = vld [vmem:[#allocation11] sm:$0x1]
        %v1990 = vlaneseq
        %v1991 = vshrl.u32 %v1990, 7
        %v1992 = vsub.s32 0, %v1991
        %v1993 = vrot.slane %v1988, %v1992
        %v1995 = vadd.f32 %v1987, %v1993
        %v1996 = vsel %vm1366, %v1995, 0.0
        %1997 = vadd.xlane.f32.xlu0 %v1996
        %v1998 = vpop.xlane.xlu0 %1997
        %v1999 = vmul.f32 %v1998, %v1370
        %v2000 = vsub.f32 %v1995, %v1999
        %v2001 = vmul.f32 %v2000, %v2000
        %v2002 = vsel %vm1366, %v2001, 0.0
        %2003 = vadd.xlane.f32.xlu0 %v2002
        %v2004 = vpop.xlane.xlu0 %2003
        %v2005 = vmul.f32 %v2004, 0.032258064
        %v2006 = vlaneseq
        %v2007 = vshrl.u32 %v2006, 7
        %v2008 = vsub.s32 1, %v2007
        %v2009 = vrot.slane %v1364, %v2008
        %v2010 = vmul.f32 %v2009, %v2000
        %v2011 = vrsqrt.pop %v2005
        %v2012 = vmul.f32 %v2005, %v2011
        %vm2013 = vcmp.eq.f32.partialorder %v2005, inf
        %v2014 = vsel %vm2013, %v2005, %v2012
        %vm2015 = vcmp.eq.f32.partialorder %v2005, 0.0
        %v2016 = vand.u32 %v2005, 2147483648
        %v2017 = vsel %vm2015, %v2016, %v2014
        %v2018 = vadd.f32 %v2017, 1e-06
        %v2019 = vrcp.pop %v2018
        %v2020 = vmul.f32 %v2010, %v2019
        %v2021 = vlaneseq
        %v2022 = vshrl.u32 %v2021, 7
        %v2023 = vsub.s32 1, %v2022
        %v2024 = vrot.slane %v1365, %v2023
        %v2025 = vadd.f32 %v2020, %v2024
        %v2026 = vpack.c.bf16 %v2025, %v2025
        %v2027 = vld [vmem:[%s21] sm:$0xf]
        %v2028 = vld [vmem:[%s21 + $0x4] sm:$0xf]
        %v2029 = vld [vmem:[%s21 + $0x8] sm:$0xf]
        %v2030 = vld [vmem:[%s21 + $0xc] sm:$0xf]
        %v2031 = vld [vmem:[#allocation12] sm:$0x1]
        %v2033 = vlaneseq
        %v2034 = vshrl.u32 %v2033, 7
        %v2035 = vsub.s32 0, %v2034
        %v2036 = vrot.slane %v2031, %v2035
        %v2042 = vunpack.c.l.b16 %v2027
        %v2043 = vunpack.c.l.b16 %v2028
        %v2044 = vunpack.c.l.b16 %v2029
        %v2045 = vunpack.c.l.b16 %v2030
        %v2046 = vpack.c.b16 %v2043, %v2042
        %v2047 = vpack.c.b16 %v2045, %v2044
        %v2051 = vsel %vm1366, %v2026, 0
        %2053 = vmatprep.subr.bf16.mxu0 0
        %2054 = vmatpush1.bf16.msra.mxu0 %v2046
        %2055 = vmatprep.subr.bf16.mxu0 0
        %2056 = vmatpush1.bf16.msra.mxu0 %v2047
        %2057 = vmatprep.subr.bf16.mxu0 0
        %2058 = vmatpush1.bf16.msra.mxu0 0
        %2059 = vmatprep.subr.bf16.mxu0 0
        %2060 = vmatpush1.bf16.msra.mxu0 0
        %2061 = vmatprep.subr.bf16.mxu0 0
        %2062 = vmatpush1.bf16.msra.mxu0 0
        %2063 = vmatprep.subr.bf16.mxu0 0
        %2064 = vmatpush1.bf16.msra.mxu0 0
        %2065 = vmatprep.subr.bf16.mxu0 0
        %2066 = vmatpush1.bf16.msra.mxu0 0
        %2067 = vmatprep.subr.bf16.mxu0 0
        %2068 = vmatpush1.bf16.msra.mxu0 0
        %2069 = vmatprep.subr.bf16.mxu0 0
        %2070 = vmatpush1.bf16.msra.mxu0 0
        %2071 = vmatprep.subr.bf16.mxu0 0
        %2072 = vmatpush1.bf16.msra.mxu0 0
        %2073 = vmatprep.subr.bf16.mxu0 0
        %2074 = vmatpush1.bf16.msra.mxu0 0
        %2075 = vmatprep.subr.bf16.mxu0 0
        %2076 = vmatpush1.bf16.msra.mxu0 0
        %2077 = vmatprep.subr.bf16.mxu0 0
        %2078 = vmatpush1.bf16.msra.mxu0 0
        %2079 = vmatprep.subr.bf16.mxu0 0
        %2080 = vmatpush1.bf16.msra.mxu0 0
        %2081 = vmatprep.subr.bf16.mxu0 0
        %2082 = vmatpush1.bf16.msra.mxu0 0
        %2083 = vmatprep.subr.bf16.mxu0 0
        %2084 = vmatpush1.bf16.msra.mxu0 0
        %2085 = vmatprep.mubr.bf16.mxu0 0
        %2086 = vmatmul.mubr.bf16.gmra.mrb[0].mxu0 %v2051
        %v2087 = vpop.f32.mrb[0].mxu0
        %v2088 = vadd.f32 %v2036, %v2087
        %v2089 = vpop.f32.mrb[0].mxu0
        %v2090 = vpop.f32.mrb[0].mxu0
        %v2091 = vpop.f32.mrb[0].mxu0
        %2092 = vdwg.mxu0
        %v2093 = vld [vmem:[%s25] sm:$0xf]
        %v2094 = vld [vmem:[%s25 + $0x4] sm:$0xf]
        %v2095 = vld [vmem:[%s25 + $0x8] sm:$0xf]
        %v2096 = vld [vmem:[%s25 + $0xc] sm:$0xf]
        %v2097 = vld [vmem:[#allocation14] sm:$0x1]
        %v2099 = vlaneseq
        %v2100 = vshrl.u32 %v2099, 7
        %v2101 = vsub.s32 0, %v2100
        %v2102 = vrot.slane %v2097, %v2101
        %v2108 = vunpack.c.l.b16 %v2093
        %v2109 = vunpack.c.l.b16 %v2094
        %v2110 = vunpack.c.l.b16 %v2095
        %v2111 = vunpack.c.l.b16 %v2096
        %v2112 = vpack.c.b16 %v2109, %v2108
        %v2113 = vpack.c.b16 %v2111, %v2110
        %v2117 = vsel %vm1366, %v1339, 0
        %2119 = vmatprep.subr.bf16.mxu0 0
        %2120 = vmatpush1.bf16.msra.mxu0 %v2112
        %2121 = vmatprep.subr.bf16.mxu0 0
        %2122 = vmatpush1.bf16.msra.mxu0 %v2113
        %2123 = vmatprep.subr.bf16.mxu0 0
        %2124 = vmatpush1.bf16.msra.mxu0 0
        %2125 = vmatprep.subr.bf16.mxu0 0
        %2126 = vmatpush1.bf16.msra.mxu0 0
        %2127 = vmatprep.subr.bf16.mxu0 0
        %2128 = vmatpush1.bf16.msra.mxu0 0
        %2129 = vmatprep.subr.bf16.mxu0 0
        %2130 = vmatpush1.bf16.msra.mxu0 0
        %2131 = vmatprep.subr.bf16.mxu0 0
        %2132 = vmatpush1.bf16.msra.mxu0 0
        %2133 = vmatprep.subr.bf16.mxu0 0
        %2134 = vmatpush1.bf16.msra.mxu0 0
        %2135 = vmatprep.subr.bf16.mxu0 0
        %2136 = vmatpush1.bf16.msra.mxu0 0
        %2137 = vmatprep.subr.bf16.mxu0 0
        %2138 = vmatpush1.bf16.msra.mxu0 0
        %2139 = vmatprep.subr.bf16.mxu0 0
        %2140 = vmatpush1.bf16.msra.mxu0 0
        %2141 = vmatprep.subr.bf16.mxu0 0
        %2142 = vmatpush1.bf16.msra.mxu0 0
        %2143 = vmatprep.subr.bf16.mxu0 0
        %2144 = vmatpush1.bf16.msra.mxu0 0
        %2145 = vmatprep.subr.bf16.mxu0 0
        %2146 = vmatpush1.bf16.msra.mxu0 0
        %2147 = vmatprep.subr.bf16.mxu0 0
        %2148 = vmatpush1.bf16.msra.mxu0 0
        %2149 = vmatprep.subr.bf16.mxu0 0
        %2150 = vmatpush1.bf16.msra.mxu0 0
        %2151 = vmatprep.mubr.bf16.mxu0 0
        %2152 = vmatmul.mubr.bf16.gmra.mrb[0].mxu0 %v2117
        %v2153 = vpop.f32.mrb[0].mxu0
        %v2154 = vadd.f32 %v2102, %v2153
        %v2155 = vpop.f32.mrb[0].mxu0
        %v2156 = vpop.f32.mrb[0].mxu0
        %v2157 = vadd.f32 %v2102, %v2156
        %v2158 = vpop.f32.mrb[0].mxu0
        %2159 = vdwg.mxu0
        %v2160 = vpack.c.bf16 %v2088, %v2088
        %v2161 = vpack.c.bf16 %v2157, %v2154
        %v2163 = vsel %vm1469, %v2160, 0
        %v2166 = vsel %vm1469, %v2161, 0
        %2168 = vmatprep.subr.bf16.mxu0 0
        %2169 = vmatpush1.bf16.xpose.msra.mxu0 %v2166
        %2170 = vmatprep.subr.bf16.mxu0 0
        %2171 = vmatpush1.bf16.xpose.msra.mxu0 0
        %2172 = vmatprep.subr.bf16.mxu0 0
        %2173 = vmatpush1.bf16.xpose.msra.mxu0 0
        %2174 = vmatprep.subr.bf16.mxu0 0
        %2175 = vmatpush1.bf16.xpose.msra.mxu0 0
        %2176 = vmatprep.subr.bf16.mxu0 0
        %2177 = vmatpush1.bf16.xpose.msra.mxu0 0
        %2178 = vmatprep.subr.bf16.mxu0 0
        %2179 = vmatpush1.bf16.xpose.msra.mxu0 0
        %2180 = vmatprep.subr.bf16.mxu0 0
        %2181 = vmatpush1.bf16.xpose.msra.mxu0 0
        %2182 = vmatprep.subr.bf16.mxu0 0
        %2183 = vmatpush1.bf16.xpose.msra.mxu0 0
        %2184 = vmatprep.subr.bf16.mxu0 0
        %2185 = vmatpush1.bf16.xpose.msra.mxu0 0
        %2186 = vmatprep.subr.bf16.mxu0 0
        %2187 = vmatpush1.bf16.xpose.msra.mxu0 0
        %2188 = vmatprep.subr.bf16.mxu0 0
        %2189 = vmatpush1.bf16.xpose.msra.mxu0 0
        %2190 = vmatprep.subr.bf16.mxu0 0
        %2191 = vmatpush1.bf16.xpose.msra.mxu0 0
        %2192 = vmatprep.subr.bf16.mxu0 0
        %2193 = vmatpush1.bf16.xpose.msra.mxu0 0
        %2194 = vmatprep.subr.bf16.mxu0 0
        %2195 = vmatpush1.bf16.xpose.msra.mxu0 0
        %2196 = vmatprep.subr.bf16.mxu0 0
        %2197 = vmatpush1.bf16.xpose.msra.mxu0 0
        %2198 = vmatprep.subr.bf16.mxu0 0
        %2199 = vmatpush1.bf16.xpose.msra.mxu0 0
        %2200 = vmatprep.mubr.bf16.mxu0 0
        %2201 = vmatmul.mubr.bf16.gmra.mrb[0].mxu0 %v2163
        %v2202 = vpop.f32.mrb[0].mxu0
        %v2203 = vadd.f32 %v1353, %v2202
        %v2204 = vpop.f32.mrb[0].mxu0
        %v2205 = vpop.f32.mrb[0].mxu0
        %v2206 = vpop.f32.mrb[0].mxu0
        %2207 = vdwg.mxu0
        %vm2208 = vcmask 130048
        %v2209 = vsel %vm2208, %v2203, -inf
        %2210 = vmax.xlane.f32.xlu0 %v2209
        %v2211 = vpop.xlane.xlu0 %2210
        %v2212 = vsub.f32 %v2203, %v2211
        %v2213 = vmul.f32 %v2212, 1.442695
        %v2214 = vpow.pop %v2213
        %v2215 = vsel %vm2208, %v2214, 0.0
        %2216 = vadd.xlane.f32.xlu0 %v2215
        %v2217 = vpop.xlane.xlu0 %2216
        %v2218 = vrcp.pop %v2217
        %v2219 = vmul.f32 %v2214, %v2218
        %v2220 = vpack.c.bf16 %v2219, %v2219
        %2222 = vrot.lane.b32.xlu0 %v2161, 96
        %v2223 = vpop.permute.xlu0 %2222
        %v2226 = vsel %vm2208, %v2220, 0
        %2228 = vmatprep.subr.bf16.mxu0 0
        %2229 = vmatpush1.bf16.msra.mxu0 %v2223
        %2230 = vmatprep.subr.bf16.mxu0 0
        %2231 = vmatpush1.bf16.msra.mxu0 0
        %2232 = vmatprep.subr.bf16.mxu0 0
        %2233 = vmatpush1.bf16.msra.mxu0 0
        %2234 = vmatprep.subr.bf16.mxu0 0
        %2235 = vmatpush1.bf16.msra.mxu0 0
        %2236 = vmatprep.subr.bf16.mxu0 0
        %2237 = vmatpush1.bf16.msra.mxu0 0
        %2238 = vmatprep.subr.bf16.mxu0 0
        %2239 = vmatpush1.bf16.msra.mxu0 0
        %2240 = vmatprep.subr.bf16.mxu0 0
        %2241 = vmatpush1.bf16.msra.mxu0 0
        %2242 = vmatprep.subr.bf16.mxu0 0
        %2243 = vmatpush1.bf16.msra.mxu0 0
        %2244 = vmatprep.subr.bf16.mxu0 0
        %2245 = vmatpush1.bf16.msra.mxu0 0
        %2246 = vmatprep.subr.bf16.mxu0 0
        %2247 = vmatpush1.bf16.msra.mxu0 0
        %2248 = vmatprep.subr.bf16.mxu0 0
        %2249 = vmatpush1.bf16.msra.mxu0 0
        %2250 = vmatprep.subr.bf16.mxu0 0
        %2251 = vmatpush1.bf16.msra.mxu0 0
        %2252 = vmatprep.subr.bf16.mxu0 0
        %2253 = vmatpush1.bf16.msra.mxu0 0
        %2254 = vmatprep.subr.bf16.mxu0 0
        %2255 = vmatpush1.bf16.msra.mxu0 0
        %2256 = vmatprep.subr.bf16.mxu0 0
        %2257 = vmatpush1.bf16.msra.mxu0 0
        %2258 = vmatprep.subr.bf16.mxu0 0
        %2259 = vmatpush1.bf16.msra.mxu0 0
        %2260 = vmatprep.mubr.bf16.mxu0 0
        %2261 = vmatmul.mubr.bf16.gmra.mrb[0].mxu0 %v2226
        %v2262 = vpop.f32.mrb[0].mxu0
        %v2263 = vadd.f32 0.0, %v2262
        %v2264 = vpop.f32.mrb[0].mxu0
        %v2265 = vpop.f32.mrb[0].mxu0
        %v2266 = vpop.f32.mrb[0].mxu0
        %2267 = vdwg.mxu0
        %2268 = vst.msk [vmem:[#allocation2] sm:$0xff] %vm1469, %v2263
        %2270 = vrot.lane.b32.xlu0 %v2160, 120
        %v2271 = vpop.permute.xlu0 %2270
        %2272 = vrot.lane.b32.xlu0 %v2161, 120
        %v2273 = vpop.permute.xlu0 %2272
        %v2275 = vsel %vm1469, %v2271, 0
        %v2278 = vsel %vm1469, %v2273, 0
        %2280 = vmatprep.subr.bf16.mxu0 0
        %2281 = vmatpush1.bf16.xpose.msra.mxu0 %v2278
        %2282 = vmatprep.subr.bf16.mxu0 0
        %2283 = vmatpush1.bf16.xpose.msra.mxu0 0
        %2284 = vmatprep.subr.bf16.mxu0 0
        %2285 = vmatpush1.bf16.xpose.msra.mxu0 0
        %2286 = vmatprep.subr.bf16.mxu0 0
        %2287 = vmatpush1.bf16.xpose.msra.mxu0 0
        %2288 = vmatprep.subr.bf16.mxu0 0
        %2289 = vmatpush1.bf16.xpose.msra.mxu0 0
        %2290 = vmatprep.subr.bf16.mxu0 0
        %2291 = vmatpush1.bf16.xpose.msra.mxu0 0
        %2292 = vmatprep.subr.bf16.mxu0 0
        %2293 = vmatpush1.bf16.xpose.msra.mxu0 0
        %2294 = vmatprep.subr.bf16.mxu0 0
        %2295 = vmatpush1.bf16.xpose.msra.mxu0 0
        %2296 = vmatprep.subr.bf16.mxu0 0
        %2297 = vmatpush1.bf16.xpose.msra.mxu0 0
        %2298 = vmatprep.subr.bf16.mxu0 0
        %2299 = vmatpush1.bf16.xpose.msra.mxu0 0
        %2300 = vmatprep.subr.bf16.mxu0 0
        %2301 = vmatpush1.bf16.xpose.msra.mxu0 0
        %2302 = vmatprep.subr.bf16.mxu0 0
        %2303 = vmatpush1.bf16.xpose.msra.mxu0 0
        %2304 = vmatprep.subr.bf16.mxu0 0
        %2305 = vmatpush1.bf16.xpose.msra.mxu0 0
        %2306 = vmatprep.subr.bf16.mxu0 0
        %2307 = vmatpush1.bf16.xpose.msra.mxu0 0
        %2308 = vmatprep.subr.bf16.mxu0 0
        %2309 = vmatpush1.bf16.xpose.msra.mxu0 0
        %2310 = vmatprep.subr.bf16.mxu0 0
        %2311 = vmatpush1.bf16.xpose.msra.mxu0 0
        %2312 = vmatprep.mubr.bf16.mxu0 0
        %2313 = vmatmul.mubr.bf16.gmra.mrb[0].mxu0 %v2275
        %v2314 = vpop.f32.mrb[0].mxu0
        %v2315 = vadd.f32 %v1353, %v2314
        %v2316 = vpop.f32.mrb[0].mxu0
        %v2317 = vpop.f32.mrb[0].mxu0
        %v2318 = vpop.f32.mrb[0].mxu0
        %2319 = vdwg.mxu0
        %v2320 = vsel %vm2208, %v2315, -inf
        %2321 = vmax.xlane.f32.xlu0 %v2320
        %v2322 = vpop.xlane.xlu0 %2321
        %v2323 = vsub.f32 %v2315, %v2322
        %v2324 = vmul.f32 %v2323, 1.442695
        %v2325 = vpow.pop %v2324
        %v2326 = vsel %vm2208, %v2325, 0.0
        %2327 = vadd.xlane.f32.xlu0 %v2326
        %v2328 = vpop.xlane.xlu0 %2327
        %v2329 = vrcp.pop %v2328
        %v2330 = vmul.f32 %v2325, %v2329
        %v2331 = vpack.c.bf16 %v2330, %v2330
        %2332 = vrot.lane.b32.xlu0 %v2161, 88
        %v2333 = vpop.permute.xlu0 %2332
        %v2336 = vsel %vm2208, %v2331, 0
        %2338 = vmatprep.subr.bf16.mxu0 0
        %2339 = vmatpush1.bf16.msra.mxu0 %v2333
        %2340 = vmatprep.subr.bf16.mxu0 0
        %2341 = vmatpush1.bf16.msra.mxu0 0
        %2342 = vmatprep.subr.bf16.mxu0 0
        %2343 = vmatpush1.bf16.msra.mxu0 0
        %2344 = vmatprep.subr.bf16.mxu0 0
        %2345 = vmatpush1.bf16.msra.mxu0 0
        %2346 = vmatprep.subr.bf16.mxu0 0
        %2347 = vmatpush1.bf16.msra.mxu0 0
        %2348 = vmatprep.subr.bf16.mxu0 0
        %2349 = vmatpush1.bf16.msra.mxu0 0
        %2350 = vmatprep.subr.bf16.mxu0 0
        %2351 = vmatpush1.bf16.msra.mxu0 0
        %2352 = vmatprep.subr.bf16.mxu0 0
        %2353 = vmatpush1.bf16.msra.mxu0 0
        %2354 = vmatprep.subr.bf16.mxu0 0
        %2355 = vmatpush1.bf16.msra.mxu0 0
        %2356 = vmatprep.subr.bf16.mxu0 0
        %2357 = vmatpush1.bf16.msra.mxu0 0
        %2358 = vmatprep.subr.bf16.mxu0 0
        %2359 = vmatpush1.bf16.msra.mxu0 0
        %2360 = vmatprep.subr.bf16.mxu0 0
        %2361 = vmatpush1.bf16.msra.mxu0 0
        %2362 = vmatprep.subr.bf16.mxu0 0
        %2363 = vmatpush1.bf16.msra.mxu0 0
        %2364 = vmatprep.subr.bf16.mxu0 0
        %2365 = vmatpush1.bf16.msra.mxu0 0
        %2366 = vmatprep.subr.bf16.mxu0 0
        %2367 = vmatpush1.bf16.msra.mxu0 0
        %2368 = vmatprep.subr.bf16.mxu0 0
        %2369 = vmatpush1.bf16.msra.mxu0 0
        %2370 = vmatprep.mubr.bf16.mxu0 0
        %2371 = vmatmul.mubr.bf16.gmra.mrb[0].mxu0 %v2336
        %v2372 = vpop.f32.mrb[0].mxu0
        %v2373 = vadd.f32 0.0, %v2372
        %v2374 = vpop.f32.mrb[0].mxu0
        %v2375 = vpop.f32.mrb[0].mxu0
        %v2376 = vpop.f32.mrb[0].mxu0
        %2377 = vdwg.mxu0
        %2379 = vrot.lane.b32.xlu0 %v2373, 8
        %v2380 = vpop.permute.xlu0 %2379
        %2382 = vst.msk [vmem:[#allocation2] sm:$0xff] %vm1692, %v2380
        %2383 = vrot.lane.b32.xlu0 %v2160, 112
        %v2384 = vpop.permute.xlu0 %2383
        %2385 = vrot.lane.b32.xlu0 %v2161, 112
        %v2386 = vpop.permute.xlu0 %2385
        %v2388 = vsel %vm1469, %v2384, 0
        %v2391 = vsel %vm1469, %v2386, 0
        %2393 = vmatprep.subr.bf16.mxu0 0
        %2394 = vmatpush1.bf16.xpose.msra.mxu0 %v2391
        %2395 = vmatprep.subr.bf16.mxu0 0
        %2396 = vmatpush1.bf16.xpose.msra.mxu0 0
        %2397 = vmatprep.subr.bf16.mxu0 0
        %2398 = vmatpush1.bf16.xpose.msra.mxu0 0
        %2399 = vmatprep.subr.bf16.mxu0 0
        %2400 = vmatpush1.bf16.xpose.msra.mxu0 0
        %2401 = vmatprep.subr.bf16.mxu0 0
        %2402 = vmatpush1.bf16.xpose.msra.mxu0 0
        %2403 = vmatprep.subr.bf16.mxu0 0
        %2404 = vmatpush1.bf16.xpose.msra.mxu0 0
        %2405 = vmatprep.subr.bf16.mxu0 0
        %2406 = vmatpush1.bf16.xpose.msra.mxu0 0
        %2407 = vmatprep.subr.bf16.mxu0 0
        %2408 = vmatpush1.bf16.xpose.msra.mxu0 0
        %2409 = vmatprep.subr.bf16.mxu0 0
        %2410 = vmatpush1.bf16.xpose.msra.mxu0 0
        %2411 = vmatprep.subr.bf16.mxu0 0
        %2412 = vmatpush1.bf16.xpose.msra.mxu0 0
        %2413 = vmatprep.subr.bf16.mxu0 0
        %2414 = vmatpush1.bf16.xpose.msra.mxu0 0
        %2415 = vmatprep.subr.bf16.mxu0 0
        %2416 = vmatpush1.bf16.xpose.msra.mxu0 0
        %2417 = vmatprep.subr.bf16.mxu0 0
        %2418 = vmatpush1.bf16.xpose.msra.mxu0 0
        %2419 = vmatprep.subr.bf16.mxu0 0
        %2420 = vmatpush1.bf16.xpose.msra.mxu0 0
        %2421 = vmatprep.subr.bf16.mxu0 0
        %2422 = vmatpush1.bf16.xpose.msra.mxu0 0
        %2423 = vmatprep.subr.bf16.mxu0 0
        %2424 = vmatpush1.bf16.xpose.msra.mxu0 0
        %2425 = vmatprep.mubr.bf16.mxu0 0
        %2426 = vmatmul.mubr.bf16.gmra.mrb[0].mxu0 %v2388
        %v2427 = vpop.f32.mrb[0].mxu0
        %v2428 = vadd.f32 %v1353, %v2427
        %v2429 = vpop.f32.mrb[0].mxu0
        %v2430 = vpop.f32.mrb[0].mxu0
        %v2431 = vpop.f32.mrb[0].mxu0
        %2432 = vdwg.mxu0
        %v2433 = vsel %vm2208, %v2428, -inf
        %2434 = vmax.xlane.f32.xlu0 %v2433
        %v2435 = vpop.xlane.xlu0 %2434
        %v2436 = vsub.f32 %v2428, %v2435
        %v2437 = vmul.f32 %v2436, 1.442695
        %v2438 = vpow.pop %v2437
        %v2439 = vsel %vm2208, %v2438, 0.0
        %2440 = vadd.xlane.f32.xlu0 %v2439
        %v2441 = vpop.xlane.xlu0 %2440
        %v2442 = vrcp.pop %v2441
        %v2443 = vmul.f32 %v2438, %v2442
        %v2444 = vpack.c.bf16 %v2443, %v2443
        %2445 = vrot.lane.b32.xlu0 %v2161, 80
        %v2446 = vpop.permute.xlu0 %2445
        %v2449 = vsel %vm2208, %v2444, 0
        %2451 = vmatprep.subr.bf16.mxu0 0
        %2452 = vmatpush1.bf16.msra.mxu0 %v2446
        %2453 = vmatprep.subr.bf16.mxu0 0
        %2454 = vmatpush1.bf16.msra.mxu0 0
        %2455 = vmatprep.subr.bf16.mxu0 0
        %2456 = vmatpush1.bf16.msra.mxu0 0
        %2457 = vmatprep.subr.bf16.mxu0 0
        %2458 = vmatpush1.bf16.msra.mxu0 0
        %2459 = vmatprep.subr.bf16.mxu0 0
        %2460 = vmatpush1.bf16.msra.mxu0 0
        %2461 = vmatprep.subr.bf16.mxu0 0
        %2462 = vmatpush1.bf16.msra.mxu0 0
        %2463 = vmatprep.subr.bf16.mxu0 0
        %2464 = vmatpush1.bf16.msra.mxu0 0
        %2465 = vmatprep.subr.bf16.mxu0 0
        %2466 = vmatpush1.bf16.msra.mxu0 0
        %2467 = vmatprep.subr.bf16.mxu0 0
        %2468 = vmatpush1.bf16.msra.mxu0 0
        %2469 = vmatprep.subr.bf16.mxu0 0
        %2470 = vmatpush1.bf16.msra.mxu0 0
        %2471 = vmatprep.subr.bf16.mxu0 0
        %2472 = vmatpush1.bf16.msra.mxu0 0
        %2473 = vmatprep.subr.bf16.mxu0 0
        %2474 = vmatpush1.bf16.msra.mxu0 0
        %2475 = vmatprep.subr.bf16.mxu0 0
        %2476 = vmatpush1.bf16.msra.mxu0 0
        %2477 = vmatprep.subr.bf16.mxu0 0
        %2478 = vmatpush1.bf16.msra.mxu0 0
        %2479 = vmatprep.subr.bf16.mxu0 0
        %2480 = vmatpush1.bf16.msra.mxu0 0
        %2481 = vmatprep.subr.bf16.mxu0 0
        %2482 = vmatpush1.bf16.msra.mxu0 0
        %2483 = vmatprep.mubr.bf16.mxu0 0
        %2484 = vmatmul.mubr.bf16.gmra.mrb[0].mxu0 %v2449
        %v2485 = vpop.f32.mrb[0].mxu0
        %v2486 = vadd.f32 0.0, %v2485
        %v2487 = vpop.f32.mrb[0].mxu0
        %v2488 = vpop.f32.mrb[0].mxu0
        %v2489 = vpop.f32.mrb[0].mxu0
        %2490 = vdwg.mxu0
        %2492 = vrot.lane.b32.xlu0 %v2486, 16
        %v2493 = vpop.permute.xlu0 %2492
        %2495 = vst.msk [vmem:[#allocation2] sm:$0xff] %vm1808, %v2493
        %2496 = vrot.lane.b32.xlu0 %v2160, 104
        %v2497 = vpop.permute.xlu0 %2496
        %2498 = vrot.lane.b32.xlu0 %v2161, 104
        %v2499 = vpop.permute.xlu0 %2498
        %v2501 = vsel %vm1469, %v2497, 0
        %v2504 = vsel %vm1469, %v2499, 0
        %2506 = vmatprep.subr.bf16.mxu0 0
        %2507 = vmatpush1.bf16.xpose.msra.mxu0 %v2504
        %2508 = vmatprep.subr.bf16.mxu0 0
        %2509 = vmatpush1.bf16.xpose.msra.mxu0 0
        %2510 = vmatprep.subr.bf16.mxu0 0
        %2511 = vmatpush1.bf16.xpose.msra.mxu0 0
        %2512 = vmatprep.subr.bf16.mxu0 0
        %2513 = vmatpush1.bf16.xpose.msra.mxu0 0
        %2514 = vmatprep.subr.bf16.mxu0 0
        %2515 = vmatpush1.bf16.xpose.msra.mxu0 0
        %2516 = vmatprep.subr.bf16.mxu0 0
        %2517 = vmatpush1.bf16.xpose.msra.mxu0 0
        %2518 = vmatprep.subr.bf16.mxu0 0
        %2519 = vmatpush1.bf16.xpose.msra.mxu0 0
        %2520 = vmatprep.subr.bf16.mxu0 0
        %2521 = vmatpush1.bf16.xpose.msra.mxu0 0
        %2522 = vmatprep.subr.bf16.mxu0 0
        %2523 = vmatpush1.bf16.xpose.msra.mxu0 0
        %2524 = vmatprep.subr.bf16.mxu0 0
        %2525 = vmatpush1.bf16.xpose.msra.mxu0 0
        %2526 = vmatprep.subr.bf16.mxu0 0
        %2527 = vmatpush1.bf16.xpose.msra.mxu0 0
        %2528 = vmatprep.subr.bf16.mxu0 0
        %2529 = vmatpush1.bf16.xpose.msra.mxu0 0
        %2530 = vmatprep.subr.bf16.mxu0 0
        %2531 = vmatpush1.bf16.xpose.msra.mxu0 0
        %2532 = vmatprep.subr.bf16.mxu0 0
        %2533 = vmatpush1.bf16.xpose.msra.mxu0 0
        %2534 = vmatprep.subr.bf16.mxu0 0
        %2535 = vmatpush1.bf16.xpose.msra.mxu0 0
        %2536 = vmatprep.subr.bf16.mxu0 0
        %2537 = vmatpush1.bf16.xpose.msra.mxu0 0
        %2538 = vmatprep.mubr.bf16.mxu0 0
        %2539 = vmatmul.mubr.bf16.gmra.mrb[0].mxu0 %v2501
        %v2540 = vpop.f32.mrb[0].mxu0
        %v2541 = vadd.f32 %v1353, %v2540
        %v2542 = vpop.f32.mrb[0].mxu0
        %v2543 = vpop.f32.mrb[0].mxu0
        %v2544 = vpop.f32.mrb[0].mxu0
        %2545 = vdwg.mxu0
        %v2546 = vsel %vm2208, %v2541, -inf
        %2547 = vmax.xlane.f32.xlu0 %v2546
        %v2548 = vpop.xlane.xlu0 %2547
        %v2549 = vsub.f32 %v2541, %v2548
        %v2550 = vmul.f32 %v2549, 1.442695
        %v2551 = vpow.pop %v2550
        %v2552 = vsel %vm2208, %v2551, 0.0
        %2553 = vadd.xlane.f32.xlu0 %v2552
        %v2554 = vpop.xlane.xlu0 %2553
        %v2555 = vrcp.pop %v2554
        %v2556 = vmul.f32 %v2551, %v2555
        %v2557 = vpack.c.bf16 %v2556, %v2556
        %2558 = vrot.lane.b32.xlu0 %v2161, 72
        %v2559 = vpop.permute.xlu0 %2558
        %v2562 = vsel %vm2208, %v2557, 0
        %2564 = vmatprep.subr.bf16.mxu0 0
        %2565 = vmatpush1.bf16.msra.mxu0 %v2559
        %2566 = vmatprep.subr.bf16.mxu0 0
        %2567 = vmatpush1.bf16.msra.mxu0 0
        %2568 = vmatprep.subr.bf16.mxu0 0
        %2569 = vmatpush1.bf16.msra.mxu0 0
        %2570 = vmatprep.subr.bf16.mxu0 0
        %2571 = vmatpush1.bf16.msra.mxu0 0
        %2572 = vmatprep.subr.bf16.mxu0 0
        %2573 = vmatpush1.bf16.msra.mxu0 0
        %2574 = vmatprep.subr.bf16.mxu0 0
        %2575 = vmatpush1.bf16.msra.mxu0 0
        %2576 = vmatprep.subr.bf16.mxu0 0
        %2577 = vmatpush1.bf16.msra.mxu0 0
        %2578 = vmatprep.subr.bf16.mxu0 0
        %2579 = vmatpush1.bf16.msra.mxu0 0
        %2580 = vmatprep.subr.bf16.mxu0 0
        %2581 = vmatpush1.bf16.msra.mxu0 0
        %2582 = vmatprep.subr.bf16.mxu0 0
        %2583 = vmatpush1.bf16.msra.mxu0 0
        %2584 = vmatprep.subr.bf16.mxu0 0
        %2585 = vmatpush1.bf16.msra.mxu0 0
        %2586 = vmatprep.subr.bf16.mxu0 0
        %2587 = vmatpush1.bf16.msra.mxu0 0
        %2588 = vmatprep.subr.bf16.mxu0 0
        %2589 = vmatpush1.bf16.msra.mxu0 0
        %2590 = vmatprep.subr.bf16.mxu0 0
        %2591 = vmatpush1.bf16.msra.mxu0 0
        %2592 = vmatprep.subr.bf16.mxu0 0
        %2593 = vmatpush1.bf16.msra.mxu0 0
        %2594 = vmatprep.subr.bf16.mxu0 0
        %2595 = vmatpush1.bf16.msra.mxu0 0
        %2596 = vmatprep.mubr.bf16.mxu0 0
        %2597 = vmatmul.mubr.bf16.gmra.mrb[0].mxu0 %v2562
        %v2598 = vpop.f32.mrb[0].mxu0
        %v2599 = vadd.f32 0.0, %v2598
        %v2600 = vpop.f32.mrb[0].mxu0
        %v2601 = vpop.f32.mrb[0].mxu0
        %v2602 = vpop.f32.mrb[0].mxu0
        %2603 = vdwg.mxu0
        %2605 = vrot.lane.b32.xlu0 %v2599, 24
        %v2606 = vpop.permute.xlu0 %2605
        %2608 = vst.msk [vmem:[#allocation2] sm:$0xff] %vm1924, %v2606
        %v2609 = vld [vmem:[#allocation2] sm:$0xff]
        %v2610 = vpack.c.bf16 %v2609, %v2609
        %v2611 = vld [vmem:[#allocation15] sm:$0xf]
        %v2612 = vld [vmem:[#allocation15 + $0x4] sm:$0xf]
        %v2613 = vld [vmem:[#allocation15 + $0x8] sm:$0xf]
        %v2614 = vld [vmem:[#allocation15 + $0xc] sm:$0xf]
        %v2619 = vunpack.c.l.b16 %v2611
        %v2620 = vunpack.c.l.b16 %v2612
        %v2621 = vunpack.c.l.b16 %v2613
        %v2622 = vunpack.c.l.b16 %v2614
        %v2623 = vpack.c.b16 %v2620, %v2619
        %v2624 = vpack.c.b16 %v2622, %v2621
        %v2628 = vsel %vm1366, %v2610, 0
        %2630 = vmatprep.subr.bf16.mxu0 0
        %2631 = vmatpush1.bf16.msra.mxu0 %v2623
        %2632 = vmatprep.subr.bf16.mxu0 0
        %2633 = vmatpush1.bf16.msra.mxu0 %v2624
        %2634 = vmatprep.subr.bf16.mxu0 0
        %2635 = vmatpush1.bf16.msra.mxu0 0
        %2636 = vmatprep.subr.bf16.mxu0 0
        %2637 = vmatpush1.bf16.msra.mxu0 0
        %2638 = vmatprep.subr.bf16.mxu0 0
        %2639 = vmatpush1.bf16.msra.mxu0 0
        %2640 = vmatprep.subr.bf16.mxu0 0
        %2641 = vmatpush1.bf16.msra.mxu0 0
        %2642 = vmatprep.subr.bf16.mxu0 0
        %2643 = vmatpush1.bf16.msra.mxu0 0
        %2644 = vmatprep.subr.bf16.mxu0 0
        %2645 = vmatpush1.bf16.msra.mxu0 0
        %2646 = vmatprep.subr.bf16.mxu0 0
        %2647 = vmatpush1.bf16.msra.mxu0 0
        %2648 = vmatprep.subr.bf16.mxu0 0
        %2649 = vmatpush1.bf16.msra.mxu0 0
        %2650 = vmatprep.subr.bf16.mxu0 0
        %2651 = vmatpush1.bf16.msra.mxu0 0
        %2652 = vmatprep.subr.bf16.mxu0 0
        %2653 = vmatpush1.bf16.msra.mxu0 0
        %2654 = vmatprep.subr.bf16.mxu0 0
        %2655 = vmatpush1.bf16.msra.mxu0 0
        %2656 = vmatprep.subr.bf16.mxu0 0
        %2657 = vmatpush1.bf16.msra.mxu0 0
        %2658 = vmatprep.subr.bf16.mxu0 0
        %2659 = vmatpush1.bf16.msra.mxu0 0
        %2660 = vmatprep.subr.bf16.mxu0 0
        %2661 = vmatpush1.bf16.msra.mxu0 0
        %2662 = vmatprep.mubr.bf16.mxu0 0
        %2663 = vmatmul.mubr.bf16.gmra.mrb[0].mxu0 %v2628
        %v2664 = vpop.f32.mrb[0].mxu0
        %v2665 = vadd.f32 0.0, %v2664
        %v2666 = vpop.f32.mrb[0].mxu0
        %v2667 = vpop.f32.mrb[0].mxu0
        %v2668 = vpop.f32.mrb[0].mxu0
        %2669 = vdwg.mxu0
        %v2670 = vadd.f32 %v1995, %v2665
        %v2671 = vld [vmem:[#allocation17] sm:$0x1]
        %v2673 = vlaneseq
        %v2674 = vshrl.u32 %v2673, 7
        %v2675 = vsub.s32 0, %v2674
        %v2676 = vrot.slane %v2671, %v2675
        %v2678 = vadd.f32 %v2670, %v2676
        %v2679 = vsel %vm1366, %v2678, 0.0
        %2680 = vadd.xlane.f32.xlu0 %v2679
        %v2681 = vpop.xlane.xlu0 %2680
        %v2682 = vmul.f32 %v2681, %v1370
        %v2683 = vsub.f32 %v2678, %v2682
        %v2684 = vmul.f32 %v2683, %v2683
        %v2685 = vsel %vm1366, %v2684, 0.0
        %2686 = vadd.xlane.f32.xlu0 %v2685
        %v2687 = vpop.xlane.xlu0 %2686
        %v2688 = vmul.f32 %v2687, 0.032258064
        %v2689 = vlaneseq
        %v2690 = vshrl.u32 %v2689, 7
        %v2691 = vsub.s32 2, %v2690
        %v2692 = vrot.slane %v1364, %v2691
        %v2693 = vmul.f32 %v2692, %v2683
        %v2694 = vrsqrt.pop %v2688
        %v2695 = vmul.f32 %v2688, %v2694
        %vm2696 = vcmp.eq.f32.partialorder %v2688, inf
        %v2697 = vsel %vm2696, %v2688, %v2695
        %vm2698 = vcmp.eq.f32.partialorder %v2688, 0.0
        %v2699 = vand.u32 %v2688, 2147483648
        %v2700 = vsel %vm2698, %v2699, %v2697
        %v2701 = vadd.f32 %v2700, 1e-06
        %v2702 = vrcp.pop %v2701
        %v2703 = vmul.f32 %v2693, %v2702
        %v2704 = vlaneseq
        %v2705 = vshrl.u32 %v2704, 7
        %v2706 = vsub.s32 2, %v2705
        %v2707 = vrot.slane %v1365, %v2706
        %v2708 = vadd.f32 %v2703, %v2707
        %v2709 = vpack.c.bf16 %v2708, %v2708
        %v2710 = vld [vmem:[%s33] sm:$0xf]
        %v2711 = vld [vmem:[%s33 + $0x4] sm:$0xf]
        %v2712 = vld [vmem:[%s33 + $0x8] sm:$0xf]
        %v2713 = vld [vmem:[%s33 + $0xc] sm:$0xf]
        %v2714 = vld [vmem:[#allocation18] sm:$0x1]
        %v2716 = vlaneseq
        %v2717 = vshrl.u32 %v2716, 7
        %v2718 = vsub.s32 0, %v2717
        %v2719 = vrot.slane %v2714, %v2718
        %v2725 = vunpack.c.l.b16 %v2710
        %v2726 = vunpack.c.l.b16 %v2711
        %v2727 = vunpack.c.l.b16 %v2712
        %v2728 = vunpack.c.l.b16 %v2713
        %v2729 = vpack.c.b16 %v2726, %v2725
        %v2730 = vpack.c.b16 %v2728, %v2727
        %v2734 = vsel %vm1366, %v2709, 0
        %2736 = vmatprep.subr.bf16.mxu0 0
        %2737 = vmatpush1.bf16.msra.mxu0 %v2729
        %2738 = vmatprep.subr.bf16.mxu0 0
        %2739 = vmatpush1.bf16.msra.mxu0 %v2730
        %2740 = vmatprep.subr.bf16.mxu0 0
        %2741 = vmatpush1.bf16.msra.mxu0 0
        %2742 = vmatprep.subr.bf16.mxu0 0
        %2743 = vmatpush1.bf16.msra.mxu0 0
        %2744 = vmatprep.subr.bf16.mxu0 0
        %2745 = vmatpush1.bf16.msra.mxu0 0
        %2746 = vmatprep.subr.bf16.mxu0 0
        %2747 = vmatpush1.bf16.msra.mxu0 0
        %2748 = vmatprep.subr.bf16.mxu0 0
        %2749 = vmatpush1.bf16.msra.mxu0 0
        %2750 = vmatprep.subr.bf16.mxu0 0
        %2751 = vmatpush1.bf16.msra.mxu0 0
        %2752 = vmatprep.subr.bf16.mxu0 0
        %2753 = vmatpush1.bf16.msra.mxu0 0
        %2754 = vmatprep.subr.bf16.mxu0 0
        %2755 = vmatpush1.bf16.msra.mxu0 0
        %2756 = vmatprep.subr.bf16.mxu0 0
        %2757 = vmatpush1.bf16.msra.mxu0 0
        %2758 = vmatprep.subr.bf16.mxu0 0
        %2759 = vmatpush1.bf16.msra.mxu0 0
        %2760 = vmatprep.subr.bf16.mxu0 0
        %2761 = vmatpush1.bf16.msra.mxu0 0
        %2762 = vmatprep.subr.bf16.mxu0 0
        %2763 = vmatpush1.bf16.msra.mxu0 0
        %2764 = vmatprep.subr.bf16.mxu0 0
        %2765 = vmatpush1.bf16.msra.mxu0 0
        %2766 = vmatprep.subr.bf16.mxu0 0
        %2767 = vmatpush1.bf16.msra.mxu0 0
        %2768 = vmatprep.mubr.bf16.mxu0 0
        %2769 = vmatmul.mubr.bf16.gmra.mrb[0].mxu0 %v2734
        %v2770 = vpop.f32.mrb[0].mxu0
        %v2771 = vadd.f32 %v2719, %v2770
        %v2772 = vpop.f32.mrb[0].mxu0
        %v2773 = vpop.f32.mrb[0].mxu0
        %v2774 = vpop.f32.mrb[0].mxu0
        %2775 = vdwg.mxu0
        %v2776 = vld [vmem:[#allocation20] sm:$0xf]
        %v2777 = vld [vmem:[#allocation20 + $0x4] sm:$0xf]
        %v2778 = vld [vmem:[#allocation20 + $0x8] sm:$0xf]
        %v2779 = vld [vmem:[#allocation20 + $0xc] sm:$0xf]
        %v2780 = vld [vmem:[#allocation21] sm:$0x1]
        %v2782 = vlaneseq
        %v2783 = vshrl.u32 %v2782, 7
        %v2784 = vsub.s32 0, %v2783
        %v2785 = vrot.slane %v2780, %v2784
        %v2791 = vunpack.c.l.b16 %v2776
        %v2792 = vunpack.c.l.b16 %v2777
        %v2793 = vunpack.c.l.b16 %v2778
        %v2794 = vunpack.c.l.b16 %v2779
        %v2795 = vpack.c.b16 %v2792, %v2791
        %v2796 = vpack.c.b16 %v2794, %v2793
        %v2800 = vsel %vm1366, %v1342, 0
        %2802 = vmatprep.subr.bf16.mxu0 0
        %2803 = vmatpush1.bf16.msra.mxu0 %v2795
        %2804 = vmatprep.subr.bf16.mxu0 0
        %2805 = vmatpush1.bf16.msra.mxu0 %v2796
        %2806 = vmatprep.subr.bf16.mxu0 0
        %2807 = vmatpush1.bf16.msra.mxu0 0
        %2808 = vmatprep.subr.bf16.mxu0 0
        %2809 = vmatpush1.bf16.msra.mxu0 0
        %2810 = vmatprep.subr.bf16.mxu0 0
        %2811 = vmatpush1.bf16.msra.mxu0 0
        %2812 = vmatprep.subr.bf16.mxu0 0
        %2813 = vmatpush1.bf16.msra.mxu0 0
        %2814 = vmatprep.subr.bf16.mxu0 0
        %2815 = vmatpush1.bf16.msra.mxu0 0
        %2816 = vmatprep.subr.bf16.mxu0 0
        %2817 = vmatpush1.bf16.msra.mxu0 0
        %2818 = vmatprep.subr.bf16.mxu0 0
        %2819 = vmatpush1.bf16.msra.mxu0 0
        %2820 = vmatprep.subr.bf16.mxu0 0
        %2821 = vmatpush1.bf16.msra.mxu0 0
        %2822 = vmatprep.subr.bf16.mxu0 0
        %2823 = vmatpush1.bf16.msra.mxu0 0
        %2824 = vmatprep.subr.bf16.mxu0 0
        %2825 = vmatpush1.bf16.msra.mxu0 0
        %2826 = vmatprep.subr.bf16.mxu0 0
        %2827 = vmatpush1.bf16.msra.mxu0 0
        %2828 = vmatprep.subr.bf16.mxu0 0
        %2829 = vmatpush1.bf16.msra.mxu0 0
        %2830 = vmatprep.subr.bf16.mxu0 0
        %2831 = vmatpush1.bf16.msra.mxu0 0
        %2832 = vmatprep.subr.bf16.mxu0 0
        %2833 = vmatpush1.bf16.msra.mxu0 0
        %2834 = vmatprep.mubr.bf16.mxu0 0
        %2835 = vmatmul.mubr.bf16.gmra.mrb[0].mxu0 %v2800
        %v2836 = vpop.f32.mrb[0].mxu0
        %v2837 = vadd.f32 %v2785, %v2836
        %v2838 = vpop.f32.mrb[0].mxu0
        %v2839 = vpop.f32.mrb[0].mxu0
        %v2840 = vadd.f32 %v2785, %v2839
        %v2841 = vpop.f32.mrb[0].mxu0
        %2842 = vdwg.mxu0
        %v2843 = vpack.c.bf16 %v2771, %v2771
        %v2844 = vpack.c.bf16 %v2840, %v2837
        %v2846 = vsel %vm1469, %v2843, 0
        %v2849 = vsel %vm1469, %v2844, 0
        %2851 = vmatprep.subr.bf16.mxu0 0
        %2852 = vmatpush1.bf16.xpose.msra.mxu0 %v2849
        %2853 = vmatprep.subr.bf16.mxu0 0
        %2854 = vmatpush1.bf16.xpose.msra.mxu0 0
        %2855 = vmatprep.subr.bf16.mxu0 0
        %2856 = vmatpush1.bf16.xpose.msra.mxu0 0
        %2857 = vmatprep.subr.bf16.mxu0 0
        %2858 = vmatpush1.bf16.xpose.msra.mxu0 0
        %2859 = vmatprep.subr.bf16.mxu0 0
        %2860 = vmatpush1.bf16.xpose.msra.mxu0 0
        %2861 = vmatprep.subr.bf16.mxu0 0
        %2862 = vmatpush1.bf16.xpose.msra.mxu0 0
        %2863 = vmatprep.subr.bf16.mxu0 0
        %2864 = vmatpush1.bf16.xpose.msra.mxu0 0
        %2865 = vmatprep.subr.bf16.mxu0 0
        %2866 = vmatpush1.bf16.xpose.msra.mxu0 0
        %2867 = vmatprep.subr.bf16.mxu0 0
        %2868 = vmatpush1.bf16.xpose.msra.mxu0 0
        %2869 = vmatprep.subr.bf16.mxu0 0
        %2870 = vmatpush1.bf16.xpose.msra.mxu0 0
        %2871 = vmatprep.subr.bf16.mxu0 0
        %2872 = vmatpush1.bf16.xpose.msra.mxu0 0
        %2873 = vmatprep.subr.bf16.mxu0 0
        %2874 = vmatpush1.bf16.xpose.msra.mxu0 0
        %2875 = vmatprep.subr.bf16.mxu0 0
        %2876 = vmatpush1.bf16.xpose.msra.mxu0 0
        %2877 = vmatprep.subr.bf16.mxu0 0
        %2878 = vmatpush1.bf16.xpose.msra.mxu0 0
        %2879 = vmatprep.subr.bf16.mxu0 0
        %2880 = vmatpush1.bf16.xpose.msra.mxu0 0
        %2881 = vmatprep.subr.bf16.mxu0 0
        %2882 = vmatpush1.bf16.xpose.msra.mxu0 0
        %2883 = vmatprep.mubr.bf16.mxu0 0
        %2884 = vmatmul.mubr.bf16.gmra.mrb[0].mxu0 %v2846
        %v2885 = vpop.f32.mrb[0].mxu0
        %v2886 = vadd.f32 %v1362, %v2885
        %v2887 = vpop.f32.mrb[0].mxu0
        %v2888 = vpop.f32.mrb[0].mxu0
        %v2889 = vpop.f32.mrb[0].mxu0
        %2890 = vdwg.mxu0
        %vm2891 = vcmask 97280
        %v2892 = vsel %vm2891, %v2886, -inf
        %2893 = vmax.xlane.f32.xlu0 %v2892
        %v2894 = vpop.xlane.xlu0 %2893
        %v2895 = vsub.f32 %v2886, %v2894
        %v2896 = vmul.f32 %v2895, 1.442695
        %v2897 = vpow.pop %v2896
        %v2898 = vsel %vm2891, %v2897, 0.0
        %2899 = vadd.xlane.f32.xlu0 %v2898
        %v2900 = vpop.xlane.xlu0 %2899
        %v2901 = vrcp.pop %v2900
        %v2902 = vmul.f32 %v2897, %v2901
        %v2903 = vpack.c.bf16 %v2902, %v2902
        %2905 = vrot.lane.b32.xlu0 %v2844, 96
        %v2906 = vpop.permute.xlu0 %2905
        %v2908 = vsel %vm2891, %v2903, 0
        %vm2910 = vcmask 1045504
        %v2912 = vsel %vm2910, %v2906, 0
        %2914 = vmatprep.subr.bf16.mxu0 0
        %2915 = vmatpush1.bf16.msra.mxu0 %v2912
        %2916 = vmatprep.subr.bf16.mxu0 0
        %2917 = vmatpush1.bf16.msra.mxu0 0
        %2918 = vmatprep.subr.bf16.mxu0 0
        %2919 = vmatpush1.bf16.msra.mxu0 0
        %2920 = vmatprep.subr.bf16.mxu0 0
        %2921 = vmatpush1.bf16.msra.mxu0 0
        %2922 = vmatprep.subr.bf16.mxu0 0
        %2923 = vmatpush1.bf16.msra.mxu0 0
        %2924 = vmatprep.subr.bf16.mxu0 0
        %2925 = vmatpush1.bf16.msra.mxu0 0
        %2926 = vmatprep.subr.bf16.mxu0 0
        %2927 = vmatpush1.bf16.msra.mxu0 0
        %2928 = vmatprep.subr.bf16.mxu0 0
        %2929 = vmatpush1.bf16.msra.mxu0 0
        %2930 = vmatprep.subr.bf16.mxu0 0
        %2931 = vmatpush1.bf16.msra.mxu0 0
        %2932 = vmatprep.subr.bf16.mxu0 0
        %2933 = vmatpush1.bf16.msra.mxu0 0
        %2934 = vmatprep.subr.bf16.mxu0 0
        %2935 = vmatpush1.bf16.msra.mxu0 0
        %2936 = vmatprep.subr.bf16.mxu0 0
        %2937 = vmatpush1.bf16.msra.mxu0 0
        %2938 = vmatprep.subr.bf16.mxu0 0
        %2939 = vmatpush1.bf16.msra.mxu0 0
        %2940 = vmatprep.subr.bf16.mxu0 0
        %2941 = vmatpush1.bf16.msra.mxu0 0
        %2942 = vmatprep.subr.bf16.mxu0 0
        %2943 = vmatpush1.bf16.msra.mxu0 0
        %2944 = vmatprep.subr.bf16.mxu0 0
        %2945 = vmatpush1.bf16.msra.mxu0 0
        %2946 = vmatprep.mubr.bf16.mxu0 0
        %2947 = vmatmul.mubr.bf16.gmra.mrb[0].mxu0 %v2908
        %v2948 = vpop.f32.mrb[0].mxu0
        %v2949 = vadd.f32 0.0, %v2948
        %v2950 = vpop.f32.mrb[0].mxu0
        %v2951 = vpop.f32.mrb[0].mxu0
        %v2952 = vpop.f32.mrb[0].mxu0
        %2953 = vdwg.mxu0
        %2954 = vst.msk [vmem:[#allocation2] sm:$0xff] %vm1469, %v2949
        %2956 = vrot.lane.b32.xlu0 %v2843, 120
        %v2957 = vpop.permute.xlu0 %2956
        %2958 = vrot.lane.b32.xlu0 %v2844, 120
        %v2959 = vpop.permute.xlu0 %2958
        %v2961 = vsel %vm1469, %v2957, 0
        %v2964 = vsel %vm1469, %v2959, 0
        %2966 = vmatprep.subr.bf16.mxu0 0
        %2967 = vmatpush1.bf16.xpose.msra.mxu0 %v2964
        %2968 = vmatprep.subr.bf16.mxu0 0
        %2969 = vmatpush1.bf16.xpose.msra.mxu0 0
        %2970 = vmatprep.subr.bf16.mxu0 0
        %2971 = vmatpush1.bf16.xpose.msra.mxu0 0
        %2972 = vmatprep.subr.bf16.mxu0 0
        %2973 = vmatpush1.bf16.xpose.msra.mxu0 0
        %2974 = vmatprep.subr.bf16.mxu0 0
        %2975 = vmatpush1.bf16.xpose.msra.mxu0 0
        %2976 = vmatprep.subr.bf16.mxu0 0
        %2977 = vmatpush1.bf16.xpose.msra.mxu0 0
        %2978 = vmatprep.subr.bf16.mxu0 0
        %2979 = vmatpush1.bf16.xpose.msra.mxu0 0
        %2980 = vmatprep.subr.bf16.mxu0 0
        %2981 = vmatpush1.bf16.xpose.msra.mxu0 0
        %2982 = vmatprep.subr.bf16.mxu0 0
        %2983 = vmatpush1.bf16.xpose.msra.mxu0 0
        %2984 = vmatprep.subr.bf16.mxu0 0
        %2985 = vmatpush1.bf16.xpose.msra.mxu0 0
        %2986 = vmatprep.subr.bf16.mxu0 0
        %2987 = vmatpush1.bf16.xpose.msra.mxu0 0
        %2988 = vmatprep.subr.bf16.mxu0 0
        %2989 = vmatpush1.bf16.xpose.msra.mxu0 0
        %2990 = vmatprep.subr.bf16.mxu0 0
        %2991 = vmatpush1.bf16.xpose.msra.mxu0 0
        %2992 = vmatprep.subr.bf16.mxu0 0
        %2993 = vmatpush1.bf16.xpose.msra.mxu0 0
        %2994 = vmatprep.subr.bf16.mxu0 0
        %2995 = vmatpush1.bf16.xpose.msra.mxu0 0
        %2996 = vmatprep.subr.bf16.mxu0 0
        %2997 = vmatpush1.bf16.xpose.msra.mxu0 0
        %2998 = vmatprep.mubr.bf16.mxu0 0
        %2999 = vmatmul.mubr.bf16.gmra.mrb[0].mxu0 %v2961
        %v3000 = vpop.f32.mrb[0].mxu0
        %v3001 = vadd.f32 %v1362, %v3000
        %v3002 = vpop.f32.mrb[0].mxu0
        %v3003 = vpop.f32.mrb[0].mxu0
        %v3004 = vpop.f32.mrb[0].mxu0
        %3005 = vdwg.mxu0
        %v3006 = vsel %vm2891, %v3001, -inf
        %3007 = vmax.xlane.f32.xlu0 %v3006
        %v3008 = vpop.xlane.xlu0 %3007
        %v3009 = vsub.f32 %v3001, %v3008
        %v3010 = vmul.f32 %v3009, 1.442695
        %v3011 = vpow.pop %v3010
        %v3012 = vsel %vm2891, %v3011, 0.0
        %3013 = vadd.xlane.f32.xlu0 %v3012
        %v3014 = vpop.xlane.xlu0 %3013
        %v3015 = vrcp.pop %v3014
        %v3016 = vmul.f32 %v3011, %v3015
        %v3017 = vpack.c.bf16 %v3016, %v3016
        %3018 = vrot.lane.b32.xlu0 %v2844, 88
        %v3019 = vpop.permute.xlu0 %3018
        %v3021 = vsel %vm2891, %v3017, 0
        %v3024 = vsel %vm2910, %v3019, 0
        %3026 = vmatprep.subr.bf16.mxu0 0
        %3027 = vmatpush1.bf16.msra.mxu0 %v3024
        %3028 = vmatprep.subr.bf16.mxu0 0
        %3029 = vmatpush1.bf16.msra.mxu0 0
        %3030 = vmatprep.subr.bf16.mxu0 0
        %3031 = vmatpush1.bf16.msra.mxu0 0
        %3032 = vmatprep.subr.bf16.mxu0 0
        %3033 = vmatpush1.bf16.msra.mxu0 0
        %3034 = vmatprep.subr.bf16.mxu0 0
        %3035 = vmatpush1.bf16.msra.mxu0 0
        %3036 = vmatprep.subr.bf16.mxu0 0
        %3037 = vmatpush1.bf16.msra.mxu0 0
        %3038 = vmatprep.subr.bf16.mxu0 0
        %3039 = vmatpush1.bf16.msra.mxu0 0
        %3040 = vmatprep.subr.bf16.mxu0 0
        %3041 = vmatpush1.bf16.msra.mxu0 0
        %3042 = vmatprep.subr.bf16.mxu0 0
        %3043 = vmatpush1.bf16.msra.mxu0 0
        %3044 = vmatprep.subr.bf16.mxu0 0
        %3045 = vmatpush1.bf16.msra.mxu0 0
        %3046 = vmatprep.subr.bf16.mxu0 0
        %3047 = vmatpush1.bf16.msra.mxu0 0
        %3048 = vmatprep.subr.bf16.mxu0 0
        %3049 = vmatpush1.bf16.msra.mxu0 0
        %3050 = vmatprep.subr.bf16.mxu0 0
        %3051 = vmatpush1.bf16.msra.mxu0 0
        %3052 = vmatprep.subr.bf16.mxu0 0
        %3053 = vmatpush1.bf16.msra.mxu0 0
        %3054 = vmatprep.subr.bf16.mxu0 0
        %3055 = vmatpush1.bf16.msra.mxu0 0
        %3056 = vmatprep.subr.bf16.mxu0 0
        %3057 = vmatpush1.bf16.msra.mxu0 0
        %3058 = vmatprep.mubr.bf16.mxu0 0
        %3059 = vmatmul.mubr.bf16.gmra.mrb[0].mxu0 %v3021
        %v3060 = vpop.f32.mrb[0].mxu0
        %v3061 = vadd.f32 0.0, %v3060
        %v3062 = vpop.f32.mrb[0].mxu0
        %v3063 = vpop.f32.mrb[0].mxu0
        %v3064 = vpop.f32.mrb[0].mxu0
        %3065 = vdwg.mxu0
        %3067 = vrot.lane.b32.xlu0 %v3061, 8
        %v3068 = vpop.permute.xlu0 %3067
        %3070 = vst.msk [vmem:[#allocation2] sm:$0xff] %vm1692, %v3068
        %3071 = vrot.lane.b32.xlu0 %v2843, 112
        %v3072 = vpop.permute.xlu0 %3071
        %3073 = vrot.lane.b32.xlu0 %v2844, 112
        %v3074 = vpop.permute.xlu0 %3073
        %v3076 = vsel %vm1469, %v3072, 0
        %v3079 = vsel %vm1469, %v3074, 0
        %3081 = vmatprep.subr.bf16.mxu0 0
        %3082 = vmatpush1.bf16.xpose.msra.mxu0 %v3079
        %3083 = vmatprep.subr.bf16.mxu0 0
        %3084 = vmatpush1.bf16.xpose.msra.mxu0 0
        %3085 = vmatprep.subr.bf16.mxu0 0
        %3086 = vmatpush1.bf16.xpose.msra.mxu0 0
        %3087 = vmatprep.subr.bf16.mxu0 0
        %3088 = vmatpush1.bf16.xpose.msra.mxu0 0
        %3089 = vmatprep.subr.bf16.mxu0 0
        %3090 = vmatpush1.bf16.xpose.msra.mxu0 0
        %3091 = vmatprep.subr.bf16.mxu0 0
        %3092 = vmatpush1.bf16.xpose.msra.mxu0 0
        %3093 = vmatprep.subr.bf16.mxu0 0
        %3094 = vmatpush1.bf16.xpose.msra.mxu0 0
        %3095 = vmatprep.subr.bf16.mxu0 0
        %3096 = vmatpush1.bf16.xpose.msra.mxu0 0
        %3097 = vmatprep.subr.bf16.mxu0 0
        %3098 = vmatpush1.bf16.xpose.msra.mxu0 0
        %3099 = vmatprep.subr.bf16.mxu0 0
        %3100 = vmatpush1.bf16.xpose.msra.mxu0 0
        %3101 = vmatprep.subr.bf16.mxu0 0
        %3102 = vmatpush1.bf16.xpose.msra.mxu0 0
        %3103 = vmatprep.subr.bf16.mxu0 0
        %3104 = vmatpush1.bf16.xpose.msra.mxu0 0
        %3105 = vmatprep.subr.bf16.mxu0 0
        %3106 = vmatpush1.bf16.xpose.msra.mxu0 0
        %3107 = vmatprep.subr.bf16.mxu0 0
        %3108 = vmatpush1.bf16.xpose.msra.mxu0 0
        %3109 = vmatprep.subr.bf16.mxu0 0
        %3110 = vmatpush1.bf16.xpose.msra.mxu0 0
        %3111 = vmatprep.subr.bf16.mxu0 0
        %3112 = vmatpush1.bf16.xpose.msra.mxu0 0
        %3113 = vmatprep.mubr.bf16.mxu0 0
        %3114 = vmatmul.mubr.bf16.gmra.mrb[0].mxu0 %v3076
        %v3115 = vpop.f32.mrb[0].mxu0
        %v3116 = vadd.f32 %v1362, %v3115
        %v3117 = vpop.f32.mrb[0].mxu0
        %v3118 = vpop.f32.mrb[0].mxu0
        %v3119 = vpop.f32.mrb[0].mxu0
        %3120 = vdwg.mxu0
        %v3121 = vsel %vm2891, %v3116, -inf
        %3122 = vmax.xlane.f32.xlu0 %v3121
        %v3123 = vpop.xlane.xlu0 %3122
        %v3124 = vsub.f32 %v3116, %v3123
        %v3125 = vmul.f32 %v3124, 1.442695
        %v3126 = vpow.pop %v3125
        %v3127 = vsel %vm2891, %v3126, 0.0
        %3128 = vadd.xlane.f32.xlu0 %v3127
        %v3129 = vpop.xlane.xlu0 %3128
        %v3130 = vrcp.pop %v3129
        %v3131 = vmul.f32 %v3126, %v3130
        %v3132 = vpack.c.bf16 %v3131, %v3131
        %3133 = vrot.lane.b32.xlu0 %v2844, 80
        %v3134 = vpop.permute.xlu0 %3133
        %v3136 = vsel %vm2891, %v3132, 0
        %v3139 = vsel %vm2910, %v3134, 0
        %3141 = vmatprep.subr.bf16.mxu0 0
        %3142 = vmatpush1.bf16.msra.mxu0 %v3139
        %3143 = vmatprep.subr.bf16.mxu0 0
        %3144 = vmatpush1.bf16.msra.mxu0 0
        %3145 = vmatprep.subr.bf16.mxu0 0
        %3146 = vmatpush1.bf16.msra.mxu0 0
        %3147 = vmatprep.subr.bf16.mxu0 0
        %3148 = vmatpush1.bf16.msra.mxu0 0
        %3149 = vmatprep.subr.bf16.mxu0 0
        %3150 = vmatpush1.bf16.msra.mxu0 0
        %3151 = vmatprep.subr.bf16.mxu0 0
        %3152 = vmatpush1.bf16.msra.mxu0 0
        %3153 = vmatprep.subr.bf16.mxu0 0
        %3154 = vmatpush1.bf16.msra.mxu0 0
        %3155 = vmatprep.subr.bf16.mxu0 0
        %3156 = vmatpush1.bf16.msra.mxu0 0
        %3157 = vmatprep.subr.bf16.mxu0 0
        %3158 = vmatpush1.bf16.msra.mxu0 0
        %3159 = vmatprep.subr.bf16.mxu0 0
        %3160 = vmatpush1.bf16.msra.mxu0 0
        %3161 = vmatprep.subr.bf16.mxu0 0
        %3162 = vmatpush1.bf16.msra.mxu0 0
        %3163 = vmatprep.subr.bf16.mxu0 0
        %3164 = vmatpush1.bf16.msra.mxu0 0
        %3165 = vmatprep.subr.bf16.mxu0 0
        %3166 = vmatpush1.bf16.msra.mxu0 0
        %3167 = vmatprep.subr.bf16.mxu0 0
        %3168 = vmatpush1.bf16.msra.mxu0 0
        %3169 = vmatprep.subr.bf16.mxu0 0
        %3170 = vmatpush1.bf16.msra.mxu0 0
        %3171 = vmatprep.subr.bf16.mxu0 0
        %3172 = vmatpush1.bf16.msra.mxu0 0
        %3173 = vmatprep.mubr.bf16.mxu0 0
        %3174 = vmatmul.mubr.bf16.gmra.mrb[0].mxu0 %v3136
        %v3175 = vpop.f32.mrb[0].mxu0
        %v3176 = vadd.f32 0.0, %v3175
        %v3177 = vpop.f32.mrb[0].mxu0
        %v3178 = vpop.f32.mrb[0].mxu0
        %v3179 = vpop.f32.mrb[0].mxu0
        %3180 = vdwg.mxu0
        %3182 = vrot.lane.b32.xlu0 %v3176, 16
        %v3183 = vpop.permute.xlu0 %3182
        %3185 = vst.msk [vmem:[#allocation2] sm:$0xff] %vm1808, %v3183
        %3186 = vrot.lane.b32.xlu0 %v2843, 104
        %v3187 = vpop.permute.xlu0 %3186
        %3188 = vrot.lane.b32.xlu0 %v2844, 104
        %v3189 = vpop.permute.xlu0 %3188
        %v3191 = vsel %vm1469, %v3187, 0
        %v3194 = vsel %vm1469, %v3189, 0
        %3196 = vmatprep.subr.bf16.mxu0 0
        %3197 = vmatpush1.bf16.xpose.msra.mxu0 %v3194
        %3198 = vmatprep.subr.bf16.mxu0 0
        %3199 = vmatpush1.bf16.xpose.msra.mxu0 0
        %3200 = vmatprep.subr.bf16.mxu0 0
        %3201 = vmatpush1.bf16.xpose.msra.mxu0 0
        %3202 = vmatprep.subr.bf16.mxu0 0
        %3203 = vmatpush1.bf16.xpose.msra.mxu0 0
        %3204 = vmatprep.subr.bf16.mxu0 0
        %3205 = vmatpush1.bf16.xpose.msra.mxu0 0
        %3206 = vmatprep.subr.bf16.mxu0 0
        %3207 = vmatpush1.bf16.xpose.msra.mxu0 0
        %3208 = vmatprep.subr.bf16.mxu0 0
        %3209 = vmatpush1.bf16.xpose.msra.mxu0 0
        %3210 = vmatprep.subr.bf16.mxu0 0
        %3211 = vmatpush1.bf16.xpose.msra.mxu0 0
        %3212 = vmatprep.subr.bf16.mxu0 0
        %3213 = vmatpush1.bf16.xpose.msra.mxu0 0
        %3214 = vmatprep.subr.bf16.mxu0 0
        %3215 = vmatpush1.bf16.xpose.msra.mxu0 0
        %3216 = vmatprep.subr.bf16.mxu0 0
        %3217 = vmatpush1.bf16.xpose.msra.mxu0 0
        %3218 = vmatprep.subr.bf16.mxu0 0
        %3219 = vmatpush1.bf16.xpose.msra.mxu0 0
        %3220 = vmatprep.subr.bf16.mxu0 0
        %3221 = vmatpush1.bf16.xpose.msra.mxu0 0
        %3222 = vmatprep.subr.bf16.mxu0 0
        %3223 = vmatpush1.bf16.xpose.msra.mxu0 0
        %3224 = vmatprep.subr.bf16.mxu0 0
        %3225 = vmatpush1.bf16.xpose.msra.mxu0 0
        %3226 = vmatprep.subr.bf16.mxu0 0
        %3227 = vmatpush1.bf16.xpose.msra.mxu0 0
        %3228 = vmatprep.mubr.bf16.mxu0 0
        %3229 = vmatmul.mubr.bf16.gmra.mrb[0].mxu0 %v3191
        %v3230 = vpop.f32.mrb[0].mxu0
        %v3231 = vadd.f32 %v1362, %v3230
        %v3232 = vpop.f32.mrb[0].mxu0
        %v3233 = vpop.f32.mrb[0].mxu0
        %v3234 = vpop.f32.mrb[0].mxu0
        %3235 = vdwg.mxu0
        %v3236 = vsel %vm2891, %v3231, -inf
        %3237 = vmax.xlane.f32.xlu0 %v3236
        %v3238 = vpop.xlane.xlu0 %3237
        %v3239 = vsub.f32 %v3231, %v3238
        %v3240 = vmul.f32 %v3239, 1.442695
        %v3241 = vpow.pop %v3240
        %v3242 = vsel %vm2891, %v3241, 0.0
        %3243 = vadd.xlane.f32.xlu0 %v3242
        %v3244 = vpop.xlane.xlu0 %3243
        %v3245 = vrcp.pop %v3244
        %v3246 = vmul.f32 %v3241, %v3245
        %v3247 = vpack.c.bf16 %v3246, %v3246
        %3248 = vrot.lane.b32.xlu0 %v2844, 72
        %v3249 = vpop.permute.xlu0 %3248
        %v3251 = vsel %vm2891, %v3247, 0
        %v3254 = vsel %vm2910, %v3249, 0
        %3256 = vmatprep.subr.bf16.mxu0 0
        %3257 = vmatpush1.bf16.msra.mxu0 %v3254
        %3258 = vmatprep.subr.bf16.mxu0 0
        %3259 = vmatpush1.bf16.msra.mxu0 0
        %3260 = vmatprep.subr.bf16.mxu0 0
        %3261 = vmatpush1.bf16.msra.mxu0 0
        %3262 = vmatprep.subr.bf16.mxu0 0
        %3263 = vmatpush1.bf16.msra.mxu0 0
        %3264 = vmatprep.subr.bf16.mxu0 0
        %3265 = vmatpush1.bf16.msra.mxu0 0
        %3266 = vmatprep.subr.bf16.mxu0 0
        %3267 = vmatpush1.bf16.msra.mxu0 0
        %3268 = vmatprep.subr.bf16.mxu0 0
        %3269 = vmatpush1.bf16.msra.mxu0 0
        %3270 = vmatprep.subr.bf16.mxu0 0
        %3271 = vmatpush1.bf16.msra.mxu0 0
        %3272 = vmatprep.subr.bf16.mxu0 0
        %3273 = vmatpush1.bf16.msra.mxu0 0
        %3274 = vmatprep.subr.bf16.mxu0 0
        %3275 = vmatpush1.bf16.msra.mxu0 0
        %3276 = vmatprep.subr.bf16.mxu0 0
        %3277 = vmatpush1.bf16.msra.mxu0 0
        %3278 = vmatprep.subr.bf16.mxu0 0
        %3279 = vmatpush1.bf16.msra.mxu0 0
        %3280 = vmatprep.subr.bf16.mxu0 0
        %3281 = vmatpush1.bf16.msra.mxu0 0
        %3282 = vmatprep.subr.bf16.mxu0 0
        %3283 = vmatpush1.bf16.msra.mxu0 0
        %3284 = vmatprep.subr.bf16.mxu0 0
        %3285 = vmatpush1.bf16.msra.mxu0 0
        %3286 = vmatprep.subr.bf16.mxu0 0
        %3287 = vmatpush1.bf16.msra.mxu0 0
        %3288 = vmatprep.mubr.bf16.mxu0 0
        %3289 = vmatmul.mubr.bf16.gmra.mrb[0].mxu0 %v3251
        %v3290 = vpop.f32.mrb[0].mxu0
        %v3291 = vadd.f32 0.0, %v3290
        %v3292 = vpop.f32.mrb[0].mxu0
        %v3293 = vpop.f32.mrb[0].mxu0
        %v3294 = vpop.f32.mrb[0].mxu0
        %3295 = vdwg.mxu0
        %3297 = vrot.lane.b32.xlu0 %v3291, 24
        %v3298 = vpop.permute.xlu0 %3297
        %3300 = vst.msk [vmem:[#allocation2] sm:$0xff] %vm1924, %v3298
        %v3301 = vld [vmem:[#allocation2] sm:$0xff]
        %v3302 = vpack.c.bf16 %v3301, %v3301
        %v3303 = vld [vmem:[#allocation23] sm:$0xf]
        %v3304 = vld [vmem:[#allocation23 + $0x4] sm:$0xf]
        %v3305 = vld [vmem:[#allocation23 + $0x8] sm:$0xf]
        %v3306 = vld [vmem:[#allocation23 + $0xc] sm:$0xf]
        %v3311 = vunpack.c.l.b16 %v3303
        %v3312 = vunpack.c.l.b16 %v3304
        %v3313 = vunpack.c.l.b16 %v3305
        %v3314 = vunpack.c.l.b16 %v3306
        %v3315 = vpack.c.b16 %v3312, %v3311
        %v3316 = vpack.c.b16 %v3314, %v3313
        %v3320 = vsel %vm1366, %v3302, 0
        %3322 = vmatprep.subr.bf16.mxu0 0
        %3323 = vmatpush1.bf16.msra.mxu0 %v3315
        %3324 = vmatprep.subr.bf16.mxu0 0
        %3325 = vmatpush1.bf16.msra.mxu0 %v3316
        %3326 = vmatprep.subr.bf16.mxu0 0
        %3327 = vmatpush1.bf16.msra.mxu0 0
        %3328 = vmatprep.subr.bf16.mxu0 0
        %3329 = vmatpush1.bf16.msra.mxu0 0
        %3330 = vmatprep.subr.bf16.mxu0 0
        %3331 = vmatpush1.bf16.msra.mxu0 0
        %3332 = vmatprep.subr.bf16.mxu0 0
        %3333 = vmatpush1.bf16.msra.mxu0 0
        %3334 = vmatprep.subr.bf16.mxu0 0
        %3335 = vmatpush1.bf16.msra.mxu0 0
        %3336 = vmatprep.subr.bf16.mxu0 0
        %3337 = vmatpush1.bf16.msra.mxu0 0
        %3338 = vmatprep.subr.bf16.mxu0 0
        %3339 = vmatpush1.bf16.msra.mxu0 0
        %3340 = vmatprep.subr.bf16.mxu0 0
        %3341 = vmatpush1.bf16.msra.mxu0 0
        %3342 = vmatprep.subr.bf16.mxu0 0
        %3343 = vmatpush1.bf16.msra.mxu0 0
        %3344 = vmatprep.subr.bf16.mxu0 0
        %3345 = vmatpush1.bf16.msra.mxu0 0
        %3346 = vmatprep.subr.bf16.mxu0 0
        %3347 = vmatpush1.bf16.msra.mxu0 0
        %3348 = vmatprep.subr.bf16.mxu0 0
        %3349 = vmatpush1.bf16.msra.mxu0 0
        %3350 = vmatprep.subr.bf16.mxu0 0
        %3351 = vmatpush1.bf16.msra.mxu0 0
        %3352 = vmatprep.subr.bf16.mxu0 0
        %3353 = vmatpush1.bf16.msra.mxu0 0
        %3354 = vmatprep.mubr.bf16.mxu0 0
        %3355 = vmatmul.mubr.bf16.gmra.mrb[0].mxu0 %v3320
        %v3356 = vpop.f32.mrb[0].mxu0
        %v3357 = vadd.f32 0.0, %v3356
        %v3358 = vpop.f32.mrb[0].mxu0
        %v3359 = vpop.f32.mrb[0].mxu0
        %v3360 = vpop.f32.mrb[0].mxu0
        %3361 = vdwg.mxu0
        %v3362 = vadd.f32 %v2678, %v3357
        %v3363 = vld [vmem:[#allocation24] sm:$0x1]
        %v3365 = vlaneseq
        %v3366 = vshrl.u32 %v3365, 7
        %v3367 = vsub.s32 0, %v3366
        %v3368 = vrot.slane %v3363, %v3367
        %v3370 = vadd.f32 %v3362, %v3368
        %v3371 = vsel %vm1366, %v3370, 0.0
        %3372 = vadd.xlane.f32.xlu0 %v3371
        %v3373 = vpop.xlane.xlu0 %3372
        %v3374 = vmul.f32 %v3373, %v1370
        %v3375 = vsub.f32 %v3370, %v3374
        %v3376 = vmul.f32 %v3375, %v3375
        %v3377 = vsel %vm1366, %v3376, 0.0
        %3378 = vadd.xlane.f32.xlu0 %v3377
        %v3379 = vpop.xlane.xlu0 %3378
        %v3380 = vmul.f32 %v3379, 0.032258064
        %v3381 = vlaneseq
        %v3382 = vshrl.u32 %v3381, 7
        %v3383 = vsub.s32 3, %v3382
        %v3384 = vrot.slane %v1364, %v3383
        %v3385 = vmul.f32 %v3384, %v3375
        %v3386 = vrsqrt.pop %v3380
        %v3387 = vmul.f32 %v3380, %v3386
        %vm3388 = vcmp.eq.f32.partialorder %v3380, inf
        %v3389 = vsel %vm3388, %v3380, %v3387
        %vm3390 = vcmp.eq.f32.partialorder %v3380, 0.0
        %v3391 = vand.u32 %v3380, 2147483648
        %v3392 = vsel %vm3390, %v3391, %v3389
        %v3393 = vadd.f32 %v3392, 1e-06
        %v3394 = vrcp.pop %v3393
        %v3395 = vmul.f32 %v3385, %v3394
        %v3396 = vlaneseq
        %v3397 = vshrl.u32 %v3396, 7
        %v3398 = vsub.s32 3, %v3397
        %v3399 = vrot.slane %v1365, %v3398
        %v3400 = vadd.f32 %v3395, %v3399
        %v3401 = vpack.c.bf16 %v3400, %v3400
        %v3402 = vld [vmem:[#allocation26] sm:$0xf]
        %v3403 = vld [vmem:[#allocation26 + $0x4] sm:$0xf]
        %v3404 = vld [vmem:[#allocation26 + $0x8] sm:$0xf]
        %v3405 = vld [vmem:[#allocation26 + $0xc] sm:$0xf]
        %v3406 = vld [vmem:[#allocation27] sm:$0x1]
        %v3408 = vlaneseq
        %v3409 = vshrl.u32 %v3408, 7
        %v3410 = vsub.s32 0, %v3409
        %v3411 = vrot.slane %v3406, %v3410
        %v3417 = vunpack.c.l.b16 %v3402
        %v3418 = vunpack.c.l.b16 %v3403
        %v3419 = vunpack.c.l.b16 %v3404
        %v3420 = vunpack.c.l.b16 %v3405
        %v3421 = vpack.c.b16 %v3418, %v3417
        %v3422 = vpack.c.b16 %v3420, %v3419
        %v3426 = vsel %vm1366, %v3401, 0
        %3428 = vmatprep.subr.bf16.mxu0 0
        %3429 = vmatpush1.bf16.msra.mxu0 %v3421
        %3430 = vmatprep.subr.bf16.mxu0 0
        %3431 = vmatpush1.bf16.msra.mxu0 %v3422
        %3432 = vmatprep.subr.bf16.mxu0 0
        %3433 = vmatpush1.bf16.msra.mxu0 0
        %3434 = vmatprep.subr.bf16.mxu0 0
        %3435 = vmatpush1.bf16.msra.mxu0 0
        %3436 = vmatprep.subr.bf16.mxu0 0
        %3437 = vmatpush1.bf16.msra.mxu0 0
        %3438 = vmatprep.subr.bf16.mxu0 0
        %3439 = vmatpush1.bf16.msra.mxu0 0
        %3440 = vmatprep.subr.bf16.mxu0 0
        %3441 = vmatpush1.bf16.msra.mxu0 0
        %3442 = vmatprep.subr.bf16.mxu0 0
        %3443 = vmatpush1.bf16.msra.mxu0 0
        %3444 = vmatprep.subr.bf16.mxu0 0
        %3445 = vmatpush1.bf16.msra.mxu0 0
        %3446 = vmatprep.subr.bf16.mxu0 0
        %3447 = vmatpush1.bf16.msra.mxu0 0
        %3448 = vmatprep.subr.bf16.mxu0 0
        %3449 = vmatpush1.bf16.msra.mxu0 0
        %3450 = vmatprep.subr.bf16.mxu0 0
        %3451 = vmatpush1.bf16.msra.mxu0 0
        %3452 = vmatprep.subr.bf16.mxu0 0
        %3453 = vmatpush1.bf16.msra.mxu0 0
        %3454 = vmatprep.subr.bf16.mxu0 0
        %3455 = vmatpush1.bf16.msra.mxu0 0
        %3456 = vmatprep.subr.bf16.mxu0 0
        %3457 = vmatpush1.bf16.msra.mxu0 0
        %3458 = vmatprep.subr.bf16.mxu0 0
        %3459 = vmatpush1.bf16.msra.mxu0 0
        %3460 = vmatprep.mubr.bf16.mxu0 0
        %3461 = vmatmul.mubr.bf16.gmra.mrb[0].mxu0 %v3426
        %v3462 = vpop.f32.mrb[0].mxu0
        %v3463 = vadd.f32 %v3411, %v3462
        %v3464 = vpop.f32.mrb[0].mxu0
        %v3465 = vpop.f32.mrb[0].mxu0
        %v3466 = vpop.f32.mrb[0].mxu0
        %3467 = vdwg.mxu0
        %v3468 = vmax.f32 %v3463, 0.0
        %v3469 = vpack.c.bf16 %v3468, %v3468
        %v3470 = vld [vmem:[%s49] sm:$0xf]
        %v3471 = vld [vmem:[%s49 + $0x4] sm:$0xf]
        %v3472 = vld [vmem:[%s49 + $0x8] sm:$0xf]
        %v3473 = vld [vmem:[%s49 + $0xc] sm:$0xf]
        %v3474 = vld [vmem:[%s49 + $0x10] sm:$0xf]
        %v3475 = vld [vmem:[%s49 + $0x14] sm:$0xf]
        %v3476 = vld [vmem:[%s49 + $0x18] sm:$0xf]
        %v3477 = vld [vmem:[%s49 + $0x1c] sm:$0xf]
        %v3486 = vunpack.c.l.b16 %v3470
        %v3487 = vunpack.c.l.b16 %v3471
        %v3488 = vunpack.c.l.b16 %v3472
        %v3489 = vunpack.c.l.b16 %v3473
        %v3490 = vunpack.c.l.b16 %v3474
        %v3491 = vunpack.c.l.b16 %v3475
        %v3492 = vunpack.c.l.b16 %v3476
        %v3493 = vunpack.c.l.b16 %v3477
        %v3494 = vpack.c.b16 %v3487, %v3486
        %v3495 = vpack.c.b16 %v3489, %v3488
        %v3496 = vpack.c.b16 %v3491, %v3490
        %v3497 = vpack.c.b16 %v3493, %v3492
        %vm3502 = vcmask 523264
        %v3504 = vsel %vm3502, %v3469, 0
        %3506 = vmatprep.subr.bf16.mxu0 0
        %3507 = vmatpush1.bf16.msra.mxu0 %v3494
        %3508 = vmatprep.subr.bf16.mxu0 0
        %3509 = vmatpush1.bf16.msra.mxu0 %v3495
        %3510 = vmatprep.subr.bf16.mxu0 0
        %3511 = vmatpush1.bf16.msra.mxu0 %v3496
        %3512 = vmatprep.subr.bf16.mxu0 0
        %3513 = vmatpush1.bf16.msra.mxu0 %v3497
        %3514 = vmatprep.subr.bf16.mxu0 0
        %3515 = vmatpush1.bf16.msra.mxu0 0
        %3516 = vmatprep.subr.bf16.mxu0 0
        %3517 = vmatpush1.bf16.msra.mxu0 0
        %3518 = vmatprep.subr.bf16.mxu0 0
        %3519 = vmatpush1.bf16.msra.mxu0 0
        %3520 = vmatprep.subr.bf16.mxu0 0
        %3521 = vmatpush1.bf16.msra.mxu0 0
        %3522 = vmatprep.subr.bf16.mxu0 0
        %3523 = vmatpush1.bf16.msra.mxu0 0
        %3524 = vmatprep.subr.bf16.mxu0 0
        %3525 = vmatpush1.bf16.msra.mxu0 0
        %3526 = vmatprep.subr.bf16.mxu0 0
        %3527 = vmatpush1.bf16.msra.mxu0 0
        %3528 = vmatprep.subr.bf16.mxu0 0
        %3529 = vmatpush1.bf16.msra.mxu0 0
        %3530 = vmatprep.subr.bf16.mxu0 0
        %3531 = vmatpush1.bf16.msra.mxu0 0
        %3532 = vmatprep.subr.bf16.mxu0 0
        %3533 = vmatpush1.bf16.msra.mxu0 0
        %3534 = vmatprep.subr.bf16.mxu0 0
        %3535 = vmatpush1.bf16.msra.mxu0 0
        %3536 = vmatprep.subr.bf16.mxu0 0
        %3537 = vmatpush1.bf16.msra.mxu0 0
        %3538 = vmatprep.mubr.bf16.mxu0 0
        %3539 = vmatmul.mubr.bf16.gmra.mrb[0].mxu0 %v3504
        %v3540 = vpop.f32.mrb[0].mxu0
        %v3541 = vadd.f32 0.0, %v3540
        %v3542 = vpop.f32.mrb[0].mxu0
        %v3543 = vpop.f32.mrb[0].mxu0
        %v3544 = vpop.f32.mrb[0].mxu0
        %3545 = vdwg.mxu0
        %v3546 = vadd.f32 %v3370, %v3541
        %v3547 = vld [vmem:[#allocation29] sm:$0x1]
        %v3549 = vlaneseq
        %v3550 = vshrl.u32 %v3549, 7
        %v3551 = vsub.s32 0, %v3550
        %v3552 = vrot.slane %v3547, %v3551
        %v3554 = vadd.f32 %v3546, %v3552
        %s3555 = scalar_lea.vmem [#allocation30], 4
        %v3556 = vld [vmem:[%s3555] sm:$0xf]
        %s3557 = scalar_lea.vmem [#allocation32], 4
        %v3558 = vld [vmem:[%s3557] sm:$0xf]
        %v3559 = vsel %vm1366, %v3554, 0.0
        %3560 = vadd.xlane.f32.xlu0 %v3559
        %v3561 = vpop.xlane.xlu0 %3560
        %v3562 = vmul.f32 %v3561, %v1370
        %v3563 = vsub.f32 %v3554, %v3562
        %v3564 = vmul.f32 %v3563, %v3563
        %v3565 = vsel %vm1366, %v3564, 0.0
        %3566 = vadd.xlane.f32.xlu0 %v3565
        %v3567 = vpop.xlane.xlu0 %3566
        %v3568 = vmul.f32 %v3567, 0.032258064
        %v3569 = vlaneseq
        %v3570 = vshrl.u32 %v3569, 7
        %v3571 = vsub.s32 0, %v3570
        %v3572 = vrot.slane %v3556, %v3571
        %v3573 = vmul.f32 %v3572, %v3563
        %v3574 = vrsqrt.pop %v3568
        %v3575 = vmul.f32 %v3568, %v3574
        %vm3576 = vcmp.eq.f32.partialorder %v3568, inf
        %v3577 = vsel %vm3576, %v3568, %v3575
        %vm3578 = vcmp.eq.f32.partialorder %v3568, 0.0
        %v3579 = vand.u32 %v3568, 2147483648
        %v3580 = vsel %vm3578, %v3579, %v3577
        %v3581 = vadd.f32 %v3580, 1e-06
        %v3582 = vrcp.pop %v3581
        %v3583 = vmul.f32 %v3573, %v3582
        %v3584 = vlaneseq
        %v3585 = vshrl.u32 %v3584, 7
        %v3586 = vsub.s32 0, %v3585
        %v3587 = vrot.slane %v3558, %v3586
        %v3588 = vadd.f32 %v3583, %v3587
        %v3589 = vpack.c.bf16 %v3588, %v3588
        %s3590 = scalar_lea.vmem %s13, 16
        %v3591 = vld [vmem:[%s3590] sm:$0xf]
        %v3592 = vld [vmem:[%s3590 + $0x4] sm:$0xf]
        %v3593 = vld [vmem:[%s3590 + $0x8] sm:$0xf]
        %v3594 = vld [vmem:[%s3590 + $0xc] sm:$0xf]
        %s3595 = scalar_lea.vmem [#allocation9], 1
        %v3596 = vld [vmem:[%s3595] sm:$0x1]
        %v3598 = vlaneseq
        %v3599 = vshrl.u32 %v3598, 7
        %v3600 = vsub.s32 0, %v3599
        %v3601 = vrot.slane %v3596, %v3600
        %v3607 = vunpack.c.l.b16 %v3591
        %v3608 = vunpack.c.l.b16 %v3592
        %v3609 = vunpack.c.l.b16 %v3593
        %v3610 = vunpack.c.l.b16 %v3594
        %v3611 = vpack.c.b16 %v3608, %v3607
        %v3612 = vpack.c.b16 %v3610, %v3609
        %v3616 = vsel %vm1366, %v3589, 0
        %3618 = vmatprep.subr.bf16.mxu0 0
        %3619 = vmatpush1.bf16.msra.mxu0 %v3611
        %3620 = vmatprep.subr.bf16.mxu0 0
        %3621 = vmatpush1.bf16.msra.mxu0 %v3612
        %3622 = vmatprep.subr.bf16.mxu0 0
        %3623 = vmatpush1.bf16.msra.mxu0 0
        %3624 = vmatprep.subr.bf16.mxu0 0
        %3625 = vmatpush1.bf16.msra.mxu0 0
        %3626 = vmatprep.subr.bf16.mxu0 0
        %3627 = vmatpush1.bf16.msra.mxu0 0
        %3628 = vmatprep.subr.bf16.mxu0 0
        %3629 = vmatpush1.bf16.msra.mxu0 0
        %3630 = vmatprep.subr.bf16.mxu0 0
        %3631 = vmatpush1.bf16.msra.mxu0 0
        %3632 = vmatprep.subr.bf16.mxu0 0
        %3633 = vmatpush1.bf16.msra.mxu0 0
        %3634 = vmatprep.subr.bf16.mxu0 0
        %3635 = vmatpush1.bf16.msra.mxu0 0
        %3636 = vmatprep.subr.bf16.mxu0 0
        %3637 = vmatpush1.bf16.msra.mxu0 0
        %3638 = vmatprep.subr.bf16.mxu0 0
        %3639 = vmatpush1.bf16.msra.mxu0 0
        %3640 = vmatprep.subr.bf16.mxu0 0
        %3641 = vmatpush1.bf16.msra.mxu0 0
        %3642 = vmatprep.subr.bf16.mxu0 0
        %3643 = vmatpush1.bf16.msra.mxu0 0
        %3644 = vmatprep.subr.bf16.mxu0 0
        %3645 = vmatpush1.bf16.msra.mxu0 0
        %3646 = vmatprep.subr.bf16.mxu0 0
        %3647 = vmatpush1.bf16.msra.mxu0 0
        %3648 = vmatprep.subr.bf16.mxu0 0
        %3649 = vmatpush1.bf16.msra.mxu0 0
        %3650 = vmatprep.mubr.bf16.mxu0 0
        %3651 = vmatmul.mubr.bf16.gmra.mrb[0].mxu0 %v3616
        %v3652 = vpop.f32.mrb[0].mxu0
        %v3653 = vadd.f32 %v3601, %v3652
        %v3654 = vpop.f32.mrb[0].mxu0
        %v3655 = vpop.f32.mrb[0].mxu0
        %v3656 = vpop.f32.mrb[0].mxu0
        %3657 = vdwg.mxu0
        %v3658 = vpack.c.bf16 %v3653, %v3653
        %3660 = vrot.lane.b32.xlu0 %v3658, 96
        %v3661 = vpop.permute.xlu0 %3660
        %v3663 = vsel %vm1469, %v3658, 0
        %v3666 = vsel %vm1469, %v3661, 0
        %3668 = vmatprep.subr.bf16.mxu0 0
        %3669 = vmatpush1.bf16.xpose.msra.mxu0 %v3666
        %3670 = vmatprep.subr.bf16.mxu0 0
        %3671 = vmatpush1.bf16.xpose.msra.mxu0 0
        %3672 = vmatprep.subr.bf16.mxu0 0
        %3673 = vmatpush1.bf16.xpose.msra.mxu0 0
        %3674 = vmatprep.subr.bf16.mxu0 0
        %3675 = vmatpush1.bf16.xpose.msra.mxu0 0
        %3676 = vmatprep.subr.bf16.mxu0 0
        %3677 = vmatpush1.bf16.xpose.msra.mxu0 0
        %3678 = vmatprep.subr.bf16.mxu0 0
        %3679 = vmatpush1.bf16.xpose.msra.mxu0 0
        %3680 = vmatprep.subr.bf16.mxu0 0
        %3681 = vmatpush1.bf16.xpose.msra.mxu0 0
        %3682 = vmatprep.subr.bf16.mxu0 0
        %3683 = vmatpush1.bf16.xpose.msra.mxu0 0
        %3684 = vmatprep.subr.bf16.mxu0 0
        %3685 = vmatpush1.bf16.xpose.msra.mxu0 0
        %3686 = vmatprep.subr.bf16.mxu0 0
        %3687 = vmatpush1.bf16.xpose.msra.mxu0 0
        %3688 = vmatprep.subr.bf16.mxu0 0
        %3689 = vmatpush1.bf16.xpose.msra.mxu0 0
        %3690 = vmatprep.subr.bf16.mxu0 0
        %3691 = vmatpush1.bf16.xpose.msra.mxu0 0
        %3692 = vmatprep.subr.bf16.mxu0 0
        %3693 = vmatpush1.bf16.xpose.msra.mxu0 0
        %3694 = vmatprep.subr.bf16.mxu0 0
        %3695 = vmatpush1.bf16.xpose.msra.mxu0 0
        %3696 = vmatprep.subr.bf16.mxu0 0
        %3697 = vmatpush1.bf16.xpose.msra.mxu0 0
        %3698 = vmatprep.subr.bf16.mxu0 0
        %3699 = vmatpush1.bf16.xpose.msra.mxu0 0
        %3700 = vmatprep.mubr.bf16.mxu0 0
        %3701 = vmatmul.mubr.bf16.gmra.mrb[0].mxu0 %v3663
        %v3702 = vpop.f32.mrb[0].mxu0
        %v3703 = vadd.f32 %v1345, %v3702
        %v3704 = vpop.f32.mrb[0].mxu0
        %v3705 = vpop.f32.mrb[0].mxu0
        %v3706 = vpop.f32.mrb[0].mxu0
        %3707 = vdwg.mxu0
        %v3708 = vsel %vm1469, %v3703, -inf
        %3709 = vmax.xlane.f32.xlu0 %v3708
        %v3710 = vpop.xlane.xlu0 %3709
        %v3711 = vsub.f32 %v3703, %v3710
        %v3712 = vmul.f32 %v3711, 1.442695
        %v3713 = vpow.pop %v3712
        %v3714 = vsel %vm1469, %v3713, 0.0
        %3715 = vadd.xlane.f32.xlu0 %v3714
        %v3716 = vpop.xlane.xlu0 %3715
        %v3717 = vrcp.pop %v3716
        %v3718 = vmul.f32 %v3713, %v3717
        %v3719 = vpack.c.bf16 %v3718, %v3718
        %3720 = vrot.lane.b32.xlu0 %v3658, 64
        %v3721 = vpop.permute.xlu0 %3720
        %v3723 = vsel %vm1469, %v3719, 0
        %v3726 = vsel %vm1533, %v3721, 0
        %3728 = vmatprep.subr.bf16.mxu0 0
        %3729 = vmatpush1.bf16.msra.mxu0 %v3726
        %3730 = vmatprep.subr.bf16.mxu0 0
        %3731 = vmatpush1.bf16.msra.mxu0 0
        %3732 = vmatprep.subr.bf16.mxu0 0
        %3733 = vmatpush1.bf16.msra.mxu0 0
        %3734 = vmatprep.subr.bf16.mxu0 0
        %3735 = vmatpush1.bf16.msra.mxu0 0
        %3736 = vmatprep.subr.bf16.mxu0 0
        %3737 = vmatpush1.bf16.msra.mxu0 0
        %3738 = vmatprep.subr.bf16.mxu0 0
        %3739 = vmatpush1.bf16.msra.mxu0 0
        %3740 = vmatprep.subr.bf16.mxu0 0
        %3741 = vmatpush1.bf16.msra.mxu0 0
        %3742 = vmatprep.subr.bf16.mxu0 0
        %3743 = vmatpush1.bf16.msra.mxu0 0
        %3744 = vmatprep.subr.bf16.mxu0 0
        %3745 = vmatpush1.bf16.msra.mxu0 0
        %3746 = vmatprep.subr.bf16.mxu0 0
        %3747 = vmatpush1.bf16.msra.mxu0 0
        %3748 = vmatprep.subr.bf16.mxu0 0
        %3749 = vmatpush1.bf16.msra.mxu0 0
        %3750 = vmatprep.subr.bf16.mxu0 0
        %3751 = vmatpush1.bf16.msra.mxu0 0
        %3752 = vmatprep.subr.bf16.mxu0 0
        %3753 = vmatpush1.bf16.msra.mxu0 0
        %3754 = vmatprep.subr.bf16.mxu0 0
        %3755 = vmatpush1.bf16.msra.mxu0 0
        %3756 = vmatprep.subr.bf16.mxu0 0
        %3757 = vmatpush1.bf16.msra.mxu0 0
        %3758 = vmatprep.subr.bf16.mxu0 0
        %3759 = vmatpush1.bf16.msra.mxu0 0
        %3760 = vmatprep.mubr.bf16.mxu0 0
        %3761 = vmatmul.mubr.bf16.gmra.mrb[0].mxu0 %v3723
        %v3762 = vpop.f32.mrb[0].mxu0
        %v3763 = vadd.f32 0.0, %v3762
        %v3764 = vpop.f32.mrb[0].mxu0
        %v3765 = vpop.f32.mrb[0].mxu0
        %v3766 = vpop.f32.mrb[0].mxu0
        %3767 = vdwg.mxu0
        %3768 = vst.msk [vmem:[#allocation2] sm:$0xff] %vm1469, %v3763
        %3769 = vrot.lane.b32.xlu0 %v3658, 120
        %v3770 = vpop.permute.xlu0 %3769
        %3771 = vrot.lane.b32.xlu0 %v3658, 88
        %v3772 = vpop.permute.xlu0 %3771
        %v3774 = vsel %vm1469, %v3770, 0
        %v3777 = vsel %vm1469, %v3772, 0
        %3779 = vmatprep.subr.bf16.mxu0 0
        %3780 = vmatpush1.bf16.xpose.msra.mxu0 %v3777
        %3781 = vmatprep.subr.bf16.mxu0 0
        %3782 = vmatpush1.bf16.xpose.msra.mxu0 0
        %3783 = vmatprep.subr.bf16.mxu0 0
        %3784 = vmatpush1.bf16.xpose.msra.mxu0 0
        %3785 = vmatprep.subr.bf16.mxu0 0
        %3786 = vmatpush1.bf16.xpose.msra.mxu0 0
        %3787 = vmatprep.subr.bf16.mxu0 0
        %3788 = vmatpush1.bf16.xpose.msra.mxu0 0
        %3789 = vmatprep.subr.bf16.mxu0 0
        %3790 = vmatpush1.bf16.xpose.msra.mxu0 0
        %3791 = vmatprep.subr.bf16.mxu0 0
        %3792 = vmatpush1.bf16.xpose.msra.mxu0 0
        %3793 = vmatprep.subr.bf16.mxu0 0
        %3794 = vmatpush1.bf16.xpose.msra.mxu0 0
        %3795 = vmatprep.subr.bf16.mxu0 0
        %3796 = vmatpush1.bf16.xpose.msra.mxu0 0
        %3797 = vmatprep.subr.bf16.mxu0 0
        %3798 = vmatpush1.bf16.xpose.msra.mxu0 0
        %3799 = vmatprep.subr.bf16.mxu0 0
        %3800 = vmatpush1.bf16.xpose.msra.mxu0 0
        %3801 = vmatprep.subr.bf16.mxu0 0
        %3802 = vmatpush1.bf16.xpose.msra.mxu0 0
        %3803 = vmatprep.subr.bf16.mxu0 0
        %3804 = vmatpush1.bf16.xpose.msra.mxu0 0
        %3805 = vmatprep.subr.bf16.mxu0 0
        %3806 = vmatpush1.bf16.xpose.msra.mxu0 0
        %3807 = vmatprep.subr.bf16.mxu0 0
        %3808 = vmatpush1.bf16.xpose.msra.mxu0 0
        %3809 = vmatprep.subr.bf16.mxu0 0
        %3810 = vmatpush1.bf16.xpose.msra.mxu0 0
        %3811 = vmatprep.mubr.bf16.mxu0 0
        %3812 = vmatmul.mubr.bf16.gmra.mrb[0].mxu0 %v3774
        %v3813 = vpop.f32.mrb[0].mxu0
        %v3814 = vadd.f32 %v1345, %v3813
        %v3815 = vpop.f32.mrb[0].mxu0
        %v3816 = vpop.f32.mrb[0].mxu0
        %v3817 = vpop.f32.mrb[0].mxu0
        %3818 = vdwg.mxu0
        %v3819 = vsel %vm1469, %v3814, -inf
        %3820 = vmax.xlane.f32.xlu0 %v3819
        %v3821 = vpop.xlane.xlu0 %3820
        %v3822 = vsub.f32 %v3814, %v3821
        %v3823 = vmul.f32 %v3822, 1.442695
        %v3824 = vpow.pop %v3823
        %v3825 = vsel %vm1469, %v3824, 0.0
        %3826 = vadd.xlane.f32.xlu0 %v3825
        %v3827 = vpop.xlane.xlu0 %3826
        %v3828 = vrcp.pop %v3827
        %v3829 = vmul.f32 %v3824, %v3828
        %v3830 = vpack.c.bf16 %v3829, %v3829
        %3831 = vrot.lane.b32.xlu0 %v3658, 56
        %v3832 = vpop.permute.xlu0 %3831
        %v3834 = vsel %vm1469, %v3830, 0
        %v3837 = vsel %vm1533, %v3832, 0
        %3839 = vmatprep.subr.bf16.mxu0 0
        %3840 = vmatpush1.bf16.msra.mxu0 %v3837
        %3841 = vmatprep.subr.bf16.mxu0 0
        %3842 = vmatpush1.bf16.msra.mxu0 0
        %3843 = vmatprep.subr.bf16.mxu0 0
        %3844 = vmatpush1.bf16.msra.mxu0 0
        %3845 = vmatprep.subr.bf16.mxu0 0
        %3846 = vmatpush1.bf16.msra.mxu0 0
        %3847 = vmatprep.subr.bf16.mxu0 0
        %3848 = vmatpush1.bf16.msra.mxu0 0
        %3849 = vmatprep.subr.bf16.mxu0 0
        %3850 = vmatpush1.bf16.msra.mxu0 0
        %3851 = vmatprep.subr.bf16.mxu0 0
        %3852 = vmatpush1.bf16.msra.mxu0 0
        %3853 = vmatprep.subr.bf16.mxu0 0
        %3854 = vmatpush1.bf16.msra.mxu0 0
        %3855 = vmatprep.subr.bf16.mxu0 0
        %3856 = vmatpush1.bf16.msra.mxu0 0
        %3857 = vmatprep.subr.bf16.mxu0 0
        %3858 = vmatpush1.bf16.msra.mxu0 0
        %3859 = vmatprep.subr.bf16.mxu0 0
        %3860 = vmatpush1.bf16.msra.mxu0 0
        %3861 = vmatprep.subr.bf16.mxu0 0
        %3862 = vmatpush1.bf16.msra.mxu0 0
        %3863 = vmatprep.subr.bf16.mxu0 0
        %3864 = vmatpush1.bf16.msra.mxu0 0
        %3865 = vmatprep.subr.bf16.mxu0 0
        %3866 = vmatpush1.bf16.msra.mxu0 0
        %3867 = vmatprep.subr.bf16.mxu0 0
        %3868 = vmatpush1.bf16.msra.mxu0 0
        %3869 = vmatprep.subr.bf16.mxu0 0
        %3870 = vmatpush1.bf16.msra.mxu0 0
        %3871 = vmatprep.mubr.bf16.mxu0 0
        %3872 = vmatmul.mubr.bf16.gmra.mrb[0].mxu0 %v3834
        %v3873 = vpop.f32.mrb[0].mxu0
        %v3874 = vadd.f32 0.0, %v3873
        %v3875 = vpop.f32.mrb[0].mxu0
        %v3876 = vpop.f32.mrb[0].mxu0
        %v3877 = vpop.f32.mrb[0].mxu0
        %3878 = vdwg.mxu0
        %3880 = vrot.lane.b32.xlu0 %v3874, 8
        %v3881 = vpop.permute.xlu0 %3880
        %3883 = vst.msk [vmem:[#allocation2] sm:$0xff] %vm1692, %v3881
        %3884 = vrot.lane.b32.xlu0 %v3658, 112
        %v3885 = vpop.permute.xlu0 %3884
        %3886 = vrot.lane.b32.xlu0 %v3658, 80
        %v3887 = vpop.permute.xlu0 %3886
        %v3889 = vsel %vm1469, %v3885, 0
        %v3892 = vsel %vm1469, %v3887, 0
        %3894 = vmatprep.subr.bf16.mxu0 0
        %3895 = vmatpush1.bf16.xpose.msra.mxu0 %v3892
        %3896 = vmatprep.subr.bf16.mxu0 0
        %3897 = vmatpush1.bf16.xpose.msra.mxu0 0
        %3898 = vmatprep.subr.bf16.mxu0 0
        %3899 = vmatpush1.bf16.xpose.msra.mxu0 0
        %3900 = vmatprep.subr.bf16.mxu0 0
        %3901 = vmatpush1.bf16.xpose.msra.mxu0 0
        %3902 = vmatprep.subr.bf16.mxu0 0
        %3903 = vmatpush1.bf16.xpose.msra.mxu0 0
        %3904 = vmatprep.subr.bf16.mxu0 0
        %3905 = vmatpush1.bf16.xpose.msra.mxu0 0
        %3906 = vmatprep.subr.bf16.mxu0 0
        %3907 = vmatpush1.bf16.xpose.msra.mxu0 0
        %3908 = vmatprep.subr.bf16.mxu0 0
        %3909 = vmatpush1.bf16.xpose.msra.mxu0 0
        %3910 = vmatprep.subr.bf16.mxu0 0
        %3911 = vmatpush1.bf16.xpose.msra.mxu0 0
        %3912 = vmatprep.subr.bf16.mxu0 0
        %3913 = vmatpush1.bf16.xpose.msra.mxu0 0
        %3914 = vmatprep.subr.bf16.mxu0 0
        %3915 = vmatpush1.bf16.xpose.msra.mxu0 0
        %3916 = vmatprep.subr.bf16.mxu0 0
        %3917 = vmatpush1.bf16.xpose.msra.mxu0 0
        %3918 = vmatprep.subr.bf16.mxu0 0
        %3919 = vmatpush1.bf16.xpose.msra.mxu0 0
        %3920 = vmatprep.subr.bf16.mxu0 0
        %3921 = vmatpush1.bf16.xpose.msra.mxu0 0
        %3922 = vmatprep.subr.bf16.mxu0 0
        %3923 = vmatpush1.bf16.xpose.msra.mxu0 0
        %3924 = vmatprep.subr.bf16.mxu0 0
        %3925 = vmatpush1.bf16.xpose.msra.mxu0 0
        %3926 = vmatprep.mubr.bf16.mxu0 0
        %3927 = vmatmul.mubr.bf16.gmra.mrb[0].mxu0 %v3889
        %v3928 = vpop.f32.mrb[0].mxu0
        %v3929 = vadd.f32 %v1345, %v3928
        %v3930 = vpop.f32.mrb[0].mxu0
        %v3931 = vpop.f32.mrb[0].mxu0
        %v3932 = vpop.f32.mrb[0].mxu0
        %3933 = vdwg.mxu0
        %v3934 = vsel %vm1469, %v3929, -inf
        %3935 = vmax.xlane.f32.xlu0 %v3934
        %v3936 = vpop.xlane.xlu0 %3935
        %v3937 = vsub.f32 %v3929, %v3936
        %v3938 = vmul.f32 %v3937, 1.442695
        %v3939 = vpow.pop %v3938
        %v3940 = vsel %vm1469, %v3939, 0.0
        %3941 = vadd.xlane.f32.xlu0 %v3940
        %v3942 = vpop.xlane.xlu0 %3941
        %v3943 = vrcp.pop %v3942
        %v3944 = vmul.f32 %v3939, %v3943
        %v3945 = vpack.c.bf16 %v3944, %v3944
        %3946 = vrot.lane.b32.xlu0 %v3658, 48
        %v3947 = vpop.permute.xlu0 %3946
        %v3949 = vsel %vm1469, %v3945, 0
        %v3952 = vsel %vm1533, %v3947, 0
        %3954 = vmatprep.subr.bf16.mxu0 0
        %3955 = vmatpush1.bf16.msra.mxu0 %v3952
        %3956 = vmatprep.subr.bf16.mxu0 0
        %3957 = vmatpush1.bf16.msra.mxu0 0
        %3958 = vmatprep.subr.bf16.mxu0 0
        %3959 = vmatpush1.bf16.msra.mxu0 0
        %3960 = vmatprep.subr.bf16.mxu0 0
        %3961 = vmatpush1.bf16.msra.mxu0 0
        %3962 = vmatprep.subr.bf16.mxu0 0
        %3963 = vmatpush1.bf16.msra.mxu0 0
        %3964 = vmatprep.subr.bf16.mxu0 0
        %3965 = vmatpush1.bf16.msra.mxu0 0
        %3966 = vmatprep.subr.bf16.mxu0 0
        %3967 = vmatpush1.bf16.msra.mxu0 0
        %3968 = vmatprep.subr.bf16.mxu0 0
        %3969 = vmatpush1.bf16.msra.mxu0 0
        %3970 = vmatprep.subr.bf16.mxu0 0
        %3971 = vmatpush1.bf16.msra.mxu0 0
        %3972 = vmatprep.subr.bf16.mxu0 0
        %3973 = vmatpush1.bf16.msra.mxu0 0
        %3974 = vmatprep.subr.bf16.mxu0 0
        %3975 = vmatpush1.bf16.msra.mxu0 0
        %3976 = vmatprep.subr.bf16.mxu0 0
        %3977 = vmatpush1.bf16.msra.mxu0 0
        %3978 = vmatprep.subr.bf16.mxu0 0
        %3979 = vmatpush1.bf16.msra.mxu0 0
        %3980 = vmatprep.subr.bf16.mxu0 0
        %3981 = vmatpush1.bf16.msra.mxu0 0
        %3982 = vmatprep.subr.bf16.mxu0 0
        %3983 = vmatpush1.bf16.msra.mxu0 0
        %3984 = vmatprep.subr.bf16.mxu0 0
        %3985 = vmatpush1.bf16.msra.mxu0 0
        %3986 = vmatprep.mubr.bf16.mxu0 0
        %3987 = vmatmul.mubr.bf16.gmra.mrb[0].mxu0 %v3949
        %v3988 = vpop.f32.mrb[0].mxu0
        %v3989 = vadd.f32 0.0, %v3988
        %v3990 = vpop.f32.mrb[0].mxu0
        %v3991 = vpop.f32.mrb[0].mxu0
        %v3992 = vpop.f32.mrb[0].mxu0
        %3993 = vdwg.mxu0
        %3995 = vrot.lane.b32.xlu0 %v3989, 16
        %v3996 = vpop.permute.xlu0 %3995
        %3998 = vst.msk [vmem:[#allocation2] sm:$0xff] %vm1808, %v3996
        %3999 = vrot.lane.b32.xlu0 %v3658, 104
        %v4000 = vpop.permute.xlu0 %3999
        %4001 = vrot.lane.b32.xlu0 %v3658, 72
        %v4002 = vpop.permute.xlu0 %4001
        %v4004 = vsel %vm1469, %v4000, 0
        %v4007 = vsel %vm1469, %v4002, 0
        %4009 = vmatprep.subr.bf16.mxu0 0
        %4010 = vmatpush1.bf16.xpose.msra.mxu0 %v4007
        %4011 = vmatprep.subr.bf16.mxu0 0
        %4012 = vmatpush1.bf16.xpose.msra.mxu0 0
        %4013 = vmatprep.subr.bf16.mxu0 0
        %4014 = vmatpush1.bf16.xpose.msra.mxu0 0
        %4015 = vmatprep.subr.bf16.mxu0 0
        %4016 = vmatpush1.bf16.xpose.msra.mxu0 0
        %4017 = vmatprep.subr.bf16.mxu0 0
        %4018 = vmatpush1.bf16.xpose.msra.mxu0 0
        %4019 = vmatprep.subr.bf16.mxu0 0
        %4020 = vmatpush1.bf16.xpose.msra.mxu0 0
        %4021 = vmatprep.subr.bf16.mxu0 0
        %4022 = vmatpush1.bf16.xpose.msra.mxu0 0
        %4023 = vmatprep.subr.bf16.mxu0 0
        %4024 = vmatpush1.bf16.xpose.msra.mxu0 0
        %4025 = vmatprep.subr.bf16.mxu0 0
        %4026 = vmatpush1.bf16.xpose.msra.mxu0 0
        %4027 = vmatprep.subr.bf16.mxu0 0
        %4028 = vmatpush1.bf16.xpose.msra.mxu0 0
        %4029 = vmatprep.subr.bf16.mxu0 0
        %4030 = vmatpush1.bf16.xpose.msra.mxu0 0
        %4031 = vmatprep.subr.bf16.mxu0 0
        %4032 = vmatpush1.bf16.xpose.msra.mxu0 0
        %4033 = vmatprep.subr.bf16.mxu0 0
        %4034 = vmatpush1.bf16.xpose.msra.mxu0 0
        %4035 = vmatprep.subr.bf16.mxu0 0
        %4036 = vmatpush1.bf16.xpose.msra.mxu0 0
        %4037 = vmatprep.subr.bf16.mxu0 0
        %4038 = vmatpush1.bf16.xpose.msra.mxu0 0
        %4039 = vmatprep.subr.bf16.mxu0 0
        %4040 = vmatpush1.bf16.xpose.msra.mxu0 0
        %4041 = vmatprep.mubr.bf16.mxu0 0
        %4042 = vmatmul.mubr.bf16.gmra.mrb[0].mxu0 %v4004
        %v4043 = vpop.f32.mrb[0].mxu0
        %v4044 = vadd.f32 %v1345, %v4043
        %v4045 = vpop.f32.mrb[0].mxu0
        %v4046 = vpop.f32.mrb[0].mxu0
        %v4047 = vpop.f32.mrb[0].mxu0
        %4048 = vdwg.mxu0
        %v4049 = vsel %vm1469, %v4044, -inf
        %4050 = vmax.xlane.f32.xlu0 %v4049
        %v4051 = vpop.xlane.xlu0 %4050
        %v4052 = vsub.f32 %v4044, %v4051
        %v4053 = vmul.f32 %v4052, 1.442695
        %v4054 = vpow.pop %v4053
        %v4055 = vsel %vm1469, %v4054, 0.0
        %4056 = vadd.xlane.f32.xlu0 %v4055
        %v4057 = vpop.xlane.xlu0 %4056
        %v4058 = vrcp.pop %v4057
        %v4059 = vmul.f32 %v4054, %v4058
        %v4060 = vpack.c.bf16 %v4059, %v4059
        %4061 = vrot.lane.b32.xlu0 %v3658, 40
        %v4062 = vpop.permute.xlu0 %4061
        %v4064 = vsel %vm1469, %v4060, 0
        %v4067 = vsel %vm1533, %v4062, 0
        %4069 = vmatprep.subr.bf16.mxu0 0
        %4070 = vmatpush1.bf16.msra.mxu0 %v4067
        %4071 = vmatprep.subr.bf16.mxu0 0
        %4072 = vmatpush1.bf16.msra.mxu0 0
        %4073 = vmatprep.subr.bf16.mxu0 0
        %4074 = vmatpush1.bf16.msra.mxu0 0
        %4075 = vmatprep.subr.bf16.mxu0 0
        %4076 = vmatpush1.bf16.msra.mxu0 0
        %4077 = vmatprep.subr.bf16.mxu0 0
        %4078 = vmatpush1.bf16.msra.mxu0 0
        %4079 = vmatprep.subr.bf16.mxu0 0
        %4080 = vmatpush1.bf16.msra.mxu0 0
        %4081 = vmatprep.subr.bf16.mxu0 0
        %4082 = vmatpush1.bf16.msra.mxu0 0
        %4083 = vmatprep.subr.bf16.mxu0 0
        %4084 = vmatpush1.bf16.msra.mxu0 0
        %4085 = vmatprep.subr.bf16.mxu0 0
        %4086 = vmatpush1.bf16.msra.mxu0 0
        %4087 = vmatprep.subr.bf16.mxu0 0
        %4088 = vmatpush1.bf16.msra.mxu0 0
        %4089 = vmatprep.subr.bf16.mxu0 0
        %4090 = vmatpush1.bf16.msra.mxu0 0
        %4091 = vmatprep.subr.bf16.mxu0 0
        %4092 = vmatpush1.bf16.msra.mxu0 0
        %4093 = vmatprep.subr.bf16.mxu0 0
        %4094 = vmatpush1.bf16.msra.mxu0 0
        %4095 = vmatprep.subr.bf16.mxu0 0
        %4096 = vmatpush1.bf16.msra.mxu0 0
        %4097 = vmatprep.subr.bf16.mxu0 0
        %4098 = vmatpush1.bf16.msra.mxu0 0
        %4099 = vmatprep.subr.bf16.mxu0 0
        %4100 = vmatpush1.bf16.msra.mxu0 0
        %4101 = vmatprep.mubr.bf16.mxu0 0
        %4102 = vmatmul.mubr.bf16.gmra.mrb[0].mxu0 %v4064
        %v4103 = vpop.f32.mrb[0].mxu0
        %v4104 = vadd.f32 0.0, %v4103
        %v4105 = vpop.f32.mrb[0].mxu0
        %v4106 = vpop.f32.mrb[0].mxu0
        %v4107 = vpop.f32.mrb[0].mxu0
        %4108 = vdwg.mxu0
        %4110 = vrot.lane.b32.xlu0 %v4104, 24
        %v4111 = vpop.permute.xlu0 %4110
        %4113 = vst.msk [vmem:[#allocation2] sm:$0xff] %vm1924, %v4111
        %v4114 = vld [vmem:[#allocation2] sm:$0xff]
        %v4115 = vpack.c.bf16 %v4114, %v4114
        %s4116 = scalar_lea.vmem %s17, 16
        %v4117 = vld [vmem:[%s4116] sm:$0xf]
        %v4118 = vld [vmem:[%s4116 + $0x4] sm:$0xf]
        %v4119 = vld [vmem:[%s4116 + $0x8] sm:$0xf]
        %v4120 = vld [vmem:[%s4116 + $0xc] sm:$0xf]
        %v4125 = vunpack.c.l.b16 %v4117
        %v4126 = vunpack.c.l.b16 %v4118
        %v4127 = vunpack.c.l.b16 %v4119
        %v4128 = vunpack.c.l.b16 %v4120
        %v4129 = vpack.c.b16 %v4126, %v4125
        %v4130 = vpack.c.b16 %v4128, %v4127
        %v4134 = vsel %vm1366, %v4115, 0
        %4136 = vmatprep.subr.bf16.mxu0 0
        %4137 = vmatpush1.bf16.msra.mxu0 %v4129
        %4138 = vmatprep.subr.bf16.mxu0 0
        %4139 = vmatpush1.bf16.msra.mxu0 %v4130
        %4140 = vmatprep.subr.bf16.mxu0 0
        %4141 = vmatpush1.bf16.msra.mxu0 0
        %4142 = vmatprep.subr.bf16.mxu0 0
        %4143 = vmatpush1.bf16.msra.mxu0 0
        %4144 = vmatprep.subr.bf16.mxu0 0
        %4145 = vmatpush1.bf16.msra.mxu0 0
        %4146 = vmatprep.subr.bf16.mxu0 0
        %4147 = vmatpush1.bf16.msra.mxu0 0
        %4148 = vmatprep.subr.bf16.mxu0 0
        %4149 = vmatpush1.bf16.msra.mxu0 0
        %4150 = vmatprep.subr.bf16.mxu0 0
        %4151 = vmatpush1.bf16.msra.mxu0 0
        %4152 = vmatprep.subr.bf16.mxu0 0
        %4153 = vmatpush1.bf16.msra.mxu0 0
        %4154 = vmatprep.subr.bf16.mxu0 0
        %4155 = vmatpush1.bf16.msra.mxu0 0
        %4156 = vmatprep.subr.bf16.mxu0 0
        %4157 = vmatpush1.bf16.msra.mxu0 0
        %4158 = vmatprep.subr.bf16.mxu0 0
        %4159 = vmatpush1.bf16.msra.mxu0 0
        %4160 = vmatprep.subr.bf16.mxu0 0
        %4161 = vmatpush1.bf16.msra.mxu0 0
        %4162 = vmatprep.subr.bf16.mxu0 0
        %4163 = vmatpush1.bf16.msra.mxu0 0
        %4164 = vmatprep.subr.bf16.mxu0 0
        %4165 = vmatpush1.bf16.msra.mxu0 0
        %4166 = vmatprep.subr.bf16.mxu0 0
        %4167 = vmatpush1.bf16.msra.mxu0 0
        %4168 = vmatprep.mubr.bf16.mxu0 0
        %4169 = vmatmul.mubr.bf16.gmra.mrb[0].mxu0 %v4134
        %v4170 = vpop.f32.mrb[0].mxu0
        %v4171 = vadd.f32 0.0, %v4170
        %v4172 = vpop.f32.mrb[0].mxu0
        %v4173 = vpop.f32.mrb[0].mxu0
        %v4174 = vpop.f32.mrb[0].mxu0
        %4175 = vdwg.mxu0
        %v4176 = vadd.f32 %v3554, %v4171
        %s4177 = scalar_lea.vmem [#allocation11], 1
        %v4178 = vld [vmem:[%s4177] sm:$0x1]
        %v4180 = vlaneseq
        %v4181 = vshrl.u32 %v4180, 7
        %v4182 = vsub.s32 0, %v4181
        %v4183 = vrot.slane %v4178, %v4182
        %v4185 = vadd.f32 %v4176, %v4183
        %v4186 = vsel %vm1366, %v4185, 0.0
        %4187 = vadd.xlane.f32.xlu0 %v4186
        %v4188 = vpop.xlane.xlu0 %4187
        %v4189 = vmul.f32 %v4188, %v1370
        %v4190 = vsub.f32 %v4185, %v4189
        %v4191 = vmul.f32 %v4190, %v4190
        %v4192 = vsel %vm1366, %v4191, 0.0
        %4193 = vadd.xlane.f32.xlu0 %v4192
        %v4194 = vpop.xlane.xlu0 %4193
        %v4195 = vmul.f32 %v4194, 0.032258064
        %v4196 = vlaneseq
        %v4197 = vshrl.u32 %v4196, 7
        %v4198 = vsub.s32 1, %v4197
        %v4199 = vrot.slane %v3556, %v4198
        %v4200 = vmul.f32 %v4199, %v4190
        %v4201 = vrsqrt.pop %v4195
        %v4202 = vmul.f32 %v4195, %v4201
        %vm4203 = vcmp.eq.f32.partialorder %v4195, inf
        %v4204 = vsel %vm4203, %v4195, %v4202
        %vm4205 = vcmp.eq.f32.partialorder %v4195, 0.0
        %v4206 = vand.u32 %v4195, 2147483648
        %v4207 = vsel %vm4205, %v4206, %v4204
        %v4208 = vadd.f32 %v4207, 1e-06
        %v4209 = vrcp.pop %v4208
        %v4210 = vmul.f32 %v4200, %v4209
        %v4211 = vlaneseq
        %v4212 = vshrl.u32 %v4211, 7
        %v4213 = vsub.s32 1, %v4212
        %v4214 = vrot.slane %v3558, %v4213
        %v4215 = vadd.f32 %v4210, %v4214
        %v4216 = vpack.c.bf16 %v4215, %v4215
        %s4217 = scalar_lea.vmem %s21, 16
        %v4218 = vld [vmem:[%s4217] sm:$0xf]
        %v4219 = vld [vmem:[%s4217 + $0x4] sm:$0xf]
        %v4220 = vld [vmem:[%s4217 + $0x8] sm:$0xf]
        %v4221 = vld [vmem:[%s4217 + $0xc] sm:$0xf]
        %s4222 = scalar_lea.vmem [#allocation12], 1
        %v4223 = vld [vmem:[%s4222] sm:$0x1]
        %v4225 = vlaneseq
        %v4226 = vshrl.u32 %v4225, 7
        %v4227 = vsub.s32 0, %v4226
        %v4228 = vrot.slane %v4223, %v4227
        %v4234 = vunpack.c.l.b16 %v4218
        %v4235 = vunpack.c.l.b16 %v4219
        %v4236 = vunpack.c.l.b16 %v4220
        %v4237 = vunpack.c.l.b16 %v4221
        %v4238 = vpack.c.b16 %v4235, %v4234
        %v4239 = vpack.c.b16 %v4237, %v4236
        %v4243 = vsel %vm1366, %v4216, 0
        %4245 = vmatprep.subr.bf16.mxu0 0
        %4246 = vmatpush1.bf16.msra.mxu0 %v4238
        %4247 = vmatprep.subr.bf16.mxu0 0
        %4248 = vmatpush1.bf16.msra.mxu0 %v4239
        %4249 = vmatprep.subr.bf16.mxu0 0
        %4250 = vmatpush1.bf16.msra.mxu0 0
        %4251 = vmatprep.subr.bf16.mxu0 0
        %4252 = vmatpush1.bf16.msra.mxu0 0
        %4253 = vmatprep.subr.bf16.mxu0 0
        %4254 = vmatpush1.bf16.msra.mxu0 0
        %4255 = vmatprep.subr.bf16.mxu0 0
        %4256 = vmatpush1.bf16.msra.mxu0 0
        %4257 = vmatprep.subr.bf16.mxu0 0
        %4258 = vmatpush1.bf16.msra.mxu0 0
        %4259 = vmatprep.subr.bf16.mxu0 0
        %4260 = vmatpush1.bf16.msra.mxu0 0
        %4261 = vmatprep.subr.bf16.mxu0 0
        %4262 = vmatpush1.bf16.msra.mxu0 0
        %4263 = vmatprep.subr.bf16.mxu0 0
        %4264 = vmatpush1.bf16.msra.mxu0 0
        %4265 = vmatprep.subr.bf16.mxu0 0
        %4266 = vmatpush1.bf16.msra.mxu0 0
        %4267 = vmatprep.subr.bf16.mxu0 0
        %4268 = vmatpush1.bf16.msra.mxu0 0
        %4269 = vmatprep.subr.bf16.mxu0 0
        %4270 = vmatpush1.bf16.msra.mxu0 0
        %4271 = vmatprep.subr.bf16.mxu0 0
        %4272 = vmatpush1.bf16.msra.mxu0 0
        %4273 = vmatprep.subr.bf16.mxu0 0
        %4274 = vmatpush1.bf16.msra.mxu0 0
        %4275 = vmatprep.subr.bf16.mxu0 0
        %4276 = vmatpush1.bf16.msra.mxu0 0
        %4277 = vmatprep.mubr.bf16.mxu0 0
        %4278 = vmatmul.mubr.bf16.gmra.mrb[0].mxu0 %v4243
        %v4279 = vpop.f32.mrb[0].mxu0
        %v4280 = vadd.f32 %v4228, %v4279
        %v4281 = vpop.f32.mrb[0].mxu0
        %v4282 = vpop.f32.mrb[0].mxu0
        %v4283 = vpop.f32.mrb[0].mxu0
        %4284 = vdwg.mxu0
        %s4285 = scalar_lea.vmem %s25, 16
        %v4286 = vld [vmem:[%s4285] sm:$0xf]
        %v4287 = vld [vmem:[%s4285 + $0x4] sm:$0xf]
        %v4288 = vld [vmem:[%s4285 + $0x8] sm:$0xf]
        %v4289 = vld [vmem:[%s4285 + $0xc] sm:$0xf]
        %s4290 = scalar_lea.vmem [#allocation14], 1
        %v4291 = vld [vmem:[%s4290] sm:$0x1]
        %v4293 = vlaneseq
        %v4294 = vshrl.u32 %v4293, 7
        %v4295 = vsub.s32 0, %v4294
        %v4296 = vrot.slane %v4291, %v4295
        %v4302 = vunpack.c.l.b16 %v4286
        %v4303 = vunpack.c.l.b16 %v4287
        %v4304 = vunpack.c.l.b16 %v4288
        %v4305 = vunpack.c.l.b16 %v4289
        %v4306 = vpack.c.b16 %v4303, %v4302
        %v4307 = vpack.c.b16 %v4305, %v4304
        %4310 = vmatprep.subr.bf16.mxu0 0
        %4311 = vmatpush1.bf16.msra.mxu0 %v4306
        %4312 = vmatprep.subr.bf16.mxu0 0
        %4313 = vmatpush1.bf16.msra.mxu0 %v4307
        %4314 = vmatprep.subr.bf16.mxu0 0
        %4315 = vmatpush1.bf16.msra.mxu0 0
        %4316 = vmatprep.subr.bf16.mxu0 0
        %4317 = vmatpush1.bf16.msra.mxu0 0
        %4318 = vmatprep.subr.bf16.mxu0 0
        %4319 = vmatpush1.bf16.msra.mxu0 0
        %4320 = vmatprep.subr.bf16.mxu0 0
        %4321 = vmatpush1.bf16.msra.mxu0 0
        %4322 = vmatprep.subr.bf16.mxu0 0
        %4323 = vmatpush1.bf16.msra.mxu0 0
        %4324 = vmatprep.subr.bf16.mxu0 0
        %4325 = vmatpush1.bf16.msra.mxu0 0
        %4326 = vmatprep.subr.bf16.mxu0 0
        %4327 = vmatpush1.bf16.msra.mxu0 0
        %4328 = vmatprep.subr.bf16.mxu0 0
        %4329 = vmatpush1.bf16.msra.mxu0 0
        %4330 = vmatprep.subr.bf16.mxu0 0
        %4331 = vmatpush1.bf16.msra.mxu0 0
        %4332 = vmatprep.subr.bf16.mxu0 0
        %4333 = vmatpush1.bf16.msra.mxu0 0
        %4334 = vmatprep.subr.bf16.mxu0 0
        %4335 = vmatpush1.bf16.msra.mxu0 0
        %4336 = vmatprep.subr.bf16.mxu0 0
        %4337 = vmatpush1.bf16.msra.mxu0 0
        %4338 = vmatprep.subr.bf16.mxu0 0
        %4339 = vmatpush1.bf16.msra.mxu0 0
        %4340 = vmatprep.subr.bf16.mxu0 0
        %4341 = vmatpush1.bf16.msra.mxu0 0
        %4342 = vmatprep.mubr.bf16.mxu0 0
        %4343 = vmatmul.mubr.bf16.gmra.mrb[0].mxu0 %v2117
        %v4344 = vpop.f32.mrb[0].mxu0
        %v4345 = vadd.f32 %v4296, %v4344
        %v4346 = vpop.f32.mrb[0].mxu0
        %v4347 = vpop.f32.mrb[0].mxu0
        %v4348 = vadd.f32 %v4296, %v4347
        %v4349 = vpop.f32.mrb[0].mxu0
        %4350 = vdwg.mxu0
        %v4351 = vpack.c.bf16 %v4280, %v4280
        %v4352 = vpack.c.bf16 %v4348, %v4345
        %v4354 = vsel %vm1469, %v4351, 0
        %v4357 = vsel %vm1469, %v4352, 0
        %4359 = vmatprep.subr.bf16.mxu0 0
        %4360 = vmatpush1.bf16.xpose.msra.mxu0 %v4357
        %4361 = vmatprep.subr.bf16.mxu0 0
        %4362 = vmatpush1.bf16.xpose.msra.mxu0 0
        %4363 = vmatprep.subr.bf16.mxu0 0
        %4364 = vmatpush1.bf16.xpose.msra.mxu0 0
        %4365 = vmatprep.subr.bf16.mxu0 0
        %4366 = vmatpush1.bf16.xpose.msra.mxu0 0
        %4367 = vmatprep.subr.bf16.mxu0 0
        %4368 = vmatpush1.bf16.xpose.msra.mxu0 0
        %4369 = vmatprep.subr.bf16.mxu0 0
        %4370 = vmatpush1.bf16.xpose.msra.mxu0 0
        %4371 = vmatprep.subr.bf16.mxu0 0
        %4372 = vmatpush1.bf16.xpose.msra.mxu0 0
        %4373 = vmatprep.subr.bf16.mxu0 0
        %4374 = vmatpush1.bf16.xpose.msra.mxu0 0
        %4375 = vmatprep.subr.bf16.mxu0 0
        %4376 = vmatpush1.bf16.xpose.msra.mxu0 0
        %4377 = vmatprep.subr.bf16.mxu0 0
        %4378 = vmatpush1.bf16.xpose.msra.mxu0 0
        %4379 = vmatprep.subr.bf16.mxu0 0
        %4380 = vmatpush1.bf16.xpose.msra.mxu0 0
        %4381 = vmatprep.subr.bf16.mxu0 0
        %4382 = vmatpush1.bf16.xpose.msra.mxu0 0
        %4383 = vmatprep.subr.bf16.mxu0 0
        %4384 = vmatpush1.bf16.xpose.msra.mxu0 0
        %4385 = vmatprep.subr.bf16.mxu0 0
        %4386 = vmatpush1.bf16.xpose.msra.mxu0 0
        %4387 = vmatprep.subr.bf16.mxu0 0
        %4388 = vmatpush1.bf16.xpose.msra.mxu0 0
        %4389 = vmatprep.subr.bf16.mxu0 0
        %4390 = vmatpush1.bf16.xpose.msra.mxu0 0
        %4391 = vmatprep.mubr.bf16.mxu0 0
        %4392 = vmatmul.mubr.bf16.gmra.mrb[0].mxu0 %v4354
        %v4393 = vpop.f32.mrb[0].mxu0
        %v4394 = vadd.f32 %v1353, %v4393
        %v4395 = vpop.f32.mrb[0].mxu0
        %v4396 = vpop.f32.mrb[0].mxu0
        %v4397 = vpop.f32.mrb[0].mxu0
        %4398 = vdwg.mxu0
        %v4399 = vsel %vm2208, %v4394, -inf
        %4400 = vmax.xlane.f32.xlu0 %v4399
        %v4401 = vpop.xlane.xlu0 %4400
        %v4402 = vsub.f32 %v4394, %v4401
        %v4403 = vmul.f32 %v4402, 1.442695
        %v4404 = vpow.pop %v4403
        %v4405 = vsel %vm2208, %v4404, 0.0
        %4406 = vadd.xlane.f32.xlu0 %v4405
        %v4407 = vpop.xlane.xlu0 %4406
        %v4408 = vrcp.pop %v4407
        %v4409 = vmul.f32 %v4404, %v4408
        %v4410 = vpack.c.bf16 %v4409, %v4409
        %4412 = vrot.lane.b32.xlu0 %v4352, 96
        %v4413 = vpop.permute.xlu0 %4412
        %v4416 = vsel %vm2208, %v4410, 0
        %4418 = vmatprep.subr.bf16.mxu0 0
        %4419 = vmatpush1.bf16.msra.mxu0 %v4413
        %4420 = vmatprep.subr.bf16.mxu0 0
        %4421 = vmatpush1.bf16.msra.mxu0 0
        %4422 = vmatprep.subr.bf16.mxu0 0
        %4423 = vmatpush1.bf16.msra.mxu0 0
        %4424 = vmatprep.subr.bf16.mxu0 0
        %4425 = vmatpush1.bf16.msra.mxu0 0
        %4426 = vmatprep.subr.bf16.mxu0 0
        %4427 = vmatpush1.bf16.msra.mxu0 0
        %4428 = vmatprep.subr.bf16.mxu0 0
        %4429 = vmatpush1.bf16.msra.mxu0 0
        %4430 = vmatprep.subr.bf16.mxu0 0
        %4431 = vmatpush1.bf16.msra.mxu0 0
        %4432 = vmatprep.subr.bf16.mxu0 0
        %4433 = vmatpush1.bf16.msra.mxu0 0
        %4434 = vmatprep.subr.bf16.mxu0 0
        %4435 = vmatpush1.bf16.msra.mxu0 0
        %4436 = vmatprep.subr.bf16.mxu0 0
        %4437 = vmatpush1.bf16.msra.mxu0 0
        %4438 = vmatprep.subr.bf16.mxu0 0
        %4439 = vmatpush1.bf16.msra.mxu0 0
        %4440 = vmatprep.subr.bf16.mxu0 0
        %4441 = vmatpush1.bf16.msra.mxu0 0
        %4442 = vmatprep.subr.bf16.mxu0 0
        %4443 = vmatpush1.bf16.msra.mxu0 0
        %4444 = vmatprep.subr.bf16.mxu0 0
        %4445 = vmatpush1.bf16.msra.mxu0 0
        %4446 = vmatprep.subr.bf16.mxu0 0
        %4447 = vmatpush1.bf16.msra.mxu0 0
        %4448 = vmatprep.subr.bf16.mxu0 0
        %4449 = vmatpush1.bf16.msra.mxu0 0
        %4450 = vmatprep.mubr.bf16.mxu0 0
        %4451 = vmatmul.mubr.bf16.gmra.mrb[0].mxu0 %v4416
        %v4452 = vpop.f32.mrb[0].mxu0
        %v4453 = vadd.f32 0.0, %v4452
        %v4454 = vpop.f32.mrb[0].mxu0
        %v4455 = vpop.f32.mrb[0].mxu0
        %v4456 = vpop.f32.mrb[0].mxu0
        %4457 = vdwg.mxu0
        %4458 = vst.msk [vmem:[#allocation2] sm:$0xff] %vm1469, %v4453
        %4460 = vrot.lane.b32.xlu0 %v4351, 120
        %v4461 = vpop.permute.xlu0 %4460
        %4462 = vrot.lane.b32.xlu0 %v4352, 120
        %v4463 = vpop.permute.xlu0 %4462
        %v4465 = vsel %vm1469, %v4461, 0
        %v4468 = vsel %vm1469, %v4463, 0
        %4470 = vmatprep.subr.bf16.mxu0 0
        %4471 = vmatpush1.bf16.xpose.msra.mxu0 %v4468
        %4472 = vmatprep.subr.bf16.mxu0 0
        %4473 = vmatpush1.bf16.xpose.msra.mxu0 0
        %4474 = vmatprep.subr.bf16.mxu0 0
        %4475 = vmatpush1.bf16.xpose.msra.mxu0 0
        %4476 = vmatprep.subr.bf16.mxu0 0
        %4477 = vmatpush1.bf16.xpose.msra.mxu0 0
        %4478 = vmatprep.subr.bf16.mxu0 0
        %4479 = vmatpush1.bf16.xpose.msra.mxu0 0
        %4480 = vmatprep.subr.bf16.mxu0 0
        %4481 = vmatpush1.bf16.xpose.msra.mxu0 0
        %4482 = vmatprep.subr.bf16.mxu0 0
        %4483 = vmatpush1.bf16.xpose.msra.mxu0 0
        %4484 = vmatprep.subr.bf16.mxu0 0
        %4485 = vmatpush1.bf16.xpose.msra.mxu0 0
        %4486 = vmatprep.subr.bf16.mxu0 0
        %4487 = vmatpush1.bf16.xpose.msra.mxu0 0
        %4488 = vmatprep.subr.bf16.mxu0 0
        %4489 = vmatpush1.bf16.xpose.msra.mxu0 0
        %4490 = vmatprep.subr.bf16.mxu0 0
        %4491 = vmatpush1.bf16.xpose.msra.mxu0 0
        %4492 = vmatprep.subr.bf16.mxu0 0
        %4493 = vmatpush1.bf16.xpose.msra.mxu0 0
        %4494 = vmatprep.subr.bf16.mxu0 0
        %4495 = vmatpush1.bf16.xpose.msra.mxu0 0
        %4496 = vmatprep.subr.bf16.mxu0 0
        %4497 = vmatpush1.bf16.xpose.msra.mxu0 0
        %4498 = vmatprep.subr.bf16.mxu0 0
        %4499 = vmatpush1.bf16.xpose.msra.mxu0 0
        %4500 = vmatprep.subr.bf16.mxu0 0
        %4501 = vmatpush1.bf16.xpose.msra.mxu0 0
        %4502 = vmatprep.mubr.bf16.mxu0 0
        %4503 = vmatmul.mubr.bf16.gmra.mrb[0].mxu0 %v4465
        %v4504 = vpop.f32.mrb[0].mxu0
        %v4505 = vadd.f32 %v1353, %v4504
        %v4506 = vpop.f32.mrb[0].mxu0
        %v4507 = vpop.f32.mrb[0].mxu0
        %v4508 = vpop.f32.mrb[0].mxu0
        %4509 = vdwg.mxu0
        %v4510 = vsel %vm2208, %v4505, -inf
        %4511 = vmax.xlane.f32.xlu0 %v4510
        %v4512 = vpop.xlane.xlu0 %4511
        %v4513 = vsub.f32 %v4505, %v4512
        %v4514 = vmul.f32 %v4513, 1.442695
        %v4515 = vpow.pop %v4514
        %v4516 = vsel %vm2208, %v4515, 0.0
        %4517 = vadd.xlane.f32.xlu0 %v4516
        %v4518 = vpop.xlane.xlu0 %4517
        %v4519 = vrcp.pop %v4518
        %v4520 = vmul.f32 %v4515, %v4519
        %v4521 = vpack.c.bf16 %v4520, %v4520
        %4522 = vrot.lane.b32.xlu0 %v4352, 88
        %v4523 = vpop.permute.xlu0 %4522
        %v4526 = vsel %vm2208, %v4521, 0
        %4528 = vmatprep.subr.bf16.mxu0 0
        %4529 = vmatpush1.bf16.msra.mxu0 %v4523
        %4530 = vmatprep.subr.bf16.mxu0 0
        %4531 = vmatpush1.bf16.msra.mxu0 0
        %4532 = vmatprep.subr.bf16.mxu0 0
        %4533 = vmatpush1.bf16.msra.mxu0 0
        %4534 = vmatprep.subr.bf16.mxu0 0
        %4535 = vmatpush1.bf16.msra.mxu0 0
        %4536 = vmatprep.subr.bf16.mxu0 0
        %4537 = vmatpush1.bf16.msra.mxu0 0
        %4538 = vmatprep.subr.bf16.mxu0 0
        %4539 = vmatpush1.bf16.msra.mxu0 0
        %4540 = vmatprep.subr.bf16.mxu0 0
        %4541 = vmatpush1.bf16.msra.mxu0 0
        %4542 = vmatprep.subr.bf16.mxu0 0
        %4543 = vmatpush1.bf16.msra.mxu0 0
        %4544 = vmatprep.subr.bf16.mxu0 0
        %4545 = vmatpush1.bf16.msra.mxu0 0
        %4546 = vmatprep.subr.bf16.mxu0 0
        %4547 = vmatpush1.bf16.msra.mxu0 0
        %4548 = vmatprep.subr.bf16.mxu0 0
        %4549 = vmatpush1.bf16.msra.mxu0 0
        %4550 = vmatprep.subr.bf16.mxu0 0
        %4551 = vmatpush1.bf16.msra.mxu0 0
        %4552 = vmatprep.subr.bf16.mxu0 0
        %4553 = vmatpush1.bf16.msra.mxu0 0
        %4554 = vmatprep.subr.bf16.mxu0 0
        %4555 = vmatpush1.bf16.msra.mxu0 0
        %4556 = vmatprep.subr.bf16.mxu0 0
        %4557 = vmatpush1.bf16.msra.mxu0 0
        %4558 = vmatprep.subr.bf16.mxu0 0
        %4559 = vmatpush1.bf16.msra.mxu0 0
        %4560 = vmatprep.mubr.bf16.mxu0 0
        %4561 = vmatmul.mubr.bf16.gmra.mrb[0].mxu0 %v4526
        %v4562 = vpop.f32.mrb[0].mxu0
        %v4563 = vadd.f32 0.0, %v4562
        %v4564 = vpop.f32.mrb[0].mxu0
        %v4565 = vpop.f32.mrb[0].mxu0
        %v4566 = vpop.f32.mrb[0].mxu0
        %4567 = vdwg.mxu0
        %4569 = vrot.lane.b32.xlu0 %v4563, 8
        %v4570 = vpop.permute.xlu0 %4569
        %4572 = vst.msk [vmem:[#allocation2] sm:$0xff] %vm1692, %v4570
        %4573 = vrot.lane.b32.xlu0 %v4351, 112
        %v4574 = vpop.permute.xlu0 %4573
        %4575 = vrot.lane.b32.xlu0 %v4352, 112
        %v4576 = vpop.permute.xlu0 %4575
        %v4578 = vsel %vm1469, %v4574, 0
        %v4581 = vsel %vm1469, %v4576, 0
        %4583 = vmatprep.subr.bf16.mxu0 0
        %4584 = vmatpush1.bf16.xpose.msra.mxu0 %v4581
        %4585 = vmatprep.subr.bf16.mxu0 0
        %4586 = vmatpush1.bf16.xpose.msra.mxu0 0
        %4587 = vmatprep.subr.bf16.mxu0 0
        %4588 = vmatpush1.bf16.xpose.msra.mxu0 0
        %4589 = vmatprep.subr.bf16.mxu0 0
        %4590 = vmatpush1.bf16.xpose.msra.mxu0 0
        %4591 = vmatprep.subr.bf16.mxu0 0
        %4592 = vmatpush1.bf16.xpose.msra.mxu0 0
        %4593 = vmatprep.subr.bf16.mxu0 0
        %4594 = vmatpush1.bf16.xpose.msra.mxu0 0
        %4595 = vmatprep.subr.bf16.mxu0 0
        %4596 = vmatpush1.bf16.xpose.msra.mxu0 0
        %4597 = vmatprep.subr.bf16.mxu0 0
        %4598 = vmatpush1.bf16.xpose.msra.mxu0 0
        %4599 = vmatprep.subr.bf16.mxu0 0
        %4600 = vmatpush1.bf16.xpose.msra.mxu0 0
        %4601 = vmatprep.subr.bf16.mxu0 0
        %4602 = vmatpush1.bf16.xpose.msra.mxu0 0
        %4603 = vmatprep.subr.bf16.mxu0 0
        %4604 = vmatpush1.bf16.xpose.msra.mxu0 0
        %4605 = vmatprep.subr.bf16.mxu0 0
        %4606 = vmatpush1.bf16.xpose.msra.mxu0 0
        %4607 = vmatprep.subr.bf16.mxu0 0
        %4608 = vmatpush1.bf16.xpose.msra.mxu0 0
        %4609 = vmatprep.subr.bf16.mxu0 0
        %4610 = vmatpush1.bf16.xpose.msra.mxu0 0
        %4611 = vmatprep.subr.bf16.mxu0 0
        %4612 = vmatpush1.bf16.xpose.msra.mxu0 0
        %4613 = vmatprep.subr.bf16.mxu0 0
        %4614 = vmatpush1.bf16.xpose.msra.mxu0 0
        %4615 = vmatprep.mubr.bf16.mxu0 0
        %4616 = vmatmul.mubr.bf16.gmra.mrb[0].mxu0 %v4578
        %v4617 = vpop.f32.mrb[0].mxu0
        %v4618 = vadd.f32 %v1353, %v4617
        %v4619 = vpop.f32.mrb[0].mxu0
        %v4620 = vpop.f32.mrb[0].mxu0
        %v4621 = vpop.f32.mrb[0].mxu0
        %4622 = vdwg.mxu0
        %v4623 = vsel %vm2208, %v4618, -inf
        %4624 = vmax.xlane.f32.xlu0 %v4623
        %v4625 = vpop.xlane.xlu0 %4624
        %v4626 = vsub.f32 %v4618, %v4625
        %v4627 = vmul.f32 %v4626, 1.442695
        %v4628 = vpow.pop %v4627
        %v4629 = vsel %vm2208, %v4628, 0.0
        %4630 = vadd.xlane.f32.xlu0 %v4629
        %v4631 = vpop.xlane.xlu0 %4630
        %v4632 = vrcp.pop %v4631
        %v4633 = vmul.f32 %v4628, %v4632
        %v4634 = vpack.c.bf16 %v4633, %v4633
        %4635 = vrot.lane.b32.xlu0 %v4352, 80
        %v4636 = vpop.permute.xlu0 %4635
        %v4639 = vsel %vm2208, %v4634, 0
        %4641 = vmatprep.subr.bf16.mxu0 0
        %4642 = vmatpush1.bf16.msra.mxu0 %v4636
        %4643 = vmatprep.subr.bf16.mxu0 0
        %4644 = vmatpush1.bf16.msra.mxu0 0
        %4645 = vmatprep.subr.bf16.mxu0 0
        %4646 = vmatpush1.bf16.msra.mxu0 0
        %4647 = vmatprep.subr.bf16.mxu0 0
        %4648 = vmatpush1.bf16.msra.mxu0 0
        %4649 = vmatprep.subr.bf16.mxu0 0
        %4650 = vmatpush1.bf16.msra.mxu0 0
        %4651 = vmatprep.subr.bf16.mxu0 0
        %4652 = vmatpush1.bf16.msra.mxu0 0
        %4653 = vmatprep.subr.bf16.mxu0 0
        %4654 = vmatpush1.bf16.msra.mxu0 0
        %4655 = vmatprep.subr.bf16.mxu0 0
        %4656 = vmatpush1.bf16.msra.mxu0 0
        %4657 = vmatprep.subr.bf16.mxu0 0
        %4658 = vmatpush1.bf16.msra.mxu0 0
        %4659 = vmatprep.subr.bf16.mxu0 0
        %4660 = vmatpush1.bf16.msra.mxu0 0
        %4661 = vmatprep.subr.bf16.mxu0 0
        %4662 = vmatpush1.bf16.msra.mxu0 0
        %4663 = vmatprep.subr.bf16.mxu0 0
        %4664 = vmatpush1.bf16.msra.mxu0 0
        %4665 = vmatprep.subr.bf16.mxu0 0
        %4666 = vmatpush1.bf16.msra.mxu0 0
        %4667 = vmatprep.subr.bf16.mxu0 0
        %4668 = vmatpush1.bf16.msra.mxu0 0
        %4669 = vmatprep.subr.bf16.mxu0 0
        %4670 = vmatpush1.bf16.msra.mxu0 0
        %4671 = vmatprep.subr.bf16.mxu0 0
        %4672 = vmatpush1.bf16.msra.mxu0 0
        %4673 = vmatprep.mubr.bf16.mxu0 0
        %4674 = vmatmul.mubr.bf16.gmra.mrb[0].mxu0 %v4639
        %v4675 = vpop.f32.mrb[0].mxu0
        %v4676 = vadd.f32 0.0, %v4675
        %v4677 = vpop.f32.mrb[0].mxu0
        %v4678 = vpop.f32.mrb[0].mxu0
        %v4679 = vpop.f32.mrb[0].mxu0
        %4680 = vdwg.mxu0
        %4682 = vrot.lane.b32.xlu0 %v4676, 16
        %v4683 = vpop.permute.xlu0 %4682
        %4685 = vst.msk [vmem:[#allocation2] sm:$0xff] %vm1808, %v4683
        %4686 = vrot.lane.b32.xlu0 %v4351, 104
        %v4687 = vpop.permute.xlu0 %4686
        %4688 = vrot.lane.b32.xlu0 %v4352, 104
        %v4689 = vpop.permute.xlu0 %4688
        %v4691 = vsel %vm1469, %v4687, 0
        %v4694 = vsel %vm1469, %v4689, 0
        %4696 = vmatprep.subr.bf16.mxu0 0
        %4697 = vmatpush1.bf16.xpose.msra.mxu0 %v4694
        %4698 = vmatprep.subr.bf16.mxu0 0
        %4699 = vmatpush1.bf16.xpose.msra.mxu0 0
        %4700 = vmatprep.subr.bf16.mxu0 0
        %4701 = vmatpush1.bf16.xpose.msra.mxu0 0
        %4702 = vmatprep.subr.bf16.mxu0 0
        %4703 = vmatpush1.bf16.xpose.msra.mxu0 0
        %4704 = vmatprep.subr.bf16.mxu0 0
        %4705 = vmatpush1.bf16.xpose.msra.mxu0 0
        %4706 = vmatprep.subr.bf16.mxu0 0
        %4707 = vmatpush1.bf16.xpose.msra.mxu0 0
        %4708 = vmatprep.subr.bf16.mxu0 0
        %4709 = vmatpush1.bf16.xpose.msra.mxu0 0
        %4710 = vmatprep.subr.bf16.mxu0 0
        %4711 = vmatpush1.bf16.xpose.msra.mxu0 0
        %4712 = vmatprep.subr.bf16.mxu0 0
        %4713 = vmatpush1.bf16.xpose.msra.mxu0 0
        %4714 = vmatprep.subr.bf16.mxu0 0
        %4715 = vmatpush1.bf16.xpose.msra.mxu0 0
        %4716 = vmatprep.subr.bf16.mxu0 0
        %4717 = vmatpush1.bf16.xpose.msra.mxu0 0
        %4718 = vmatprep.subr.bf16.mxu0 0
        %4719 = vmatpush1.bf16.xpose.msra.mxu0 0
        %4720 = vmatprep.subr.bf16.mxu0 0
        %4721 = vmatpush1.bf16.xpose.msra.mxu0 0
        %4722 = vmatprep.subr.bf16.mxu0 0
        %4723 = vmatpush1.bf16.xpose.msra.mxu0 0
        %4724 = vmatprep.subr.bf16.mxu0 0
        %4725 = vmatpush1.bf16.xpose.msra.mxu0 0
        %4726 = vmatprep.subr.bf16.mxu0 0
        %4727 = vmatpush1.bf16.xpose.msra.mxu0 0
        %4728 = vmatprep.mubr.bf16.mxu0 0
        %4729 = vmatmul.mubr.bf16.gmra.mrb[0].mxu0 %v4691
        %v4730 = vpop.f32.mrb[0].mxu0
        %v4731 = vadd.f32 %v1353, %v4730
        %v4732 = vpop.f32.mrb[0].mxu0
        %v4733 = vpop.f32.mrb[0].mxu0
        %v4734 = vpop.f32.mrb[0].mxu0
        %4735 = vdwg.mxu0
        %v4736 = vsel %vm2208, %v4731, -inf
        %4737 = vmax.xlane.f32.xlu0 %v4736
        %v4738 = vpop.xlane.xlu0 %4737
        %v4739 = vsub.f32 %v4731, %v4738
        %v4740 = vmul.f32 %v4739, 1.442695
        %v4741 = vpow.pop %v4740
        %v4742 = vsel %vm2208, %v4741, 0.0
        %4743 = vadd.xlane.f32.xlu0 %v4742
        %v4744 = vpop.xlane.xlu0 %4743
        %v4745 = vrcp.pop %v4744
        %v4746 = vmul.f32 %v4741, %v4745
        %v4747 = vpack.c.bf16 %v4746, %v4746
        %4748 = vrot.lane.b32.xlu0 %v4352, 72
        %v4749 = vpop.permute.xlu0 %4748
        %v4752 = vsel %vm2208, %v4747, 0
        %4754 = vmatprep.subr.bf16.mxu0 0
        %4755 = vmatpush1.bf16.msra.mxu0 %v4749
        %4756 = vmatprep.subr.bf16.mxu0 0
        %4757 = vmatpush1.bf16.msra.mxu0 0
        %4758 = vmatprep.subr.bf16.mxu0 0
        %4759 = vmatpush1.bf16.msra.mxu0 0
        %4760 = vmatprep.subr.bf16.mxu0 0
        %4761 = vmatpush1.bf16.msra.mxu0 0
        %4762 = vmatprep.subr.bf16.mxu0 0
        %4763 = vmatpush1.bf16.msra.mxu0 0
        %4764 = vmatprep.subr.bf16.mxu0 0
        %4765 = vmatpush1.bf16.msra.mxu0 0
        %4766 = vmatprep.subr.bf16.mxu0 0
        %4767 = vmatpush1.bf16.msra.mxu0 0
        %4768 = vmatprep.subr.bf16.mxu0 0
        %4769 = vmatpush1.bf16.msra.mxu0 0
        %4770 = vmatprep.subr.bf16.mxu0 0
        %4771 = vmatpush1.bf16.msra.mxu0 0
        %4772 = vmatprep.subr.bf16.mxu0 0
        %4773 = vmatpush1.bf16.msra.mxu0 0
        %4774 = vmatprep.subr.bf16.mxu0 0
        %4775 = vmatpush1.bf16.msra.mxu0 0
        %4776 = vmatprep.subr.bf16.mxu0 0
        %4777 = vmatpush1.bf16.msra.mxu0 0
        %4778 = vmatprep.subr.bf16.mxu0 0
        %4779 = vmatpush1.bf16.msra.mxu0 0
        %4780 = vmatprep.subr.bf16.mxu0 0
        %4781 = vmatpush1.bf16.msra.mxu0 0
        %4782 = vmatprep.subr.bf16.mxu0 0
        %4783 = vmatpush1.bf16.msra.mxu0 0
        %4784 = vmatprep.subr.bf16.mxu0 0
        %4785 = vmatpush1.bf16.msra.mxu0 0
        %4786 = vmatprep.mubr.bf16.mxu0 0
        %4787 = vmatmul.mubr.bf16.gmra.mrb[0].mxu0 %v4752
        %v4788 = vpop.f32.mrb[0].mxu0
        %v4789 = vadd.f32 0.0, %v4788
        %v4790 = vpop.f32.mrb[0].mxu0
        %v4791 = vpop.f32.mrb[0].mxu0
        %v4792 = vpop.f32.mrb[0].mxu0
        %4793 = vdwg.mxu0
        %4795 = vrot.lane.b32.xlu0 %v4789, 24
        %v4796 = vpop.permute.xlu0 %4795
        %4798 = vst.msk [vmem:[#allocation2] sm:$0xff] %vm1924, %v4796
        %v4799 = vld [vmem:[#allocation2] sm:$0xff]
        %v4800 = vpack.c.bf16 %v4799, %v4799
        %s4801 = scalar_lea.vmem [#allocation15], 16
        %v4802 = vld [vmem:[%s4801] sm:$0xf]
        %v4803 = vld [vmem:[%s4801 + $0x4] sm:$0xf]
        %v4804 = vld [vmem:[%s4801 + $0x8] sm:$0xf]
        %v4805 = vld [vmem:[%s4801 + $0xc] sm:$0xf]
        %v4810 = vunpack.c.l.b16 %v4802
        %v4811 = vunpack.c.l.b16 %v4803
        %v4812 = vunpack.c.l.b16 %v4804
        %v4813 = vunpack.c.l.b16 %v4805
        %v4814 = vpack.c.b16 %v4811, %v4810
        %v4815 = vpack.c.b16 %v4813, %v4812
        %v4819 = vsel %vm1366, %v4800, 0
        %4821 = vmatprep.subr.bf16.mxu0 0
        %4822 = vmatpush1.bf16.msra.mxu0 %v4814
        %4823 = vmatprep.subr.bf16.mxu0 0
        %4824 = vmatpush1.bf16.msra.mxu0 %v4815
        %4825 = vmatprep.subr.bf16.mxu0 0
        %4826 = vmatpush1.bf16.msra.mxu0 0
        %4827 = vmatprep.subr.bf16.mxu0 0
        %4828 = vmatpush1.bf16.msra.mxu0 0
        %4829 = vmatprep.subr.bf16.mxu0 0
        %4830 = vmatpush1.bf16.msra.mxu0 0
        %4831 = vmatprep.subr.bf16.mxu0 0
        %4832 = vmatpush1.bf16.msra.mxu0 0
        %4833 = vmatprep.subr.bf16.mxu0 0
        %4834 = vmatpush1.bf16.msra.mxu0 0
        %4835 = vmatprep.subr.bf16.mxu0 0
        %4836 = vmatpush1.bf16.msra.mxu0 0
        %4837 = vmatprep.subr.bf16.mxu0 0
        %4838 = vmatpush1.bf16.msra.mxu0 0
        %4839 = vmatprep.subr.bf16.mxu0 0
        %4840 = vmatpush1.bf16.msra.mxu0 0
        %4841 = vmatprep.subr.bf16.mxu0 0
        %4842 = vmatpush1.bf16.msra.mxu0 0
        %4843 = vmatprep.subr.bf16.mxu0 0
        %4844 = vmatpush1.bf16.msra.mxu0 0
        %4845 = vmatprep.subr.bf16.mxu0 0
        %4846 = vmatpush1.bf16.msra.mxu0 0
        %4847 = vmatprep.subr.bf16.mxu0 0
        %4848 = vmatpush1.bf16.msra.mxu0 0
        %4849 = vmatprep.subr.bf16.mxu0 0
        %4850 = vmatpush1.bf16.msra.mxu0 0
        %4851 = vmatprep.subr.bf16.mxu0 0
        %4852 = vmatpush1.bf16.msra.mxu0 0
        %4853 = vmatprep.mubr.bf16.mxu0 0
        %4854 = vmatmul.mubr.bf16.gmra.mrb[0].mxu0 %v4819
        %v4855 = vpop.f32.mrb[0].mxu0
        %v4856 = vadd.f32 0.0, %v4855
        %v4857 = vpop.f32.mrb[0].mxu0
        %v4858 = vpop.f32.mrb[0].mxu0
        %v4859 = vpop.f32.mrb[0].mxu0
        %4860 = vdwg.mxu0
        %v4861 = vadd.f32 %v4185, %v4856
        %s4862 = scalar_lea.vmem [#allocation17], 1
        %v4863 = vld [vmem:[%s4862] sm:$0x1]
        %v4865 = vlaneseq
        %v4866 = vshrl.u32 %v4865, 7
        %v4867 = vsub.s32 0, %v4866
        %v4868 = vrot.slane %v4863, %v4867
        %v4870 = vadd.f32 %v4861, %v4868
        %v4871 = vsel %vm1366, %v4870, 0.0
        %4872 = vadd.xlane.f32.xlu0 %v4871
        %v4873 = vpop.xlane.xlu0 %4872
        %v4874 = vmul.f32 %v4873, %v1370
        %v4875 = vsub.f32 %v4870, %v4874
        %v4876 = vmul.f32 %v4875, %v4875
        %v4877 = vsel %vm1366, %v4876, 0.0
        %4878 = vadd.xlane.f32.xlu0 %v4877
        %v4879 = vpop.xlane.xlu0 %4878
        %v4880 = vmul.f32 %v4879, 0.032258064
        %v4881 = vlaneseq
        %v4882 = vshrl.u32 %v4881, 7
        %v4883 = vsub.s32 2, %v4882
        %v4884 = vrot.slane %v3556, %v4883
        %v4885 = vmul.f32 %v4884, %v4875
        %v4886 = vrsqrt.pop %v4880
        %v4887 = vmul.f32 %v4880, %v4886
        %vm4888 = vcmp.eq.f32.partialorder %v4880, inf
        %v4889 = vsel %vm4888, %v4880, %v4887
        %vm4890 = vcmp.eq.f32.partialorder %v4880, 0.0
        %v4891 = vand.u32 %v4880, 2147483648
        %v4892 = vsel %vm4890, %v4891, %v4889
        %v4893 = vadd.f32 %v4892, 1e-06
        %v4894 = vrcp.pop %v4893
        %v4895 = vmul.f32 %v4885, %v4894
        %v4896 = vlaneseq
        %v4897 = vshrl.u32 %v4896, 7
        %v4898 = vsub.s32 2, %v4897
        %v4899 = vrot.slane %v3558, %v4898
        %v4900 = vadd.f32 %v4895, %v4899
        %v4901 = vpack.c.bf16 %v4900, %v4900
        %s4902 = scalar_lea.vmem %s33, 16
        %v4903 = vld [vmem:[%s4902] sm:$0xf]
        %v4904 = vld [vmem:[%s4902 + $0x4] sm:$0xf]
        %v4905 = vld [vmem:[%s4902 + $0x8] sm:$0xf]
        %v4906 = vld [vmem:[%s4902 + $0xc] sm:$0xf]
        %s4907 = scalar_lea.vmem [#allocation18], 1
        %v4908 = vld [vmem:[%s4907] sm:$0x1]
        %v4910 = vlaneseq
        %v4911 = vshrl.u32 %v4910, 7
        %v4912 = vsub.s32 0, %v4911
        %v4913 = vrot.slane %v4908, %v4912
        %v4919 = vunpack.c.l.b16 %v4903
        %v4920 = vunpack.c.l.b16 %v4904
        %v4921 = vunpack.c.l.b16 %v4905
        %v4922 = vunpack.c.l.b16 %v4906
        %v4923 = vpack.c.b16 %v4920, %v4919
        %v4924 = vpack.c.b16 %v4922, %v4921
        %v4928 = vsel %vm1366, %v4901, 0
        %4930 = vmatprep.subr.bf16.mxu0 0
        %4931 = vmatpush1.bf16.msra.mxu0 %v4923
        %4932 = vmatprep.subr.bf16.mxu0 0
        %4933 = vmatpush1.bf16.msra.mxu0 %v4924
        %4934 = vmatprep.subr.bf16.mxu0 0
        %4935 = vmatpush1.bf16.msra.mxu0 0
        %4936 = vmatprep.subr.bf16.mxu0 0
        %4937 = vmatpush1.bf16.msra.mxu0 0
        %4938 = vmatprep.subr.bf16.mxu0 0
        %4939 = vmatpush1.bf16.msra.mxu0 0
        %4940 = vmatprep.subr.bf16.mxu0 0
        %4941 = vmatpush1.bf16.msra.mxu0 0
        %4942 = vmatprep.subr.bf16.mxu0 0
        %4943 = vmatpush1.bf16.msra.mxu0 0
        %4944 = vmatprep.subr.bf16.mxu0 0
        %4945 = vmatpush1.bf16.msra.mxu0 0
        %4946 = vmatprep.subr.bf16.mxu0 0
        %4947 = vmatpush1.bf16.msra.mxu0 0
        %4948 = vmatprep.subr.bf16.mxu0 0
        %4949 = vmatpush1.bf16.msra.mxu0 0
        %4950 = vmatprep.subr.bf16.mxu0 0
        %4951 = vmatpush1.bf16.msra.mxu0 0
        %4952 = vmatprep.subr.bf16.mxu0 0
        %4953 = vmatpush1.bf16.msra.mxu0 0
        %4954 = vmatprep.subr.bf16.mxu0 0
        %4955 = vmatpush1.bf16.msra.mxu0 0
        %4956 = vmatprep.subr.bf16.mxu0 0
        %4957 = vmatpush1.bf16.msra.mxu0 0
        %4958 = vmatprep.subr.bf16.mxu0 0
        %4959 = vmatpush1.bf16.msra.mxu0 0
        %4960 = vmatprep.subr.bf16.mxu0 0
        %4961 = vmatpush1.bf16.msra.mxu0 0
        %4962 = vmatprep.mubr.bf16.mxu0 0
        %4963 = vmatmul.mubr.bf16.gmra.mrb[0].mxu0 %v4928
        %v4964 = vpop.f32.mrb[0].mxu0
        %v4965 = vadd.f32 %v4913, %v4964
        %v4966 = vpop.f32.mrb[0].mxu0
        %v4967 = vpop.f32.mrb[0].mxu0
        %v4968 = vpop.f32.mrb[0].mxu0
        %4969 = vdwg.mxu0
        %s4970 = scalar_lea.vmem [#allocation20], 16
        %v4971 = vld [vmem:[%s4970] sm:$0xf]
        %v4972 = vld [vmem:[%s4970 + $0x4] sm:$0xf]
        %v4973 = vld [vmem:[%s4970 + $0x8] sm:$0xf]
        %v4974 = vld [vmem:[%s4970 + $0xc] sm:$0xf]
        %s4975 = scalar_lea.vmem [#allocation21], 1
        %v4976 = vld [vmem:[%s4975] sm:$0x1]
        %v4978 = vlaneseq
        %v4979 = vshrl.u32 %v4978, 7
        %v4980 = vsub.s32 0, %v4979
        %v4981 = vrot.slane %v4976, %v4980
        %v4987 = vunpack.c.l.b16 %v4971
        %v4988 = vunpack.c.l.b16 %v4972
        %v4989 = vunpack.c.l.b16 %v4973
        %v4990 = vunpack.c.l.b16 %v4974
        %v4991 = vpack.c.b16 %v4988, %v4987
        %v4992 = vpack.c.b16 %v4990, %v4989
        %4995 = vmatprep.subr.bf16.mxu0 0
        %4996 = vmatpush1.bf16.msra.mxu0 %v4991
        %4997 = vmatprep.subr.bf16.mxu0 0
        %4998 = vmatpush1.bf16.msra.mxu0 %v4992
        %4999 = vmatprep.subr.bf16.mxu0 0
        %5000 = vmatpush1.bf16.msra.mxu0 0
        %5001 = vmatprep.subr.bf16.mxu0 0
        %5002 = vmatpush1.bf16.msra.mxu0 0
        %5003 = vmatprep.subr.bf16.mxu0 0
        %5004 = vmatpush1.bf16.msra.mxu0 0
        %5005 = vmatprep.subr.bf16.mxu0 0
        %5006 = vmatpush1.bf16.msra.mxu0 0
        %5007 = vmatprep.subr.bf16.mxu0 0
        %5008 = vmatpush1.bf16.msra.mxu0 0
        %5009 = vmatprep.subr.bf16.mxu0 0
        %5010 = vmatpush1.bf16.msra.mxu0 0
        %5011 = vmatprep.subr.bf16.mxu0 0
        %5012 = vmatpush1.bf16.msra.mxu0 0
        %5013 = vmatprep.subr.bf16.mxu0 0
        %5014 = vmatpush1.bf16.msra.mxu0 0
        %5015 = vmatprep.subr.bf16.mxu0 0
        %5016 = vmatpush1.bf16.msra.mxu0 0
        %5017 = vmatprep.subr.bf16.mxu0 0
        %5018 = vmatpush1.bf16.msra.mxu0 0
        %5019 = vmatprep.subr.bf16.mxu0 0
        %5020 = vmatpush1.bf16.msra.mxu0 0
        %5021 = vmatprep.subr.bf16.mxu0 0
        %5022 = vmatpush1.bf16.msra.mxu0 0
        %5023 = vmatprep.subr.bf16.mxu0 0
        %5024 = vmatpush1.bf16.msra.mxu0 0
        %5025 = vmatprep.subr.bf16.mxu0 0
        %5026 = vmatpush1.bf16.msra.mxu0 0
        %5027 = vmatprep.mubr.bf16.mxu0 0
        %5028 = vmatmul.mubr.bf16.gmra.mrb[0].mxu0 %v2800
        %v5029 = vpop.f32.mrb[0].mxu0
        %v5030 = vadd.f32 %v4981, %v5029
        %v5031 = vpop.f32.mrb[0].mxu0
        %v5032 = vpop.f32.mrb[0].mxu0
        %v5033 = vadd.f32 %v4981, %v5032
        %v5034 = vpop.f32.mrb[0].mxu0
        %5035 = vdwg.mxu0
        %v5036 = vpack.c.bf16 %v4965, %v4965
        %v5037 = vpack.c.bf16 %v5033, %v5030
        %v5039 = vsel %vm1469, %v5036, 0
        %v5042 = vsel %vm1469, %v5037, 0
        %5044 = vmatprep.subr.bf16.mxu0 0
        %5045 = vmatpush1.bf16.xpose.msra.mxu0 %v5042
        %5046 = vmatprep.subr.bf16.mxu0 0
        %5047 = vmatpush1.bf16.xpose.msra.mxu0 0
        %5048 = vmatprep.subr.bf16.mxu0 0
        %5049 = vmatpush1.bf16.xpose.msra.mxu0 0
        %5050 = vmatprep.subr.bf16.mxu0 0
        %5051 = vmatpush1.bf16.xpose.msra.mxu0 0
        %5052 = vmatprep.subr.bf16.mxu0 0
        %5053 = vmatpush1.bf16.xpose.msra.mxu0 0
        %5054 = vmatprep.subr.bf16.mxu0 0
        %5055 = vmatpush1.bf16.xpose.msra.mxu0 0
        %5056 = vmatprep.subr.bf16.mxu0 0
        %5057 = vmatpush1.bf16.xpose.msra.mxu0 0
        %5058 = vmatprep.subr.bf16.mxu0 0
        %5059 = vmatpush1.bf16.xpose.msra.mxu0 0
        %5060 = vmatprep.subr.bf16.mxu0 0
        %5061 = vmatpush1.bf16.xpose.msra.mxu0 0
        %5062 = vmatprep.subr.bf16.mxu0 0
        %5063 = vmatpush1.bf16.xpose.msra.mxu0 0
        %5064 = vmatprep.subr.bf16.mxu0 0
        %5065 = vmatpush1.bf16.xpose.msra.mxu0 0
        %5066 = vmatprep.subr.bf16.mxu0 0
        %5067 = vmatpush1.bf16.xpose.msra.mxu0 0
        %5068 = vmatprep.subr.bf16.mxu0 0
        %5069 = vmatpush1.bf16.xpose.msra.mxu0 0
        %5070 = vmatprep.subr.bf16.mxu0 0
        %5071 = vmatpush1.bf16.xpose.msra.mxu0 0
        %5072 = vmatprep.subr.bf16.mxu0 0
        %5073 = vmatpush1.bf16.xpose.msra.mxu0 0
        %5074 = vmatprep.subr.bf16.mxu0 0
        %5075 = vmatpush1.bf16.xpose.msra.mxu0 0
        %5076 = vmatprep.mubr.bf16.mxu0 0
        %5077 = vmatmul.mubr.bf16.gmra.mrb[0].mxu0 %v5039
        %v5078 = vpop.f32.mrb[0].mxu0
        %v5079 = vadd.f32 %v1362, %v5078
        %v5080 = vpop.f32.mrb[0].mxu0
        %v5081 = vpop.f32.mrb[0].mxu0
        %v5082 = vpop.f32.mrb[0].mxu0
        %5083 = vdwg.mxu0
        %v5084 = vsel %vm2891, %v5079, -inf
        %5085 = vmax.xlane.f32.xlu0 %v5084
        %v5086 = vpop.xlane.xlu0 %5085
        %v5087 = vsub.f32 %v5079, %v5086
        %v5088 = vmul.f32 %v5087, 1.442695
        %v5089 = vpow.pop %v5088
        %v5090 = vsel %vm2891, %v5089, 0.0
        %5091 = vadd.xlane.f32.xlu0 %v5090
        %v5092 = vpop.xlane.xlu0 %5091
        %v5093 = vrcp.pop %v5092
        %v5094 = vmul.f32 %v5089, %v5093
        %v5095 = vpack.c.bf16 %v5094, %v5094
        %5097 = vrot.lane.b32.xlu0 %v5037, 96
        %v5098 = vpop.permute.xlu0 %5097
        %v5100 = vsel %vm2891, %v5095, 0
        %v5103 = vsel %vm2910, %v5098, 0
        %5105 = vmatprep.subr.bf16.mxu0 0
        %5106 = vmatpush1.bf16.msra.mxu0 %v5103
        %5107 = vmatprep.subr.bf16.mxu0 0
        %5108 = vmatpush1.bf16.msra.mxu0 0
        %5109 = vmatprep.subr.bf16.mxu0 0
        %5110 = vmatpush1.bf16.msra.mxu0 0
        %5111 = vmatprep.subr.bf16.mxu0 0
        %5112 = vmatpush1.bf16.msra.mxu0 0
        %5113 = vmatprep.subr.bf16.mxu0 0
        %5114 = vmatpush1.bf16.msra.mxu0 0
        %5115 = vmatprep.subr.bf16.mxu0 0
        %5116 = vmatpush1.bf16.msra.mxu0 0
        %5117 = vmatprep.subr.bf16.mxu0 0
        %5118 = vmatpush1.bf16.msra.mxu0 0
        %5119 = vmatprep.subr.bf16.mxu0 0
        %5120 = vmatpush1.bf16.msra.mxu0 0
        %5121 = vmatprep.subr.bf16.mxu0 0
        %5122 = vmatpush1.bf16.msra.mxu0 0
        %5123 = vmatprep.subr.bf16.mxu0 0
        %5124 = vmatpush1.bf16.msra.mxu0 0
        %5125 = vmatprep.subr.bf16.mxu0 0
        %5126 = vmatpush1.bf16.msra.mxu0 0
        %5127 = vmatprep.subr.bf16.mxu0 0
        %5128 = vmatpush1.bf16.msra.mxu0 0
        %5129 = vmatprep.subr.bf16.mxu0 0
        %5130 = vmatpush1.bf16.msra.mxu0 0
        %5131 = vmatprep.subr.bf16.mxu0 0
        %5132 = vmatpush1.bf16.msra.mxu0 0
        %5133 = vmatprep.subr.bf16.mxu0 0
        %5134 = vmatpush1.bf16.msra.mxu0 0
        %5135 = vmatprep.subr.bf16.mxu0 0
        %5136 = vmatpush1.bf16.msra.mxu0 0
        %5137 = vmatprep.mubr.bf16.mxu0 0
        %5138 = vmatmul.mubr.bf16.gmra.mrb[0].mxu0 %v5100
        %v5139 = vpop.f32.mrb[0].mxu0
        %v5140 = vadd.f32 0.0, %v5139
        %v5141 = vpop.f32.mrb[0].mxu0
        %v5142 = vpop.f32.mrb[0].mxu0
        %v5143 = vpop.f32.mrb[0].mxu0
        %5144 = vdwg.mxu0
        %5145 = vst.msk [vmem:[#allocation2] sm:$0xff] %vm1469, %v5140
        %5147 = vrot.lane.b32.xlu0 %v5036, 120
        %v5148 = vpop.permute.xlu0 %5147
        %5149 = vrot.lane.b32.xlu0 %v5037, 120
        %v5150 = vpop.permute.xlu0 %5149
        %v5152 = vsel %vm1469, %v5148, 0
        %v5155 = vsel %vm1469, %v5150, 0
        %5157 = vmatprep.subr.bf16.mxu0 0
        %5158 = vmatpush1.bf16.xpose.msra.mxu0 %v5155
        %5159 = vmatprep.subr.bf16.mxu0 0
        %5160 = vmatpush1.bf16.xpose.msra.mxu0 0
        %5161 = vmatprep.subr.bf16.mxu0 0
        %5162 = vmatpush1.bf16.xpose.msra.mxu0 0
        %5163 = vmatprep.subr.bf16.mxu0 0
        %5164 = vmatpush1.bf16.xpose.msra.mxu0 0
        %5165 = vmatprep.subr.bf16.mxu0 0
        %5166 = vmatpush1.bf16.xpose.msra.mxu0 0
        %5167 = vmatprep.subr.bf16.mxu0 0
        %5168 = vmatpush1.bf16.xpose.msra.mxu0 0
        %5169 = vmatprep.subr.bf16.mxu0 0
        %5170 = vmatpush1.bf16.xpose.msra.mxu0 0
        %5171 = vmatprep.subr.bf16.mxu0 0
        %5172 = vmatpush1.bf16.xpose.msra.mxu0 0
        %5173 = vmatprep.subr.bf16.mxu0 0
        %5174 = vmatpush1.bf16.xpose.msra.mxu0 0
        %5175 = vmatprep.subr.bf16.mxu0 0
        %5176 = vmatpush1.bf16.xpose.msra.mxu0 0
        %5177 = vmatprep.subr.bf16.mxu0 0
        %5178 = vmatpush1.bf16.xpose.msra.mxu0 0
        %5179 = vmatprep.subr.bf16.mxu0 0
        %5180 = vmatpush1.bf16.xpose.msra.mxu0 0
        %5181 = vmatprep.subr.bf16.mxu0 0
        %5182 = vmatpush1.bf16.xpose.msra.mxu0 0
        %5183 = vmatprep.subr.bf16.mxu0 0
        %5184 = vmatpush1.bf16.xpose.msra.mxu0 0
        %5185 = vmatprep.subr.bf16.mxu0 0
        %5186 = vmatpush1.bf16.xpose.msra.mxu0 0
        %5187 = vmatprep.subr.bf16.mxu0 0
        %5188 = vmatpush1.bf16.xpose.msra.mxu0 0
        %5189 = vmatprep.mubr.bf16.mxu0 0
        %5190 = vmatmul.mubr.bf16.gmra.mrb[0].mxu0 %v5152
        %v5191 = vpop.f32.mrb[0].mxu0
        %v5192 = vadd.f32 %v1362, %v5191
        %v5193 = vpop.f32.mrb[0].mxu0
        %v5194 = vpop.f32.mrb[0].mxu0
        %v5195 = vpop.f32.mrb[0].mxu0
        %5196 = vdwg.mxu0
        %v5197 = vsel %vm2891, %v5192, -inf
        %5198 = vmax.xlane.f32.xlu0 %v5197
        %v5199 = vpop.xlane.xlu0 %5198
        %v5200 = vsub.f32 %v5192, %v5199
        %v5201 = vmul.f32 %v5200, 1.442695
        %v5202 = vpow.pop %v5201
        %v5203 = vsel %vm2891, %v5202, 0.0
        %5204 = vadd.xlane.f32.xlu0 %v5203
        %v5205 = vpop.xlane.xlu0 %5204
        %v5206 = vrcp.pop %v5205
        %v5207 = vmul.f32 %v5202, %v5206
        %v5208 = vpack.c.bf16 %v5207, %v5207
        %5209 = vrot.lane.b32.xlu0 %v5037, 88
        %v5210 = vpop.permute.xlu0 %5209
        %v5212 = vsel %vm2891, %v5208, 0
        %v5215 = vsel %vm2910, %v5210, 0
        %5217 = vmatprep.subr.bf16.mxu0 0
        %5218 = vmatpush1.bf16.msra.mxu0 %v5215
        %5219 = vmatprep.subr.bf16.mxu0 0
        %5220 = vmatpush1.bf16.msra.mxu0 0
        %5221 = vmatprep.subr.bf16.mxu0 0
        %5222 = vmatpush1.bf16.msra.mxu0 0
        %5223 = vmatprep.subr.bf16.mxu0 0
        %5224 = vmatpush1.bf16.msra.mxu0 0
        %5225 = vmatprep.subr.bf16.mxu0 0
        %5226 = vmatpush1.bf16.msra.mxu0 0
        %5227 = vmatprep.subr.bf16.mxu0 0
        %5228 = vmatpush1.bf16.msra.mxu0 0
        %5229 = vmatprep.subr.bf16.mxu0 0
        %5230 = vmatpush1.bf16.msra.mxu0 0
        %5231 = vmatprep.subr.bf16.mxu0 0
        %5232 = vmatpush1.bf16.msra.mxu0 0
        %5233 = vmatprep.subr.bf16.mxu0 0
        %5234 = vmatpush1.bf16.msra.mxu0 0
        %5235 = vmatprep.subr.bf16.mxu0 0
        %5236 = vmatpush1.bf16.msra.mxu0 0
        %5237 = vmatprep.subr.bf16.mxu0 0
        %5238 = vmatpush1.bf16.msra.mxu0 0
        %5239 = vmatprep.subr.bf16.mxu0 0
        %5240 = vmatpush1.bf16.msra.mxu0 0
        %5241 = vmatprep.subr.bf16.mxu0 0
        %5242 = vmatpush1.bf16.msra.mxu0 0
        %5243 = vmatprep.subr.bf16.mxu0 0
        %5244 = vmatpush1.bf16.msra.mxu0 0
        %5245 = vmatprep.subr.bf16.mxu0 0
        %5246 = vmatpush1.bf16.msra.mxu0 0
        %5247 = vmatprep.subr.bf16.mxu0 0
        %5248 = vmatpush1.bf16.msra.mxu0 0
        %5249 = vmatprep.mubr.bf16.mxu0 0
        %5250 = vmatmul.mubr.bf16.gmra.mrb[0].mxu0 %v5212
        %v5251 = vpop.f32.mrb[0].mxu0
        %v5252 = vadd.f32 0.0, %v5251
        %v5253 = vpop.f32.mrb[0].mxu0
        %v5254 = vpop.f32.mrb[0].mxu0
        %v5255 = vpop.f32.mrb[0].mxu0
        %5256 = vdwg.mxu0
        %5258 = vrot.lane.b32.xlu0 %v5252, 8
        %v5259 = vpop.permute.xlu0 %5258
        %5261 = vst.msk [vmem:[#allocation2] sm:$0xff] %vm1692, %v5259
        %5262 = vrot.lane.b32.xlu0 %v5036, 112
        %v5263 = vpop.permute.xlu0 %5262
        %5264 = vrot.lane.b32.xlu0 %v5037, 112
        %v5265 = vpop.permute.xlu0 %5264
        %v5267 = vsel %vm1469, %v5263, 0
        %v5270 = vsel %vm1469, %v5265, 0
        %5272 = vmatprep.subr.bf16.mxu0 0
        %5273 = vmatpush1.bf16.xpose.msra.mxu0 %v5270
        %5274 = vmatprep.subr.bf16.mxu0 0
        %5275 = vmatpush1.bf16.xpose.msra.mxu0 0
        %5276 = vmatprep.subr.bf16.mxu0 0
        %5277 = vmatpush1.bf16.xpose.msra.mxu0 0
        %5278 = vmatprep.subr.bf16.mxu0 0
        %5279 = vmatpush1.bf16.xpose.msra.mxu0 0
        %5280 = vmatprep.subr.bf16.mxu0 0
        %5281 = vmatpush1.bf16.xpose.msra.mxu0 0
        %5282 = vmatprep.subr.bf16.mxu0 0
        %5283 = vmatpush1.bf16.xpose.msra.mxu0 0
        %5284 = vmatprep.subr.bf16.mxu0 0
        %5285 = vmatpush1.bf16.xpose.msra.mxu0 0
        %5286 = vmatprep.subr.bf16.mxu0 0
        %5287 = vmatpush1.bf16.xpose.msra.mxu0 0
        %5288 = vmatprep.subr.bf16.mxu0 0
        %5289 = vmatpush1.bf16.xpose.msra.mxu0 0
        %5290 = vmatprep.subr.bf16.mxu0 0
        %5291 = vmatpush1.bf16.xpose.msra.mxu0 0
        %5292 = vmatprep.subr.bf16.mxu0 0
        %5293 = vmatpush1.bf16.xpose.msra.mxu0 0
        %5294 = vmatprep.subr.bf16.mxu0 0
        %5295 = vmatpush1.bf16.xpose.msra.mxu0 0
        %5296 = vmatprep.subr.bf16.mxu0 0
        %5297 = vmatpush1.bf16.xpose.msra.mxu0 0
        %5298 = vmatprep.subr.bf16.mxu0 0
        %5299 = vmatpush1.bf16.xpose.msra.mxu0 0
        %5300 = vmatprep.subr.bf16.mxu0 0
        %5301 = vmatpush1.bf16.xpose.msra.mxu0 0
        %5302 = vmatprep.subr.bf16.mxu0 0
        %5303 = vmatpush1.bf16.xpose.msra.mxu0 0
        %5304 = vmatprep.mubr.bf16.mxu0 0
        %5305 = vmatmul.mubr.bf16.gmra.mrb[0].mxu0 %v5267
        %v5306 = vpop.f32.mrb[0].mxu0
        %v5307 = vadd.f32 %v1362, %v5306
        %v5308 = vpop.f32.mrb[0].mxu0
        %v5309 = vpop.f32.mrb[0].mxu0
        %v5310 = vpop.f32.mrb[0].mxu0
        %5311 = vdwg.mxu0
        %v5312 = vsel %vm2891, %v5307, -inf
        %5313 = vmax.xlane.f32.xlu0 %v5312
        %v5314 = vpop.xlane.xlu0 %5313
        %v5315 = vsub.f32 %v5307, %v5314
        %v5316 = vmul.f32 %v5315, 1.442695
        %v5317 = vpow.pop %v5316
        %v5318 = vsel %vm2891, %v5317, 0.0
        %5319 = vadd.xlane.f32.xlu0 %v5318
        %v5320 = vpop.xlane.xlu0 %5319
        %v5321 = vrcp.pop %v5320
        %v5322 = vmul.f32 %v5317, %v5321
        %v5323 = vpack.c.bf16 %v5322, %v5322
        %5324 = vrot.lane.b32.xlu0 %v5037, 80
        %v5325 = vpop.permute.xlu0 %5324
        %v5327 = vsel %vm2891, %v5323, 0
        %v5330 = vsel %vm2910, %v5325, 0
        %5332 = vmatprep.subr.bf16.mxu0 0
        %5333 = vmatpush1.bf16.msra.mxu0 %v5330
        %5334 = vmatprep.subr.bf16.mxu0 0
        %5335 = vmatpush1.bf16.msra.mxu0 0
        %5336 = vmatprep.subr.bf16.mxu0 0
        %5337 = vmatpush1.bf16.msra.mxu0 0
        %5338 = vmatprep.subr.bf16.mxu0 0
        %5339 = vmatpush1.bf16.msra.mxu0 0
        %5340 = vmatprep.subr.bf16.mxu0 0
        %5341 = vmatpush1.bf16.msra.mxu0 0
        %5342 = vmatprep.subr.bf16.mxu0 0
        %5343 = vmatpush1.bf16.msra.mxu0 0
        %5344 = vmatprep.subr.bf16.mxu0 0
        %5345 = vmatpush1.bf16.msra.mxu0 0
        %5346 = vmatprep.subr.bf16.mxu0 0
        %5347 = vmatpush1.bf16.msra.mxu0 0
        %5348 = vmatprep.subr.bf16.mxu0 0
        %5349 = vmatpush1.bf16.msra.mxu0 0
        %5350 = vmatprep.subr.bf16.mxu0 0
        %5351 = vmatpush1.bf16.msra.mxu0 0
        %5352 = vmatprep.subr.bf16.mxu0 0
        %5353 = vmatpush1.bf16.msra.mxu0 0
        %5354 = vmatprep.subr.bf16.mxu0 0
        %5355 = vmatpush1.bf16.msra.mxu0 0
        %5356 = vmatprep.subr.bf16.mxu0 0
        %5357 = vmatpush1.bf16.msra.mxu0 0
        %5358 = vmatprep.subr.bf16.mxu0 0
        %5359 = vmatpush1.bf16.msra.mxu0 0
        %5360 = vmatprep.subr.bf16.mxu0 0
        %5361 = vmatpush1.bf16.msra.mxu0 0
        %5362 = vmatprep.subr.bf16.mxu0 0
        %5363 = vmatpush1.bf16.msra.mxu0 0
        %5364 = vmatprep.mubr.bf16.mxu0 0
        %5365 = vmatmul.mubr.bf16.gmra.mrb[0].mxu0 %v5327
        %v5366 = vpop.f32.mrb[0].mxu0
        %v5367 = vadd.f32 0.0, %v5366
        %v5368 = vpop.f32.mrb[0].mxu0
        %v5369 = vpop.f32.mrb[0].mxu0
        %v5370 = vpop.f32.mrb[0].mxu0
        %5371 = vdwg.mxu0
        %5373 = vrot.lane.b32.xlu0 %v5367, 16
        %v5374 = vpop.permute.xlu0 %5373
        %5376 = vst.msk [vmem:[#allocation2] sm:$0xff] %vm1808, %v5374
        %5377 = vrot.lane.b32.xlu0 %v5036, 104
        %v5378 = vpop.permute.xlu0 %5377
        %5379 = vrot.lane.b32.xlu0 %v5037, 104
        %v5380 = vpop.permute.xlu0 %5379
        %v5382 = vsel %vm1469, %v5378, 0
        %v5385 = vsel %vm1469, %v5380, 0
        %5387 = vmatprep.subr.bf16.mxu0 0
        %5388 = vmatpush1.bf16.xpose.msra.mxu0 %v5385
        %5389 = vmatprep.subr.bf16.mxu0 0
        %5390 = vmatpush1.bf16.xpose.msra.mxu0 0
        %5391 = vmatprep.subr.bf16.mxu0 0
        %5392 = vmatpush1.bf16.xpose.msra.mxu0 0
        %5393 = vmatprep.subr.bf16.mxu0 0
        %5394 = vmatpush1.bf16.xpose.msra.mxu0 0
        %5395 = vmatprep.subr.bf16.mxu0 0
        %5396 = vmatpush1.bf16.xpose.msra.mxu0 0
        %5397 = vmatprep.subr.bf16.mxu0 0
        %5398 = vmatpush1.bf16.xpose.msra.mxu0 0
        %5399 = vmatprep.subr.bf16.mxu0 0
        %5400 = vmatpush1.bf16.xpose.msra.mxu0 0
        %5401 = vmatprep.subr.bf16.mxu0 0
        %5402 = vmatpush1.bf16.xpose.msra.mxu0 0
        %5403 = vmatprep.subr.bf16.mxu0 0
        %5404 = vmatpush1.bf16.xpose.msra.mxu0 0
        %5405 = vmatprep.subr.bf16.mxu0 0
        %5406 = vmatpush1.bf16.xpose.msra.mxu0 0
        %5407 = vmatprep.subr.bf16.mxu0 0
        %5408 = vmatpush1.bf16.xpose.msra.mxu0 0
        %5409 = vmatprep.subr.bf16.mxu0 0
        %5410 = vmatpush1.bf16.xpose.msra.mxu0 0
        %5411 = vmatprep.subr.bf16.mxu0 0
        %5412 = vmatpush1.bf16.xpose.msra.mxu0 0
        %5413 = vmatprep.subr.bf16.mxu0 0
        %5414 = vmatpush1.bf16.xpose.msra.mxu0 0
        %5415 = vmatprep.subr.bf16.mxu0 0
        %5416 = vmatpush1.bf16.xpose.msra.mxu0 0
        %5417 = vmatprep.subr.bf16.mxu0 0
        %5418 = vmatpush1.bf16.xpose.msra.mxu0 0
        %5419 = vmatprep.mubr.bf16.mxu0 0
        %5420 = vmatmul.mubr.bf16.gmra.mrb[0].mxu0 %v5382
        %v5421 = vpop.f32.mrb[0].mxu0
        %v5422 = vadd.f32 %v1362, %v5421
        %v5423 = vpop.f32.mrb[0].mxu0
        %v5424 = vpop.f32.mrb[0].mxu0
        %v5425 = vpop.f32.mrb[0].mxu0
        %5426 = vdwg.mxu0
        %v5427 = vsel %vm2891, %v5422, -inf
        %5428 = vmax.xlane.f32.xlu0 %v5427
        %v5429 = vpop.xlane.xlu0 %5428
        %v5430 = vsub.f32 %v5422, %v5429
        %v5431 = vmul.f32 %v5430, 1.442695
        %v5432 = vpow.pop %v5431
        %v5433 = vsel %vm2891, %v5432, 0.0
        %5434 = vadd.xlane.f32.xlu0 %v5433
        %v5435 = vpop.xlane.xlu0 %5434
        %v5436 = vrcp.pop %v5435
        %v5437 = vmul.f32 %v5432, %v5436
        %v5438 = vpack.c.bf16 %v5437, %v5437
        %5439 = vrot.lane.b32.xlu0 %v5037, 72
        %v5440 = vpop.permute.xlu0 %5439
        %v5442 = vsel %vm2891, %v5438, 0
        %v5445 = vsel %vm2910, %v5440, 0
        %5447 = vmatprep.subr.bf16.mxu0 0
        %5448 = vmatpush1.bf16.msra.mxu0 %v5445
        %5449 = vmatprep.subr.bf16.mxu0 0
        %5450 = vmatpush1.bf16.msra.mxu0 0
        %5451 = vmatprep.subr.bf16.mxu0 0
        %5452 = vmatpush1.bf16.msra.mxu0 0
        %5453 = vmatprep.subr.bf16.mxu0 0
        %5454 = vmatpush1.bf16.msra.mxu0 0
        %5455 = vmatprep.subr.bf16.mxu0 0
        %5456 = vmatpush1.bf16.msra.mxu0 0
        %5457 = vmatprep.subr.bf16.mxu0 0
        %5458 = vmatpush1.bf16.msra.mxu0 0
        %5459 = vmatprep.subr.bf16.mxu0 0
        %5460 = vmatpush1.bf16.msra.mxu0 0
        %5461 = vmatprep.subr.bf16.mxu0 0
        %5462 = vmatpush1.bf16.msra.mxu0 0
        %5463 = vmatprep.subr.bf16.mxu0 0
        %5464 = vmatpush1.bf16.msra.mxu0 0
        %5465 = vmatprep.subr.bf16.mxu0 0
        %5466 = vmatpush1.bf16.msra.mxu0 0
        %5467 = vmatprep.subr.bf16.mxu0 0
        %5468 = vmatpush1.bf16.msra.mxu0 0
        %5469 = vmatprep.subr.bf16.mxu0 0
        %5470 = vmatpush1.bf16.msra.mxu0 0
        %5471 = vmatprep.subr.bf16.mxu0 0
        %5472 = vmatpush1.bf16.msra.mxu0 0
        %5473 = vmatprep.subr.bf16.mxu0 0
        %5474 = vmatpush1.bf16.msra.mxu0 0
        %5475 = vmatprep.subr.bf16.mxu0 0
        %5476 = vmatpush1.bf16.msra.mxu0 0
        %5477 = vmatprep.subr.bf16.mxu0 0
        %5478 = vmatpush1.bf16.msra.mxu0 0
        %5479 = vmatprep.mubr.bf16.mxu0 0
        %5480 = vmatmul.mubr.bf16.gmra.mrb[0].mxu0 %v5442
        %v5481 = vpop.f32.mrb[0].mxu0
        %v5482 = vadd.f32 0.0, %v5481
        %v5483 = vpop.f32.mrb[0].mxu0
        %v5484 = vpop.f32.mrb[0].mxu0
        %v5485 = vpop.f32.mrb[0].mxu0
        %5486 = vdwg.mxu0
        %5488 = vrot.lane.b32.xlu0 %v5482, 24
        %v5489 = vpop.permute.xlu0 %5488
        %5491 = vst.msk [vmem:[#allocation2] sm:$0xff] %vm1924, %v5489
        %v5492 = vld [vmem:[#allocation2] sm:$0xff]
        %v5493 = vpack.c.bf16 %v5492, %v5492
        %s5494 = scalar_lea.vmem [#allocation23], 16
        %v5495 = vld [vmem:[%s5494] sm:$0xf]
        %v5496 = vld [vmem:[%s5494 + $0x4] sm:$0xf]
        %v5497 = vld [vmem:[%s5494 + $0x8] sm:$0xf]
        %v5498 = vld [vmem:[%s5494 + $0xc] sm:$0xf]
        %v5503 = vunpack.c.l.b16 %v5495
        %v5504 = vunpack.c.l.b16 %v5496
        %v5505 = vunpack.c.l.b16 %v5497
        %v5506 = vunpack.c.l.b16 %v5498
        %v5507 = vpack.c.b16 %v5504, %v5503
        %v5508 = vpack.c.b16 %v5506, %v5505
        %v5512 = vsel %vm1366, %v5493, 0
        %5514 = vmatprep.subr.bf16.mxu0 0
        %5515 = vmatpush1.bf16.msra.mxu0 %v5507
        %5516 = vmatprep.subr.bf16.mxu0 0
        %5517 = vmatpush1.bf16.msra.mxu0 %v5508
        %5518 = vmatprep.subr.bf16.mxu0 0
        %5519 = vmatpush1.bf16.msra.mxu0 0
        %5520 = vmatprep.subr.bf16.mxu0 0
        %5521 = vmatpush1.bf16.msra.mxu0 0
        %5522 = vmatprep.subr.bf16.mxu0 0
        %5523 = vmatpush1.bf16.msra.mxu0 0
        %5524 = vmatprep.subr.bf16.mxu0 0
        %5525 = vmatpush1.bf16.msra.mxu0 0
        %5526 = vmatprep.subr.bf16.mxu0 0
        %5527 = vmatpush1.bf16.msra.mxu0 0
        %5528 = vmatprep.subr.bf16.mxu0 0
        %5529 = vmatpush1.bf16.msra.mxu0 0
        %5530 = vmatprep.subr.bf16.mxu0 0
        %5531 = vmatpush1.bf16.msra.mxu0 0
        %5532 = vmatprep.subr.bf16.mxu0 0
        %5533 = vmatpush1.bf16.msra.mxu0 0
        %5534 = vmatprep.subr.bf16.mxu0 0
        %5535 = vmatpush1.bf16.msra.mxu0 0
        %5536 = vmatprep.subr.bf16.mxu0 0
        %5537 = vmatpush1.bf16.msra.mxu0 0
        %5538 = vmatprep.subr.bf16.mxu0 0
        %5539 = vmatpush1.bf16.msra.mxu0 0
        %5540 = vmatprep.subr.bf16.mxu0 0
        %5541 = vmatpush1.bf16.msra.mxu0 0
        %5542 = vmatprep.subr.bf16.mxu0 0
        %5543 = vmatpush1.bf16.msra.mxu0 0
        %5544 = vmatprep.subr.bf16.mxu0 0
        %5545 = vmatpush1.bf16.msra.mxu0 0
        %5546 = vmatprep.mubr.bf16.mxu0 0
        %5547 = vmatmul.mubr.bf16.gmra.mrb[0].mxu0 %v5512
        %v5548 = vpop.f32.mrb[0].mxu0
        %v5549 = vadd.f32 0.0, %v5548
        %v5550 = vpop.f32.mrb[0].mxu0
        %v5551 = vpop.f32.mrb[0].mxu0
        %v5552 = vpop.f32.mrb[0].mxu0
        %5553 = vdwg.mxu0
        %v5554 = vadd.f32 %v4870, %v5549
        %s5555 = scalar_lea.vmem [#allocation24], 1
        %v5556 = vld [vmem:[%s5555] sm:$0x1]
        %v5558 = vlaneseq
        %v5559 = vshrl.u32 %v5558, 7
        %v5560 = vsub.s32 0, %v5559
        %v5561 = vrot.slane %v5556, %v5560
        %v5563 = vadd.f32 %v5554, %v5561
        %v5564 = vsel %vm1366, %v5563, 0.0
        %5565 = vadd.xlane.f32.xlu0 %v5564
        %v5566 = vpop.xlane.xlu0 %5565
        %v5567 = vmul.f32 %v5566, %v1370
        %v5568 = vsub.f32 %v5563, %v5567
        %v5569 = vmul.f32 %v5568, %v5568
        %v5570 = vsel %vm1366, %v5569, 0.0
        %5571 = vadd.xlane.f32.xlu0 %v5570
        %v5572 = vpop.xlane.xlu0 %5571
        %v5573 = vmul.f32 %v5572, 0.032258064
        %v5574 = vlaneseq
        %v5575 = vshrl.u32 %v5574, 7
        %v5576 = vsub.s32 3, %v5575
        %v5577 = vrot.slane %v3556, %v5576
        %v5578 = vmul.f32 %v5577, %v5568
        %v5579 = vrsqrt.pop %v5573
        %v5580 = vmul.f32 %v5573, %v5579
        %vm5581 = vcmp.eq.f32.partialorder %v5573, inf
        %v5582 = vsel %vm5581, %v5573, %v5580
        %vm5583 = vcmp.eq.f32.partialorder %v5573, 0.0
        %v5584 = vand.u32 %v5573, 2147483648
        %v5585 = vsel %vm5583, %v5584, %v5582
        %v5586 = vadd.f32 %v5585, 1e-06
        %v5587 = vrcp.pop %v5586
        %v5588 = vmul.f32 %v5578, %v5587
        %v5589 = vlaneseq
        %v5590 = vshrl.u32 %v5589, 7
        %v5591 = vsub.s32 3, %v5590
        %v5592 = vrot.slane %v3558, %v5591
        %v5593 = vadd.f32 %v5588, %v5592
        %v5594 = vpack.c.bf16 %v5593, %v5593
        %s5595 = scalar_lea.vmem [#allocation26], 16
        %v5596 = vld [vmem:[%s5595] sm:$0xf]
        %v5597 = vld [vmem:[%s5595 + $0x4] sm:$0xf]
        %v5598 = vld [vmem:[%s5595 + $0x8] sm:$0xf]
        %v5599 = vld [vmem:[%s5595 + $0xc] sm:$0xf]
        %s5600 = scalar_lea.vmem [#allocation27], 1
        %v5601 = vld [vmem:[%s5600] sm:$0x1]
        %v5603 = vlaneseq
        %v5604 = vshrl.u32 %v5603, 7
        %v5605 = vsub.s32 0, %v5604
        %v5606 = vrot.slane %v5601, %v5605
        %v5612 = vunpack.c.l.b16 %v5596
        %v5613 = vunpack.c.l.b16 %v5597
        %v5614 = vunpack.c.l.b16 %v5598
        %v5615 = vunpack.c.l.b16 %v5599
        %v5616 = vpack.c.b16 %v5613, %v5612
        %v5617 = vpack.c.b16 %v5615, %v5614
        %v5621 = vsel %vm1366, %v5594, 0
        %5623 = vmatprep.subr.bf16.mxu0 0
        %5624 = vmatpush1.bf16.msra.mxu0 %v5616
        %5625 = vmatprep.subr.bf16.mxu0 0
        %5626 = vmatpush1.bf16.msra.mxu0 %v5617
        %5627 = vmatprep.subr.bf16.mxu0 0
        %5628 = vmatpush1.bf16.msra.mxu0 0
        %5629 = vmatprep.subr.bf16.mxu0 0
        %5630 = vmatpush1.bf16.msra.mxu0 0
        %5631 = vmatprep.subr.bf16.mxu0 0
        %5632 = vmatpush1.bf16.msra.mxu0 0
        %5633 = vmatprep.subr.bf16.mxu0 0
        %5634 = vmatpush1.bf16.msra.mxu0 0
        %5635 = vmatprep.subr.bf16.mxu0 0
        %5636 = vmatpush1.bf16.msra.mxu0 0
        %5637 = vmatprep.subr.bf16.mxu0 0
        %5638 = vmatpush1.bf16.msra.mxu0 0
        %5639 = vmatprep.subr.bf16.mxu0 0
        %5640 = vmatpush1.bf16.msra.mxu0 0
        %5641 = vmatprep.subr.bf16.mxu0 0
        %5642 = vmatpush1.bf16.msra.mxu0 0
        %5643 = vmatprep.subr.bf16.mxu0 0
        %5644 = vmatpush1.bf16.msra.mxu0 0
        %5645 = vmatprep.subr.bf16.mxu0 0
        %5646 = vmatpush1.bf16.msra.mxu0 0
        %5647 = vmatprep.subr.bf16.mxu0 0
        %5648 = vmatpush1.bf16.msra.mxu0 0
        %5649 = vmatprep.subr.bf16.mxu0 0
        %5650 = vmatpush1.bf16.msra.mxu0 0
        %5651 = vmatprep.subr.bf16.mxu0 0
        %5652 = vmatpush1.bf16.msra.mxu0 0
        %5653 = vmatprep.subr.bf16.mxu0 0
        %5654 = vmatpush1.bf16.msra.mxu0 0
        %5655 = vmatprep.mubr.bf16.mxu0 0
        %5656 = vmatmul.mubr.bf16.gmra.mrb[0].mxu0 %v5621
        %v5657 = vpop.f32.mrb[0].mxu0
        %v5658 = vadd.f32 %v5606, %v5657
        %v5659 = vpop.f32.mrb[0].mxu0
        %v5660 = vpop.f32.mrb[0].mxu0
        %v5661 = vpop.f32.mrb[0].mxu0
        %5662 = vdwg.mxu0
        %v5663 = vmax.f32 %v5658, 0.0
        %v5664 = vpack.c.bf16 %v5663, %v5663
        %s5665 = scalar_lea.vmem %s49, 32
        %v5666 = vld [vmem:[%s5665] sm:$0xf]
        %v5667 = vld [vmem:[%s5665 + $0x4] sm:$0xf]
        %v5668 = vld [vmem:[%s5665 + $0x8] sm:$0xf]
        %v5669 = vld [vmem:[%s5665 + $0xc] sm:$0xf]
        %v5670 = vld [vmem:[%s5665 + $0x10] sm:$0xf]
        %v5671 = vld [vmem:[%s5665 + $0x14] sm:$0xf]
        %v5672 = vld [vmem:[%s5665 + $0x18] sm:$0xf]
        %v5673 = vld [vmem:[%s5665 + $0x1c] sm:$0xf]
        %v5682 = vunpack.c.l.b16 %v5666
        %v5683 = vunpack.c.l.b16 %v5667
        %v5684 = vunpack.c.l.b16 %v5668
        %v5685 = vunpack.c.l.b16 %v5669
        %v5686 = vunpack.c.l.b16 %v5670
        %v5687 = vunpack.c.l.b16 %v5671
        %v5688 = vunpack.c.l.b16 %v5672
        %v5689 = vunpack.c.l.b16 %v5673
        %v5690 = vpack.c.b16 %v5683, %v5682
        %v5691 = vpack.c.b16 %v5685, %v5684
        %v5692 = vpack.c.b16 %v5687, %v5686
        %v5693 = vpack.c.b16 %v5689, %v5688
        %v5699 = vsel %vm3502, %v5664, 0
        %5701 = vmatprep.subr.bf16.mxu0 0
        %5702 = vmatpush1.bf16.msra.mxu0 %v5690
        %5703 = vmatprep.subr.bf16.mxu0 0
        %5704 = vmatpush1.bf16.msra.mxu0 %v5691
        %5705 = vmatprep.subr.bf16.mxu0 0
        %5706 = vmatpush1.bf16.msra.mxu0 %v5692
        %5707 = vmatprep.subr.bf16.mxu0 0
        %5708 = vmatpush1.bf16.msra.mxu0 %v5693
        %5709 = vmatprep.subr.bf16.mxu0 0
        %5710 = vmatpush1.bf16.msra.mxu0 0
        %5711 = vmatprep.subr.bf16.mxu0 0
        %5712 = vmatpush1.bf16.msra.mxu0 0
        %5713 = vmatprep.subr.bf16.mxu0 0
        %5714 = vmatpush1.bf16.msra.mxu0 0
        %5715 = vmatprep.subr.bf16.mxu0 0
        %5716 = vmatpush1.bf16.msra.mxu0 0
        %5717 = vmatprep.subr.bf16.mxu0 0
        %5718 = vmatpush1.bf16.msra.mxu0 0
        %5719 = vmatprep.subr.bf16.mxu0 0
        %5720 = vmatpush1.bf16.msra.mxu0 0
        %5721 = vmatprep.subr.bf16.mxu0 0
        %5722 = vmatpush1.bf16.msra.mxu0 0
        %5723 = vmatprep.subr.bf16.mxu0 0
        %5724 = vmatpush1.bf16.msra.mxu0 0
        %5725 = vmatprep.subr.bf16.mxu0 0
        %5726 = vmatpush1.bf16.msra.mxu0 0
        %5727 = vmatprep.subr.bf16.mxu0 0
        %5728 = vmatpush1.bf16.msra.mxu0 0
        %5729 = vmatprep.subr.bf16.mxu0 0
        %5730 = vmatpush1.bf16.msra.mxu0 0
        %5731 = vmatprep.subr.bf16.mxu0 0
        %5732 = vmatpush1.bf16.msra.mxu0 0
        %5733 = vmatprep.mubr.bf16.mxu0 0
        %5734 = vmatmul.mubr.bf16.gmra.mrb[0].mxu0 %v5699
        %v5735 = vpop.f32.mrb[0].mxu0
        %v5736 = vadd.f32 0.0, %v5735
        %v5737 = vpop.f32.mrb[0].mxu0
        %v5738 = vpop.f32.mrb[0].mxu0
        %v5739 = vpop.f32.mrb[0].mxu0
        %5740 = vdwg.mxu0
        %v5741 = vadd.f32 %v5563, %v5736
        %s5742 = scalar_lea.vmem [#allocation29], 1
        %v5743 = vld [vmem:[%s5742] sm:$0x1]
        %v5745 = vlaneseq
        %v5746 = vshrl.u32 %v5745, 7
        %v5747 = vsub.s32 0, %v5746
        %v5748 = vrot.slane %v5743, %v5747
        %v5750 = vadd.f32 %v5741, %v5748
        %5751 = vst.msk [vmem:[%s1324] sm:$0xff] %vm1366, %v5750
        %v5752 = vld [vmem:[%s57] sm:$0x1]
        %v5753 = vld [vmem:[#allocation33] sm:$0x1]
        %v5754 = vsel %vm1366, %v5750, 0.0
        %5755 = vadd.xlane.f32.xlu0 %v5754
        %v5756 = vpop.xlane.xlu0 %5755
        %v5757 = vmul.f32 %v5756, %v1370
        %v5758 = vsub.f32 %v5750, %v5757
        %v5759 = vmul.f32 %v5758, %v5758
        %v5760 = vsel %vm1366, %v5759, 0.0
        %5761 = vadd.xlane.f32.xlu0 %v5760
        %v5762 = vpop.xlane.xlu0 %5761
        %v5763 = vmul.f32 %v5762, 0.032258064
        %v5765 = vlaneseq
        %v5766 = vshrl.u32 %v5765, 7
        %v5767 = vsub.s32 0, %v5766
        %v5768 = vrot.slane %v5752, %v5767
        %v5770 = vmul.f32 %v5768, %v5758
        %v5771 = vrsqrt.pop %v5763
        %v5772 = vmul.f32 %v5763, %v5771
        %vm5773 = vcmp.eq.f32.partialorder %v5763, inf
        %v5774 = vsel %vm5773, %v5763, %v5772
        %vm5775 = vcmp.eq.f32.partialorder %v5763, 0.0
        %v5776 = vand.u32 %v5763, 2147483648
        %v5777 = vsel %vm5775, %v5776, %v5774
        %v5778 = vadd.f32 %v5777, 1e-06
        %v5779 = vrcp.pop %v5778
        %v5780 = vmul.f32 %v5770, %v5779
        %v5782 = vlaneseq
        %v5783 = vshrl.u32 %v5782, 7
        %v5784 = vsub.s32 0, %v5783
        %v5785 = vrot.slane %v5753, %v5784
        %v5787 = vadd.f32 %v5780, %v5785
        %5788 = vst.msk [vmem:[%s1317] sm:$0xff] %vm1366, %v5787
        %s5789 = sand.u32 %s759, 1
        %s5790 = scalar_lea.sflag [#allocation5], %s5789
        %s5791 = sand.u32 %s759, 1
        %s5792 = smul.addr %s5791, 8
        %s5793 = scalar_lea.vmem [#allocation35], %s5792
        %s5794 = sand.u32 %s785, 1
        %s5795 = scalar_lea.sflag [#allocation37], %s5794
        %s5796 = sand.u32 %s785, 1
        %s5797 = smul.addr %s5796, 8
        %s5798 = scalar_lea.vmem [#allocation36], %s5797
        // Predicated region
        $region221: #{mix3_att_decoder.1} parent=139 // pred_check
          %p5799 = pneg %p769
        $region222: #{mix3_att_decoder.1} parent=139 // pred_check_branch
          %5801 = sbr.rel (%p5799) target = $region224
        $region223: #{mix3_att_decoder.1} parent=139 // pred_region
          %s5803 = ssub.s32 128, 128
          %5804 = vsyncadd %s5790, %s5803
          %s5805 = smul.addr %s96, 128
          %s5806 = scalar_lea.hbm %s61, %s5805
          %s5808 = sshll.u32 %s5793, 4
          %s5809 = int_to_ptr.vmem [resolvable:$true] %s5808
          %5811 = dma.vmem_to_hbm [thread:$0]  %s5809, 128, %s5806, %s5790
        $region224: #{mix3_att_decoder.1} parent=139 // pred_fallthru
          _
        // Predicated region
        $region225: #{mix3_att_decoder.1} parent=139 // pred_check
          %p5812 = pneg %p795
        $region226: #{mix3_att_decoder.1} parent=139 // pred_check_branch
          %5814 = sbr.rel (%p5812) target = $region228
        $region227: #{mix3_att_decoder.1} parent=139 // pred_region
          %s5816 = ssub.s32 128, 128
          %5817 = vsyncadd %s5795, %s5816
          %s5818 = smul.addr %s96, 128
          %s5819 = scalar_lea.hbm %s63, %s5818
          %s5821 = sshll.u32 %s5798, 4
          %s5822 = int_to_ptr.vmem [resolvable:$true] %s5821
          %5824 = dma.vmem_to_hbm [thread:$0]  %s5822, 128, %s5819, %s5795
        $region228: #{mix3_att_decoder.1} parent=139 // pred_fallthru
          _
      $region140: #{mix3_att_decoder.1} parent=5 // pred_fallthru
        _
      %p5825 = scmp.le.s32.totalorder 2, %s91
      // Predicated region
      $region229: #{mix3_att_decoder.1} parent=5 // pred_check
        %p5826 = pneg %p5825
      $region230: #{mix3_att_decoder.1} parent=5 // pred_check_branch
        %5828 = sbr.rel (%p5826) target = $region232
      $region231: #{mix3_att_decoder.1} parent=5 // pred_region
        %s5829 = ssub.s32 %s91, 2
        // Predicated region
        $region233: #{mix3_att_decoder.1} parent=231 // pred_check
          %p5830 = pneg %p775
        $region234: #{mix3_att_decoder.1} parent=231 // pred_check_branch
          %5832 = sbr.rel (%p5830) target = $region236
        $region235: #{mix3_att_decoder.1} parent=231 // pred_region
          %s5833 = sand.u32 %s760, 1
          %s5834 = scalar_lea.sflag [#allocation5], %s5833
          %s5835 = sand.u32 %s760, 1
          %s5836 = smul.addr %s5835, 8
          %s5837 = scalar_lea.vmem [#allocation35], %s5836
          %5838 = dma.done %s5834, 128
        $region236: #{mix3_att_decoder.1} parent=231 // pred_fallthru
          _
        // Predicated region
        $region237: #{mix3_att_decoder.1} parent=231 // pred_check
          %p5839 = pneg %p801
        $region238: #{mix3_att_decoder.1} parent=231 // pred_check_branch
          %5841 = sbr.rel (%p5839) target = $region240
        $region239: #{mix3_att_decoder.1} parent=231 // pred_region
          %s5842 = sand.u32 %s786, 1
          %s5843 = scalar_lea.sflag [#allocation37], %s5842
          %s5844 = sand.u32 %s786, 1
          %s5845 = smul.addr %s5844, 8
          %s5846 = scalar_lea.vmem [#allocation36], %s5845
          %5847 = dma.done %s5843, 128
        $region240: #{mix3_att_decoder.1} parent=231 // pred_fallthru
          _
      $region232: #{mix3_att_decoder.1} parent=5 // pred_fallthru
        _
    $region6: #{mix3_att_decoder.1} parent=1 // loop_footer
      %s95 = sadd.s32 1, %s91
    $region7: #{mix3_att_decoder.1} parent=1 // loop_footer_branch
      %90 = sbr.rel target = $region3
    $region8: #{mix3_att_decoder.1} parent=1 // loop_exit
      _
    %5848 = vsyncpa [#allocation4], 1
    %s5849 = scalar_lea.sflag [#allocation4], 1
    %5850 = vsyncpa %s5849, 1
    %5851 = vsyncpa [#allocation7], 1
    %s5852 = scalar_lea.sflag [#allocation7], 1
    %5853 = vsyncpa %s5852, 1
    %5854 = vsyncpa [#allocation10], 1
    %5855 = vsyncpa [#allocation13], 1
    %5856 = vsyncpa [#allocation16], 1
    %5857 = vsyncpa [#allocation19], 1
    %5858 = vsyncpa [#allocation22], 1
    %5859 = vsyncpa [#allocation25], 1
    %5860 = vsyncpa [#allocation28], 1
    %5861 = vsyncpa [#allocation31], 1
    %5862 = vsyncpa [#allocation34], 1
    %5863 = vsyncpa [#allocation5], 1
    %s5864 = scalar_lea.sflag [#allocation5], 1
    %5865 = vsyncpa %s5864, 1
    %5866 = vsyncpa [#allocation37], 1
    %s5867 = scalar_lea.sflag [#allocation37], 1
    %5868 = vsyncpa %s5867, 1

</llo_original>
